<compile_context>
chip_gen: v7x
topology: tpu7x:2x2x1
jax: 0.10.0
libtpu: 0.0.40
codegen_flags: <defaults>
</compile_context>

<pallas_src>
import functools

import jax
import jax.numpy as jnp
import numpy as np
from jax.experimental import pallas as pl
from jax.experimental.pallas import tpu as pltpu


# ----------------------------- fused Pallas kernel -----------------------------

def _ode_block_kernel(x_ref, w1_ref, w2_ref, g1_ref, b1_ref, g2_ref, b2_ref,
                      gmat_ref, mask_ref, o_ref, kcat_ref,
                      *, N, H, W, C, KP, n_steps, step_size, eps):
    """Whole Euler integration, VMEM-resident, batch stacked into the matmul M dim.

    x_ref   : (M, C)  f32   initial state, row = n*H*W + h*W + w
    w1/w2   : (KP, C) bf16  K-stacked conv weights; rows [9*C, KP) are zero padding
    g*/b*   : (1, C)  f32   GroupNorm affine
    gmat    : (C, C)  f32   group-membership matrix pre-scaled by 1/(cg*H*W)
    mask    : (M, 9)  f32   per-tap halo validity masks (1 inside image, 0 outside)
    o_ref   : (M, C)  f32   state after integration
    kcat    : (M, KP) bf16  VMEM scratch holding the im2col (K-stacked) operand
    """
    HW = H * W
    M = N * HW

    gmat = gmat_ref[...]
    gamma1 = g1_ref[...].reshape(1, 1, C)
    beta1 = b1_ref[...].reshape(1, 1, C)
    gamma2 = g2_ref[...].reshape(1, 1, C)
    beta2 = b2_ref[...].reshape(1, 1, C)

    # Zero the padded K columns once so they contribute exactly 0 to every dot.
    if KP > 9 * C:
        kcat_ref[:, 9 * C:] = jnp.zeros((M, KP - 9 * C), jnp.bfloat16)

    def conv3x3(src, w_ref):
        # src: (M, C) f32.  Build the (M, 9*C) im2col operand in VMEM via 9 sublane
        # rotations (XLU slot, nearly free) + halo masks, then ONE MXU dot (K = 9*C).
        # Rolling the flat (sample, h, w) row axis is safe: every row pulled across an
        # image/sample boundary is exactly one masked (out-of-image) row.
        for t in range(9):
            ki, kj = t // 3, t % 3
            off = (ki - 1) * W + (kj - 1)          # flat row offset of this tap
            win = src if off == 0 else jnp.roll(src, -off, axis=0)
            m = mask_ref[:, t:t + 1]               # (M, 1) 0/1 halo mask
            kcat_ref[:, t * C:(t + 1) * C] = (win * m).astype(jnp.bfloat16)
        return jnp.dot(kcat_ref[...], w_ref[...],
                       preferred_element_type=jnp.float32)        # (M, C) f32

    def gn_relu(y, gamma, beta):
        # Per-sample GroupNorm stats in f32; group reduce via one tiny matmul
        # (inv_count = 1/(cg*H*W) is folded into gmat).
        y3 = y.reshape(N, HW, C)
        s = jnp.sum(y3, axis=1)                    # (N, C) per-sample channel sums
        ss = jnp.sum(y3 * y3, axis=1)              # (N, C)
        st = jnp.concatenate([s, ss], axis=0)      # (2N, C)
        g = jnp.dot(st, gmat, preferred_element_type=jnp.float32)  # (2N, C)
        mean = g[0:N, :]                                           # E[x]
        var = jnp.maximum(g[N:2 * N, :] - mean * mean, 0.0)        # E[x^2]-E[x]^2 >= 0
        inv = jax.lax.rsqrt(var + eps)             # (N, C)
        yn = (y3 - mean[:, None, :]) * inv[:, None, :]
        return jnp.maximum(yn * gamma + beta, 0.0).reshape(M, C)

    def odefunc(z):
        a = gn_relu(conv3x3(z, w1_ref), gamma1, beta1)
        return gn_relu(conv3x3(a, w2_ref), gamma2, beta2)

    z = x_ref[...]                                 # (M, C) f32, stays in vregs/VMEM
    if n_steps <= 4:                               # small static unroll
        for _ in range(n_steps):
            z = z + step_size * odefunc(z)
    else:                                          # bound code size for tiny step_size
        z = jax.lax.fori_loop(0, n_steps,
                              lambda i, zz: zz + step_size * odefunc(zz), z)
    o_ref[...] = z


# ------------------------------- wrapper ----------------------------------

def ode_block_forward(params, x_nchw, t=(0.0, 1.0), step_size=0.5,
                      num_groups=32, eps=1e-5):
    """ODEBlock.forward: Euler-integrate the conv-GN-ReLU odefunc from t[0] to t[1]."""
    N, C, H, W = x_nchw.shape
    n_steps = int(round((float(t[1]) - float(t[0])) / float(step_size)))
    cg = C // num_groups
    HW = H * W
    M = N * HW
    K = 9 * C
    KP = ((K + 127) // 128) * 128                  # pad contraction dim to lane multiple

    # NCHW -> (M, C) with row = n*H*W + h*W + w (sample-major, spatial row-major).
    x = jnp.transpose(x_nchw, (0, 2, 3, 1)).astype(jnp.float32).reshape(M, C)

    # K-stacked bf16 conv weights (HWIO -> (9*C, C)), zero-padded to KP rows.
    # TODO(synk): if this block is called repeatedly, pre-cast/pad the weights once
    #             outside (or use cross-call prefetch) instead of per call.
    def stack_w(w_hwio):
        wk = w_hwio.reshape(K, C).astype(jnp.bfloat16)
        return jnp.concatenate([wk, jnp.zeros((KP - K, C), jnp.bfloat16)], axis=0)

    w1 = stack_w(params["conv1_w"])
    w2 = stack_w(params["conv2_w"])

    # Group-membership matrix with 1/(cg*H*W) folded in (numpy -> compile-time const).
    gidx = np.arange(C) // cg
    gmat = jnp.asarray((gidx[:, None] == gidx[None, :]).astype(np.float32)
                       / float(cg * HW))

    # Per-tap halo validity masks, shape (M, 9) (numpy -> compile-time const).
    r = np.arange(M)
    hw_ = r % HW
    hh = hw_ // W
    ww = hw_ % W
    cols = []
    for ki in range(3):
        for kj in range(3):
            di, dj = ki - 1, kj - 1
            cols.append((hh + di >= 0) & (hh + di < H) & (ww + dj >= 0) & (ww + dj < W))
    masks = jnp.asarray(np.stack(cols, axis=1).astype(np.float32))     # (M, 9)

    kernel = functools.partial(
        _ode_block_kernel, N=N, H=H, W=W, C=C, KP=KP, n_steps=n_steps,
        step_size=float(step_size), eps=float(eps))

    vmem = pl.BlockSpec(memory_space=pltpu.MemorySpace.VMEM)
    out = pl.pallas_call(
        kernel,
        out_shape=jax.ShapeDtypeStruct((M, C), jnp.float32),
        in_specs=[vmem] * 9,
        out_specs=vmem,
        scratch_shapes=[pltpu.VMEM((M, KP), jnp.bfloat16)],   # K-stacked conv operand
    )(x, w1, w2, params["gn1_g"], params["gn1_b"], params["gn2_g"],
      params["gn2_b"], gmat, masks)

    return jnp.transpose(out.reshape(N, H, W, C), (0, 3, 1, 2))        # back to NCHW


# --------------------------- params & reference -----------------------------

def init_params(key, C=64):
    k1, k2 = jax.random.split(key)
    fan_in = 9 * C
    return {
        # HWIO layout (a PyTorch OIHW weight would be transposed (2,3,1,0) to this).
        "conv1_w": jax.random.normal(k1, (3, 3, C, C), jnp.float32) / jnp.sqrt(float(fan_in)),
        "conv2_w": jax.random.normal(k2, (3, 3, C, C), jnp.float32) / jnp.sqrt(float(fan_in)),
        "gn1_g": jnp.ones((1, C), jnp.float32), "gn1_b": jnp.zeros((1, C), jnp.float32),
        "gn2_g": jnp.ones((1, C), jnp.float32), "gn2_b": jnp.zeros((1, C), jnp.float32),
    }


def _ref_forward(params, x_nchw, t=(0.0, 1.0), step_size=0.5, num_groups=32, eps=1e-5):
    """Pure-JAX f32 reference of the same ODEBlock forward (for a sanity check)."""
    n_steps = int(round((float(t[1]) - float(t[0])) / float(step_size)))
    z = jnp.transpose(x_nchw, (0, 2, 3, 1)).astype(jnp.float32)
    C = z.shape[-1]

    def conv(x, w):
        return jax.lax.conv_general_dilated(
            x, w, window_strides=(1, 1), padding=((1, 1), (1, 1)),
            dimension_numbers=("NHWC", "HWIO", "NHWC"))

    def gn_relu(x, gamma, beta):
        N, H, W, _ = x.shape
        xg = x.reshape(N, H, W, num_groups, C // num_groups)
        mean = jnp.mean(xg, axis=(1, 2, 4), keepdims=True)
        var = jnp.mean((xg - mean) ** 2, axis=(1, 2, 4), keepdims=True)
        xh = ((xg - mean) * jax.lax.rsqrt(var + eps)).reshape(N, H, W, C)
        return jnp.maximum(xh * gamma.reshape(1, 1, 1, C) + beta.reshape(1, 1, 1, C), 0.0)

    def f(zz):
        a = gn_relu(conv(zz, params["conv1_w"]), params["gn1_g"], params["gn1_b"])
        return gn_relu(conv(a, params["conv2_w"]), params["gn2_g"], params["gn2_b"])

    for _ in range(n_steps):
        z = z + step_size * f(z)
    return jnp.transpose(z, (0, 3, 1, 2))


# --------------------------------- main -------------------------------------

if __name__ == "__main__":
    key = jax.random.PRNGKey(0)
    pkey, xkey = jax.random.split(key)
    C = 64                                  # GroupNorm(32, 64) as in the MNIST network
    params = init_params(pkey, C)

    # Small feature-map state entering the ODE block: NCHW (2, 64, 8, 8).
    x = jax.random.normal(xkey, (2, C, 8, 8), jnp.float32)

    fwd = jax.jit(lambda p, xx: ode_block_forward(p, xx, t=(0.0, 1.0), step_size=0.5))
    out = jax.block_until_ready(fwd(params, x))

    assert out.shape == (2, C, 8, 8) and out.dtype == jnp.float32
    assert bool(jnp.all(jnp.isfinite(out)))

    # Loose numeric check vs. the pure-JAX f32 reference (kernel matmuls use bf16 operands).
    ref = jax.block_until_ready(
        jax.jit(lambda p, xx: _ref_forward(p, xx, step_size=0.5))(params, x))
    max_err = float(jnp.max(jnp.abs(out - ref)))
    assert max_err < 0.25, f"max abs error vs reference: {max_err}"

    print("KERNEL_OK")
</pallas_src>

<mosaic_0001>
module attributes {stable_mosaic.version = 11 : i64} {
  func.func @_ode_block_kernel(%arg0: memref<128x64xf32, #tpu.memory_space<vmem>>, %arg1: memref<640x64xbf16, #tpu.memory_space<vmem>>, %arg2: memref<640x64xbf16, #tpu.memory_space<vmem>>, %arg3: memref<1x64xf32, #tpu.memory_space<vmem>>, %arg4: memref<1x64xf32, #tpu.memory_space<vmem>>, %arg5: memref<1x64xf32, #tpu.memory_space<vmem>>, %arg6: memref<1x64xf32, #tpu.memory_space<vmem>>, %arg7: memref<64x64xf32, #tpu.memory_space<vmem>>, %arg8: memref<128x9xf32, #tpu.memory_space<vmem>>, %arg9: memref<128x64xf32, #tpu.memory_space<vmem>>, %arg10: memref<128x640xbf16, #tpu.memory_space<vmem>>) attributes {dimension_semantics = [], scalar_prefetch = 0 : i64, scratch_operands = 1 : i64, tpu.core_type = #tpu.core_type<tc>} {
    %c0 = arith.constant 0 : index
    %c0_0 = arith.constant 0 : index
    %0 = vector.load %arg7[%c0, %c0_0] : memref<64x64xf32, #tpu.memory_space<vmem>>, vector<64x64xf32>
    %c0_1 = arith.constant 0 : index
    %c0_2 = arith.constant 0 : index
    %1 = vector.load %arg3[%c0_1, %c0_2] : memref<1x64xf32, #tpu.memory_space<vmem>>, vector<1x64xf32>
    %2 = vector.shape_cast %1 : vector<1x64xf32> to vector<1x1x64xf32>
    %c0_3 = arith.constant 0 : index
    %c0_4 = arith.constant 0 : index
    %3 = vector.load %arg4[%c0_3, %c0_4] : memref<1x64xf32, #tpu.memory_space<vmem>>, vector<1x64xf32>
    %4 = vector.shape_cast %3 : vector<1x64xf32> to vector<1x1x64xf32>
    %c0_5 = arith.constant 0 : index
    %c0_6 = arith.constant 0 : index
    %5 = vector.load %arg5[%c0_5, %c0_6] : memref<1x64xf32, #tpu.memory_space<vmem>>, vector<1x64xf32>
    %6 = vector.shape_cast %5 : vector<1x64xf32> to vector<1x1x64xf32>
    %c0_7 = arith.constant 0 : index
    %c0_8 = arith.constant 0 : index
    %7 = vector.load %arg6[%c0_7, %c0_8] : memref<1x64xf32, #tpu.memory_space<vmem>>, vector<1x64xf32>
    %8 = vector.shape_cast %7 : vector<1x64xf32> to vector<1x1x64xf32>
    %cst = arith.constant 0.000000e+00 : bf16
    %9 = vector.broadcast %cst : bf16 to vector<128x64xbf16>
    %c0_9 = arith.constant 0 : index
    %c576 = arith.constant 576 : index
    %10 = vector.load %arg10[%c0_9, %c576] : memref<128x640xbf16, #tpu.memory_space<vmem>>, vector<128x64xbf16>
    tpu.vector_store %arg10[%c0_9, %c576], %9 {strides = array<i32>} : memref<128x640xbf16, #tpu.memory_space<vmem>>, vector<128x64xbf16>,
    %c0_10 = arith.constant 0 : index
    %c0_11 = arith.constant 0 : index
    %11 = vector.load %arg0[%c0_10, %c0_11] : memref<128x64xf32, #tpu.memory_space<vmem>>, vector<128x64xf32>
    %12 = vector.extract_strided_slice %11 {offsets = [119, 0], sizes = [9, 64], strides = [1, 1]} : vector<128x64xf32> to vector<9x64xf32>
    %13 = vector.extract_strided_slice %11 {offsets = [0, 0], sizes = [119, 64], strides = [1, 1]} : vector<128x64xf32> to vector<119x64xf32>
    %14 = tpu.concatenate %12, %13 in 0 : vector<9x64xf32>, vector<119x64xf32> -> vector<128x64xf32>
    %c0_12 = arith.constant 0 : index
    %c0_13 = arith.constant 0 : index
    %15 = vector.load %arg8[%c0_12, %c0_13] : memref<128x9xf32, #tpu.memory_space<vmem>>, vector<128x1xf32>
    %16 = vector.broadcast %15 : vector<128x1xf32> to vector<128x64xf32>
    %17 = arith.mulf %14, %16 : vector<128x64xf32>
    %18 = arith.truncf %17 : vector<128x64xf32> to vector<128x64xbf16>
    %c0_14 = arith.constant 0 : index
    %c0_15 = arith.constant 0 : index
    %19 = vector.load %arg10[%c0_14, %c0_15] : memref<128x640xbf16, #tpu.memory_space<vmem>>, vector<128x64xbf16>
    tpu.vector_store %arg10[%c0_14, %c0_15], %18 {strides = array<i32>} : memref<128x640xbf16, #tpu.memory_space<vmem>>, vector<128x64xbf16>,
    %20 = vector.extract_strided_slice %11 {offsets = [120, 0], sizes = [8, 64], strides = [1, 1]} : vector<128x64xf32> to vector<8x64xf32>
    %21 = vector.extract_strided_slice %11 {offsets = [0, 0], sizes = [120, 64], strides = [1, 1]} : vector<128x64xf32> to vector<120x64xf32>
    %22 = tpu.concatenate %20, %21 in 0 : vector<8x64xf32>, vector<120x64xf32> -> vector<128x64xf32>
    %c0_16 = arith.constant 0 : index
    %c1 = arith.constant 1 : index
    %23 = vector.load %arg8[%c0_16, %c1] : memref<128x9xf32, #tpu.memory_space<vmem>>, vector<128x1xf32>
    %24 = vector.broadcast %23 : vector<128x1xf32> to vector<128x64xf32>
    %25 = arith.mulf %22, %24 : vector<128x64xf32>
    %26 = arith.truncf %25 : vector<128x64xf32> to vector<128x64xbf16>
    %c0_17 = arith.constant 0 : index
    %c64 = arith.constant 64 : index
    %27 = vector.load %arg10[%c0_17, %c64] : memref<128x640xbf16, #tpu.memory_space<vmem>>, vector<128x64xbf16>
    tpu.vector_store %arg10[%c0_17, %c64], %26 {strides = array<i32>} : memref<128x640xbf16, #tpu.memory_space<vmem>>, vector<128x64xbf16>,
    %28 = vector.extract_strided_slice %11 {offsets = [121, 0], sizes = [7, 64], strides = [1, 1]} : vector<128x64xf32> to vector<7x64xf32>
    %29 = vector.extract_strided_slice %11 {offsets = [0, 0], sizes = [121, 64], strides = [1, 1]} : vector<128x64xf32> to vector<121x64xf32>
    %30 = tpu.concatenate %28, %29 in 0 : vector<7x64xf32>, vector<121x64xf32> -> vector<128x64xf32>
    %c0_18 = arith.constant 0 : index
    %c2 = arith.constant 2 : index
    %31 = vector.load %arg8[%c0_18, %c2] : memref<128x9xf32, #tpu.memory_space<vmem>>, vector<128x1xf32>
    %32 = vector.broadcast %31 : vector<128x1xf32> to vector<128x64xf32>
    %33 = arith.mulf %30, %32 : vector<128x64xf32>
    %34 = arith.truncf %33 : vector<128x64xf32> to vector<128x64xbf16>
    %c0_19 = arith.constant 0 : index
    %c128 = arith.constant 128 : index
    %35 = vector.load %arg10[%c0_19, %c128] : memref<128x640xbf16, #tpu.memory_space<vmem>>, vector<128x64xbf16>
    tpu.vector_store %arg10[%c0_19, %c128], %34 {strides = array<i32>} : memref<128x640xbf16, #tpu.memory_space<vmem>>, vector<128x64xbf16>,
    %36 = vector.extract_strided_slice %11 {offsets = [127, 0], sizes = [1, 64], strides = [1, 1]} : vector<128x64xf32> to vector<1x64xf32>
    %37 = vector.extract_strided_slice %11 {offsets = [0, 0], sizes = [127, 64], strides = [1, 1]} : vector<128x64xf32> to vector<127x64xf32>
    %38 = tpu.concatenate %36, %37 in 0 : vector<1x64xf32>, vector<127x64xf32> -> vector<128x64xf32>
    %c0_20 = arith.constant 0 : index
    %c3 = arith.constant 3 : index
    %39 = vector.load %arg8[%c0_20, %c3] : memref<128x9xf32, #tpu.memory_space<vmem>>, vector<128x1xf32>
    %40 = vector.broadcast %39 : vector<128x1xf32> to vector<128x64xf32>
    %41 = arith.mulf %38, %40 : vector<128x64xf32>
    %42 = arith.truncf %41 : vector<128x64xf32> to vector<128x64xbf16>
    %c0_21 = arith.constant 0 : index
    %c192 = arith.constant 192 : index
    %43 = vector.load %arg10[%c0_21, %c192] : memref<128x640xbf16, #tpu.memory_space<vmem>>, vector<128x64xbf16>
    tpu.vector_store %arg10[%c0_21, %c192], %42 {strides = array<i32>} : memref<128x640xbf16, #tpu.memory_space<vmem>>, vector<128x64xbf16>,
    %c0_22 = arith.constant 0 : index
    %c4 = arith.constant 4 : index
    %44 = vector.load %arg8[%c0_22, %c4] : memref<128x9xf32, #tpu.memory_space<vmem>>, vector<128x1xf32>
    %45 = vector.broadcast %44 : vector<128x1xf32> to vector<128x64xf32>
    %46 = arith.mulf %11, %45 : vector<128x64xf32>
    %47 = arith.truncf %46 : vector<128x64xf32> to vector<128x64xbf16>
    %c0_23 = arith.constant 0 : index
    %c256 = arith.constant 256 : index
    %48 = vector.load %arg10[%c0_23, %c256] : memref<128x640xbf16, #tpu.memory_space<vmem>>, vector<128x64xbf16>
    tpu.vector_store %arg10[%c0_23, %c256], %47 {strides = array<i32>} : memref<128x640xbf16, #tpu.memory_space<vmem>>, vector<128x64xbf16>,
    %49 = vector.extract_strided_slice %11 {offsets = [1, 0], sizes = [127, 64], strides = [1, 1]} : vector<128x64xf32> to vector<127x64xf32>
    %50 = vector.extract_strided_slice %11 {offsets = [0, 0], sizes = [1, 64], strides = [1, 1]} : vector<128x64xf32> to vector<1x64xf32>
    %51 = tpu.concatenate %49, %50 in 0 : vector<127x64xf32>, vector<1x64xf32> -> vector<128x64xf32>
    %c0_24 = arith.constant 0 : index
    %c5 = arith.constant 5 : index
    %52 = vector.load %arg8[%c0_24, %c5] : memref<128x9xf32, #tpu.memory_space<vmem>>, vector<128x1xf32>
    %53 = vector.broadcast %52 : vector<128x1xf32> to vector<128x64xf32>
    %54 = arith.mulf %51, %53 : vector<128x64xf32>
    %55 = arith.truncf %54 : vector<128x64xf32> to vector<128x64xbf16>
    %c0_25 = arith.constant 0 : index
    %c320 = arith.constant 320 : index
    %56 = vector.load %arg10[%c0_25, %c320] : memref<128x640xbf16, #tpu.memory_space<vmem>>, vector<128x64xbf16>
    tpu.vector_store %arg10[%c0_25, %c320], %55 {strides = array<i32>} : memref<128x640xbf16, #tpu.memory_space<vmem>>, vector<128x64xbf16>,
    %57 = vector.extract_strided_slice %11 {offsets = [7, 0], sizes = [121, 64], strides = [1, 1]} : vector<128x64xf32> to vector<121x64xf32>
    %58 = vector.extract_strided_slice %11 {offsets = [0, 0], sizes = [7, 64], strides = [1, 1]} : vector<128x64xf32> to vector<7x64xf32>
    %59 = tpu.concatenate %57, %58 in 0 : vector<121x64xf32>, vector<7x64xf32> -> vector<128x64xf32>
    %c0_26 = arith.constant 0 : index
    %c6 = arith.constant 6 : index
    %60 = vector.load %arg8[%c0_26, %c6] : memref<128x9xf32, #tpu.memory_space<vmem>>, vector<128x1xf32>
    %61 = vector.broadcast %60 : vector<128x1xf32> to vector<128x64xf32>
    %62 = arith.mulf %59, %61 : vector<128x64xf32>
    %63 = arith.truncf %62 : vector<128x64xf32> to vector<128x64xbf16>
    %c0_27 = arith.constant 0 : index
    %c384 = arith.constant 384 : index
    %64 = vector.load %arg10[%c0_27, %c384] : memref<128x640xbf16, #tpu.memory_space<vmem>>, vector<128x64xbf16>
    tpu.vector_store %arg10[%c0_27, %c384], %63 {strides = array<i32>} : memref<128x640xbf16, #tpu.memory_space<vmem>>, vector<128x64xbf16>,
    %65 = vector.extract_strided_slice %11 {offsets = [8, 0], sizes = [120, 64], strides = [1, 1]} : vector<128x64xf32> to vector<120x64xf32>
    %66 = vector.extract_strided_slice %11 {offsets = [0, 0], sizes = [8, 64], strides = [1, 1]} : vector<128x64xf32> to vector<8x64xf32>
    %67 = tpu.concatenate %65, %66 in 0 : vector<120x64xf32>, vector<8x64xf32> -> vector<128x64xf32>
    %c0_28 = arith.constant 0 : index
    %c7 = arith.constant 7 : index
    %68 = vector.load %arg8[%c0_28, %c7] : memref<128x9xf32, #tpu.memory_space<vmem>>, vector<128x1xf32>
    %69 = vector.broadcast %68 : vector<128x1xf32> to vector<128x64xf32>
    %70 = arith.mulf %67, %69 : vector<128x64xf32>
    %71 = arith.truncf %70 : vector<128x64xf32> to vector<128x64xbf16>
    %c0_29 = arith.constant 0 : index
    %c448 = arith.constant 448 : index
    %72 = vector.load %arg10[%c0_29, %c448] : memref<128x640xbf16, #tpu.memory_space<vmem>>, vector<128x64xbf16>
    tpu.vector_store %arg10[%c0_29, %c448], %71 {strides = array<i32>} : memref<128x640xbf16, #tpu.memory_space<vmem>>, vector<128x64xbf16>,
    %73 = vector.extract_strided_slice %11 {offsets = [9, 0], sizes = [119, 64], strides = [1, 1]} : vector<128x64xf32> to vector<119x64xf32>
    %74 = vector.extract_strided_slice %11 {offsets = [0, 0], sizes = [9, 64], strides = [1, 1]} : vector<128x64xf32> to vector<9x64xf32>
    %75 = tpu.concatenate %73, %74 in 0 : vector<119x64xf32>, vector<9x64xf32> -> vector<128x64xf32>
    %c0_30 = arith.constant 0 : index
    %c8 = arith.constant 8 : index
    %76 = vector.load %arg8[%c0_30, %c8] : memref<128x9xf32, #tpu.memory_space<vmem>>, vector<128x1xf32>
    %77 = vector.broadcast %76 : vector<128x1xf32> to vector<128x64xf32>
    %78 = arith.mulf %75, %77 : vector<128x64xf32>
    %79 = arith.truncf %78 : vector<128x64xf32> to vector<128x64xbf16>
    %c0_31 = arith.constant 0 : index
    %c512 = arith.constant 512 : index
    %80 = vector.load %arg10[%c0_31, %c512] : memref<128x640xbf16, #tpu.memory_space<vmem>>, vector<128x64xbf16>
    tpu.vector_store %arg10[%c0_31, %c512], %79 {strides = array<i32>} : memref<128x640xbf16, #tpu.memory_space<vmem>>, vector<128x64xbf16>,
    %c0_32 = arith.constant 0 : index
    %c0_33 = arith.constant 0 : index
    %81 = vector.load %arg10[%c0_32, %c0_33] : memref<128x640xbf16, #tpu.memory_space<vmem>>, vector<128x640xbf16>
    %c0_34 = arith.constant 0 : index
    %c0_35 = arith.constant 0 : index
    %82 = vector.load %arg1[%c0_34, %c0_35] : memref<640x64xbf16, #tpu.memory_space<vmem>>, vector<640x64xbf16>
    %cst_36 = arith.constant dense<0.000000e+00> : vector<128x64xf32>
    %83 = tpu.matmul %81, %82, %cst_36 {dimension_numbers = #tpu.dot_dimension_numbers<[1], [0], [0], [1], [0, 0, 1, 1], [], []>} : vector<128x640xbf16>, vector<640x64xbf16>, vector<128x64xf32> -> vector<128x64xf32>
    %84 = vector.shape_cast %83 : vector<128x64xf32> to vector<2x64x64xf32>
    %cst_37 = arith.constant dense<0.000000e+00> : vector<2x64xf32>
    %85 = vector.multi_reduction <add>, %84, %cst_37 [1] : vector<2x64x64xf32> to vector<2x64xf32>
    %86 = arith.mulf %84, %84 : vector<2x64x64xf32>
    %cst_38 = arith.constant dense<0.000000e+00> : vector<2x64xf32>
    %87 = vector.multi_reduction <add>, %86, %cst_38 [1] : vector<2x64x64xf32> to vector<2x64xf32>
    %88 = tpu.concatenate %85, %87 in 0 : vector<2x64xf32>, vector<2x64xf32> -> vector<4x64xf32>
    %cst_39 = arith.constant dense<0.000000e+00> : vector<4x64xf32>
    %89 = tpu.matmul %88, %0, %cst_39 {dimension_numbers = #tpu.dot_dimension_numbers<[1], [0], [0], [1], [0, 0, 1, 1], [], []>} : vector<4x64xf32>, vector<64x64xf32>, vector<4x64xf32> -> vector<4x64xf32>
    %90 = vector.extract_strided_slice %89 {offsets = [0, 0], sizes = [2, 64], strides = [1, 1]} : vector<4x64xf32> to vector<2x64xf32>
    %91 = vector.extract_strided_slice %89 {offsets = [2, 0], sizes = [2, 64], strides = [1, 1]} : vector<4x64xf32> to vector<2x64xf32>
    %92 = arith.mulf %90, %90 : vector<2x64xf32>
    %93 = arith.subf %91, %92 : vector<2x64xf32>
    %cst_40 = arith.constant 0.000000e+00 : f32
    %94 = vector.broadcast %cst_40 : f32 to vector<2x64xf32>
    %95 = arith.maximumf %93, %94 : vector<2x64xf32>
    %cst_41 = arith.constant 9.99999974E-6 : f32
    %96 = vector.broadcast %cst_41 : f32 to vector<2x64xf32>
    %97 = arith.addf %95, %96 : vector<2x64xf32>
    %98 = math.rsqrt %97 : vector<2x64xf32>
    %99 = vector.shape_cast %90 : vector<2x64xf32> to vector<2x1x64xf32>
    %100 = vector.broadcast %99 : vector<2x1x64xf32> to vector<2x64x64xf32>
    %101 = arith.subf %84, %100 : vector<2x64x64xf32>
    %102 = vector.shape_cast %98 : vector<2x64xf32> to vector<2x1x64xf32>
    %103 = vector.broadcast %102 : vector<2x1x64xf32> to vector<2x64x64xf32>
    %104 = arith.mulf %101, %103 : vector<2x64x64xf32>
    %105 = vector.broadcast %2 : vector<1x1x64xf32> to vector<2x64x64xf32>
    %106 = arith.mulf %104, %105 : vector<2x64x64xf32>
    %107 = vector.broadcast %4 : vector<1x1x64xf32> to vector<2x64x64xf32>
    %108 = arith.addf %106, %107 : vector<2x64x64xf32>
    %cst_42 = arith.constant 0.000000e+00 : f32
    %109 = vector.broadcast %cst_42 : f32 to vector<2x64x64xf32>
    %110 = arith.maximumf %108, %109 : vector<2x64x64xf32>
    %111 = vector.shape_cast %110 : vector<2x64x64xf32> to vector<128x64xf32>
    %112 = vector.extract_strided_slice %111 {offsets = [119, 0], sizes = [9, 64], strides = [1, 1]} : vector<128x64xf32> to vector<9x64xf32>
    %113 = vector.extract_strided_slice %111 {offsets = [0, 0], sizes = [119, 64], strides = [1, 1]} : vector<128x64xf32> to vector<119x64xf32>
    %114 = tpu.concatenate %112, %113 in 0 : vector<9x64xf32>, vector<119x64xf32> -> vector<128x64xf32>
    %c0_43 = arith.constant 0 : index
    %c0_44 = arith.constant 0 : index
    %115 = vector.load %arg8[%c0_43, %c0_44] : memref<128x9xf32, #tpu.memory_space<vmem>>, vector<128x1xf32>
    %116 = vector.broadcast %115 : vector<128x1xf32> to vector<128x64xf32>
    %117 = arith.mulf %114, %116 : vector<128x64xf32>
    %118 = arith.truncf %117 : vector<128x64xf32> to vector<128x64xbf16>
    %c0_45 = arith.constant 0 : index
    %c0_46 = arith.constant 0 : index
    %119 = vector.load %arg10[%c0_45, %c0_46] : memref<128x640xbf16, #tpu.memory_space<vmem>>, vector<128x64xbf16>
    tpu.vector_store %arg10[%c0_45, %c0_46], %118 {strides = array<i32>} : memref<128x640xbf16, #tpu.memory_space<vmem>>, vector<128x64xbf16>,
    %120 = vector.extract_strided_slice %111 {offsets = [120, 0], sizes = [8, 64], strides = [1, 1]} : vector<128x64xf32> to vector<8x64xf32>
    %121 = vector.extract_strided_slice %111 {offsets = [0, 0], sizes = [120, 64], strides = [1, 1]} : vector<128x64xf32> to vector<120x64xf32>
    %122 = tpu.concatenate %120, %121 in 0 : vector<8x64xf32>, vector<120x64xf32> -> vector<128x64xf32>
    %c0_47 = arith.constant 0 : index
    %c1_48 = arith.constant 1 : index
    %123 = vector.load %arg8[%c0_47, %c1_48] : memref<128x9xf32, #tpu.memory_space<vmem>>, vector<128x1xf32>
    %124 = vector.broadcast %123 : vector<128x1xf32> to vector<128x64xf32>
    %125 = arith.mulf %122, %124 : vector<128x64xf32>
    %126 = arith.truncf %125 : vector<128x64xf32> to vector<128x64xbf16>
    %c0_49 = arith.constant 0 : index
    %c64_50 = arith.constant 64 : index
    %127 = vector.load %arg10[%c0_49, %c64_50] : memref<128x640xbf16, #tpu.memory_space<vmem>>, vector<128x64xbf16>
    tpu.vector_store %arg10[%c0_49, %c64_50], %126 {strides = array<i32>} : memref<128x640xbf16, #tpu.memory_space<vmem>>, vector<128x64xbf16>,
    %128 = vector.extract_strided_slice %111 {offsets = [121, 0], sizes = [7, 64], strides = [1, 1]} : vector<128x64xf32> to vector<7x64xf32>
    %129 = vector.extract_strided_slice %111 {offsets = [0, 0], sizes = [121, 64], strides = [1, 1]} : vector<128x64xf32> to vector<121x64xf32>
    %130 = tpu.concatenate %128, %129 in 0 : vector<7x64xf32>, vector<121x64xf32> -> vector<128x64xf32>
    %c0_51 = arith.constant 0 : index
    %c2_52 = arith.constant 2 : index
    %131 = vector.load %arg8[%c0_51, %c2_52] : memref<128x9xf32, #tpu.memory_space<vmem>>, vector<128x1xf32>
    %132 = vector.broadcast %131 : vector<128x1xf32> to vector<128x64xf32>
    %133 = arith.mulf %130, %132 : vector<128x64xf32>
    %134 = arith.truncf %133 : vector<128x64xf32> to vector<128x64xbf16>
    %c0_53 = arith.constant 0 : index
    %c128_54 = arith.constant 128 : index
    %135 = vector.load %arg10[%c0_53, %c128_54] : memref<128x640xbf16, #tpu.memory_space<vmem>>, vector<128x64xbf16>
    tpu.vector_store %arg10[%c0_53, %c128_54], %134 {strides = array<i32>} : memref<128x640xbf16, #tpu.memory_space<vmem>>, vector<128x64xbf16>,
    %136 = vector.extract_strided_slice %111 {offsets = [127, 0], sizes = [1, 64], strides = [1, 1]} : vector<128x64xf32> to vector<1x64xf32>
    %137 = vector.extract_strided_slice %111 {offsets = [0, 0], sizes = [127, 64], strides = [1, 1]} : vector<128x64xf32> to vector<127x64xf32>
    %138 = tpu.concatenate %136, %137 in 0 : vector<1x64xf32>, vector<127x64xf32> -> vector<128x64xf32>
    %c0_55 = arith.constant 0 : index
    %c3_56 = arith.constant 3 : index
    %139 = vector.load %arg8[%c0_55, %c3_56] : memref<128x9xf32, #tpu.memory_space<vmem>>, vector<128x1xf32>
    %140 = vector.broadcast %139 : vector<128x1xf32> to vector<128x64xf32>
    %141 = arith.mulf %138, %140 : vector<128x64xf32>
    %142 = arith.truncf %141 : vector<128x64xf32> to vector<128x64xbf16>
    %c0_57 = arith.constant 0 : index
    %c192_58 = arith.constant 192 : index
    %143 = vector.load %arg10[%c0_57, %c192_58] : memref<128x640xbf16, #tpu.memory_space<vmem>>, vector<128x64xbf16>
    tpu.vector_store %arg10[%c0_57, %c192_58], %142 {strides = array<i32>} : memref<128x640xbf16, #tpu.memory_space<vmem>>, vector<128x64xbf16>,
    %c0_59 = arith.constant 0 : index
    %c4_60 = arith.constant 4 : index
    %144 = vector.load %arg8[%c0_59, %c4_60] : memref<128x9xf32, #tpu.memory_space<vmem>>, vector<128x1xf32>
    %145 = vector.broadcast %144 : vector<128x1xf32> to vector<128x64xf32>
    %146 = arith.mulf %111, %145 : vector<128x64xf32>
    %147 = arith.truncf %146 : vector<128x64xf32> to vector<128x64xbf16>
    %c0_61 = arith.constant 0 : index
    %c256_62 = arith.constant 256 : index
    %148 = vector.load %arg10[%c0_61, %c256_62] : memref<128x640xbf16, #tpu.memory_space<vmem>>, vector<128x64xbf16>
    tpu.vector_store %arg10[%c0_61, %c256_62], %147 {strides = array<i32>} : memref<128x640xbf16, #tpu.memory_space<vmem>>, vector<128x64xbf16>,
    %149 = vector.extract_strided_slice %111 {offsets = [1, 0], sizes = [127, 64], strides = [1, 1]} : vector<128x64xf32> to vector<127x64xf32>
    %150 = vector.extract_strided_slice %111 {offsets = [0, 0], sizes = [1, 64], strides = [1, 1]} : vector<128x64xf32> to vector<1x64xf32>
    %151 = tpu.concatenate %149, %150 in 0 : vector<127x64xf32>, vector<1x64xf32> -> vector<128x64xf32>
    %c0_63 = arith.constant 0 : index
    %c5_64 = arith.constant 5 : index
    %152 = vector.load %arg8[%c0_63, %c5_64] : memref<128x9xf32, #tpu.memory_space<vmem>>, vector<128x1xf32>
    %153 = vector.broadcast %152 : vector<128x1xf32> to vector<128x64xf32>
    %154 = arith.mulf %151, %153 : vector<128x64xf32>
    %155 = arith.truncf %154 : vector<128x64xf32> to vector<128x64xbf16>
    %c0_65 = arith.constant 0 : index
    %c320_66 = arith.constant 320 : index
    %156 = vector.load %arg10[%c0_65, %c320_66] : memref<128x640xbf16, #tpu.memory_space<vmem>>, vector<128x64xbf16>
    tpu.vector_store %arg10[%c0_65, %c320_66], %155 {strides = array<i32>} : memref<128x640xbf16, #tpu.memory_space<vmem>>, vector<128x64xbf16>,
    %157 = vector.extract_strided_slice %111 {offsets = [7, 0], sizes = [121, 64], strides = [1, 1]} : vector<128x64xf32> to vector<121x64xf32>
    %158 = vector.extract_strided_slice %111 {offsets = [0, 0], sizes = [7, 64], strides = [1, 1]} : vector<128x64xf32> to vector<7x64xf32>
    %159 = tpu.concatenate %157, %158 in 0 : vector<121x64xf32>, vector<7x64xf32> -> vector<128x64xf32>
    %c0_67 = arith.constant 0 : index
    %c6_68 = arith.constant 6 : index
    %160 = vector.load %arg8[%c0_67, %c6_68] : memref<128x9xf32, #tpu.memory_space<vmem>>, vector<128x1xf32>
    %161 = vector.broadcast %160 : vector<128x1xf32> to vector<128x64xf32>
    %162 = arith.mulf %159, %161 : vector<128x64xf32>
    %163 = arith.truncf %162 : vector<128x64xf32> to vector<128x64xbf16>
    %c0_69 = arith.constant 0 : index
    %c384_70 = arith.constant 384 : index
    %164 = vector.load %arg10[%c0_69, %c384_70] : memref<128x640xbf16, #tpu.memory_space<vmem>>, vector<128x64xbf16>
    tpu.vector_store %arg10[%c0_69, %c384_70], %163 {strides = array<i32>} : memref<128x640xbf16, #tpu.memory_space<vmem>>, vector<128x64xbf16>,
    %165 = vector.extract_strided_slice %111 {offsets = [8, 0], sizes = [120, 64], strides = [1, 1]} : vector<128x64xf32> to vector<120x64xf32>
    %166 = vector.extract_strided_slice %111 {offsets = [0, 0], sizes = [8, 64], strides = [1, 1]} : vector<128x64xf32> to vector<8x64xf32>
    %167 = tpu.concatenate %165, %166 in 0 : vector<120x64xf32>, vector<8x64xf32> -> vector<128x64xf32>
    %c0_71 = arith.constant 0 : index
    %c7_72 = arith.constant 7 : index
    %168 = vector.load %arg8[%c0_71, %c7_72] : memref<128x9xf32, #tpu.memory_space<vmem>>, vector<128x1xf32>
    %169 = vector.broadcast %168 : vector<128x1xf32> to vector<128x64xf32>
    %170 = arith.mulf %167, %169 : vector<128x64xf32>
    %171 = arith.truncf %170 : vector<128x64xf32> to vector<128x64xbf16>
    %c0_73 = arith.constant 0 : index
    %c448_74 = arith.constant 448 : index
    %172 = vector.load %arg10[%c0_73, %c448_74] : memref<128x640xbf16, #tpu.memory_space<vmem>>, vector<128x64xbf16>
    tpu.vector_store %arg10[%c0_73, %c448_74], %171 {strides = array<i32>} : memref<128x640xbf16, #tpu.memory_space<vmem>>, vector<128x64xbf16>,
    %173 = vector.extract_strided_slice %111 {offsets = [9, 0], sizes = [119, 64], strides = [1, 1]} : vector<128x64xf32> to vector<119x64xf32>
    %174 = vector.extract_strided_slice %111 {offsets = [0, 0], sizes = [9, 64], strides = [1, 1]} : vector<128x64xf32> to vector<9x64xf32>
    %175 = tpu.concatenate %173, %174 in 0 : vector<119x64xf32>, vector<9x64xf32> -> vector<128x64xf32>
    %c0_75 = arith.constant 0 : index
    %c8_76 = arith.constant 8 : index
    %176 = vector.load %arg8[%c0_75, %c8_76] : memref<128x9xf32, #tpu.memory_space<vmem>>, vector<128x1xf32>
    %177 = vector.broadcast %176 : vector<128x1xf32> to vector<128x64xf32>
    %178 = arith.mulf %175, %177 : vector<128x64xf32>
    %179 = arith.truncf %178 : vector<128x64xf32> to vector<128x64xbf16>
    %c0_77 = arith.constant 0 : index
    %c512_78 = arith.constant 512 : index
    %180 = vector.load %arg10[%c0_77, %c512_78] : memref<128x640xbf16, #tpu.memory_space<vmem>>, vector<128x64xbf16>
    tpu.vector_store %arg10[%c0_77, %c512_78], %179 {strides = array<i32>} : memref<128x640xbf16, #tpu.memory_space<vmem>>, vector<128x64xbf16>,
    %c0_79 = arith.constant 0 : index
    %c0_80 = arith.constant 0 : index
    %181 = vector.load %arg10[%c0_79, %c0_80] : memref<128x640xbf16, #tpu.memory_space<vmem>>, vector<128x640xbf16>
    %c0_81 = arith.constant 0 : index
    %c0_82 = arith.constant 0 : index
    %182 = vector.load %arg2[%c0_81, %c0_82] : memref<640x64xbf16, #tpu.memory_space<vmem>>, vector<640x64xbf16>
    %cst_83 = arith.constant dense<0.000000e+00> : vector<128x64xf32>
    %183 = tpu.matmul %181, %182, %cst_83 {dimension_numbers = #tpu.dot_dimension_numbers<[1], [0], [0], [1], [0, 0, 1, 1], [], []>} : vector<128x640xbf16>, vector<640x64xbf16>, vector<128x64xf32> -> vector<128x64xf32>
    %184 = vector.shape_cast %183 : vector<128x64xf32> to vector<2x64x64xf32>
    %cst_84 = arith.constant dense<0.000000e+00> : vector<2x64xf32>
    %185 = vector.multi_reduction <add>, %184, %cst_84 [1] : vector<2x64x64xf32> to vector<2x64xf32>
    %186 = arith.mulf %184, %184 : vector<2x64x64xf32>
    %cst_85 = arith.constant dense<0.000000e+00> : vector<2x64xf32>
    %187 = vector.multi_reduction <add>, %186, %cst_85 [1] : vector<2x64x64xf32> to vector<2x64xf32>
    %188 = tpu.concatenate %185, %187 in 0 : vector<2x64xf32>, vector<2x64xf32> -> vector<4x64xf32>
    %cst_86 = arith.constant dense<0.000000e+00> : vector<4x64xf32>
    %189 = tpu.matmul %188, %0, %cst_86 {dimension_numbers = #tpu.dot_dimension_numbers<[1], [0], [0], [1], [0, 0, 1, 1], [], []>} : vector<4x64xf32>, vector<64x64xf32>, vector<4x64xf32> -> vector<4x64xf32>
    %190 = vector.extract_strided_slice %189 {offsets = [0, 0], sizes = [2, 64], strides = [1, 1]} : vector<4x64xf32> to vector<2x64xf32>
    %191 = vector.extract_strided_slice %189 {offsets = [2, 0], sizes = [2, 64], strides = [1, 1]} : vector<4x64xf32> to vector<2x64xf32>
    %192 = arith.mulf %190, %190 : vector<2x64xf32>
    %193 = arith.subf %191, %192 : vector<2x64xf32>
    %cst_87 = arith.constant 0.000000e+00 : f32
    %194 = vector.broadcast %cst_87 : f32 to vector<2x64xf32>
    %195 = arith.maximumf %193, %194 : vector<2x64xf32>
    %cst_88 = arith.constant 9.99999974E-6 : f32
    %196 = vector.broadcast %cst_88 : f32 to vector<2x64xf32>
    %197 = arith.addf %195, %196 : vector<2x64xf32>
    %198 = math.rsqrt %197 : vector<2x64xf32>
    %199 = vector.shape_cast %190 : vector<2x64xf32> to vector<2x1x64xf32>
    %200 = vector.broadcast %199 : vector<2x1x64xf32> to vector<2x64x64xf32>
    %201 = arith.subf %184, %200 : vector<2x64x64xf32>
    %202 = vector.shape_cast %198 : vector<2x64xf32> to vector<2x1x64xf32>
    %203 = vector.broadcast %202 : vector<2x1x64xf32> to vector<2x64x64xf32>
    %204 = arith.mulf %201, %203 : vector<2x64x64xf32>
    %205 = vector.broadcast %6 : vector<1x1x64xf32> to vector<2x64x64xf32>
    %206 = arith.mulf %204, %205 : vector<2x64x64xf32>
    %207 = vector.broadcast %8 : vector<1x1x64xf32> to vector<2x64x64xf32>
    %208 = arith.addf %206, %207 : vector<2x64x64xf32>
    %cst_89 = arith.constant 0.000000e+00 : f32
    %209 = vector.broadcast %cst_89 : f32 to vector<2x64x64xf32>
    %210 = arith.maximumf %208, %209 : vector<2x64x64xf32>
    %211 = vector.shape_cast %210 : vector<2x64x64xf32> to vector<128x64xf32>
    %cst_90 = arith.constant 5.000000e-01 : f32
    %212 = vector.broadcast %cst_90 : f32 to vector<128x64xf32>
    %213 = arith.mulf %212, %211 : vector<128x64xf32>
    %214 = arith.addf %11, %213 : vector<128x64xf32>
    %215 = vector.extract_strided_slice %214 {offsets = [119, 0], sizes = [9, 64], strides = [1, 1]} : vector<128x64xf32> to vector<9x64xf32>
    %216 = vector.extract_strided_slice %214 {offsets = [0, 0], sizes = [119, 64], strides = [1, 1]} : vector<128x64xf32> to vector<119x64xf32>
    %217 = tpu.concatenate %215, %216 in 0 : vector<9x64xf32>, vector<119x64xf32> -> vector<128x64xf32>
    %c0_91 = arith.constant 0 : index
    %c0_92 = arith.constant 0 : index
    %218 = vector.load %arg8[%c0_91, %c0_92] : memref<128x9xf32, #tpu.memory_space<vmem>>, vector<128x1xf32>
    %219 = vector.broadcast %218 : vector<128x1xf32> to vector<128x64xf32>
    %220 = arith.mulf %217, %219 : vector<128x64xf32>
    %221 = arith.truncf %220 : vector<128x64xf32> to vector<128x64xbf16>
    %c0_93 = arith.constant 0 : index
    %c0_94 = arith.constant 0 : index
    %222 = vector.load %arg10[%c0_93, %c0_94] : memref<128x640xbf16, #tpu.memory_space<vmem>>, vector<128x64xbf16>
    tpu.vector_store %arg10[%c0_93, %c0_94], %221 {strides = array<i32>} : memref<128x640xbf16, #tpu.memory_space<vmem>>, vector<128x64xbf16>,
    %223 = vector.extract_strided_slice %214 {offsets = [120, 0], sizes = [8, 64], strides = [1, 1]} : vector<128x64xf32> to vector<8x64xf32>
    %224 = vector.extract_strided_slice %214 {offsets = [0, 0], sizes = [120, 64], strides = [1, 1]} : vector<128x64xf32> to vector<120x64xf32>
    %225 = tpu.concatenate %223, %224 in 0 : vector<8x64xf32>, vector<120x64xf32> -> vector<128x64xf32>
    %c0_95 = arith.constant 0 : index
    %c1_96 = arith.constant 1 : index
    %226 = vector.load %arg8[%c0_95, %c1_96] : memref<128x9xf32, #tpu.memory_space<vmem>>, vector<128x1xf32>
    %227 = vector.broadcast %226 : vector<128x1xf32> to vector<128x64xf32>
    %228 = arith.mulf %225, %227 : vector<128x64xf32>
    %229 = arith.truncf %228 : vector<128x64xf32> to vector<128x64xbf16>
    %c0_97 = arith.constant 0 : index
    %c64_98 = arith.constant 64 : index
    %230 = vector.load %arg10[%c0_97, %c64_98] : memref<128x640xbf16, #tpu.memory_space<vmem>>, vector<128x64xbf16>
    tpu.vector_store %arg10[%c0_97, %c64_98], %229 {strides = array<i32>} : memref<128x640xbf16, #tpu.memory_space<vmem>>, vector<128x64xbf16>,
    %231 = vector.extract_strided_slice %214 {offsets = [121, 0], sizes = [7, 64], strides = [1, 1]} : vector<128x64xf32> to vector<7x64xf32>
    %232 = vector.extract_strided_slice %214 {offsets = [0, 0], sizes = [121, 64], strides = [1, 1]} : vector<128x64xf32> to vector<121x64xf32>
    %233 = tpu.concatenate %231, %232 in 0 : vector<7x64xf32>, vector<121x64xf32> -> vector<128x64xf32>
    %c0_99 = arith.constant 0 : index
    %c2_100 = arith.constant 2 : index
    %234 = vector.load %arg8[%c0_99, %c2_100] : memref<128x9xf32, #tpu.memory_space<vmem>>, vector<128x1xf32>
    %235 = vector.broadcast %234 : vector<128x1xf32> to vector<128x64xf32>
    %236 = arith.mulf %233, %235 : vector<128x64xf32>
    %237 = arith.truncf %236 : vector<128x64xf32> to vector<128x64xbf16>
    %c0_101 = arith.constant 0 : index
    %c128_102 = arith.constant 128 : index
    %238 = vector.load %arg10[%c0_101, %c128_102] : memref<128x640xbf16, #tpu.memory_space<vmem>>, vector<128x64xbf16>
    tpu.vector_store %arg10[%c0_101, %c128_102], %237 {strides = array<i32>} : memref<128x640xbf16, #tpu.memory_space<vmem>>, vector<128x64xbf16>,
    %239 = vector.extract_strided_slice %214 {offsets = [127, 0], sizes = [1, 64], strides = [1, 1]} : vector<128x64xf32> to vector<1x64xf32>
    %240 = vector.extract_strided_slice %214 {offsets = [0, 0], sizes = [127, 64], strides = [1, 1]} : vector<128x64xf32> to vector<127x64xf32>
    %241 = tpu.concatenate %239, %240 in 0 : vector<1x64xf32>, vector<127x64xf32> -> vector<128x64xf32>
    %c0_103 = arith.constant 0 : index
    %c3_104 = arith.constant 3 : index
    %242 = vector.load %arg8[%c0_103, %c3_104] : memref<128x9xf32, #tpu.memory_space<vmem>>, vector<128x1xf32>
    %243 = vector.broadcast %242 : vector<128x1xf32> to vector<128x64xf32>
    %244 = arith.mulf %241, %243 : vector<128x64xf32>
    %245 = arith.truncf %244 : vector<128x64xf32> to vector<128x64xbf16>
    %c0_105 = arith.constant 0 : index
    %c192_106 = arith.constant 192 : index
    %246 = vector.load %arg10[%c0_105, %c192_106] : memref<128x640xbf16, #tpu.memory_space<vmem>>, vector<128x64xbf16>
    tpu.vector_store %arg10[%c0_105, %c192_106], %245 {strides = array<i32>} : memref<128x640xbf16, #tpu.memory_space<vmem>>, vector<128x64xbf16>,
    %c0_107 = arith.constant 0 : index
    %c4_108 = arith.constant 4 : index
    %247 = vector.load %arg8[%c0_107, %c4_108] : memref<128x9xf32, #tpu.memory_space<vmem>>, vector<128x1xf32>
    %248 = vector.broadcast %247 : vector<128x1xf32> to vector<128x64xf32>
    %249 = arith.mulf %214, %248 : vector<128x64xf32>
    %250 = arith.truncf %249 : vector<128x64xf32> to vector<128x64xbf16>
    %c0_109 = arith.constant 0 : index
    %c256_110 = arith.constant 256 : index
    %251 = vector.load %arg10[%c0_109, %c256_110] : memref<128x640xbf16, #tpu.memory_space<vmem>>, vector<128x64xbf16>
    tpu.vector_store %arg10[%c0_109, %c256_110], %250 {strides = array<i32>} : memref<128x640xbf16, #tpu.memory_space<vmem>>, vector<128x64xbf16>,
    %252 = vector.extract_strided_slice %214 {offsets = [1, 0], sizes = [127, 64], strides = [1, 1]} : vector<128x64xf32> to vector<127x64xf32>
    %253 = vector.extract_strided_slice %214 {offsets = [0, 0], sizes = [1, 64], strides = [1, 1]} : vector<128x64xf32> to vector<1x64xf32>
    %254 = tpu.concatenate %252, %253 in 0 : vector<127x64xf32>, vector<1x64xf32> -> vector<128x64xf32>
    %c0_111 = arith.constant 0 : index
    %c5_112 = arith.constant 5 : index
    %255 = vector.load %arg8[%c0_111, %c5_112] : memref<128x9xf32, #tpu.memory_space<vmem>>, vector<128x1xf32>
    %256 = vector.broadcast %255 : vector<128x1xf32> to vector<128x64xf32>
    %257 = arith.mulf %254, %256 : vector<128x64xf32>
    %258 = arith.truncf %257 : vector<128x64xf32> to vector<128x64xbf16>
    %c0_113 = arith.constant 0 : index
    %c320_114 = arith.constant 320 : index
    %259 = vector.load %arg10[%c0_113, %c320_114] : memref<128x640xbf16, #tpu.memory_space<vmem>>, vector<128x64xbf16>
    tpu.vector_store %arg10[%c0_113, %c320_114], %258 {strides = array<i32>} : memref<128x640xbf16, #tpu.memory_space<vmem>>, vector<128x64xbf16>,
    %260 = vector.extract_strided_slice %214 {offsets = [7, 0], sizes = [121, 64], strides = [1, 1]} : vector<128x64xf32> to vector<121x64xf32>
    %261 = vector.extract_strided_slice %214 {offsets = [0, 0], sizes = [7, 64], strides = [1, 1]} : vector<128x64xf32> to vector<7x64xf32>
    %262 = tpu.concatenate %260, %261 in 0 : vector<121x64xf32>, vector<7x64xf32> -> vector<128x64xf32>
    %c0_115 = arith.constant 0 : index
    %c6_116 = arith.constant 6 : index
    %263 = vector.load %arg8[%c0_115, %c6_116] : memref<128x9xf32, #tpu.memory_space<vmem>>, vector<128x1xf32>
    %264 = vector.broadcast %263 : vector<128x1xf32> to vector<128x64xf32>
    %265 = arith.mulf %262, %264 : vector<128x64xf32>
    %266 = arith.truncf %265 : vector<128x64xf32> to vector<128x64xbf16>
    %c0_117 = arith.constant 0 : index
    %c384_118 = arith.constant 384 : index
    %267 = vector.load %arg10[%c0_117, %c384_118] : memref<128x640xbf16, #tpu.memory_space<vmem>>, vector<128x64xbf16>
    tpu.vector_store %arg10[%c0_117, %c384_118], %266 {strides = array<i32>} : memref<128x640xbf16, #tpu.memory_space<vmem>>, vector<128x64xbf16>,
    %268 = vector.extract_strided_slice %214 {offsets = [8, 0], sizes = [120, 64], strides = [1, 1]} : vector<128x64xf32> to vector<120x64xf32>
    %269 = vector.extract_strided_slice %214 {offsets = [0, 0], sizes = [8, 64], strides = [1, 1]} : vector<128x64xf32> to vector<8x64xf32>
    %270 = tpu.concatenate %268, %269 in 0 : vector<120x64xf32>, vector<8x64xf32> -> vector<128x64xf32>
    %c0_119 = arith.constant 0 : index
    %c7_120 = arith.constant 7 : index
    %271 = vector.load %arg8[%c0_119, %c7_120] : memref<128x9xf32, #tpu.memory_space<vmem>>, vector<128x1xf32>
    %272 = vector.broadcast %271 : vector<128x1xf32> to vector<128x64xf32>
    %273 = arith.mulf %270, %272 : vector<128x64xf32>
    %274 = arith.truncf %273 : vector<128x64xf32> to vector<128x64xbf16>
    %c0_121 = arith.constant 0 : index
    %c448_122 = arith.constant 448 : index
    %275 = vector.load %arg10[%c0_121, %c448_122] : memref<128x640xbf16, #tpu.memory_space<vmem>>, vector<128x64xbf16>
    tpu.vector_store %arg10[%c0_121, %c448_122], %274 {strides = array<i32>} : memref<128x640xbf16, #tpu.memory_space<vmem>>, vector<128x64xbf16>,
    %276 = vector.extract_strided_slice %214 {offsets = [9, 0], sizes = [119, 64], strides = [1, 1]} : vector<128x64xf32> to vector<119x64xf32>
    %277 = vector.extract_strided_slice %214 {offsets = [0, 0], sizes = [9, 64], strides = [1, 1]} : vector<128x64xf32> to vector<9x64xf32>
    %278 = tpu.concatenate %276, %277 in 0 : vector<119x64xf32>, vector<9x64xf32> -> vector<128x64xf32>
    %c0_123 = arith.constant 0 : index
    %c8_124 = arith.constant 8 : index
    %279 = vector.load %arg8[%c0_123, %c8_124] : memref<128x9xf32, #tpu.memory_space<vmem>>, vector<128x1xf32>
    %280 = vector.broadcast %279 : vector<128x1xf32> to vector<128x64xf32>
    %281 = arith.mulf %278, %280 : vector<128x64xf32>
    %282 = arith.truncf %281 : vector<128x64xf32> to vector<128x64xbf16>
    %c0_125 = arith.constant 0 : index
    %c512_126 = arith.constant 512 : index
    %283 = vector.load %arg10[%c0_125, %c512_126] : memref<128x640xbf16, #tpu.memory_space<vmem>>, vector<128x64xbf16>
    tpu.vector_store %arg10[%c0_125, %c512_126], %282 {strides = array<i32>} : memref<128x640xbf16, #tpu.memory_space<vmem>>, vector<128x64xbf16>,
    %c0_127 = arith.constant 0 : index
    %c0_128 = arith.constant 0 : index
    %284 = vector.load %arg10[%c0_127, %c0_128] : memref<128x640xbf16, #tpu.memory_space<vmem>>, vector<128x640xbf16>
    %c0_129 = arith.constant 0 : index
    %c0_130 = arith.constant 0 : index
    %285 = vector.load %arg1[%c0_129, %c0_130] : memref<640x64xbf16, #tpu.memory_space<vmem>>, vector<640x64xbf16>
    %cst_131 = arith.constant dense<0.000000e+00> : vector<128x64xf32>
    %286 = tpu.matmul %284, %285, %cst_131 {dimension_numbers = #tpu.dot_dimension_numbers<[1], [0], [0], [1], [0, 0, 1, 1], [], []>} : vector<128x640xbf16>, vector<640x64xbf16>, vector<128x64xf32> -> vector<128x64xf32>
    %287 = vector.shape_cast %286 : vector<128x64xf32> to vector<2x64x64xf32>
    %cst_132 = arith.constant dense<0.000000e+00> : vector<2x64xf32>
    %288 = vector.multi_reduction <add>, %287, %cst_132 [1] : vector<2x64x64xf32> to vector<2x64xf32>
    %289 = arith.mulf %287, %287 : vector<2x64x64xf32>
    %cst_133 = arith.constant dense<0.000000e+00> : vector<2x64xf32>
    %290 = vector.multi_reduction <add>, %289, %cst_133 [1] : vector<2x64x64xf32> to vector<2x64xf32>
    %291 = tpu.concatenate %288, %290 in 0 : vector<2x64xf32>, vector<2x64xf32> -> vector<4x64xf32>
    %cst_134 = arith.constant dense<0.000000e+00> : vector<4x64xf32>
    %292 = tpu.matmul %291, %0, %cst_134 {dimension_numbers = #tpu.dot_dimension_numbers<[1], [0], [0], [1], [0, 0, 1, 1], [], []>} : vector<4x64xf32>, vector<64x64xf32>, vector<4x64xf32> -> vector<4x64xf32>
    %293 = vector.extract_strided_slice %292 {offsets = [0, 0], sizes = [2, 64], strides = [1, 1]} : vector<4x64xf32> to vector<2x64xf32>
    %294 = vector.extract_strided_slice %292 {offsets = [2, 0], sizes = [2, 64], strides = [1, 1]} : vector<4x64xf32> to vector<2x64xf32>
    %295 = arith.mulf %293, %293 : vector<2x64xf32>
    %296 = arith.subf %294, %295 : vector<2x64xf32>
    %cst_135 = arith.constant 0.000000e+00 : f32
    %297 = vector.broadcast %cst_135 : f32 to vector<2x64xf32>
    %298 = arith.maximumf %296, %297 : vector<2x64xf32>
    %cst_136 = arith.constant 9.99999974E-6 : f32
    %299 = vector.broadcast %cst_136 : f32 to vector<2x64xf32>
    %300 = arith.addf %298, %299 : vector<2x64xf32>
    %301 = math.rsqrt %300 : vector<2x64xf32>
    %302 = vector.shape_cast %293 : vector<2x64xf32> to vector<2x1x64xf32>
    %303 = vector.broadcast %302 : vector<2x1x64xf32> to vector<2x64x64xf32>
    %304 = arith.subf %287, %303 : vector<2x64x64xf32>
    %305 = vector.shape_cast %301 : vector<2x64xf32> to vector<2x1x64xf32>
    %306 = vector.broadcast %305 : vector<2x1x64xf32> to vector<2x64x64xf32>
    %307 = arith.mulf %304, %306 : vector<2x64x64xf32>
    %308 = vector.broadcast %2 : vector<1x1x64xf32> to vector<2x64x64xf32>
    %309 = arith.mulf %307, %308 : vector<2x64x64xf32>
    %310 = vector.broadcast %4 : vector<1x1x64xf32> to vector<2x64x64xf32>
    %311 = arith.addf %309, %310 : vector<2x64x64xf32>
    %cst_137 = arith.constant 0.000000e+00 : f32
    %312 = vector.broadcast %cst_137 : f32 to vector<2x64x64xf32>
    %313 = arith.maximumf %311, %312 : vector<2x64x64xf32>
    %314 = vector.shape_cast %313 : vector<2x64x64xf32> to vector<128x64xf32>
    %315 = vector.extract_strided_slice %314 {offsets = [119, 0], sizes = [9, 64], strides = [1, 1]} : vector<128x64xf32> to vector<9x64xf32>
    %316 = vector.extract_strided_slice %314 {offsets = [0, 0], sizes = [119, 64], strides = [1, 1]} : vector<128x64xf32> to vector<119x64xf32>
    %317 = tpu.concatenate %315, %316 in 0 : vector<9x64xf32>, vector<119x64xf32> -> vector<128x64xf32>
    %c0_138 = arith.constant 0 : index
    %c0_139 = arith.constant 0 : index
    %318 = vector.load %arg8[%c0_138, %c0_139] : memref<128x9xf32, #tpu.memory_space<vmem>>, vector<128x1xf32>
    %319 = vector.broadcast %318 : vector<128x1xf32> to vector<128x64xf32>
    %320 = arith.mulf %317, %319 : vector<128x64xf32>
    %321 = arith.truncf %320 : vector<128x64xf32> to vector<128x64xbf16>
    %c0_140 = arith.constant 0 : index
    %c0_141 = arith.constant 0 : index
    %322 = vector.load %arg10[%c0_140, %c0_141] : memref<128x640xbf16, #tpu.memory_space<vmem>>, vector<128x64xbf16>
    tpu.vector_store %arg10[%c0_140, %c0_141], %321 {strides = array<i32>} : memref<128x640xbf16, #tpu.memory_space<vmem>>, vector<128x64xbf16>,
    %323 = vector.extract_strided_slice %314 {offsets = [120, 0], sizes = [8, 64], strides = [1, 1]} : vector<128x64xf32> to vector<8x64xf32>
    %324 = vector.extract_strided_slice %314 {offsets = [0, 0], sizes = [120, 64], strides = [1, 1]} : vector<128x64xf32> to vector<120x64xf32>
    %325 = tpu.concatenate %323, %324 in 0 : vector<8x64xf32>, vector<120x64xf32> -> vector<128x64xf32>
    %c0_142 = arith.constant 0 : index
    %c1_143 = arith.constant 1 : index
    %326 = vector.load %arg8[%c0_142, %c1_143] : memref<128x9xf32, #tpu.memory_space<vmem>>, vector<128x1xf32>
    %327 = vector.broadcast %326 : vector<128x1xf32> to vector<128x64xf32>
    %328 = arith.mulf %325, %327 : vector<128x64xf32>
    %329 = arith.truncf %328 : vector<128x64xf32> to vector<128x64xbf16>
    %c0_144 = arith.constant 0 : index
    %c64_145 = arith.constant 64 : index
    %330 = vector.load %arg10[%c0_144, %c64_145] : memref<128x640xbf16, #tpu.memory_space<vmem>>, vector<128x64xbf16>
    tpu.vector_store %arg10[%c0_144, %c64_145], %329 {strides = array<i32>} : memref<128x640xbf16, #tpu.memory_space<vmem>>, vector<128x64xbf16>,
    %331 = vector.extract_strided_slice %314 {offsets = [121, 0], sizes = [7, 64], strides = [1, 1]} : vector<128x64xf32> to vector<7x64xf32>
    %332 = vector.extract_strided_slice %314 {offsets = [0, 0], sizes = [121, 64], strides = [1, 1]} : vector<128x64xf32> to vector<121x64xf32>
    %333 = tpu.concatenate %331, %332 in 0 : vector<7x64xf32>, vector<121x64xf32> -> vector<128x64xf32>
    %c0_146 = arith.constant 0 : index
    %c2_147 = arith.constant 2 : index
    %334 = vector.load %arg8[%c0_146, %c2_147] : memref<128x9xf32, #tpu.memory_space<vmem>>, vector<128x1xf32>
    %335 = vector.broadcast %334 : vector<128x1xf32> to vector<128x64xf32>
    %336 = arith.mulf %333, %335 : vector<128x64xf32>
    %337 = arith.truncf %336 : vector<128x64xf32> to vector<128x64xbf16>
    %c0_148 = arith.constant 0 : index
    %c128_149 = arith.constant 128 : index
    %338 = vector.load %arg10[%c0_148, %c128_149] : memref<128x640xbf16, #tpu.memory_space<vmem>>, vector<128x64xbf16>
    tpu.vector_store %arg10[%c0_148, %c128_149], %337 {strides = array<i32>} : memref<128x640xbf16, #tpu.memory_space<vmem>>, vector<128x64xbf16>,
    %339 = vector.extract_strided_slice %314 {offsets = [127, 0], sizes = [1, 64], strides = [1, 1]} : vector<128x64xf32> to vector<1x64xf32>
    %340 = vector.extract_strided_slice %314 {offsets = [0, 0], sizes = [127, 64], strides = [1, 1]} : vector<128x64xf32> to vector<127x64xf32>
    %341 = tpu.concatenate %339, %340 in 0 : vector<1x64xf32>, vector<127x64xf32> -> vector<128x64xf32>
    %c0_150 = arith.constant 0 : index
    %c3_151 = arith.constant 3 : index
    %342 = vector.load %arg8[%c0_150, %c3_151] : memref<128x9xf32, #tpu.memory_space<vmem>>, vector<128x1xf32>
    %343 = vector.broadcast %342 : vector<128x1xf32> to vector<128x64xf32>
    %344 = arith.mulf %341, %343 : vector<128x64xf32>
    %345 = arith.truncf %344 : vector<128x64xf32> to vector<128x64xbf16>
    %c0_152 = arith.constant 0 : index
    %c192_153 = arith.constant 192 : index
    %346 = vector.load %arg10[%c0_152, %c192_153] : memref<128x640xbf16, #tpu.memory_space<vmem>>, vector<128x64xbf16>
    tpu.vector_store %arg10[%c0_152, %c192_153], %345 {strides = array<i32>} : memref<128x640xbf16, #tpu.memory_space<vmem>>, vector<128x64xbf16>,
    %c0_154 = arith.constant 0 : index
    %c4_155 = arith.constant 4 : index
    %347 = vector.load %arg8[%c0_154, %c4_155] : memref<128x9xf32, #tpu.memory_space<vmem>>, vector<128x1xf32>
    %348 = vector.broadcast %347 : vector<128x1xf32> to vector<128x64xf32>
    %349 = arith.mulf %314, %348 : vector<128x64xf32>
    %350 = arith.truncf %349 : vector<128x64xf32> to vector<128x64xbf16>
    %c0_156 = arith.constant 0 : index
    %c256_157 = arith.constant 256 : index
    %351 = vector.load %arg10[%c0_156, %c256_157] : memref<128x640xbf16, #tpu.memory_space<vmem>>, vector<128x64xbf16>
    tpu.vector_store %arg10[%c0_156, %c256_157], %350 {strides = array<i32>} : memref<128x640xbf16, #tpu.memory_space<vmem>>, vector<128x64xbf16>,
    %352 = vector.extract_strided_slice %314 {offsets = [1, 0], sizes = [127, 64], strides = [1, 1]} : vector<128x64xf32> to vector<127x64xf32>
    %353 = vector.extract_strided_slice %314 {offsets = [0, 0], sizes = [1, 64], strides = [1, 1]} : vector<128x64xf32> to vector<1x64xf32>
    %354 = tpu.concatenate %352, %353 in 0 : vector<127x64xf32>, vector<1x64xf32> -> vector<128x64xf32>
    %c0_158 = arith.constant 0 : index
    %c5_159 = arith.constant 5 : index
    %355 = vector.load %arg8[%c0_158, %c5_159] : memref<128x9xf32, #tpu.memory_space<vmem>>, vector<128x1xf32>
    %356 = vector.broadcast %355 : vector<128x1xf32> to vector<128x64xf32>
    %357 = arith.mulf %354, %356 : vector<128x64xf32>
    %358 = arith.truncf %357 : vector<128x64xf32> to vector<128x64xbf16>
    %c0_160 = arith.constant 0 : index
    %c320_161 = arith.constant 320 : index
    %359 = vector.load %arg10[%c0_160, %c320_161] : memref<128x640xbf16, #tpu.memory_space<vmem>>, vector<128x64xbf16>
    tpu.vector_store %arg10[%c0_160, %c320_161], %358 {strides = array<i32>} : memref<128x640xbf16, #tpu.memory_space<vmem>>, vector<128x64xbf16>,
    %360 = vector.extract_strided_slice %314 {offsets = [7, 0], sizes = [121, 64], strides = [1, 1]} : vector<128x64xf32> to vector<121x64xf32>
    %361 = vector.extract_strided_slice %314 {offsets = [0, 0], sizes = [7, 64], strides = [1, 1]} : vector<128x64xf32> to vector<7x64xf32>
    %362 = tpu.concatenate %360, %361 in 0 : vector<121x64xf32>, vector<7x64xf32> -> vector<128x64xf32>
    %c0_162 = arith.constant 0 : index
    %c6_163 = arith.constant 6 : index
    %363 = vector.load %arg8[%c0_162, %c6_163] : memref<128x9xf32, #tpu.memory_space<vmem>>, vector<128x1xf32>
    %364 = vector.broadcast %363 : vector<128x1xf32> to vector<128x64xf32>
    %365 = arith.mulf %362, %364 : vector<128x64xf32>
    %366 = arith.truncf %365 : vector<128x64xf32> to vector<128x64xbf16>
    %c0_164 = arith.constant 0 : index
    %c384_165 = arith.constant 384 : index
    %367 = vector.load %arg10[%c0_164, %c384_165] : memref<128x640xbf16, #tpu.memory_space<vmem>>, vector<128x64xbf16>
    tpu.vector_store %arg10[%c0_164, %c384_165], %366 {strides = array<i32>} : memref<128x640xbf16, #tpu.memory_space<vmem>>, vector<128x64xbf16>,
    %368 = vector.extract_strided_slice %314 {offsets = [8, 0], sizes = [120, 64], strides = [1, 1]} : vector<128x64xf32> to vector<120x64xf32>
    %369 = vector.extract_strided_slice %314 {offsets = [0, 0], sizes = [8, 64], strides = [1, 1]} : vector<128x64xf32> to vector<8x64xf32>
    %370 = tpu.concatenate %368, %369 in 0 : vector<120x64xf32>, vector<8x64xf32> -> vector<128x64xf32>
    %c0_166 = arith.constant 0 : index
    %c7_167 = arith.constant 7 : index
    %371 = vector.load %arg8[%c0_166, %c7_167] : memref<128x9xf32, #tpu.memory_space<vmem>>, vector<128x1xf32>
    %372 = vector.broadcast %371 : vector<128x1xf32> to vector<128x64xf32>
    %373 = arith.mulf %370, %372 : vector<128x64xf32>
    %374 = arith.truncf %373 : vector<128x64xf32> to vector<128x64xbf16>
    %c0_168 = arith.constant 0 : index
    %c448_169 = arith.constant 448 : index
    %375 = vector.load %arg10[%c0_168, %c448_169] : memref<128x640xbf16, #tpu.memory_space<vmem>>, vector<128x64xbf16>
    tpu.vector_store %arg10[%c0_168, %c448_169], %374 {strides = array<i32>} : memref<128x640xbf16, #tpu.memory_space<vmem>>, vector<128x64xbf16>,
    %376 = vector.extract_strided_slice %314 {offsets = [9, 0], sizes = [119, 64], strides = [1, 1]} : vector<128x64xf32> to vector<119x64xf32>
    %377 = vector.extract_strided_slice %314 {offsets = [0, 0], sizes = [9, 64], strides = [1, 1]} : vector<128x64xf32> to vector<9x64xf32>
    %378 = tpu.concatenate %376, %377 in 0 : vector<119x64xf32>, vector<9x64xf32> -> vector<128x64xf32>
    %c0_170 = arith.constant 0 : index
    %c8_171 = arith.constant 8 : index
    %379 = vector.load %arg8[%c0_170, %c8_171] : memref<128x9xf32, #tpu.memory_space<vmem>>, vector<128x1xf32>
    %380 = vector.broadcast %379 : vector<128x1xf32> to vector<128x64xf32>
    %381 = arith.mulf %378, %380 : vector<128x64xf32>
    %382 = arith.truncf %381 : vector<128x64xf32> to vector<128x64xbf16>
    %c0_172 = arith.constant 0 : index
    %c512_173 = arith.constant 512 : index
    %383 = vector.load %arg10[%c0_172, %c512_173] : memref<128x640xbf16, #tpu.memory_space<vmem>>, vector<128x64xbf16>
    tpu.vector_store %arg10[%c0_172, %c512_173], %382 {strides = array<i32>} : memref<128x640xbf16, #tpu.memory_space<vmem>>, vector<128x64xbf16>,
    %c0_174 = arith.constant 0 : index
    %c0_175 = arith.constant 0 : index
    %384 = vector.load %arg10[%c0_174, %c0_175] : memref<128x640xbf16, #tpu.memory_space<vmem>>, vector<128x640xbf16>
    %c0_176 = arith.constant 0 : index
    %c0_177 = arith.constant 0 : index
    %385 = vector.load %arg2[%c0_176, %c0_177] : memref<640x64xbf16, #tpu.memory_space<vmem>>, vector<640x64xbf16>
    %cst_178 = arith.constant dense<0.000000e+00> : vector<128x64xf32>
    %386 = tpu.matmul %384, %385, %cst_178 {dimension_numbers = #tpu.dot_dimension_numbers<[1], [0], [0], [1], [0, 0, 1, 1], [], []>} : vector<128x640xbf16>, vector<640x64xbf16>, vector<128x64xf32> -> vector<128x64xf32>
    %387 = vector.shape_cast %386 : vector<128x64xf32> to vector<2x64x64xf32>
    %cst_179 = arith.constant dense<0.000000e+00> : vector<2x64xf32>
    %388 = vector.multi_reduction <add>, %387, %cst_179 [1] : vector<2x64x64xf32> to vector<2x64xf32>
    %389 = arith.mulf %387, %387 : vector<2x64x64xf32>
    %cst_180 = arith.constant dense<0.000000e+00> : vector<2x64xf32>
    %390 = vector.multi_reduction <add>, %389, %cst_180 [1] : vector<2x64x64xf32> to vector<2x64xf32>
    %391 = tpu.concatenate %388, %390 in 0 : vector<2x64xf32>, vector<2x64xf32> -> vector<4x64xf32>
    %cst_181 = arith.constant dense<0.000000e+00> : vector<4x64xf32>
    %392 = tpu.matmul %391, %0, %cst_181 {dimension_numbers = #tpu.dot_dimension_numbers<[1], [0], [0], [1], [0, 0, 1, 1], [], []>} : vector<4x64xf32>, vector<64x64xf32>, vector<4x64xf32> -> vector<4x64xf32>
    %393 = vector.extract_strided_slice %392 {offsets = [0, 0], sizes = [2, 64], strides = [1, 1]} : vector<4x64xf32> to vector<2x64xf32>
    %394 = vector.extract_strided_slice %392 {offsets = [2, 0], sizes = [2, 64], strides = [1, 1]} : vector<4x64xf32> to vector<2x64xf32>
    %395 = arith.mulf %393, %393 : vector<2x64xf32>
    %396 = arith.subf %394, %395 : vector<2x64xf32>
    %cst_182 = arith.constant 0.000000e+00 : f32
    %397 = vector.broadcast %cst_182 : f32 to vector<2x64xf32>
    %398 = arith.maximumf %396, %397 : vector<2x64xf32>
    %cst_183 = arith.constant 9.99999974E-6 : f32
    %399 = vector.broadcast %cst_183 : f32 to vector<2x64xf32>
    %400 = arith.addf %398, %399 : vector<2x64xf32>
    %401 = math.rsqrt %400 : vector<2x64xf32>
    %402 = vector.shape_cast %393 : vector<2x64xf32> to vector<2x1x64xf32>
    %403 = vector.broadcast %402 : vector<2x1x64xf32> to vector<2x64x64xf32>
    %404 = arith.subf %387, %403 : vector<2x64x64xf32>
    %405 = vector.shape_cast %401 : vector<2x64xf32> to vector<2x1x64xf32>
    %406 = vector.broadcast %405 : vector<2x1x64xf32> to vector<2x64x64xf32>
    %407 = arith.mulf %404, %406 : vector<2x64x64xf32>
    %408 = vector.broadcast %6 : vector<1x1x64xf32> to vector<2x64x64xf32>
    %409 = arith.mulf %407, %408 : vector<2x64x64xf32>
    %410 = vector.broadcast %8 : vector<1x1x64xf32> to vector<2x64x64xf32>
    %411 = arith.addf %409, %410 : vector<2x64x64xf32>
    %cst_184 = arith.constant 0.000000e+00 : f32
    %412 = vector.broadcast %cst_184 : f32 to vector<2x64x64xf32>
    %413 = arith.maximumf %411, %412 : vector<2x64x64xf32>
    %414 = vector.shape_cast %413 : vector<2x64x64xf32> to vector<128x64xf32>
    %cst_185 = arith.constant 5.000000e-01 : f32
    %415 = vector.broadcast %cst_185 : f32 to vector<128x64xf32>
    %416 = arith.mulf %415, %414 : vector<128x64xf32>
    %417 = arith.addf %214, %416 : vector<128x64xf32>
    %c0_186 = arith.constant 0 : index
    %c0_187 = arith.constant 0 : index
    %418 = vector.load %arg9[%c0_186, %c0_187] : memref<128x64xf32, #tpu.memory_space<vmem>>, vector<128x64xf32>
    tpu.vector_store %arg9[%c0_186, %c0_187], %417 {strides = array<i32>} : memref<128x64xf32, #tpu.memory_space<vmem>>, vector<128x64xf32>,
    return
  }
}

</mosaic_0001>

<llo_original>
// kernel: _lambda_.1
$region0: #{_lambda_.1}
  #allocation0 [shape = 'u32[]', space=smem, size = 0x4, offset = 0x4, fixed_abs, tag = 'smem constant byte address 0x4 - core index']
  #allocation1 [shape = 'u32[144,128]{1,0:T(1,128)}', space=vmem, size = 0x12000, scoped, tag = 'internal scratch']
  #allocation2 [shape = 'bf16[128,640]{1,0:T(16,128)(2,1)}', space=vmem, size = 0x28000, scoped, tag = 'scratch operand']
  %s0 = inlined_call_operand.vmem [shape: f32[128,64], index: 0, kind: input, shape index: {}]
  %s1 = inlined_call_operand.vmem [shape: bf16[640,64], index: 1, kind: input, shape index: {}]
  %s2 = inlined_call_operand.vmem [shape: bf16[640,64], index: 2, kind: input, shape index: {}]
  %s3 = inlined_call_operand.vmem [shape: f32[1,64], index: 3, kind: input, shape index: {}]
  %s4 = inlined_call_operand.vmem [shape: f32[1,64], index: 4, kind: input, shape index: {}]
  %s5 = inlined_call_operand.vmem [shape: f32[1,64], index: 5, kind: input, shape index: {}]
  %s6 = inlined_call_operand.vmem [shape: f32[1,64], index: 6, kind: input, shape index: {}]
  %s7 = inlined_call_operand.vmem [shape: f32[64,64], index: 7, kind: input, shape index: {}]
  %s8 = inlined_call_operand.vmem [shape: f32[128,9], index: 8, kind: input, shape index: {}]
  %s9 = inlined_call_operand.hbm [shape: f32[128,64], index: 9, kind: output, shape index: {}]
  %s10 = sld [smem:[#allocation0]]
  $region46: #{_lambda_.1} parent=0
    _
  %s12 = ssub.s32 1, %s10
  %s13 = scalar_select 0, %s12, %s10
  $region1: #{_lambda_.1} parent=0
    #allocation3 [shape = 'u8[65536]{0}', space=vmem, size = 0x10000, scoped, tag = 'output window, operand 0, single buffered']
    #allocation4 [shape = 's32[1]{0}', space=sflag, size = 0x4, scoped, tag = 'scoped memory for _lambda_.1']
    %14 = vsyncpa [#allocation4], 0
    // Predicated region
    $region2: #{_lambda_.1} parent=1 // pred_check
      _
    $region3: #{_lambda_.1} parent=1 // pred_check_branch
      %16 = sbr.rel (0) target = $region5
    $region4: #{_lambda_.1} parent=1 // pred_region
      _
    $region5: #{_lambda_.1} parent=1 // pred_fallthru
      _
    // Predicated region
    $region6: #{_lambda_.1} parent=1 // pred_check
      _
    $region7: #{_lambda_.1} parent=1 // pred_check_branch
      %18 = sbr.rel (0) target = $region9
    $region8: #{_lambda_.1} parent=1 // pred_region
      _
    $region9: #{_lambda_.1} parent=1 // pred_fallthru
      _
    // Predicated region
    $region10: #{_lambda_.1} parent=1 // pred_check
      _
    $region11: #{_lambda_.1} parent=1 // pred_check_branch
      %20 = sbr.rel (0) target = $region13
    $region12: #{_lambda_.1} parent=1 // pred_region
      _
    $region13: #{_lambda_.1} parent=1 // pred_fallthru
      _
    // Predicated region
    $region14: #{_lambda_.1} parent=1 // pred_check
      _
    $region15: #{_lambda_.1} parent=1 // pred_check_branch
      %22 = sbr.rel (0) target = $region17
    $region16: #{_lambda_.1} parent=1 // pred_region
      _
    $region17: #{_lambda_.1} parent=1 // pred_fallthru
      _
    // Predicated region
    $region18: #{_lambda_.1} parent=1 // pred_check
      _
    $region19: #{_lambda_.1} parent=1 // pred_check_branch
      %24 = sbr.rel (0) target = $region21
    $region20: #{_lambda_.1} parent=1 // pred_region
      _
    $region21: #{_lambda_.1} parent=1 // pred_fallthru
      _
    // Predicated region
    $region22: #{_lambda_.1} parent=1 // pred_check
      _
    $region23: #{_lambda_.1} parent=1 // pred_check_branch
      %26 = sbr.rel (0) target = $region25
    $region24: #{_lambda_.1} parent=1 // pred_region
      _
    $region25: #{_lambda_.1} parent=1 // pred_fallthru
      _
    // Predicated region
    $region26: #{_lambda_.1} parent=1 // pred_check
      _
    $region27: #{_lambda_.1} parent=1 // pred_check_branch
      %28 = sbr.rel (0) target = $region29
    $region28: #{_lambda_.1} parent=1 // pred_region
      _
    $region29: #{_lambda_.1} parent=1 // pred_fallthru
      _
    // Predicated region
    $region30: #{_lambda_.1} parent=1 // pred_check
      _
    $region31: #{_lambda_.1} parent=1 // pred_check_branch
      %30 = sbr.rel (0) target = $region33
    $region32: #{_lambda_.1} parent=1 // pred_region
      _
    $region33: #{_lambda_.1} parent=1 // pred_fallthru
      _
    // Predicated region
    $region34: #{_lambda_.1} parent=1 // pred_check
      _
    $region35: #{_lambda_.1} parent=1 // pred_check_branch
      %32 = sbr.rel (0) target = $region37
    $region36: #{_lambda_.1} parent=1 // pred_region
      _
    $region37: #{_lambda_.1} parent=1 // pred_fallthru
      _
    %v34 = vld [vmem:[%s7] sm:$0xff]
    %v35 = vld [vmem:[%s7 + $0x8] sm:$0xff]
    %v36 = vld [vmem:[%s7 + $0x10] sm:$0xff]
    %v37 = vld [vmem:[%s7 + $0x18] sm:$0xff]
    %v38 = vld [vmem:[%s7 + $0x20] sm:$0xff]
    %v39 = vld [vmem:[%s7 + $0x28] sm:$0xff]
    %v40 = vld [vmem:[%s7 + $0x30] sm:$0xff]
    %v41 = vld [vmem:[%s7 + $0x38] sm:$0xff]
    %v42 = vld [vmem:[%s3] sm:$0x1]
    %v43 = vld [vmem:[%s4] sm:$0x1]
    %v44 = vld [vmem:[%s5] sm:$0x1]
    %v45 = vld [vmem:[%s6] sm:$0x1]
    %vm46 = vcmask 1048064
    %47 = vst.msk [vmem:[#allocation2 + $0x20] sm:$0xff] %vm46, 0
    %48 = vst.msk [vmem:[#allocation2 + $0x48] sm:$0xff] %vm46, 0
    %49 = vst.msk [vmem:[#allocation2 + $0x70] sm:$0xff] %vm46, 0
    %50 = vst.msk [vmem:[#allocation2 + $0x98] sm:$0xff] %vm46, 0
    %51 = vst.msk [vmem:[#allocation2 + $0xc0] sm:$0xff] %vm46, 0
    %52 = vst.msk [vmem:[#allocation2 + $0xe8] sm:$0xff] %vm46, 0
    %53 = vst.msk [vmem:[#allocation2 + $0x110] sm:$0xff] %vm46, 0
    %54 = vst.msk [vmem:[#allocation2 + $0x138] sm:$0xff] %vm46, 0
    %v55 = vld [vmem:[%s0] sm:$0xff]
    %v56 = vld [vmem:[%s0 + $0x8] sm:$0xff]
    %v57 = vld [vmem:[%s0 + $0x10] sm:$0xff]
    %v58 = vld [vmem:[%s0 + $0x18] sm:$0xff]
    %v59 = vld [vmem:[%s0 + $0x20] sm:$0xff]
    %v60 = vld [vmem:[%s0 + $0x28] sm:$0xff]
    %v61 = vld [vmem:[%s0 + $0x30] sm:$0xff]
    %v62 = vld [vmem:[%s0 + $0x38] sm:$0xff]
    %v63 = vld [vmem:[%s0 + $0x40] sm:$0xff]
    %v64 = vld [vmem:[%s0 + $0x48] sm:$0xff]
    %v65 = vld [vmem:[%s0 + $0x50] sm:$0xff]
    %v66 = vld [vmem:[%s0 + $0x58] sm:$0xff]
    %v67 = vld [vmem:[%s0 + $0x60] sm:$0xff]
    %v68 = vld [vmem:[%s0 + $0x68] sm:$0xff]
    %v69 = vld [vmem:[%s0 + $0x70] sm:$0xff]
    %v70 = vld [vmem:[%s0 + $0x78] sm:$0xff]
    %vm73 = vcmask 1040384
    %v74 = vrot.slane %v69, 7
    %v75 = vrot.slane %v70, 7
    %v76 = vsel %vm73, %v74, %v75
    %v93 = vrot.slane %v55, 7
    %v94 = vrot.slane %v56, 7
    %v95 = vsel %vm73, %v93, %v94
    %v96 = vrot.slane %v57, 7
    %v97 = vsel %vm73, %v94, %v96
    %v98 = vrot.slane %v58, 7
    %v99 = vsel %vm73, %v96, %v98
    %v100 = vrot.slane %v59, 7
    %v101 = vsel %vm73, %v98, %v100
    %v102 = vrot.slane %v60, 7
    %v103 = vsel %vm73, %v100, %v102
    %v104 = vrot.slane %v61, 7
    %v105 = vsel %vm73, %v102, %v104
    %v106 = vrot.slane %v62, 7
    %v107 = vsel %vm73, %v104, %v106
    %v108 = vrot.slane %v63, 7
    %v109 = vsel %vm73, %v106, %v108
    %v110 = vrot.slane %v64, 7
    %v111 = vsel %vm73, %v108, %v110
    %v112 = vrot.slane %v65, 7
    %v113 = vsel %vm73, %v110, %v112
    %v114 = vrot.slane %v66, 7
    %v115 = vsel %vm73, %v112, %v114
    %v116 = vrot.slane %v67, 7
    %v117 = vsel %vm73, %v114, %v116
    %v118 = vrot.slane %v68, 7
    %v119 = vsel %vm73, %v116, %v118
    %v120 = vsel %vm73, %v118, %v74
    %v136 = vsel %vm73, %v75, %v93
    %v137 = vld [vmem:[%s8] sm:$0xff]
    %v138 = vld [vmem:[%s8 + $0x8] sm:$0xff]
    %v139 = vld [vmem:[%s8 + $0x10] sm:$0xff]
    %v140 = vld [vmem:[%s8 + $0x18] sm:$0xff]
    %v141 = vld [vmem:[%s8 + $0x20] sm:$0xff]
    %v142 = vld [vmem:[%s8 + $0x28] sm:$0xff]
    %v143 = vld [vmem:[%s8 + $0x30] sm:$0xff]
    %v144 = vld [vmem:[%s8 + $0x38] sm:$0xff]
    %v145 = vld [vmem:[%s8 + $0x40] sm:$0xff]
    %v146 = vld [vmem:[%s8 + $0x48] sm:$0xff]
    %v147 = vld [vmem:[%s8 + $0x50] sm:$0xff]
    %v148 = vld [vmem:[%s8 + $0x58] sm:$0xff]
    %v149 = vld [vmem:[%s8 + $0x60] sm:$0xff]
    %v150 = vld [vmem:[%s8 + $0x68] sm:$0xff]
    %v151 = vld [vmem:[%s8 + $0x70] sm:$0xff]
    %v152 = vld [vmem:[%s8 + $0x78] sm:$0xff]
    %154 = vset.pattern.permute.xlu0 0
    %155 = vperm.xlu0 %154, %v137
    %v156 = vpop.permute.xlu0 %155
    %159 = vset.pattern.permute.xlu0 0
    %160 = vperm.xlu0 %159, %v138
    %v161 = vpop.permute.xlu0 %160
    %164 = vset.pattern.permute.xlu0 0
    %165 = vperm.xlu0 %164, %v139
    %v166 = vpop.permute.xlu0 %165
    %169 = vset.pattern.permute.xlu0 0
    %170 = vperm.xlu0 %169, %v140
    %v171 = vpop.permute.xlu0 %170
    %174 = vset.pattern.permute.xlu0 0
    %175 = vperm.xlu0 %174, %v141
    %v176 = vpop.permute.xlu0 %175
    %179 = vset.pattern.permute.xlu0 0
    %180 = vperm.xlu0 %179, %v142
    %v181 = vpop.permute.xlu0 %180
    %184 = vset.pattern.permute.xlu0 0
    %185 = vperm.xlu0 %184, %v143
    %v186 = vpop.permute.xlu0 %185
    %189 = vset.pattern.permute.xlu0 0
    %190 = vperm.xlu0 %189, %v144
    %v191 = vpop.permute.xlu0 %190
    %194 = vset.pattern.permute.xlu0 0
    %195 = vperm.xlu0 %194, %v145
    %v196 = vpop.permute.xlu0 %195
    %199 = vset.pattern.permute.xlu0 0
    %200 = vperm.xlu0 %199, %v146
    %v201 = vpop.permute.xlu0 %200
    %204 = vset.pattern.permute.xlu0 0
    %205 = vperm.xlu0 %204, %v147
    %v206 = vpop.permute.xlu0 %205
    %209 = vset.pattern.permute.xlu0 0
    %210 = vperm.xlu0 %209, %v148
    %v211 = vpop.permute.xlu0 %210
    %214 = vset.pattern.permute.xlu0 0
    %215 = vperm.xlu0 %214, %v149
    %v216 = vpop.permute.xlu0 %215
    %219 = vset.pattern.permute.xlu0 0
    %220 = vperm.xlu0 %219, %v150
    %v221 = vpop.permute.xlu0 %220
    %224 = vset.pattern.permute.xlu0 0
    %225 = vperm.xlu0 %224, %v151
    %v226 = vpop.permute.xlu0 %225
    %229 = vset.pattern.permute.xlu0 0
    %230 = vperm.xlu0 %229, %v152
    %v231 = vpop.permute.xlu0 %230
    %v233 = vmul.f32 %v76, %v156
    %v234 = vmul.f32 %v136, %v161
    %v235 = vmul.f32 %v95, %v166
    %v236 = vmul.f32 %v97, %v171
    %v237 = vmul.f32 %v99, %v176
    %v238 = vmul.f32 %v101, %v181
    %v239 = vmul.f32 %v103, %v186
    %v240 = vmul.f32 %v105, %v191
    %v241 = vmul.f32 %v107, %v196
    %v242 = vmul.f32 %v109, %v201
    %v243 = vmul.f32 %v111, %v206
    %v244 = vmul.f32 %v113, %v211
    %v245 = vmul.f32 %v115, %v216
    %v246 = vmul.f32 %v117, %v221
    %v247 = vmul.f32 %v119, %v226
    %v248 = vmul.f32 %v120, %v231
    %v249 = vpack.c.bf16 %v234, %v233
    %v250 = vpack.c.bf16 %v236, %v235
    %v251 = vpack.c.bf16 %v238, %v237
    %v252 = vpack.c.bf16 %v240, %v239
    %v253 = vpack.c.bf16 %v242, %v241
    %v254 = vpack.c.bf16 %v244, %v243
    %v255 = vpack.c.bf16 %v246, %v245
    %v256 = vpack.c.bf16 %v248, %v247
    %vm257 = vcmask 523264
    %258 = vst.msk [vmem:[#allocation2] sm:$0xff] %vm257, %v249
    %259 = vst.msk [vmem:[#allocation2 + $0x28] sm:$0xff] %vm257, %v250
    %260 = vst.msk [vmem:[#allocation2 + $0x50] sm:$0xff] %vm257, %v251
    %261 = vst.msk [vmem:[#allocation2 + $0x78] sm:$0xff] %vm257, %v252
    %262 = vst.msk [vmem:[#allocation2 + $0xa0] sm:$0xff] %vm257, %v253
    %263 = vst.msk [vmem:[#allocation2 + $0xc8] sm:$0xff] %vm257, %v254
    %264 = vst.msk [vmem:[#allocation2 + $0xf0] sm:$0xff] %vm257, %v255
    %265 = vst.msk [vmem:[#allocation2 + $0x118] sm:$0xff] %vm257, %v256
    %v266 = vld [vmem:[%s8] sm:$0xff]
    %v267 = vld [vmem:[%s8 + $0x8] sm:$0xff]
    %v268 = vld [vmem:[%s8 + $0x10] sm:$0xff]
    %v269 = vld [vmem:[%s8 + $0x18] sm:$0xff]
    %v270 = vld [vmem:[%s8 + $0x20] sm:$0xff]
    %v271 = vld [vmem:[%s8 + $0x28] sm:$0xff]
    %v272 = vld [vmem:[%s8 + $0x30] sm:$0xff]
    %v273 = vld [vmem:[%s8 + $0x38] sm:$0xff]
    %v274 = vld [vmem:[%s8 + $0x40] sm:$0xff]
    %v275 = vld [vmem:[%s8 + $0x48] sm:$0xff]
    %v276 = vld [vmem:[%s8 + $0x50] sm:$0xff]
    %v277 = vld [vmem:[%s8 + $0x58] sm:$0xff]
    %v278 = vld [vmem:[%s8 + $0x60] sm:$0xff]
    %v279 = vld [vmem:[%s8 + $0x68] sm:$0xff]
    %v280 = vld [vmem:[%s8 + $0x70] sm:$0xff]
    %v281 = vld [vmem:[%s8 + $0x78] sm:$0xff]
    %283 = vset.pattern.permute.xlu0 1
    %284 = vperm.xlu0 %283, %v266
    %v285 = vpop.permute.xlu0 %284
    %288 = vset.pattern.permute.xlu0 1
    %289 = vperm.xlu0 %288, %v267
    %v290 = vpop.permute.xlu0 %289
    %293 = vset.pattern.permute.xlu0 1
    %294 = vperm.xlu0 %293, %v268
    %v295 = vpop.permute.xlu0 %294
    %298 = vset.pattern.permute.xlu0 1
    %299 = vperm.xlu0 %298, %v269
    %v300 = vpop.permute.xlu0 %299
    %303 = vset.pattern.permute.xlu0 1
    %304 = vperm.xlu0 %303, %v270
    %v305 = vpop.permute.xlu0 %304
    %308 = vset.pattern.permute.xlu0 1
    %309 = vperm.xlu0 %308, %v271
    %v310 = vpop.permute.xlu0 %309
    %313 = vset.pattern.permute.xlu0 1
    %314 = vperm.xlu0 %313, %v272
    %v315 = vpop.permute.xlu0 %314
    %318 = vset.pattern.permute.xlu0 1
    %319 = vperm.xlu0 %318, %v273
    %v320 = vpop.permute.xlu0 %319
    %323 = vset.pattern.permute.xlu0 1
    %324 = vperm.xlu0 %323, %v274
    %v325 = vpop.permute.xlu0 %324
    %328 = vset.pattern.permute.xlu0 1
    %329 = vperm.xlu0 %328, %v275
    %v330 = vpop.permute.xlu0 %329
    %333 = vset.pattern.permute.xlu0 1
    %334 = vperm.xlu0 %333, %v276
    %v335 = vpop.permute.xlu0 %334
    %338 = vset.pattern.permute.xlu0 1
    %339 = vperm.xlu0 %338, %v277
    %v340 = vpop.permute.xlu0 %339
    %343 = vset.pattern.permute.xlu0 1
    %344 = vperm.xlu0 %343, %v278
    %v345 = vpop.permute.xlu0 %344
    %348 = vset.pattern.permute.xlu0 1
    %349 = vperm.xlu0 %348, %v279
    %v350 = vpop.permute.xlu0 %349
    %353 = vset.pattern.permute.xlu0 1
    %354 = vperm.xlu0 %353, %v280
    %v355 = vpop.permute.xlu0 %354
    %358 = vset.pattern.permute.xlu0 1
    %359 = vperm.xlu0 %358, %v281
    %v360 = vpop.permute.xlu0 %359
    %v362 = vmul.f32 %v70, %v285
    %v363 = vmul.f32 %v55, %v290
    %v364 = vmul.f32 %v56, %v295
    %v365 = vmul.f32 %v57, %v300
    %v366 = vmul.f32 %v58, %v305
    %v367 = vmul.f32 %v59, %v310
    %v368 = vmul.f32 %v60, %v315
    %v369 = vmul.f32 %v61, %v320
    %v370 = vmul.f32 %v62, %v325
    %v371 = vmul.f32 %v63, %v330
    %v372 = vmul.f32 %v64, %v335
    %v373 = vmul.f32 %v65, %v340
    %v374 = vmul.f32 %v66, %v345
    %v375 = vmul.f32 %v67, %v350
    %v376 = vmul.f32 %v68, %v355
    %v377 = vmul.f32 %v69, %v360
    %v378 = vpack.c.bf16 %v363, %v362
    %v379 = vpack.c.bf16 %v365, %v364
    %v380 = vpack.c.bf16 %v367, %v366
    %v381 = vpack.c.bf16 %v369, %v368
    %v382 = vpack.c.bf16 %v371, %v370
    %v383 = vpack.c.bf16 %v373, %v372
    %v384 = vpack.c.bf16 %v375, %v374
    %v385 = vpack.c.bf16 %v377, %v376
    %394 = vrot.lane.b32.xlu0 %v378, 64
    %v395 = vpop.permute.xlu0 %394
    %396 = vrot.lane.b32.xlu0 %v379, 64
    %v397 = vpop.permute.xlu0 %396
    %398 = vrot.lane.b32.xlu0 %v380, 64
    %v399 = vpop.permute.xlu0 %398
    %400 = vrot.lane.b32.xlu0 %v381, 64
    %v401 = vpop.permute.xlu0 %400
    %402 = vrot.lane.b32.xlu0 %v382, 64
    %v403 = vpop.permute.xlu0 %402
    %404 = vrot.lane.b32.xlu0 %v383, 64
    %v405 = vpop.permute.xlu0 %404
    %406 = vrot.lane.b32.xlu0 %v384, 64
    %v407 = vpop.permute.xlu0 %406
    %408 = vrot.lane.b32.xlu0 %v385, 64
    %v409 = vpop.permute.xlu0 %408
    %418 = vst.msk [vmem:[#allocation2] sm:$0xff] %vm46, %v395
    %419 = vst.msk [vmem:[#allocation2 + $0x28] sm:$0xff] %vm46, %v397
    %420 = vst.msk [vmem:[#allocation2 + $0x50] sm:$0xff] %vm46, %v399
    %421 = vst.msk [vmem:[#allocation2 + $0x78] sm:$0xff] %vm46, %v401
    %422 = vst.msk [vmem:[#allocation2 + $0xa0] sm:$0xff] %vm46, %v403
    %423 = vst.msk [vmem:[#allocation2 + $0xc8] sm:$0xff] %vm46, %v405
    %424 = vst.msk [vmem:[#allocation2 + $0xf0] sm:$0xff] %vm46, %v407
    %425 = vst.msk [vmem:[#allocation2 + $0x118] sm:$0xff] %vm46, %v409
    %v426 = vrot.slane %v70, 1
    %vm428 = vcmask 1046528
    %v429 = vrot.slane %v55, 1
    %v430 = vrot.slane %v56, 1
    %v431 = vsel %vm428, %v429, %v430
    %v432 = vrot.slane %v57, 1
    %v433 = vsel %vm428, %v430, %v432
    %v434 = vrot.slane %v58, 1
    %v435 = vsel %vm428, %v432, %v434
    %v436 = vrot.slane %v59, 1
    %v437 = vsel %vm428, %v434, %v436
    %v438 = vrot.slane %v60, 1
    %v439 = vsel %vm428, %v436, %v438
    %v440 = vrot.slane %v61, 1
    %v441 = vsel %vm428, %v438, %v440
    %v442 = vrot.slane %v62, 1
    %v443 = vsel %vm428, %v440, %v442
    %v444 = vrot.slane %v63, 1
    %v445 = vsel %vm428, %v442, %v444
    %v446 = vrot.slane %v64, 1
    %v447 = vsel %vm428, %v444, %v446
    %v448 = vrot.slane %v65, 1
    %v449 = vsel %vm428, %v446, %v448
    %v450 = vrot.slane %v66, 1
    %v451 = vsel %vm428, %v448, %v450
    %v452 = vrot.slane %v67, 1
    %v453 = vsel %vm428, %v450, %v452
    %v454 = vrot.slane %v68, 1
    %v455 = vsel %vm428, %v452, %v454
    %v456 = vrot.slane %v69, 1
    %v457 = vsel %vm428, %v454, %v456
    %v458 = vsel %vm428, %v456, %v426
    %v475 = vsel %vm428, %v426, %v429
    %v476 = vld [vmem:[%s8] sm:$0xff]
    %v477 = vld [vmem:[%s8 + $0x8] sm:$0xff]
    %v478 = vld [vmem:[%s8 + $0x10] sm:$0xff]
    %v479 = vld [vmem:[%s8 + $0x18] sm:$0xff]
    %v480 = vld [vmem:[%s8 + $0x20] sm:$0xff]
    %v481 = vld [vmem:[%s8 + $0x28] sm:$0xff]
    %v482 = vld [vmem:[%s8 + $0x30] sm:$0xff]
    %v483 = vld [vmem:[%s8 + $0x38] sm:$0xff]
    %v484 = vld [vmem:[%s8 + $0x40] sm:$0xff]
    %v485 = vld [vmem:[%s8 + $0x48] sm:$0xff]
    %v486 = vld [vmem:[%s8 + $0x50] sm:$0xff]
    %v487 = vld [vmem:[%s8 + $0x58] sm:$0xff]
    %v488 = vld [vmem:[%s8 + $0x60] sm:$0xff]
    %v489 = vld [vmem:[%s8 + $0x68] sm:$0xff]
    %v490 = vld [vmem:[%s8 + $0x70] sm:$0xff]
    %v491 = vld [vmem:[%s8 + $0x78] sm:$0xff]
    %493 = vset.pattern.permute.xlu0 2
    %494 = vperm.xlu0 %493, %v476
    %v495 = vpop.permute.xlu0 %494
    %498 = vset.pattern.permute.xlu0 2
    %499 = vperm.xlu0 %498, %v477
    %v500 = vpop.permute.xlu0 %499
    %503 = vset.pattern.permute.xlu0 2
    %504 = vperm.xlu0 %503, %v478
    %v505 = vpop.permute.xlu0 %504
    %508 = vset.pattern.permute.xlu0 2
    %509 = vperm.xlu0 %508, %v479
    %v510 = vpop.permute.xlu0 %509
    %513 = vset.pattern.permute.xlu0 2
    %514 = vperm.xlu0 %513, %v480
    %v515 = vpop.permute.xlu0 %514
    %518 = vset.pattern.permute.xlu0 2
    %519 = vperm.xlu0 %518, %v481
    %v520 = vpop.permute.xlu0 %519
    %523 = vset.pattern.permute.xlu0 2
    %524 = vperm.xlu0 %523, %v482
    %v525 = vpop.permute.xlu0 %524
    %528 = vset.pattern.permute.xlu0 2
    %529 = vperm.xlu0 %528, %v483
    %v530 = vpop.permute.xlu0 %529
    %533 = vset.pattern.permute.xlu0 2
    %534 = vperm.xlu0 %533, %v484
    %v535 = vpop.permute.xlu0 %534
    %538 = vset.pattern.permute.xlu0 2
    %539 = vperm.xlu0 %538, %v485
    %v540 = vpop.permute.xlu0 %539
    %543 = vset.pattern.permute.xlu0 2
    %544 = vperm.xlu0 %543, %v486
    %v545 = vpop.permute.xlu0 %544
    %548 = vset.pattern.permute.xlu0 2
    %549 = vperm.xlu0 %548, %v487
    %v550 = vpop.permute.xlu0 %549
    %553 = vset.pattern.permute.xlu0 2
    %554 = vperm.xlu0 %553, %v488
    %v555 = vpop.permute.xlu0 %554
    %558 = vset.pattern.permute.xlu0 2
    %559 = vperm.xlu0 %558, %v489
    %v560 = vpop.permute.xlu0 %559
    %563 = vset.pattern.permute.xlu0 2
    %564 = vperm.xlu0 %563, %v490
    %v565 = vpop.permute.xlu0 %564
    %568 = vset.pattern.permute.xlu0 2
    %569 = vperm.xlu0 %568, %v491
    %v570 = vpop.permute.xlu0 %569
    %v572 = vmul.f32 %v475, %v495
    %v573 = vmul.f32 %v431, %v500
    %v574 = vmul.f32 %v433, %v505
    %v575 = vmul.f32 %v435, %v510
    %v576 = vmul.f32 %v437, %v515
    %v577 = vmul.f32 %v439, %v520
    %v578 = vmul.f32 %v441, %v525
    %v579 = vmul.f32 %v443, %v530
    %v580 = vmul.f32 %v445, %v535
    %v581 = vmul.f32 %v447, %v540
    %v582 = vmul.f32 %v449, %v545
    %v583 = vmul.f32 %v451, %v550
    %v584 = vmul.f32 %v453, %v555
    %v585 = vmul.f32 %v455, %v560
    %v586 = vmul.f32 %v457, %v565
    %v587 = vmul.f32 %v458, %v570
    %v588 = vpack.c.bf16 %v573, %v572
    %v589 = vpack.c.bf16 %v575, %v574
    %v590 = vpack.c.bf16 %v577, %v576
    %v591 = vpack.c.bf16 %v579, %v578
    %v592 = vpack.c.bf16 %v581, %v580
    %v593 = vpack.c.bf16 %v583, %v582
    %v594 = vpack.c.bf16 %v585, %v584
    %v595 = vpack.c.bf16 %v587, %v586
    %596 = vst.msk [vmem:[#allocation2 + $0x8] sm:$0xff] %vm257, %v588
    %597 = vst.msk [vmem:[#allocation2 + $0x30] sm:$0xff] %vm257, %v589
    %598 = vst.msk [vmem:[#allocation2 + $0x58] sm:$0xff] %vm257, %v590
    %599 = vst.msk [vmem:[#allocation2 + $0x80] sm:$0xff] %vm257, %v591
    %600 = vst.msk [vmem:[#allocation2 + $0xa8] sm:$0xff] %vm257, %v592
    %601 = vst.msk [vmem:[#allocation2 + $0xd0] sm:$0xff] %vm257, %v593
    %602 = vst.msk [vmem:[#allocation2 + $0xf8] sm:$0xff] %vm257, %v594
    %603 = vst.msk [vmem:[#allocation2 + $0x120] sm:$0xff] %vm257, %v595
    %v604 = vld [vmem:[%s8] sm:$0xff]
    %v605 = vld [vmem:[%s8 + $0x8] sm:$0xff]
    %v606 = vld [vmem:[%s8 + $0x10] sm:$0xff]
    %v607 = vld [vmem:[%s8 + $0x18] sm:$0xff]
    %v608 = vld [vmem:[%s8 + $0x20] sm:$0xff]
    %v609 = vld [vmem:[%s8 + $0x28] sm:$0xff]
    %v610 = vld [vmem:[%s8 + $0x30] sm:$0xff]
    %v611 = vld [vmem:[%s8 + $0x38] sm:$0xff]
    %v612 = vld [vmem:[%s8 + $0x40] sm:$0xff]
    %v613 = vld [vmem:[%s8 + $0x48] sm:$0xff]
    %v614 = vld [vmem:[%s8 + $0x50] sm:$0xff]
    %v615 = vld [vmem:[%s8 + $0x58] sm:$0xff]
    %v616 = vld [vmem:[%s8 + $0x60] sm:$0xff]
    %v617 = vld [vmem:[%s8 + $0x68] sm:$0xff]
    %v618 = vld [vmem:[%s8 + $0x70] sm:$0xff]
    %v619 = vld [vmem:[%s8 + $0x78] sm:$0xff]
    %621 = vset.pattern.permute.xlu0 3
    %622 = vperm.xlu0 %621, %v604
    %v623 = vpop.permute.xlu0 %622
    %626 = vset.pattern.permute.xlu0 3
    %627 = vperm.xlu0 %626, %v605
    %v628 = vpop.permute.xlu0 %627
    %631 = vset.pattern.permute.xlu0 3
    %632 = vperm.xlu0 %631, %v606
    %v633 = vpop.permute.xlu0 %632
    %636 = vset.pattern.permute.xlu0 3
    %637 = vperm.xlu0 %636, %v607
    %v638 = vpop.permute.xlu0 %637
    %641 = vset.pattern.permute.xlu0 3
    %642 = vperm.xlu0 %641, %v608
    %v643 = vpop.permute.xlu0 %642
    %646 = vset.pattern.permute.xlu0 3
    %647 = vperm.xlu0 %646, %v609
    %v648 = vpop.permute.xlu0 %647
    %651 = vset.pattern.permute.xlu0 3
    %652 = vperm.xlu0 %651, %v610
    %v653 = vpop.permute.xlu0 %652
    %656 = vset.pattern.permute.xlu0 3
    %657 = vperm.xlu0 %656, %v611
    %v658 = vpop.permute.xlu0 %657
    %661 = vset.pattern.permute.xlu0 3
    %662 = vperm.xlu0 %661, %v612
    %v663 = vpop.permute.xlu0 %662
    %666 = vset.pattern.permute.xlu0 3
    %667 = vperm.xlu0 %666, %v613
    %v668 = vpop.permute.xlu0 %667
    %671 = vset.pattern.permute.xlu0 3
    %672 = vperm.xlu0 %671, %v614
    %v673 = vpop.permute.xlu0 %672
    %676 = vset.pattern.permute.xlu0 3
    %677 = vperm.xlu0 %676, %v615
    %v678 = vpop.permute.xlu0 %677
    %681 = vset.pattern.permute.xlu0 3
    %682 = vperm.xlu0 %681, %v616
    %v683 = vpop.permute.xlu0 %682
    %686 = vset.pattern.permute.xlu0 3
    %687 = vperm.xlu0 %686, %v617
    %v688 = vpop.permute.xlu0 %687
    %691 = vset.pattern.permute.xlu0 3
    %692 = vperm.xlu0 %691, %v618
    %v693 = vpop.permute.xlu0 %692
    %696 = vset.pattern.permute.xlu0 3
    %697 = vperm.xlu0 %696, %v619
    %v698 = vpop.permute.xlu0 %697
    %v700 = vmul.f32 %v136, %v623
    %v701 = vmul.f32 %v95, %v628
    %v702 = vmul.f32 %v97, %v633
    %v703 = vmul.f32 %v99, %v638
    %v704 = vmul.f32 %v101, %v643
    %v705 = vmul.f32 %v103, %v648
    %v706 = vmul.f32 %v105, %v653
    %v707 = vmul.f32 %v107, %v658
    %v708 = vmul.f32 %v109, %v663
    %v709 = vmul.f32 %v111, %v668
    %v710 = vmul.f32 %v113, %v673
    %v711 = vmul.f32 %v115, %v678
    %v712 = vmul.f32 %v117, %v683
    %v713 = vmul.f32 %v119, %v688
    %v714 = vmul.f32 %v120, %v693
    %v715 = vmul.f32 %v76, %v698
    %v716 = vpack.c.bf16 %v701, %v700
    %v717 = vpack.c.bf16 %v703, %v702
    %v718 = vpack.c.bf16 %v705, %v704
    %v719 = vpack.c.bf16 %v707, %v706
    %v720 = vpack.c.bf16 %v709, %v708
    %v721 = vpack.c.bf16 %v711, %v710
    %v722 = vpack.c.bf16 %v713, %v712
    %v723 = vpack.c.bf16 %v715, %v714
    %732 = vrot.lane.b32.xlu0 %v716, 64
    %v733 = vpop.permute.xlu0 %732
    %734 = vrot.lane.b32.xlu0 %v717, 64
    %v735 = vpop.permute.xlu0 %734
    %736 = vrot.lane.b32.xlu0 %v718, 64
    %v737 = vpop.permute.xlu0 %736
    %738 = vrot.lane.b32.xlu0 %v719, 64
    %v739 = vpop.permute.xlu0 %738
    %740 = vrot.lane.b32.xlu0 %v720, 64
    %v741 = vpop.permute.xlu0 %740
    %742 = vrot.lane.b32.xlu0 %v721, 64
    %v743 = vpop.permute.xlu0 %742
    %744 = vrot.lane.b32.xlu0 %v722, 64
    %v745 = vpop.permute.xlu0 %744
    %746 = vrot.lane.b32.xlu0 %v723, 64
    %v747 = vpop.permute.xlu0 %746
    %756 = vst.msk [vmem:[#allocation2 + $0x8] sm:$0xff] %vm46, %v733
    %757 = vst.msk [vmem:[#allocation2 + $0x30] sm:$0xff] %vm46, %v735
    %758 = vst.msk [vmem:[#allocation2 + $0x58] sm:$0xff] %vm46, %v737
    %759 = vst.msk [vmem:[#allocation2 + $0x80] sm:$0xff] %vm46, %v739
    %760 = vst.msk [vmem:[#allocation2 + $0xa8] sm:$0xff] %vm46, %v741
    %761 = vst.msk [vmem:[#allocation2 + $0xd0] sm:$0xff] %vm46, %v743
    %762 = vst.msk [vmem:[#allocation2 + $0xf8] sm:$0xff] %vm46, %v745
    %763 = vst.msk [vmem:[#allocation2 + $0x120] sm:$0xff] %vm46, %v747
    %v764 = vld [vmem:[%s8] sm:$0xff]
    %v765 = vld [vmem:[%s8 + $0x8] sm:$0xff]
    %v766 = vld [vmem:[%s8 + $0x10] sm:$0xff]
    %v767 = vld [vmem:[%s8 + $0x18] sm:$0xff]
    %v768 = vld [vmem:[%s8 + $0x20] sm:$0xff]
    %v769 = vld [vmem:[%s8 + $0x28] sm:$0xff]
    %v770 = vld [vmem:[%s8 + $0x30] sm:$0xff]
    %v771 = vld [vmem:[%s8 + $0x38] sm:$0xff]
    %v772 = vld [vmem:[%s8 + $0x40] sm:$0xff]
    %v773 = vld [vmem:[%s8 + $0x48] sm:$0xff]
    %v774 = vld [vmem:[%s8 + $0x50] sm:$0xff]
    %v775 = vld [vmem:[%s8 + $0x58] sm:$0xff]
    %v776 = vld [vmem:[%s8 + $0x60] sm:$0xff]
    %v777 = vld [vmem:[%s8 + $0x68] sm:$0xff]
    %v778 = vld [vmem:[%s8 + $0x70] sm:$0xff]
    %v779 = vld [vmem:[%s8 + $0x78] sm:$0xff]
    %781 = vset.pattern.permute.xlu0 4
    %782 = vperm.xlu0 %781, %v764
    %v783 = vpop.permute.xlu0 %782
    %786 = vset.pattern.permute.xlu0 4
    %787 = vperm.xlu0 %786, %v765
    %v788 = vpop.permute.xlu0 %787
    %791 = vset.pattern.permute.xlu0 4
    %792 = vperm.xlu0 %791, %v766
    %v793 = vpop.permute.xlu0 %792
    %796 = vset.pattern.permute.xlu0 4
    %797 = vperm.xlu0 %796, %v767
    %v798 = vpop.permute.xlu0 %797
    %801 = vset.pattern.permute.xlu0 4
    %802 = vperm.xlu0 %801, %v768
    %v803 = vpop.permute.xlu0 %802
    %806 = vset.pattern.permute.xlu0 4
    %807 = vperm.xlu0 %806, %v769
    %v808 = vpop.permute.xlu0 %807
    %811 = vset.pattern.permute.xlu0 4
    %812 = vperm.xlu0 %811, %v770
    %v813 = vpop.permute.xlu0 %812
    %816 = vset.pattern.permute.xlu0 4
    %817 = vperm.xlu0 %816, %v771
    %v818 = vpop.permute.xlu0 %817
    %821 = vset.pattern.permute.xlu0 4
    %822 = vperm.xlu0 %821, %v772
    %v823 = vpop.permute.xlu0 %822
    %826 = vset.pattern.permute.xlu0 4
    %827 = vperm.xlu0 %826, %v773
    %v828 = vpop.permute.xlu0 %827
    %831 = vset.pattern.permute.xlu0 4
    %832 = vperm.xlu0 %831, %v774
    %v833 = vpop.permute.xlu0 %832
    %836 = vset.pattern.permute.xlu0 4
    %837 = vperm.xlu0 %836, %v775
    %v838 = vpop.permute.xlu0 %837
    %841 = vset.pattern.permute.xlu0 4
    %842 = vperm.xlu0 %841, %v776
    %v843 = vpop.permute.xlu0 %842
    %846 = vset.pattern.permute.xlu0 4
    %847 = vperm.xlu0 %846, %v777
    %v848 = vpop.permute.xlu0 %847
    %851 = vset.pattern.permute.xlu0 4
    %852 = vperm.xlu0 %851, %v778
    %v853 = vpop.permute.xlu0 %852
    %856 = vset.pattern.permute.xlu0 4
    %857 = vperm.xlu0 %856, %v779
    %v858 = vpop.permute.xlu0 %857
    %v860 = vmul.f32 %v55, %v783
    %v861 = vmul.f32 %v56, %v788
    %v862 = vmul.f32 %v57, %v793
    %v863 = vmul.f32 %v58, %v798
    %v864 = vmul.f32 %v59, %v803
    %v865 = vmul.f32 %v60, %v808
    %v866 = vmul.f32 %v61, %v813
    %v867 = vmul.f32 %v62, %v818
    %v868 = vmul.f32 %v63, %v823
    %v869 = vmul.f32 %v64, %v828
    %v870 = vmul.f32 %v65, %v833
    %v871 = vmul.f32 %v66, %v838
    %v872 = vmul.f32 %v67, %v843
    %v873 = vmul.f32 %v68, %v848
    %v874 = vmul.f32 %v69, %v853
    %v875 = vmul.f32 %v70, %v858
    %v876 = vpack.c.bf16 %v861, %v860
    %v877 = vpack.c.bf16 %v863, %v862
    %v878 = vpack.c.bf16 %v865, %v864
    %v879 = vpack.c.bf16 %v867, %v866
    %v880 = vpack.c.bf16 %v869, %v868
    %v881 = vpack.c.bf16 %v871, %v870
    %v882 = vpack.c.bf16 %v873, %v872
    %v883 = vpack.c.bf16 %v875, %v874
    %884 = vst.msk [vmem:[#allocation2 + $0x10] sm:$0xff] %vm257, %v876
    %885 = vst.msk [vmem:[#allocation2 + $0x38] sm:$0xff] %vm257, %v877
    %886 = vst.msk [vmem:[#allocation2 + $0x60] sm:$0xff] %vm257, %v878
    %887 = vst.msk [vmem:[#allocation2 + $0x88] sm:$0xff] %vm257, %v879
    %888 = vst.msk [vmem:[#allocation2 + $0xb0] sm:$0xff] %vm257, %v880
    %889 = vst.msk [vmem:[#allocation2 + $0xd8] sm:$0xff] %vm257, %v881
    %890 = vst.msk [vmem:[#allocation2 + $0x100] sm:$0xff] %vm257, %v882
    %891 = vst.msk [vmem:[#allocation2 + $0x128] sm:$0xff] %vm257, %v883
    %v892 = vld [vmem:[%s8] sm:$0xff]
    %v893 = vld [vmem:[%s8 + $0x8] sm:$0xff]
    %v894 = vld [vmem:[%s8 + $0x10] sm:$0xff]
    %v895 = vld [vmem:[%s8 + $0x18] sm:$0xff]
    %v896 = vld [vmem:[%s8 + $0x20] sm:$0xff]
    %v897 = vld [vmem:[%s8 + $0x28] sm:$0xff]
    %v898 = vld [vmem:[%s8 + $0x30] sm:$0xff]
    %v899 = vld [vmem:[%s8 + $0x38] sm:$0xff]
    %v900 = vld [vmem:[%s8 + $0x40] sm:$0xff]
    %v901 = vld [vmem:[%s8 + $0x48] sm:$0xff]
    %v902 = vld [vmem:[%s8 + $0x50] sm:$0xff]
    %v903 = vld [vmem:[%s8 + $0x58] sm:$0xff]
    %v904 = vld [vmem:[%s8 + $0x60] sm:$0xff]
    %v905 = vld [vmem:[%s8 + $0x68] sm:$0xff]
    %v906 = vld [vmem:[%s8 + $0x70] sm:$0xff]
    %v907 = vld [vmem:[%s8 + $0x78] sm:$0xff]
    %909 = vset.pattern.permute.xlu0 5
    %910 = vperm.xlu0 %909, %v892
    %v911 = vpop.permute.xlu0 %910
    %914 = vset.pattern.permute.xlu0 5
    %915 = vperm.xlu0 %914, %v893
    %v916 = vpop.permute.xlu0 %915
    %919 = vset.pattern.permute.xlu0 5
    %920 = vperm.xlu0 %919, %v894
    %v921 = vpop.permute.xlu0 %920
    %924 = vset.pattern.permute.xlu0 5
    %925 = vperm.xlu0 %924, %v895
    %v926 = vpop.permute.xlu0 %925
    %929 = vset.pattern.permute.xlu0 5
    %930 = vperm.xlu0 %929, %v896
    %v931 = vpop.permute.xlu0 %930
    %934 = vset.pattern.permute.xlu0 5
    %935 = vperm.xlu0 %934, %v897
    %v936 = vpop.permute.xlu0 %935
    %939 = vset.pattern.permute.xlu0 5
    %940 = vperm.xlu0 %939, %v898
    %v941 = vpop.permute.xlu0 %940
    %944 = vset.pattern.permute.xlu0 5
    %945 = vperm.xlu0 %944, %v899
    %v946 = vpop.permute.xlu0 %945
    %949 = vset.pattern.permute.xlu0 5
    %950 = vperm.xlu0 %949, %v900
    %v951 = vpop.permute.xlu0 %950
    %954 = vset.pattern.permute.xlu0 5
    %955 = vperm.xlu0 %954, %v901
    %v956 = vpop.permute.xlu0 %955
    %959 = vset.pattern.permute.xlu0 5
    %960 = vperm.xlu0 %959, %v902
    %v961 = vpop.permute.xlu0 %960
    %964 = vset.pattern.permute.xlu0 5
    %965 = vperm.xlu0 %964, %v903
    %v966 = vpop.permute.xlu0 %965
    %969 = vset.pattern.permute.xlu0 5
    %970 = vperm.xlu0 %969, %v904
    %v971 = vpop.permute.xlu0 %970
    %974 = vset.pattern.permute.xlu0 5
    %975 = vperm.xlu0 %974, %v905
    %v976 = vpop.permute.xlu0 %975
    %979 = vset.pattern.permute.xlu0 5
    %980 = vperm.xlu0 %979, %v906
    %v981 = vpop.permute.xlu0 %980
    %984 = vset.pattern.permute.xlu0 5
    %985 = vperm.xlu0 %984, %v907
    %v986 = vpop.permute.xlu0 %985
    %v988 = vmul.f32 %v431, %v911
    %v989 = vmul.f32 %v433, %v916
    %v990 = vmul.f32 %v435, %v921
    %v991 = vmul.f32 %v437, %v926
    %v992 = vmul.f32 %v439, %v931
    %v993 = vmul.f32 %v441, %v936
    %v994 = vmul.f32 %v443, %v941
    %v995 = vmul.f32 %v445, %v946
    %v996 = vmul.f32 %v447, %v951
    %v997 = vmul.f32 %v449, %v956
    %v998 = vmul.f32 %v451, %v961
    %v999 = vmul.f32 %v453, %v966
    %v1000 = vmul.f32 %v455, %v971
    %v1001 = vmul.f32 %v457, %v976
    %v1002 = vmul.f32 %v458, %v981
    %v1003 = vmul.f32 %v475, %v986
    %v1004 = vpack.c.bf16 %v989, %v988
    %v1005 = vpack.c.bf16 %v991, %v990
    %v1006 = vpack.c.bf16 %v993, %v992
    %v1007 = vpack.c.bf16 %v995, %v994
    %v1008 = vpack.c.bf16 %v997, %v996
    %v1009 = vpack.c.bf16 %v999, %v998
    %v1010 = vpack.c.bf16 %v1001, %v1000
    %v1011 = vpack.c.bf16 %v1003, %v1002
    %1020 = vrot.lane.b32.xlu0 %v1004, 64
    %v1021 = vpop.permute.xlu0 %1020
    %1022 = vrot.lane.b32.xlu0 %v1005, 64
    %v1023 = vpop.permute.xlu0 %1022
    %1024 = vrot.lane.b32.xlu0 %v1006, 64
    %v1025 = vpop.permute.xlu0 %1024
    %1026 = vrot.lane.b32.xlu0 %v1007, 64
    %v1027 = vpop.permute.xlu0 %1026
    %1028 = vrot.lane.b32.xlu0 %v1008, 64
    %v1029 = vpop.permute.xlu0 %1028
    %1030 = vrot.lane.b32.xlu0 %v1009, 64
    %v1031 = vpop.permute.xlu0 %1030
    %1032 = vrot.lane.b32.xlu0 %v1010, 64
    %v1033 = vpop.permute.xlu0 %1032
    %1034 = vrot.lane.b32.xlu0 %v1011, 64
    %v1035 = vpop.permute.xlu0 %1034
    %1044 = vst.msk [vmem:[#allocation2 + $0x10] sm:$0xff] %vm46, %v1021
    %1045 = vst.msk [vmem:[#allocation2 + $0x38] sm:$0xff] %vm46, %v1023
    %1046 = vst.msk [vmem:[#allocation2 + $0x60] sm:$0xff] %vm46, %v1025
    %1047 = vst.msk [vmem:[#allocation2 + $0x88] sm:$0xff] %vm46, %v1027
    %1048 = vst.msk [vmem:[#allocation2 + $0xb0] sm:$0xff] %vm46, %v1029
    %1049 = vst.msk [vmem:[#allocation2 + $0xd8] sm:$0xff] %vm46, %v1031
    %1050 = vst.msk [vmem:[#allocation2 + $0x100] sm:$0xff] %vm46, %v1033
    %1051 = vst.msk [vmem:[#allocation2 + $0x128] sm:$0xff] %vm46, %v1035
    %v1052 = vld [vmem:[%s8] sm:$0xff]
    %v1053 = vld [vmem:[%s8 + $0x8] sm:$0xff]
    %v1054 = vld [vmem:[%s8 + $0x10] sm:$0xff]
    %v1055 = vld [vmem:[%s8 + $0x18] sm:$0xff]
    %v1056 = vld [vmem:[%s8 + $0x20] sm:$0xff]
    %v1057 = vld [vmem:[%s8 + $0x28] sm:$0xff]
    %v1058 = vld [vmem:[%s8 + $0x30] sm:$0xff]
    %v1059 = vld [vmem:[%s8 + $0x38] sm:$0xff]
    %v1060 = vld [vmem:[%s8 + $0x40] sm:$0xff]
    %v1061 = vld [vmem:[%s8 + $0x48] sm:$0xff]
    %v1062 = vld [vmem:[%s8 + $0x50] sm:$0xff]
    %v1063 = vld [vmem:[%s8 + $0x58] sm:$0xff]
    %v1064 = vld [vmem:[%s8 + $0x60] sm:$0xff]
    %v1065 = vld [vmem:[%s8 + $0x68] sm:$0xff]
    %v1066 = vld [vmem:[%s8 + $0x70] sm:$0xff]
    %v1067 = vld [vmem:[%s8 + $0x78] sm:$0xff]
    %1069 = vset.pattern.permute.xlu0 6
    %1070 = vperm.xlu0 %1069, %v1052
    %v1071 = vpop.permute.xlu0 %1070
    %1074 = vset.pattern.permute.xlu0 6
    %1075 = vperm.xlu0 %1074, %v1053
    %v1076 = vpop.permute.xlu0 %1075
    %1079 = vset.pattern.permute.xlu0 6
    %1080 = vperm.xlu0 %1079, %v1054
    %v1081 = vpop.permute.xlu0 %1080
    %1084 = vset.pattern.permute.xlu0 6
    %1085 = vperm.xlu0 %1084, %v1055
    %v1086 = vpop.permute.xlu0 %1085
    %1089 = vset.pattern.permute.xlu0 6
    %1090 = vperm.xlu0 %1089, %v1056
    %v1091 = vpop.permute.xlu0 %1090
    %1094 = vset.pattern.permute.xlu0 6
    %1095 = vperm.xlu0 %1094, %v1057
    %v1096 = vpop.permute.xlu0 %1095
    %1099 = vset.pattern.permute.xlu0 6
    %1100 = vperm.xlu0 %1099, %v1058
    %v1101 = vpop.permute.xlu0 %1100
    %1104 = vset.pattern.permute.xlu0 6
    %1105 = vperm.xlu0 %1104, %v1059
    %v1106 = vpop.permute.xlu0 %1105
    %1109 = vset.pattern.permute.xlu0 6
    %1110 = vperm.xlu0 %1109, %v1060
    %v1111 = vpop.permute.xlu0 %1110
    %1114 = vset.pattern.permute.xlu0 6
    %1115 = vperm.xlu0 %1114, %v1061
    %v1116 = vpop.permute.xlu0 %1115
    %1119 = vset.pattern.permute.xlu0 6
    %1120 = vperm.xlu0 %1119, %v1062
    %v1121 = vpop.permute.xlu0 %1120
    %1124 = vset.pattern.permute.xlu0 6
    %1125 = vperm.xlu0 %1124, %v1063
    %v1126 = vpop.permute.xlu0 %1125
    %1129 = vset.pattern.permute.xlu0 6
    %1130 = vperm.xlu0 %1129, %v1064
    %v1131 = vpop.permute.xlu0 %1130
    %1134 = vset.pattern.permute.xlu0 6
    %1135 = vperm.xlu0 %1134, %v1065
    %v1136 = vpop.permute.xlu0 %1135
    %1139 = vset.pattern.permute.xlu0 6
    %1140 = vperm.xlu0 %1139, %v1066
    %v1141 = vpop.permute.xlu0 %1140
    %1144 = vset.pattern.permute.xlu0 6
    %1145 = vperm.xlu0 %1144, %v1067
    %v1146 = vpop.permute.xlu0 %1145
    %v1148 = vmul.f32 %v95, %v1071
    %v1149 = vmul.f32 %v97, %v1076
    %v1150 = vmul.f32 %v99, %v1081
    %v1151 = vmul.f32 %v101, %v1086
    %v1152 = vmul.f32 %v103, %v1091
    %v1153 = vmul.f32 %v105, %v1096
    %v1154 = vmul.f32 %v107, %v1101
    %v1155 = vmul.f32 %v109, %v1106
    %v1156 = vmul.f32 %v111, %v1111
    %v1157 = vmul.f32 %v113, %v1116
    %v1158 = vmul.f32 %v115, %v1121
    %v1159 = vmul.f32 %v117, %v1126
    %v1160 = vmul.f32 %v119, %v1131
    %v1161 = vmul.f32 %v120, %v1136
    %v1162 = vmul.f32 %v76, %v1141
    %v1163 = vmul.f32 %v136, %v1146
    %v1164 = vpack.c.bf16 %v1149, %v1148
    %v1165 = vpack.c.bf16 %v1151, %v1150
    %v1166 = vpack.c.bf16 %v1153, %v1152
    %v1167 = vpack.c.bf16 %v1155, %v1154
    %v1168 = vpack.c.bf16 %v1157, %v1156
    %v1169 = vpack.c.bf16 %v1159, %v1158
    %v1170 = vpack.c.bf16 %v1161, %v1160
    %v1171 = vpack.c.bf16 %v1163, %v1162
    %1172 = vst.msk [vmem:[#allocation2 + $0x18] sm:$0xff] %vm257, %v1164
    %1173 = vst.msk [vmem:[#allocation2 + $0x40] sm:$0xff] %vm257, %v1165
    %1174 = vst.msk [vmem:[#allocation2 + $0x68] sm:$0xff] %vm257, %v1166
    %1175 = vst.msk [vmem:[#allocation2 + $0x90] sm:$0xff] %vm257, %v1167
    %1176 = vst.msk [vmem:[#allocation2 + $0xb8] sm:$0xff] %vm257, %v1168
    %1177 = vst.msk [vmem:[#allocation2 + $0xe0] sm:$0xff] %vm257, %v1169
    %1178 = vst.msk [vmem:[#allocation2 + $0x108] sm:$0xff] %vm257, %v1170
    %1179 = vst.msk [vmem:[#allocation2 + $0x130] sm:$0xff] %vm257, %v1171
    %v1180 = vld [vmem:[%s8] sm:$0xff]
    %v1181 = vld [vmem:[%s8 + $0x8] sm:$0xff]
    %v1182 = vld [vmem:[%s8 + $0x10] sm:$0xff]
    %v1183 = vld [vmem:[%s8 + $0x18] sm:$0xff]
    %v1184 = vld [vmem:[%s8 + $0x20] sm:$0xff]
    %v1185 = vld [vmem:[%s8 + $0x28] sm:$0xff]
    %v1186 = vld [vmem:[%s8 + $0x30] sm:$0xff]
    %v1187 = vld [vmem:[%s8 + $0x38] sm:$0xff]
    %v1188 = vld [vmem:[%s8 + $0x40] sm:$0xff]
    %v1189 = vld [vmem:[%s8 + $0x48] sm:$0xff]
    %v1190 = vld [vmem:[%s8 + $0x50] sm:$0xff]
    %v1191 = vld [vmem:[%s8 + $0x58] sm:$0xff]
    %v1192 = vld [vmem:[%s8 + $0x60] sm:$0xff]
    %v1193 = vld [vmem:[%s8 + $0x68] sm:$0xff]
    %v1194 = vld [vmem:[%s8 + $0x70] sm:$0xff]
    %v1195 = vld [vmem:[%s8 + $0x78] sm:$0xff]
    %1197 = vset.pattern.permute.xlu0 7
    %1198 = vperm.xlu0 %1197, %v1180
    %v1199 = vpop.permute.xlu0 %1198
    %1202 = vset.pattern.permute.xlu0 7
    %1203 = vperm.xlu0 %1202, %v1181
    %v1204 = vpop.permute.xlu0 %1203
    %1207 = vset.pattern.permute.xlu0 7
    %1208 = vperm.xlu0 %1207, %v1182
    %v1209 = vpop.permute.xlu0 %1208
    %1212 = vset.pattern.permute.xlu0 7
    %1213 = vperm.xlu0 %1212, %v1183
    %v1214 = vpop.permute.xlu0 %1213
    %1217 = vset.pattern.permute.xlu0 7
    %1218 = vperm.xlu0 %1217, %v1184
    %v1219 = vpop.permute.xlu0 %1218
    %1222 = vset.pattern.permute.xlu0 7
    %1223 = vperm.xlu0 %1222, %v1185
    %v1224 = vpop.permute.xlu0 %1223
    %1227 = vset.pattern.permute.xlu0 7
    %1228 = vperm.xlu0 %1227, %v1186
    %v1229 = vpop.permute.xlu0 %1228
    %1232 = vset.pattern.permute.xlu0 7
    %1233 = vperm.xlu0 %1232, %v1187
    %v1234 = vpop.permute.xlu0 %1233
    %1237 = vset.pattern.permute.xlu0 7
    %1238 = vperm.xlu0 %1237, %v1188
    %v1239 = vpop.permute.xlu0 %1238
    %1242 = vset.pattern.permute.xlu0 7
    %1243 = vperm.xlu0 %1242, %v1189
    %v1244 = vpop.permute.xlu0 %1243
    %1247 = vset.pattern.permute.xlu0 7
    %1248 = vperm.xlu0 %1247, %v1190
    %v1249 = vpop.permute.xlu0 %1248
    %1252 = vset.pattern.permute.xlu0 7
    %1253 = vperm.xlu0 %1252, %v1191
    %v1254 = vpop.permute.xlu0 %1253
    %1257 = vset.pattern.permute.xlu0 7
    %1258 = vperm.xlu0 %1257, %v1192
    %v1259 = vpop.permute.xlu0 %1258
    %1262 = vset.pattern.permute.xlu0 7
    %1263 = vperm.xlu0 %1262, %v1193
    %v1264 = vpop.permute.xlu0 %1263
    %1267 = vset.pattern.permute.xlu0 7
    %1268 = vperm.xlu0 %1267, %v1194
    %v1269 = vpop.permute.xlu0 %1268
    %1272 = vset.pattern.permute.xlu0 7
    %1273 = vperm.xlu0 %1272, %v1195
    %v1274 = vpop.permute.xlu0 %1273
    %v1276 = vmul.f32 %v56, %v1199
    %v1277 = vmul.f32 %v57, %v1204
    %v1278 = vmul.f32 %v58, %v1209
    %v1279 = vmul.f32 %v59, %v1214
    %v1280 = vmul.f32 %v60, %v1219
    %v1281 = vmul.f32 %v61, %v1224
    %v1282 = vmul.f32 %v62, %v1229
    %v1283 = vmul.f32 %v63, %v1234
    %v1284 = vmul.f32 %v64, %v1239
    %v1285 = vmul.f32 %v65, %v1244
    %v1286 = vmul.f32 %v66, %v1249
    %v1287 = vmul.f32 %v67, %v1254
    %v1288 = vmul.f32 %v68, %v1259
    %v1289 = vmul.f32 %v69, %v1264
    %v1290 = vmul.f32 %v70, %v1269
    %v1291 = vmul.f32 %v55, %v1274
    %v1292 = vpack.c.bf16 %v1277, %v1276
    %v1293 = vpack.c.bf16 %v1279, %v1278
    %v1294 = vpack.c.bf16 %v1281, %v1280
    %v1295 = vpack.c.bf16 %v1283, %v1282
    %v1296 = vpack.c.bf16 %v1285, %v1284
    %v1297 = vpack.c.bf16 %v1287, %v1286
    %v1298 = vpack.c.bf16 %v1289, %v1288
    %v1299 = vpack.c.bf16 %v1291, %v1290
    %1308 = vrot.lane.b32.xlu0 %v1292, 64
    %v1309 = vpop.permute.xlu0 %1308
    %1310 = vrot.lane.b32.xlu0 %v1293, 64
    %v1311 = vpop.permute.xlu0 %1310
    %1312 = vrot.lane.b32.xlu0 %v1294, 64
    %v1313 = vpop.permute.xlu0 %1312
    %1314 = vrot.lane.b32.xlu0 %v1295, 64
    %v1315 = vpop.permute.xlu0 %1314
    %1316 = vrot.lane.b32.xlu0 %v1296, 64
    %v1317 = vpop.permute.xlu0 %1316
    %1318 = vrot.lane.b32.xlu0 %v1297, 64
    %v1319 = vpop.permute.xlu0 %1318
    %1320 = vrot.lane.b32.xlu0 %v1298, 64
    %v1321 = vpop.permute.xlu0 %1320
    %1322 = vrot.lane.b32.xlu0 %v1299, 64
    %v1323 = vpop.permute.xlu0 %1322
    %1332 = vst.msk [vmem:[#allocation2 + $0x18] sm:$0xff] %vm46, %v1309
    %1333 = vst.msk [vmem:[#allocation2 + $0x40] sm:$0xff] %vm46, %v1311
    %1334 = vst.msk [vmem:[#allocation2 + $0x68] sm:$0xff] %vm46, %v1313
    %1335 = vst.msk [vmem:[#allocation2 + $0x90] sm:$0xff] %vm46, %v1315
    %1336 = vst.msk [vmem:[#allocation2 + $0xb8] sm:$0xff] %vm46, %v1317
    %1337 = vst.msk [vmem:[#allocation2 + $0xe0] sm:$0xff] %vm46, %v1319
    %1338 = vst.msk [vmem:[#allocation2 + $0x108] sm:$0xff] %vm46, %v1321
    %1339 = vst.msk [vmem:[#allocation2 + $0x130] sm:$0xff] %vm46, %v1323
    %v1340 = vld [vmem:[%s8] sm:$0xff]
    %v1341 = vld [vmem:[%s8 + $0x8] sm:$0xff]
    %v1342 = vld [vmem:[%s8 + $0x10] sm:$0xff]
    %v1343 = vld [vmem:[%s8 + $0x18] sm:$0xff]
    %v1344 = vld [vmem:[%s8 + $0x20] sm:$0xff]
    %v1345 = vld [vmem:[%s8 + $0x28] sm:$0xff]
    %v1346 = vld [vmem:[%s8 + $0x30] sm:$0xff]
    %v1347 = vld [vmem:[%s8 + $0x38] sm:$0xff]
    %v1348 = vld [vmem:[%s8 + $0x40] sm:$0xff]
    %v1349 = vld [vmem:[%s8 + $0x48] sm:$0xff]
    %v1350 = vld [vmem:[%s8 + $0x50] sm:$0xff]
    %v1351 = vld [vmem:[%s8 + $0x58] sm:$0xff]
    %v1352 = vld [vmem:[%s8 + $0x60] sm:$0xff]
    %v1353 = vld [vmem:[%s8 + $0x68] sm:$0xff]
    %v1354 = vld [vmem:[%s8 + $0x70] sm:$0xff]
    %v1355 = vld [vmem:[%s8 + $0x78] sm:$0xff]
    %1357 = vset.pattern.permute.xlu0 8
    %1358 = vperm.xlu0 %1357, %v1340
    %v1359 = vpop.permute.xlu0 %1358
    %1362 = vset.pattern.permute.xlu0 8
    %1363 = vperm.xlu0 %1362, %v1341
    %v1364 = vpop.permute.xlu0 %1363
    %1367 = vset.pattern.permute.xlu0 8
    %1368 = vperm.xlu0 %1367, %v1342
    %v1369 = vpop.permute.xlu0 %1368
    %1372 = vset.pattern.permute.xlu0 8
    %1373 = vperm.xlu0 %1372, %v1343
    %v1374 = vpop.permute.xlu0 %1373
    %1377 = vset.pattern.permute.xlu0 8
    %1378 = vperm.xlu0 %1377, %v1344
    %v1379 = vpop.permute.xlu0 %1378
    %1382 = vset.pattern.permute.xlu0 8
    %1383 = vperm.xlu0 %1382, %v1345
    %v1384 = vpop.permute.xlu0 %1383
    %1387 = vset.pattern.permute.xlu0 8
    %1388 = vperm.xlu0 %1387, %v1346
    %v1389 = vpop.permute.xlu0 %1388
    %1392 = vset.pattern.permute.xlu0 8
    %1393 = vperm.xlu0 %1392, %v1347
    %v1394 = vpop.permute.xlu0 %1393
    %1397 = vset.pattern.permute.xlu0 8
    %1398 = vperm.xlu0 %1397, %v1348
    %v1399 = vpop.permute.xlu0 %1398
    %1402 = vset.pattern.permute.xlu0 8
    %1403 = vperm.xlu0 %1402, %v1349
    %v1404 = vpop.permute.xlu0 %1403
    %1407 = vset.pattern.permute.xlu0 8
    %1408 = vperm.xlu0 %1407, %v1350
    %v1409 = vpop.permute.xlu0 %1408
    %1412 = vset.pattern.permute.xlu0 8
    %1413 = vperm.xlu0 %1412, %v1351
    %v1414 = vpop.permute.xlu0 %1413
    %1417 = vset.pattern.permute.xlu0 8
    %1418 = vperm.xlu0 %1417, %v1352
    %v1419 = vpop.permute.xlu0 %1418
    %1422 = vset.pattern.permute.xlu0 8
    %1423 = vperm.xlu0 %1422, %v1353
    %v1424 = vpop.permute.xlu0 %1423
    %1427 = vset.pattern.permute.xlu0 8
    %1428 = vperm.xlu0 %1427, %v1354
    %v1429 = vpop.permute.xlu0 %1428
    %1432 = vset.pattern.permute.xlu0 8
    %1433 = vperm.xlu0 %1432, %v1355
    %v1434 = vpop.permute.xlu0 %1433
    %v1436 = vmul.f32 %v433, %v1359
    %v1437 = vmul.f32 %v435, %v1364
    %v1438 = vmul.f32 %v437, %v1369
    %v1439 = vmul.f32 %v439, %v1374
    %v1440 = vmul.f32 %v441, %v1379
    %v1441 = vmul.f32 %v443, %v1384
    %v1442 = vmul.f32 %v445, %v1389
    %v1443 = vmul.f32 %v447, %v1394
    %v1444 = vmul.f32 %v449, %v1399
    %v1445 = vmul.f32 %v451, %v1404
    %v1446 = vmul.f32 %v453, %v1409
    %v1447 = vmul.f32 %v455, %v1414
    %v1448 = vmul.f32 %v457, %v1419
    %v1449 = vmul.f32 %v458, %v1424
    %v1450 = vmul.f32 %v475, %v1429
    %v1451 = vmul.f32 %v431, %v1434
    %v1452 = vpack.c.bf16 %v1437, %v1436
    %v1453 = vpack.c.bf16 %v1439, %v1438
    %v1454 = vpack.c.bf16 %v1441, %v1440
    %v1455 = vpack.c.bf16 %v1443, %v1442
    %v1456 = vpack.c.bf16 %v1445, %v1444
    %v1457 = vpack.c.bf16 %v1447, %v1446
    %v1458 = vpack.c.bf16 %v1449, %v1448
    %v1459 = vpack.c.bf16 %v1451, %v1450
    %1460 = vst.msk [vmem:[#allocation2 + $0x20] sm:$0xff] %vm257, %v1452
    %1461 = vst.msk [vmem:[#allocation2 + $0x48] sm:$0xff] %vm257, %v1453
    %1462 = vst.msk [vmem:[#allocation2 + $0x70] sm:$0xff] %vm257, %v1454
    %1463 = vst.msk [vmem:[#allocation2 + $0x98] sm:$0xff] %vm257, %v1455
    %1464 = vst.msk [vmem:[#allocation2 + $0xc0] sm:$0xff] %vm257, %v1456
    %1465 = vst.msk [vmem:[#allocation2 + $0xe8] sm:$0xff] %vm257, %v1457
    %1466 = vst.msk [vmem:[#allocation2 + $0x110] sm:$0xff] %vm257, %v1458
    %1467 = vst.msk [vmem:[#allocation2 + $0x138] sm:$0xff] %vm257, %v1459
    %v1468 = vld [vmem:[#allocation2] sm:$0xff]
    %v1469 = vld [vmem:[#allocation2 + $0x8] sm:$0xff]
    %v1470 = vld [vmem:[#allocation2 + $0x10] sm:$0xff]
    %v1471 = vld [vmem:[#allocation2 + $0x18] sm:$0xff]
    %v1472 = vld [vmem:[#allocation2 + $0x20] sm:$0xff]
    %v1473 = vld [vmem:[#allocation2 + $0x28] sm:$0xff]
    %v1474 = vld [vmem:[#allocation2 + $0x30] sm:$0xff]
    %v1475 = vld [vmem:[#allocation2 + $0x38] sm:$0xff]
    %v1476 = vld [vmem:[#allocation2 + $0x40] sm:$0xff]
    %v1477 = vld [vmem:[#allocation2 + $0x48] sm:$0xff]
    %v1478 = vld [vmem:[#allocation2 + $0x50] sm:$0xff]
    %v1479 = vld [vmem:[#allocation2 + $0x58] sm:$0xff]
    %v1480 = vld [vmem:[#allocation2 + $0x60] sm:$0xff]
    %v1481 = vld [vmem:[#allocation2 + $0x68] sm:$0xff]
    %v1482 = vld [vmem:[#allocation2 + $0x70] sm:$0xff]
    %v1483 = vld [vmem:[#allocation2 + $0x78] sm:$0xff]
    %v1484 = vld [vmem:[#allocation2 + $0x80] sm:$0xff]
    %v1485 = vld [vmem:[#allocation2 + $0x88] sm:$0xff]
    %v1486 = vld [vmem:[#allocation2 + $0x90] sm:$0xff]
    %v1487 = vld [vmem:[#allocation2 + $0x98] sm:$0xff]
    %v1488 = vld [vmem:[#allocation2 + $0xa0] sm:$0xff]
    %v1489 = vld [vmem:[#allocation2 + $0xa8] sm:$0xff]
    %v1490 = vld [vmem:[#allocation2 + $0xb0] sm:$0xff]
    %v1491 = vld [vmem:[#allocation2 + $0xb8] sm:$0xff]
    %v1492 = vld [vmem:[#allocation2 + $0xc0] sm:$0xff]
    %v1493 = vld [vmem:[#allocation2 + $0xc8] sm:$0xff]
    %v1494 = vld [vmem:[#allocation2 + $0xd0] sm:$0xff]
    %v1495 = vld [vmem:[#allocation2 + $0xd8] sm:$0xff]
    %v1496 = vld [vmem:[#allocation2 + $0xe0] sm:$0xff]
    %v1497 = vld [vmem:[#allocation2 + $0xe8] sm:$0xff]
    %v1498 = vld [vmem:[#allocation2 + $0xf0] sm:$0xff]
    %v1499 = vld [vmem:[#allocation2 + $0xf8] sm:$0xff]
    %v1500 = vld [vmem:[#allocation2 + $0x100] sm:$0xff]
    %v1501 = vld [vmem:[#allocation2 + $0x108] sm:$0xff]
    %v1502 = vld [vmem:[#allocation2 + $0x110] sm:$0xff]
    %v1503 = vld [vmem:[#allocation2 + $0x118] sm:$0xff]
    %v1504 = vld [vmem:[#allocation2 + $0x120] sm:$0xff]
    %v1505 = vld [vmem:[#allocation2 + $0x128] sm:$0xff]
    %v1506 = vld [vmem:[#allocation2 + $0x130] sm:$0xff]
    %v1507 = vld [vmem:[#allocation2 + $0x138] sm:$0xff]
    %v1508 = vld [vmem:[%s1] sm:$0xf]
    %v1509 = vld [vmem:[%s1 + $0x4] sm:$0xf]
    %v1510 = vld [vmem:[%s1 + $0x8] sm:$0xf]
    %v1511 = vld [vmem:[%s1 + $0xc] sm:$0xf]
    %v1512 = vld [vmem:[%s1 + $0x10] sm:$0xf]
    %v1513 = vld [vmem:[%s1 + $0x14] sm:$0xf]
    %v1514 = vld [vmem:[%s1 + $0x18] sm:$0xf]
    %v1515 = vld [vmem:[%s1 + $0x1c] sm:$0xf]
    %v1516 = vld [vmem:[%s1 + $0x20] sm:$0xf]
    %v1517 = vld [vmem:[%s1 + $0x24] sm:$0xf]
    %v1518 = vld [vmem:[%s1 + $0x28] sm:$0xf]
    %v1519 = vld [vmem:[%s1 + $0x2c] sm:$0xf]
    %v1520 = vld [vmem:[%s1 + $0x30] sm:$0xf]
    %v1521 = vld [vmem:[%s1 + $0x34] sm:$0xf]
    %v1522 = vld [vmem:[%s1 + $0x38] sm:$0xf]
    %v1523 = vld [vmem:[%s1 + $0x3c] sm:$0xf]
    %v1524 = vld [vmem:[%s1 + $0x40] sm:$0xf]
    %v1525 = vld [vmem:[%s1 + $0x44] sm:$0xf]
    %v1526 = vld [vmem:[%s1 + $0x48] sm:$0xf]
    %v1527 = vld [vmem:[%s1 + $0x4c] sm:$0xf]
    %v1528 = vld [vmem:[%s1 + $0x50] sm:$0xf]
    %v1529 = vld [vmem:[%s1 + $0x54] sm:$0xf]
    %v1530 = vld [vmem:[%s1 + $0x58] sm:$0xf]
    %v1531 = vld [vmem:[%s1 + $0x5c] sm:$0xf]
    %v1532 = vld [vmem:[%s1 + $0x60] sm:$0xf]
    %v1533 = vld [vmem:[%s1 + $0x64] sm:$0xf]
    %v1534 = vld [vmem:[%s1 + $0x68] sm:$0xf]
    %v1535 = vld [vmem:[%s1 + $0x6c] sm:$0xf]
    %v1536 = vld [vmem:[%s1 + $0x70] sm:$0xf]
    %v1537 = vld [vmem:[%s1 + $0x74] sm:$0xf]
    %v1538 = vld [vmem:[%s1 + $0x78] sm:$0xf]
    %v1539 = vld [vmem:[%s1 + $0x7c] sm:$0xf]
    %v1540 = vld [vmem:[%s1 + $0x80] sm:$0xf]
    %v1541 = vld [vmem:[%s1 + $0x84] sm:$0xf]
    %v1542 = vld [vmem:[%s1 + $0x88] sm:$0xf]
    %v1543 = vld [vmem:[%s1 + $0x8c] sm:$0xf]
    %v1544 = vld [vmem:[%s1 + $0x90] sm:$0xf]
    %v1545 = vld [vmem:[%s1 + $0x94] sm:$0xf]
    %v1546 = vld [vmem:[%s1 + $0x98] sm:$0xf]
    %v1547 = vld [vmem:[%s1 + $0x9c] sm:$0xf]
    %v1548 = vld [vmem:[%s1 + $0xa0] sm:$0xf]
    %v1549 = vld [vmem:[%s1 + $0xa4] sm:$0xf]
    %v1550 = vld [vmem:[%s1 + $0xa8] sm:$0xf]
    %v1551 = vld [vmem:[%s1 + $0xac] sm:$0xf]
    %v1552 = vld [vmem:[%s1 + $0xb0] sm:$0xf]
    %v1553 = vld [vmem:[%s1 + $0xb4] sm:$0xf]
    %v1554 = vld [vmem:[%s1 + $0xb8] sm:$0xf]
    %v1555 = vld [vmem:[%s1 + $0xbc] sm:$0xf]
    %v1556 = vld [vmem:[%s1 + $0xc0] sm:$0xf]
    %v1557 = vld [vmem:[%s1 + $0xc4] sm:$0xf]
    %v1558 = vld [vmem:[%s1 + $0xc8] sm:$0xf]
    %v1559 = vld [vmem:[%s1 + $0xcc] sm:$0xf]
    %v1560 = vld [vmem:[%s1 + $0xd0] sm:$0xf]
    %v1561 = vld [vmem:[%s1 + $0xd4] sm:$0xf]
    %v1562 = vld [vmem:[%s1 + $0xd8] sm:$0xf]
    %v1563 = vld [vmem:[%s1 + $0xdc] sm:$0xf]
    %v1564 = vld [vmem:[%s1 + $0xe0] sm:$0xf]
    %v1565 = vld [vmem:[%s1 + $0xe4] sm:$0xf]
    %v1566 = vld [vmem:[%s1 + $0xe8] sm:$0xf]
    %v1567 = vld [vmem:[%s1 + $0xec] sm:$0xf]
    %v1568 = vld [vmem:[%s1 + $0xf0] sm:$0xf]
    %v1569 = vld [vmem:[%s1 + $0xf4] sm:$0xf]
    %v1570 = vld [vmem:[%s1 + $0xf8] sm:$0xf]
    %v1571 = vld [vmem:[%s1 + $0xfc] sm:$0xf]
    %v1572 = vld [vmem:[%s1 + $0x100] sm:$0xf]
    %v1573 = vld [vmem:[%s1 + $0x104] sm:$0xf]
    %v1574 = vld [vmem:[%s1 + $0x108] sm:$0xf]
    %v1575 = vld [vmem:[%s1 + $0x10c] sm:$0xf]
    %v1576 = vld [vmem:[%s1 + $0x110] sm:$0xf]
    %v1577 = vld [vmem:[%s1 + $0x114] sm:$0xf]
    %v1578 = vld [vmem:[%s1 + $0x118] sm:$0xf]
    %v1579 = vld [vmem:[%s1 + $0x11c] sm:$0xf]
    %v1580 = vld [vmem:[%s1 + $0x120] sm:$0xf]
    %v1581 = vld [vmem:[%s1 + $0x124] sm:$0xf]
    %v1582 = vld [vmem:[%s1 + $0x128] sm:$0xf]
    %v1583 = vld [vmem:[%s1 + $0x12c] sm:$0xf]
    %v1584 = vld [vmem:[%s1 + $0x130] sm:$0xf]
    %v1585 = vld [vmem:[%s1 + $0x134] sm:$0xf]
    %v1586 = vld [vmem:[%s1 + $0x138] sm:$0xf]
    %v1587 = vld [vmem:[%s1 + $0x13c] sm:$0xf]
    %v1668 = vunpack.c.l.b16 %v1508
    %v1669 = vunpack.c.l.b16 %v1509
    %v1670 = vunpack.c.l.b16 %v1510
    %v1671 = vunpack.c.l.b16 %v1511
    %v1672 = vunpack.c.l.b16 %v1512
    %v1673 = vunpack.c.l.b16 %v1513
    %v1674 = vunpack.c.l.b16 %v1514
    %v1675 = vunpack.c.l.b16 %v1515
    %v1676 = vunpack.c.l.b16 %v1516
    %v1677 = vunpack.c.l.b16 %v1517
    %v1678 = vunpack.c.l.b16 %v1518
    %v1679 = vunpack.c.l.b16 %v1519
    %v1680 = vunpack.c.l.b16 %v1520
    %v1681 = vunpack.c.l.b16 %v1521
    %v1682 = vunpack.c.l.b16 %v1522
    %v1683 = vunpack.c.l.b16 %v1523
    %v1684 = vunpack.c.l.b16 %v1524
    %v1685 = vunpack.c.l.b16 %v1525
    %v1686 = vunpack.c.l.b16 %v1526
    %v1687 = vunpack.c.l.b16 %v1527
    %v1688 = vunpack.c.l.b16 %v1528
    %v1689 = vunpack.c.l.b16 %v1529
    %v1690 = vunpack.c.l.b16 %v1530
    %v1691 = vunpack.c.l.b16 %v1531
    %v1692 = vunpack.c.l.b16 %v1532
    %v1693 = vunpack.c.l.b16 %v1533
    %v1694 = vunpack.c.l.b16 %v1534
    %v1695 = vunpack.c.l.b16 %v1535
    %v1696 = vunpack.c.l.b16 %v1536
    %v1697 = vunpack.c.l.b16 %v1537
    %v1698 = vunpack.c.l.b16 %v1538
    %v1699 = vunpack.c.l.b16 %v1539
    %v1700 = vunpack.c.l.b16 %v1540
    %v1701 = vunpack.c.l.b16 %v1541
    %v1702 = vunpack.c.l.b16 %v1542
    %v1703 = vunpack.c.l.b16 %v1543
    %v1704 = vunpack.c.l.b16 %v1544
    %v1705 = vunpack.c.l.b16 %v1545
    %v1706 = vunpack.c.l.b16 %v1546
    %v1707 = vunpack.c.l.b16 %v1547
    %v1708 = vunpack.c.l.b16 %v1548
    %v1709 = vunpack.c.l.b16 %v1549
    %v1710 = vunpack.c.l.b16 %v1550
    %v1711 = vunpack.c.l.b16 %v1551
    %v1712 = vunpack.c.l.b16 %v1552
    %v1713 = vunpack.c.l.b16 %v1553
    %v1714 = vunpack.c.l.b16 %v1554
    %v1715 = vunpack.c.l.b16 %v1555
    %v1716 = vunpack.c.l.b16 %v1556
    %v1717 = vunpack.c.l.b16 %v1557
    %v1718 = vunpack.c.l.b16 %v1558
    %v1719 = vunpack.c.l.b16 %v1559
    %v1720 = vunpack.c.l.b16 %v1560
    %v1721 = vunpack.c.l.b16 %v1561
    %v1722 = vunpack.c.l.b16 %v1562
    %v1723 = vunpack.c.l.b16 %v1563
    %v1724 = vunpack.c.l.b16 %v1564
    %v1725 = vunpack.c.l.b16 %v1565
    %v1726 = vunpack.c.l.b16 %v1566
    %v1727 = vunpack.c.l.b16 %v1567
    %v1728 = vunpack.c.l.b16 %v1568
    %v1729 = vunpack.c.l.b16 %v1569
    %v1730 = vunpack.c.l.b16 %v1570
    %v1731 = vunpack.c.l.b16 %v1571
    %v1732 = vunpack.c.l.b16 %v1572
    %v1733 = vunpack.c.l.b16 %v1573
    %v1734 = vunpack.c.l.b16 %v1574
    %v1735 = vunpack.c.l.b16 %v1575
    %v1736 = vunpack.c.l.b16 %v1576
    %v1737 = vunpack.c.l.b16 %v1577
    %v1738 = vunpack.c.l.b16 %v1578
    %v1739 = vunpack.c.l.b16 %v1579
    %v1740 = vunpack.c.l.b16 %v1580
    %v1741 = vunpack.c.l.b16 %v1581
    %v1742 = vunpack.c.l.b16 %v1582
    %v1743 = vunpack.c.l.b16 %v1583
    %v1744 = vunpack.c.l.b16 %v1584
    %v1745 = vunpack.c.l.b16 %v1585
    %v1746 = vunpack.c.l.b16 %v1586
    %v1747 = vunpack.c.l.b16 %v1587
    %v1748 = vpack.c.b16 %v1669, %v1668
    %v1749 = vpack.c.b16 %v1671, %v1670
    %v1750 = vpack.c.b16 %v1673, %v1672
    %v1751 = vpack.c.b16 %v1675, %v1674
    %v1752 = vpack.c.b16 %v1677, %v1676
    %v1753 = vpack.c.b16 %v1679, %v1678
    %v1754 = vpack.c.b16 %v1681, %v1680
    %v1755 = vpack.c.b16 %v1683, %v1682
    %v1756 = vpack.c.b16 %v1685, %v1684
    %v1757 = vpack.c.b16 %v1687, %v1686
    %v1758 = vpack.c.b16 %v1689, %v1688
    %v1759 = vpack.c.b16 %v1691, %v1690
    %v1760 = vpack.c.b16 %v1693, %v1692
    %v1761 = vpack.c.b16 %v1695, %v1694
    %v1762 = vpack.c.b16 %v1697, %v1696
    %v1763 = vpack.c.b16 %v1699, %v1698
    %v1764 = vpack.c.b16 %v1701, %v1700
    %v1765 = vpack.c.b16 %v1703, %v1702
    %v1766 = vpack.c.b16 %v1705, %v1704
    %v1767 = vpack.c.b16 %v1707, %v1706
    %v1768 = vpack.c.b16 %v1709, %v1708
    %v1769 = vpack.c.b16 %v1711, %v1710
    %v1770 = vpack.c.b16 %v1713, %v1712
    %v1771 = vpack.c.b16 %v1715, %v1714
    %v1772 = vpack.c.b16 %v1717, %v1716
    %v1773 = vpack.c.b16 %v1719, %v1718
    %v1774 = vpack.c.b16 %v1721, %v1720
    %v1775 = vpack.c.b16 %v1723, %v1722
    %v1776 = vpack.c.b16 %v1725, %v1724
    %v1777 = vpack.c.b16 %v1727, %v1726
    %v1778 = vpack.c.b16 %v1729, %v1728
    %v1779 = vpack.c.b16 %v1731, %v1730
    %v1780 = vpack.c.b16 %v1733, %v1732
    %v1781 = vpack.c.b16 %v1735, %v1734
    %v1782 = vpack.c.b16 %v1737, %v1736
    %v1783 = vpack.c.b16 %v1739, %v1738
    %v1784 = vpack.c.b16 %v1741, %v1740
    %v1785 = vpack.c.b16 %v1743, %v1742
    %v1786 = vpack.c.b16 %v1745, %v1744
    %v1787 = vpack.c.b16 %v1747, %v1746
    %1828 = vmatprep.subr.bf16.mxu0 0
    %1829 = vmatpush1.bf16.msra.mxu0 %v1748
    %1830 = vmatprep.subr.bf16.mxu0 0
    %1831 = vmatpush1.bf16.msra.mxu0 %v1749
    %1832 = vmatprep.subr.bf16.mxu0 0
    %1833 = vmatpush1.bf16.msra.mxu0 %v1750
    %1834 = vmatprep.subr.bf16.mxu0 0
    %1835 = vmatpush1.bf16.msra.mxu0 %v1751
    %1836 = vmatprep.subr.bf16.mxu0 0
    %1837 = vmatpush1.bf16.msra.mxu0 %v1752
    %1838 = vmatprep.subr.bf16.mxu0 0
    %1839 = vmatpush1.bf16.msra.mxu0 %v1753
    %1840 = vmatprep.subr.bf16.mxu0 0
    %1841 = vmatpush1.bf16.msra.mxu0 %v1754
    %1842 = vmatprep.subr.bf16.mxu0 0
    %1843 = vmatpush1.bf16.msra.mxu0 %v1755
    %1844 = vmatprep.subr.bf16.mxu0 0
    %1845 = vmatpush1.bf16.msra.mxu0 %v1756
    %1846 = vmatprep.subr.bf16.mxu0 0
    %1847 = vmatpush1.bf16.msra.mxu0 %v1757
    %1848 = vmatprep.subr.bf16.mxu0 0
    %1849 = vmatpush1.bf16.msra.mxu0 %v1758
    %1850 = vmatprep.subr.bf16.mxu0 0
    %1851 = vmatpush1.bf16.msra.mxu0 %v1759
    %1852 = vmatprep.subr.bf16.mxu0 0
    %1853 = vmatpush1.bf16.msra.mxu0 %v1760
    %1854 = vmatprep.subr.bf16.mxu0 0
    %1855 = vmatpush1.bf16.msra.mxu0 %v1761
    %1856 = vmatprep.subr.bf16.mxu0 0
    %1857 = vmatpush1.bf16.msra.mxu0 %v1762
    %1858 = vmatprep.subr.bf16.mxu0 0
    %1859 = vmatpush1.bf16.msra.mxu0 %v1763
    %1860 = vmatprep.mubr.bf16.mxu0 %v1469
    %1861 = vmatmul.mubr.bf16.gmra.mrb[0].mxu0 %v1468
    %v1862 = vpop.f32.mrb[0].mxu0
    %v1863 = vadd.f32 0.0, %v1862
    %v1864 = vpop.f32.mrb[0].mxu0
    %v1865 = vpop.f32.mrb[0].mxu0
    %v1866 = vadd.f32 0.0, %v1865
    %v1867 = vpop.f32.mrb[0].mxu0
    %1868 = vmatprep.mubr.bf16.mxu0 %v1474
    %1869 = vmatmul.mubr.bf16.gmra.mrb[0].mxu0 %v1473
    %v1870 = vpop.f32.mrb[0].mxu0
    %v1871 = vadd.f32 0.0, %v1870
    %v1872 = vpop.f32.mrb[0].mxu0
    %v1873 = vpop.f32.mrb[0].mxu0
    %v1874 = vadd.f32 0.0, %v1873
    %v1875 = vpop.f32.mrb[0].mxu0
    %1876 = vmatprep.mubr.bf16.mxu0 %v1479
    %1877 = vmatmul.mubr.bf16.gmra.mrb[0].mxu0 %v1478
    %v1878 = vpop.f32.mrb[0].mxu0
    %v1879 = vadd.f32 0.0, %v1878
    %v1880 = vpop.f32.mrb[0].mxu0
    %v1881 = vpop.f32.mrb[0].mxu0
    %v1882 = vadd.f32 0.0, %v1881
    %v1883 = vpop.f32.mrb[0].mxu0
    %1884 = vmatprep.mubr.bf16.mxu0 %v1484
    %1885 = vmatmul.mubr.bf16.gmra.mrb[0].mxu0 %v1483
    %v1886 = vpop.f32.mrb[0].mxu0
    %v1887 = vadd.f32 0.0, %v1886
    %v1888 = vpop.f32.mrb[0].mxu0
    %v1889 = vpop.f32.mrb[0].mxu0
    %v1890 = vadd.f32 0.0, %v1889
    %v1891 = vpop.f32.mrb[0].mxu0
    %1892 = vmatprep.mubr.bf16.mxu0 %v1489
    %1893 = vmatmul.mubr.bf16.gmra.mrb[0].mxu0 %v1488
    %v1894 = vpop.f32.mrb[0].mxu0
    %v1895 = vadd.f32 0.0, %v1894
    %v1896 = vpop.f32.mrb[0].mxu0
    %v1897 = vpop.f32.mrb[0].mxu0
    %v1898 = vadd.f32 0.0, %v1897
    %v1899 = vpop.f32.mrb[0].mxu0
    %1900 = vmatprep.mubr.bf16.mxu0 %v1494
    %1901 = vmatmul.mubr.bf16.gmra.mrb[0].mxu0 %v1493
    %v1902 = vpop.f32.mrb[0].mxu0
    %v1903 = vadd.f32 0.0, %v1902
    %v1904 = vpop.f32.mrb[0].mxu0
    %v1905 = vpop.f32.mrb[0].mxu0
    %v1906 = vadd.f32 0.0, %v1905
    %v1907 = vpop.f32.mrb[0].mxu0
    %1908 = vmatprep.mubr.bf16.mxu0 %v1499
    %1909 = vmatmul.mubr.bf16.gmra.mrb[0].mxu0 %v1498
    %v1910 = vpop.f32.mrb[0].mxu0
    %v1911 = vadd.f32 0.0, %v1910
    %v1912 = vpop.f32.mrb[0].mxu0
    %v1913 = vpop.f32.mrb[0].mxu0
    %v1914 = vadd.f32 0.0, %v1913
    %v1915 = vpop.f32.mrb[0].mxu0
    %1916 = vmatprep.mubr.bf16.mxu0 %v1504
    %1917 = vmatmul.mubr.bf16.gmra.mrb[0].mxu0 %v1503
    %v1918 = vpop.f32.mrb[0].mxu0
    %v1919 = vadd.f32 0.0, %v1918
    %v1920 = vpop.f32.mrb[0].mxu0
    %v1921 = vpop.f32.mrb[0].mxu0
    %v1922 = vadd.f32 0.0, %v1921
    %v1923 = vpop.f32.mrb[0].mxu0
    %1924 = vdwg.mxu0
    %1925 = vmatprep.subr.bf16.mxu0 0
    %1926 = vmatpush1.bf16.msra.mxu0 %v1764
    %1927 = vmatprep.subr.bf16.mxu0 0
    %1928 = vmatpush1.bf16.msra.mxu0 %v1765
    %1929 = vmatprep.subr.bf16.mxu0 0
    %1930 = vmatpush1.bf16.msra.mxu0 %v1766
    %1931 = vmatprep.subr.bf16.mxu0 0
    %1932 = vmatpush1.bf16.msra.mxu0 %v1767
    %1933 = vmatprep.subr.bf16.mxu0 0
    %1934 = vmatpush1.bf16.msra.mxu0 %v1768
    %1935 = vmatprep.subr.bf16.mxu0 0
    %1936 = vmatpush1.bf16.msra.mxu0 %v1769
    %1937 = vmatprep.subr.bf16.mxu0 0
    %1938 = vmatpush1.bf16.msra.mxu0 %v1770
    %1939 = vmatprep.subr.bf16.mxu0 0
    %1940 = vmatpush1.bf16.msra.mxu0 %v1771
    %1941 = vmatprep.subr.bf16.mxu0 0
    %1942 = vmatpush1.bf16.msra.mxu0 %v1772
    %1943 = vmatprep.subr.bf16.mxu0 0
    %1944 = vmatpush1.bf16.msra.mxu0 %v1773
    %1945 = vmatprep.subr.bf16.mxu0 0
    %1946 = vmatpush1.bf16.msra.mxu0 %v1774
    %1947 = vmatprep.subr.bf16.mxu0 0
    %1948 = vmatpush1.bf16.msra.mxu0 %v1775
    %1949 = vmatprep.subr.bf16.mxu0 0
    %1950 = vmatpush1.bf16.msra.mxu0 %v1776
    %1951 = vmatprep.subr.bf16.mxu0 0
    %1952 = vmatpush1.bf16.msra.mxu0 %v1777
    %1953 = vmatprep.subr.bf16.mxu0 0
    %1954 = vmatpush1.bf16.msra.mxu0 %v1778
    %1955 = vmatprep.subr.bf16.mxu0 0
    %1956 = vmatpush1.bf16.msra.mxu0 %v1779
    %1957 = vmatprep.mubr.bf16.mxu0 %v1471
    %1958 = vmatmul.mubr.bf16.gmra.mrb[0].mxu0 %v1470
    %v1959 = vpop.f32.mrb[0].mxu0
    %v1960 = vadd.f32 %v1863, %v1959
    %v1961 = vpop.f32.mrb[0].mxu0
    %v1962 = vpop.f32.mrb[0].mxu0
    %v1963 = vadd.f32 %v1866, %v1962
    %v1964 = vpop.f32.mrb[0].mxu0
    %1965 = vmatprep.mubr.bf16.mxu0 %v1476
    %1966 = vmatmul.mubr.bf16.gmra.mrb[0].mxu0 %v1475
    %v1967 = vpop.f32.mrb[0].mxu0
    %v1968 = vadd.f32 %v1871, %v1967
    %v1969 = vpop.f32.mrb[0].mxu0
    %v1970 = vpop.f32.mrb[0].mxu0
    %v1971 = vadd.f32 %v1874, %v1970
    %v1972 = vpop.f32.mrb[0].mxu0
    %1973 = vmatprep.mubr.bf16.mxu0 %v1481
    %1974 = vmatmul.mubr.bf16.gmra.mrb[0].mxu0 %v1480
    %v1975 = vpop.f32.mrb[0].mxu0
    %v1976 = vadd.f32 %v1879, %v1975
    %v1977 = vpop.f32.mrb[0].mxu0
    %v1978 = vpop.f32.mrb[0].mxu0
    %v1979 = vadd.f32 %v1882, %v1978
    %v1980 = vpop.f32.mrb[0].mxu0
    %1981 = vmatprep.mubr.bf16.mxu0 %v1486
    %1982 = vmatmul.mubr.bf16.gmra.mrb[0].mxu0 %v1485
    %v1983 = vpop.f32.mrb[0].mxu0
    %v1984 = vadd.f32 %v1887, %v1983
    %v1985 = vpop.f32.mrb[0].mxu0
    %v1986 = vpop.f32.mrb[0].mxu0
    %v1987 = vadd.f32 %v1890, %v1986
    %v1988 = vpop.f32.mrb[0].mxu0
    %1989 = vmatprep.mubr.bf16.mxu0 %v1491
    %1990 = vmatmul.mubr.bf16.gmra.mrb[0].mxu0 %v1490
    %v1991 = vpop.f32.mrb[0].mxu0
    %v1992 = vadd.f32 %v1895, %v1991
    %v1993 = vpop.f32.mrb[0].mxu0
    %v1994 = vpop.f32.mrb[0].mxu0
    %v1995 = vadd.f32 %v1898, %v1994
    %v1996 = vpop.f32.mrb[0].mxu0
    %1997 = vmatprep.mubr.bf16.mxu0 %v1496
    %1998 = vmatmul.mubr.bf16.gmra.mrb[0].mxu0 %v1495
    %v1999 = vpop.f32.mrb[0].mxu0
    %v2000 = vadd.f32 %v1903, %v1999
    %v2001 = vpop.f32.mrb[0].mxu0
    %v2002 = vpop.f32.mrb[0].mxu0
    %v2003 = vadd.f32 %v1906, %v2002
    %v2004 = vpop.f32.mrb[0].mxu0
    %2005 = vmatprep.mubr.bf16.mxu0 %v1501
    %2006 = vmatmul.mubr.bf16.gmra.mrb[0].mxu0 %v1500
    %v2007 = vpop.f32.mrb[0].mxu0
    %v2008 = vadd.f32 %v1911, %v2007
    %v2009 = vpop.f32.mrb[0].mxu0
    %v2010 = vpop.f32.mrb[0].mxu0
    %v2011 = vadd.f32 %v1914, %v2010
    %v2012 = vpop.f32.mrb[0].mxu0
    %2013 = vmatprep.mubr.bf16.mxu0 %v1506
    %2014 = vmatmul.mubr.bf16.gmra.mrb[0].mxu0 %v1505
    %v2015 = vpop.f32.mrb[0].mxu0
    %v2016 = vadd.f32 %v1919, %v2015
    %v2017 = vpop.f32.mrb[0].mxu0
    %v2018 = vpop.f32.mrb[0].mxu0
    %v2019 = vadd.f32 %v1922, %v2018
    %v2020 = vpop.f32.mrb[0].mxu0
    %2021 = vdwg.mxu0
    %2022 = vmatprep.subr.bf16.mxu0 0
    %2023 = vmatpush1.bf16.msra.mxu0 %v1780
    %2024 = vmatprep.subr.bf16.mxu0 0
    %2025 = vmatpush1.bf16.msra.mxu0 %v1781
    %2026 = vmatprep.subr.bf16.mxu0 0
    %2027 = vmatpush1.bf16.msra.mxu0 %v1782
    %2028 = vmatprep.subr.bf16.mxu0 0
    %2029 = vmatpush1.bf16.msra.mxu0 %v1783
    %2030 = vmatprep.subr.bf16.mxu0 0
    %2031 = vmatpush1.bf16.msra.mxu0 %v1784
    %2032 = vmatprep.subr.bf16.mxu0 0
    %2033 = vmatpush1.bf16.msra.mxu0 %v1785
    %2034 = vmatprep.subr.bf16.mxu0 0
    %2035 = vmatpush1.bf16.msra.mxu0 %v1786
    %2036 = vmatprep.subr.bf16.mxu0 0
    %2037 = vmatpush1.bf16.msra.mxu0 %v1787
    %2038 = vmatprep.subr.bf16.mxu0 0
    %2039 = vmatpush1.bf16.msra.mxu0 0
    %2040 = vmatprep.subr.bf16.mxu0 0
    %2041 = vmatpush1.bf16.msra.mxu0 0
    %2042 = vmatprep.subr.bf16.mxu0 0
    %2043 = vmatpush1.bf16.msra.mxu0 0
    %2044 = vmatprep.subr.bf16.mxu0 0
    %2045 = vmatpush1.bf16.msra.mxu0 0
    %2046 = vmatprep.subr.bf16.mxu0 0
    %2047 = vmatpush1.bf16.msra.mxu0 0
    %2048 = vmatprep.subr.bf16.mxu0 0
    %2049 = vmatpush1.bf16.msra.mxu0 0
    %2050 = vmatprep.subr.bf16.mxu0 0
    %2051 = vmatpush1.bf16.msra.mxu0 0
    %2052 = vmatprep.subr.bf16.mxu0 0
    %2053 = vmatpush1.bf16.msra.mxu0 0
    %2054 = vmatprep.mubr.bf16.mxu0 0
    %2055 = vmatmul.mubr.bf16.gmra.mrb[0].mxu0 %v1472
    %v2056 = vpop.f32.mrb[0].mxu0
    %v2057 = vadd.f32 %v1960, %v2056
    %v2058 = vpop.f32.mrb[0].mxu0
    %v2059 = vpop.f32.mrb[0].mxu0
    %v2060 = vadd.f32 %v1963, %v2059
    %v2061 = vpop.f32.mrb[0].mxu0
    %2062 = vmatprep.mubr.bf16.mxu0 0
    %2063 = vmatmul.mubr.bf16.gmra.mrb[0].mxu0 %v1477
    %v2064 = vpop.f32.mrb[0].mxu0
    %v2065 = vadd.f32 %v1968, %v2064
    %v2066 = vpop.f32.mrb[0].mxu0
    %v2067 = vpop.f32.mrb[0].mxu0
    %v2068 = vadd.f32 %v1971, %v2067
    %v2069 = vpop.f32.mrb[0].mxu0
    %2070 = vmatprep.mubr.bf16.mxu0 0
    %2071 = vmatmul.mubr.bf16.gmra.mrb[0].mxu0 %v1482
    %v2072 = vpop.f32.mrb[0].mxu0
    %v2073 = vadd.f32 %v1976, %v2072
    %v2074 = vpop.f32.mrb[0].mxu0
    %v2075 = vpop.f32.mrb[0].mxu0
    %v2076 = vadd.f32 %v1979, %v2075
    %v2077 = vpop.f32.mrb[0].mxu0
    %2078 = vmatprep.mubr.bf16.mxu0 0
    %2079 = vmatmul.mubr.bf16.gmra.mrb[0].mxu0 %v1487
    %v2080 = vpop.f32.mrb[0].mxu0
    %v2081 = vadd.f32 %v1984, %v2080
    %v2082 = vpop.f32.mrb[0].mxu0
    %v2083 = vpop.f32.mrb[0].mxu0
    %v2084 = vadd.f32 %v1987, %v2083
    %v2085 = vpop.f32.mrb[0].mxu0
    %2086 = vmatprep.mubr.bf16.mxu0 0
    %2087 = vmatmul.mubr.bf16.gmra.mrb[0].mxu0 %v1492
    %v2088 = vpop.f32.mrb[0].mxu0
    %v2089 = vadd.f32 %v1992, %v2088
    %v2090 = vpop.f32.mrb[0].mxu0
    %v2091 = vpop.f32.mrb[0].mxu0
    %v2092 = vadd.f32 %v1995, %v2091
    %v2093 = vpop.f32.mrb[0].mxu0
    %2094 = vmatprep.mubr.bf16.mxu0 0
    %2095 = vmatmul.mubr.bf16.gmra.mrb[0].mxu0 %v1497
    %v2096 = vpop.f32.mrb[0].mxu0
    %v2097 = vadd.f32 %v2000, %v2096
    %v2098 = vpop.f32.mrb[0].mxu0
    %v2099 = vpop.f32.mrb[0].mxu0
    %v2100 = vadd.f32 %v2003, %v2099
    %v2101 = vpop.f32.mrb[0].mxu0
    %2102 = vmatprep.mubr.bf16.mxu0 0
    %2103 = vmatmul.mubr.bf16.gmra.mrb[0].mxu0 %v1502
    %v2104 = vpop.f32.mrb[0].mxu0
    %v2105 = vadd.f32 %v2008, %v2104
    %v2106 = vpop.f32.mrb[0].mxu0
    %v2107 = vpop.f32.mrb[0].mxu0
    %v2108 = vadd.f32 %v2011, %v2107
    %v2109 = vpop.f32.mrb[0].mxu0
    %2110 = vmatprep.mubr.bf16.mxu0 0
    %2111 = vmatmul.mubr.bf16.gmra.mrb[0].mxu0 %v1507
    %v2112 = vpop.f32.mrb[0].mxu0
    %v2113 = vadd.f32 %v2016, %v2112
    %v2114 = vpop.f32.mrb[0].mxu0
    %v2115 = vpop.f32.mrb[0].mxu0
    %v2116 = vadd.f32 %v2019, %v2115
    %v2117 = vpop.f32.mrb[0].mxu0
    %2118 = vdwg.mxu0
    %v2119 = vsel %vm257, %v2057, 0.0
    %v2120 = vsel %vm257, %v2060, 0.0
    %v2121 = vadd.f32 %v2119, %v2120
    %v2122 = vsel %vm257, %v2065, 0.0
    %v2123 = vadd.f32 %v2121, %v2122
    %v2124 = vsel %vm257, %v2068, 0.0
    %v2125 = vadd.f32 %v2123, %v2124
    %v2126 = vsel %vm257, %v2073, 0.0
    %v2127 = vadd.f32 %v2125, %v2126
    %v2128 = vsel %vm257, %v2076, 0.0
    %v2129 = vadd.f32 %v2127, %v2128
    %v2130 = vsel %vm257, %v2081, 0.0
    %v2131 = vadd.f32 %v2129, %v2130
    %v2132 = vsel %vm257, %v2084, 0.0
    %v2133 = vadd.f32 %v2131, %v2132
    %v2134 = vrot.slane %v2133, 4
    %v2135 = vadd.f32 %v2133, %v2134
    %v2136 = vrot.slane %v2135, 2
    %v2137 = vadd.f32 %v2135, %v2136
    %v2138 = vrot.slane %v2137, 1
    %v2139 = vadd.f32 %v2137, %v2138
    %v2140 = vsel %vm257, %v2089, 0.0
    %v2141 = vsel %vm257, %v2092, 0.0
    %v2142 = vadd.f32 %v2140, %v2141
    %v2143 = vsel %vm257, %v2097, 0.0
    %v2144 = vadd.f32 %v2142, %v2143
    %v2145 = vsel %vm257, %v2100, 0.0
    %v2146 = vadd.f32 %v2144, %v2145
    %v2147 = vsel %vm257, %v2105, 0.0
    %v2148 = vadd.f32 %v2146, %v2147
    %v2149 = vsel %vm257, %v2108, 0.0
    %v2150 = vadd.f32 %v2148, %v2149
    %v2151 = vsel %vm257, %v2113, 0.0
    %v2152 = vadd.f32 %v2150, %v2151
    %v2153 = vsel %vm257, %v2116, 0.0
    %v2154 = vadd.f32 %v2152, %v2153
    %v2155 = vrot.slane %v2154, 4
    %v2156 = vadd.f32 %v2154, %v2155
    %v2157 = vrot.slane %v2156, 2
    %v2158 = vadd.f32 %v2156, %v2157
    %v2159 = vrot.slane %v2158, 1
    %v2160 = vadd.f32 %v2158, %v2159
    %v2161 = vmul.f32 %v2057, %v2057
    %v2162 = vmul.f32 %v2060, %v2060
    %v2163 = vmul.f32 %v2065, %v2065
    %v2164 = vmul.f32 %v2068, %v2068
    %v2165 = vmul.f32 %v2073, %v2073
    %v2166 = vmul.f32 %v2076, %v2076
    %v2167 = vmul.f32 %v2081, %v2081
    %v2168 = vmul.f32 %v2084, %v2084
    %v2169 = vmul.f32 %v2089, %v2089
    %v2170 = vmul.f32 %v2092, %v2092
    %v2171 = vmul.f32 %v2097, %v2097
    %v2172 = vmul.f32 %v2100, %v2100
    %v2173 = vmul.f32 %v2105, %v2105
    %v2174 = vmul.f32 %v2108, %v2108
    %v2175 = vmul.f32 %v2113, %v2113
    %v2176 = vmul.f32 %v2116, %v2116
    %v2177 = vsel %vm257, %v2161, 0.0
    %v2178 = vsel %vm257, %v2162, 0.0
    %v2179 = vadd.f32 %v2177, %v2178
    %v2180 = vsel %vm257, %v2163, 0.0
    %v2181 = vadd.f32 %v2179, %v2180
    %v2182 = vsel %vm257, %v2164, 0.0
    %v2183 = vadd.f32 %v2181, %v2182
    %v2184 = vsel %vm257, %v2165, 0.0
    %v2185 = vadd.f32 %v2183, %v2184
    %v2186 = vsel %vm257, %v2166, 0.0
    %v2187 = vadd.f32 %v2185, %v2186
    %v2188 = vsel %vm257, %v2167, 0.0
    %v2189 = vadd.f32 %v2187, %v2188
    %v2190 = vsel %vm257, %v2168, 0.0
    %v2191 = vadd.f32 %v2189, %v2190
    %v2192 = vrot.slane %v2191, 4
    %v2193 = vadd.f32 %v2191, %v2192
    %v2194 = vrot.slane %v2193, 2
    %v2195 = vadd.f32 %v2193, %v2194
    %v2196 = vrot.slane %v2195, 1
    %v2197 = vadd.f32 %v2195, %v2196
    %v2198 = vsel %vm257, %v2169, 0.0
    %v2199 = vsel %vm257, %v2170, 0.0
    %v2200 = vadd.f32 %v2198, %v2199
    %v2201 = vsel %vm257, %v2171, 0.0
    %v2202 = vadd.f32 %v2200, %v2201
    %v2203 = vsel %vm257, %v2172, 0.0
    %v2204 = vadd.f32 %v2202, %v2203
    %v2205 = vsel %vm257, %v2173, 0.0
    %v2206 = vadd.f32 %v2204, %v2205
    %v2207 = vsel %vm257, %v2174, 0.0
    %v2208 = vadd.f32 %v2206, %v2207
    %v2209 = vsel %vm257, %v2175, 0.0
    %v2210 = vadd.f32 %v2208, %v2209
    %v2211 = vsel %vm257, %v2176, 0.0
    %v2212 = vadd.f32 %v2210, %v2211
    %v2213 = vrot.slane %v2212, 4
    %v2214 = vadd.f32 %v2212, %v2213
    %v2215 = vrot.slane %v2214, 2
    %v2216 = vadd.f32 %v2214, %v2215
    %v2217 = vrot.slane %v2216, 1
    %v2218 = vadd.f32 %v2216, %v2217
    %vm2221 = vcmask 1041409
    %v2222 = vsel %vm2221, %v2160, %v2139
    %vm2226 = vcmask 1043459
    %v2227 = vsel %vm2226, %v2218, %v2197
    %vm2229 = vcmask 1041408
    %v2230 = vsel %vm2229, %v2222, %v2227
    %v2232 = vsel %vm257, %v2230, 0
    %2234 = vmatprep.subr.mxu0 0.0
    %2235 = vmatpush1.msra.mxu0 %v34
    %2236 = vmatprep.subr.mxu0 0.0
    %2237 = vmatpush1.msra.mxu0 %v35
    %2238 = vmatprep.subr.mxu0 0.0
    %2239 = vmatpush1.msra.mxu0 %v36
    %2240 = vmatprep.subr.mxu0 0.0
    %2241 = vmatpush1.msra.mxu0 %v37
    %2242 = vmatprep.subr.mxu0 0.0
    %2243 = vmatpush1.msra.mxu0 %v38
    %2244 = vmatprep.subr.mxu0 0.0
    %2245 = vmatpush1.msra.mxu0 %v39
    %2246 = vmatprep.subr.mxu0 0.0
    %2247 = vmatpush1.msra.mxu0 %v40
    %2248 = vmatprep.subr.mxu0 0.0
    %2249 = vmatpush1.msra.mxu0 %v41
    %2250 = vmatprep.subr.mxu0 0.0
    %2251 = vmatpush1.msra.mxu0 0.0
    %2252 = vmatprep.subr.mxu0 0.0
    %2253 = vmatpush1.msra.mxu0 0.0
    %2254 = vmatprep.subr.mxu0 0.0
    %2255 = vmatpush1.msra.mxu0 0.0
    %2256 = vmatprep.subr.mxu0 0.0
    %2257 = vmatpush1.msra.mxu0 0.0
    %2258 = vmatprep.subr.mxu0 0.0
    %2259 = vmatpush1.msra.mxu0 0.0
    %2260 = vmatprep.subr.mxu0 0.0
    %2261 = vmatpush1.msra.mxu0 0.0
    %2262 = vmatprep.subr.mxu0 0.0
    %2263 = vmatpush1.msra.mxu0 0.0
    %2264 = vmatprep.subr.mxu0 0.0
    %2265 = vmatpush1.msra.mxu0 0.0
    %2266 = vmatprep.subr.mxu0 0.0
    %2267 = vmatpush1.msra.mxu0 0.0
    %2268 = vmatprep.subr.mxu0 0.0
    %2269 = vmatpush1.msra.mxu0 0.0
    %2270 = vmatprep.subr.mxu0 0.0
    %2271 = vmatpush1.msra.mxu0 0.0
    %2272 = vmatprep.subr.mxu0 0.0
    %2273 = vmatpush1.msra.mxu0 0.0
    %2274 = vmatprep.subr.mxu0 0.0
    %2275 = vmatpush1.msra.mxu0 0.0
    %2276 = vmatprep.subr.mxu0 0.0
    %2277 = vmatpush1.msra.mxu0 0.0
    %2278 = vmatprep.subr.mxu0 0.0
    %2279 = vmatpush1.msra.mxu0 0.0
    %2280 = vmatprep.subr.mxu0 0.0
    %2281 = vmatpush1.msra.mxu0 0.0
    %2282 = vmatprep.subr.mxu0 0.0
    %2283 = vmatpush1.msra.mxu0 0.0
    %2284 = vmatprep.subr.mxu0 0.0
    %2285 = vmatpush1.msra.mxu0 0.0
    %2286 = vmatprep.subr.mxu0 0.0
    %2287 = vmatpush1.msra.mxu0 0.0
    %2288 = vmatprep.subr.mxu0 0.0
    %2289 = vmatpush1.msra.mxu0 0.0
    %2290 = vmatprep.subr.mxu0 0.0
    %2291 = vmatpush1.msra.mxu0 0.0
    %2292 = vmatprep.subr.mxu0 0.0
    %2293 = vmatpush1.msra.mxu0 0.0
    %2294 = vmatprep.subr.mxu0 0.0
    %2295 = vmatpush1.msra.mxu0 0.0
    %2296 = vmatprep.subr.mxu0 0.0
    %2297 = vmatpush1.msra.mxu0 0.0
    %2298 = vmatprep.mubr.f32.mxu0 0.0
    %2299 = vmatmul.mubr.f32.gmra.mrb[0].mxu0 %v2232
    %v2300 = vpop.f32.mrb[0].mxu0
    %v2301 = vadd.f32 0.0, %v2300
    %v2302 = vpop.f32.mrb[0].mxu0
    %2303 = vdwg.mxu0
    %v2304 = vmul.f32 %v2301, %v2301
    %v2306 = vrot.slane %v2304, 6
    %v2308 = vsub.f32 %v2301, %v2306
    %v2309 = vmax.f32 %v2308, 0.0
    %v2310 = vadd.f32 %v2309, 1e-05
    %v2311 = vrsqrt.pop %v2310
    %v2314 = vunpack.c.l.s4 1966171168
    %v2315 = vunpack.c.0.s8 %v2314
    %v2316 = vlaneseq
    %v2317 = vshrl.u32 %v2316, 7
    %v2318 = vsub.s32 %v2315, %v2317
    %v2319 = vrot.slane %v2301, %v2318
    %v2320 = vcombine.high %v2319, %v2319
    %v2322 = vunpack.c.l.s4 1966171168
    %v2323 = vunpack.c.0.s8 %v2322
    %v2324 = vlaneseq
    %v2325 = vshrl.u32 %v2324, 7
    %v2326 = vsub.s32 %v2323, %v2325
    %v2327 = vrot.slane %v2319, %v2326
    %v2329 = vunpack.c.l.s4 1966171168
    %v2330 = vunpack.c.0.s8 %v2329
    %v2331 = vlaneseq
    %v2332 = vshrl.u32 %v2331, 7
    %v2333 = vsub.s32 %v2330, %v2332
    %v2334 = vrot.slane %v2320, %v2333
    %v2335 = vlaneseq
    %v2336 = vshrl.u32 %v2335, 7
    %v2337 = vsub.s32 0, %v2336
    %v2338 = vrot.slane %v2327, %v2337
    %v2339 = vlaneseq
    %v2340 = vshrl.u32 %v2339, 7
    %v2341 = vsub.s32 0, %v2340
    %v2342 = vrot.slane %v2334, %v2341
    %v2345 = vsub.f32 %v2057, %v2338
    %v2346 = vsub.f32 %v2060, %v2338
    %v2347 = vsub.f32 %v2065, %v2338
    %v2348 = vsub.f32 %v2068, %v2338
    %v2349 = vsub.f32 %v2073, %v2338
    %v2350 = vsub.f32 %v2076, %v2338
    %v2351 = vsub.f32 %v2081, %v2338
    %v2352 = vsub.f32 %v2084, %v2338
    %v2353 = vsub.f32 %v2089, %v2342
    %v2354 = vsub.f32 %v2092, %v2342
    %v2355 = vsub.f32 %v2097, %v2342
    %v2356 = vsub.f32 %v2100, %v2342
    %v2357 = vsub.f32 %v2105, %v2342
    %v2358 = vsub.f32 %v2108, %v2342
    %v2359 = vsub.f32 %v2113, %v2342
    %v2360 = vsub.f32 %v2116, %v2342
    %v2363 = vunpack.c.l.s4 1966171168
    %v2364 = vunpack.c.0.s8 %v2363
    %v2365 = vlaneseq
    %v2366 = vshrl.u32 %v2365, 7
    %v2367 = vsub.s32 %v2364, %v2366
    %v2368 = vrot.slane %v2311, %v2367
    %v2369 = vcombine.high %v2368, %v2368
    %v2371 = vunpack.c.l.s4 1966171168
    %v2372 = vunpack.c.0.s8 %v2371
    %v2373 = vlaneseq
    %v2374 = vshrl.u32 %v2373, 7
    %v2375 = vsub.s32 %v2372, %v2374
    %v2376 = vrot.slane %v2368, %v2375
    %v2378 = vunpack.c.l.s4 1966171168
    %v2379 = vunpack.c.0.s8 %v2378
    %v2380 = vlaneseq
    %v2381 = vshrl.u32 %v2380, 7
    %v2382 = vsub.s32 %v2379, %v2381
    %v2383 = vrot.slane %v2369, %v2382
    %v2384 = vcombine.high %v2376, %v2376
    %v2385 = vcombine.high %v2383, %v2383
    %v2386 = vlaneseq
    %v2387 = vshrl.u32 %v2386, 7
    %v2388 = vsub.s32 0, %v2387
    %v2389 = vrot.slane %v2384, %v2388
    %v2390 = vlaneseq
    %v2391 = vshrl.u32 %v2390, 7
    %v2392 = vsub.s32 0, %v2391
    %v2393 = vrot.slane %v2385, %v2392
    %v2396 = vmul.f32 %v2345, %v2389
    %v2397 = vmul.f32 %v2346, %v2389
    %v2398 = vmul.f32 %v2347, %v2389
    %v2399 = vmul.f32 %v2348, %v2389
    %v2400 = vmul.f32 %v2349, %v2389
    %v2401 = vmul.f32 %v2350, %v2389
    %v2402 = vmul.f32 %v2351, %v2389
    %v2403 = vmul.f32 %v2352, %v2389
    %v2404 = vmul.f32 %v2353, %v2393
    %v2405 = vmul.f32 %v2354, %v2393
    %v2406 = vmul.f32 %v2355, %v2393
    %v2407 = vmul.f32 %v2356, %v2393
    %v2408 = vmul.f32 %v2357, %v2393
    %v2409 = vmul.f32 %v2358, %v2393
    %v2410 = vmul.f32 %v2359, %v2393
    %v2411 = vmul.f32 %v2360, %v2393
    %v2413 = vlaneseq
    %v2414 = vshrl.u32 %v2413, 7
    %v2415 = vsub.s32 0, %v2414
    %v2416 = vrot.slane %v42, %v2415
    %v2418 = vmul.f32 %v2396, %v2416
    %v2419 = vmul.f32 %v2397, %v2416
    %v2420 = vmul.f32 %v2398, %v2416
    %v2421 = vmul.f32 %v2399, %v2416
    %v2422 = vmul.f32 %v2400, %v2416
    %v2423 = vmul.f32 %v2401, %v2416
    %v2424 = vmul.f32 %v2402, %v2416
    %v2425 = vmul.f32 %v2403, %v2416
    %v2426 = vmul.f32 %v2404, %v2416
    %v2427 = vmul.f32 %v2405, %v2416
    %v2428 = vmul.f32 %v2406, %v2416
    %v2429 = vmul.f32 %v2407, %v2416
    %v2430 = vmul.f32 %v2408, %v2416
    %v2431 = vmul.f32 %v2409, %v2416
    %v2432 = vmul.f32 %v2410, %v2416
    %v2433 = vmul.f32 %v2411, %v2416
    %v2435 = vlaneseq
    %v2436 = vshrl.u32 %v2435, 7
    %v2437 = vsub.s32 0, %v2436
    %v2438 = vrot.slane %v43, %v2437
    %v2440 = vadd.f32 %v2418, %v2438
    %v2441 = vadd.f32 %v2419, %v2438
    %v2442 = vadd.f32 %v2420, %v2438
    %v2443 = vadd.f32 %v2421, %v2438
    %v2444 = vadd.f32 %v2422, %v2438
    %v2445 = vadd.f32 %v2423, %v2438
    %v2446 = vadd.f32 %v2424, %v2438
    %v2447 = vadd.f32 %v2425, %v2438
    %v2448 = vadd.f32 %v2426, %v2438
    %v2449 = vadd.f32 %v2427, %v2438
    %v2450 = vadd.f32 %v2428, %v2438
    %v2451 = vadd.f32 %v2429, %v2438
    %v2452 = vadd.f32 %v2430, %v2438
    %v2453 = vadd.f32 %v2431, %v2438
    %v2454 = vadd.f32 %v2432, %v2438
    %v2455 = vadd.f32 %v2433, %v2438
    %v2456 = vmax.f32 %v2440, 0.0
    %v2457 = vmax.f32 %v2441, 0.0
    %v2458 = vmax.f32 %v2442, 0.0
    %v2459 = vmax.f32 %v2443, 0.0
    %v2460 = vmax.f32 %v2444, 0.0
    %v2461 = vmax.f32 %v2445, 0.0
    %v2462 = vmax.f32 %v2446, 0.0
    %v2463 = vmax.f32 %v2447, 0.0
    %v2464 = vmax.f32 %v2448, 0.0
    %v2465 = vmax.f32 %v2449, 0.0
    %v2466 = vmax.f32 %v2450, 0.0
    %v2467 = vmax.f32 %v2451, 0.0
    %v2468 = vmax.f32 %v2452, 0.0
    %v2469 = vmax.f32 %v2453, 0.0
    %v2470 = vmax.f32 %v2454, 0.0
    %v2471 = vmax.f32 %v2455, 0.0
    %v2474 = vrot.slane %v2470, 7
    %v2475 = vrot.slane %v2471, 7
    %v2476 = vsel %vm73, %v2474, %v2475
    %v2493 = vrot.slane %v2456, 7
    %v2494 = vrot.slane %v2457, 7
    %v2495 = vsel %vm73, %v2493, %v2494
    %v2496 = vrot.slane %v2458, 7
    %v2497 = vsel %vm73, %v2494, %v2496
    %v2498 = vrot.slane %v2459, 7
    %v2499 = vsel %vm73, %v2496, %v2498
    %v2500 = vrot.slane %v2460, 7
    %v2501 = vsel %vm73, %v2498, %v2500
    %v2502 = vrot.slane %v2461, 7
    %v2503 = vsel %vm73, %v2500, %v2502
    %v2504 = vrot.slane %v2462, 7
    %v2505 = vsel %vm73, %v2502, %v2504
    %v2506 = vrot.slane %v2463, 7
    %v2507 = vsel %vm73, %v2504, %v2506
    %v2508 = vrot.slane %v2464, 7
    %v2509 = vsel %vm73, %v2506, %v2508
    %v2510 = vrot.slane %v2465, 7
    %v2511 = vsel %vm73, %v2508, %v2510
    %v2512 = vrot.slane %v2466, 7
    %v2513 = vsel %vm73, %v2510, %v2512
    %v2514 = vrot.slane %v2467, 7
    %v2515 = vsel %vm73, %v2512, %v2514
    %v2516 = vrot.slane %v2468, 7
    %v2517 = vsel %vm73, %v2514, %v2516
    %v2518 = vrot.slane %v2469, 7
    %v2519 = vsel %vm73, %v2516, %v2518
    %v2520 = vsel %vm73, %v2518, %v2474
    %v2536 = vsel %vm73, %v2475, %v2493
    %v2537 = vld [vmem:[%s8] sm:$0xff]
    %v2538 = vld [vmem:[%s8 + $0x8] sm:$0xff]
    %v2539 = vld [vmem:[%s8 + $0x10] sm:$0xff]
    %v2540 = vld [vmem:[%s8 + $0x18] sm:$0xff]
    %v2541 = vld [vmem:[%s8 + $0x20] sm:$0xff]
    %v2542 = vld [vmem:[%s8 + $0x28] sm:$0xff]
    %v2543 = vld [vmem:[%s8 + $0x30] sm:$0xff]
    %v2544 = vld [vmem:[%s8 + $0x38] sm:$0xff]
    %v2545 = vld [vmem:[%s8 + $0x40] sm:$0xff]
    %v2546 = vld [vmem:[%s8 + $0x48] sm:$0xff]
    %v2547 = vld [vmem:[%s8 + $0x50] sm:$0xff]
    %v2548 = vld [vmem:[%s8 + $0x58] sm:$0xff]
    %v2549 = vld [vmem:[%s8 + $0x60] sm:$0xff]
    %v2550 = vld [vmem:[%s8 + $0x68] sm:$0xff]
    %v2551 = vld [vmem:[%s8 + $0x70] sm:$0xff]
    %v2552 = vld [vmem:[%s8 + $0x78] sm:$0xff]
    %2554 = vset.pattern.permute.xlu0 0
    %2555 = vperm.xlu0 %2554, %v2537
    %v2556 = vpop.permute.xlu0 %2555
    %2559 = vset.pattern.permute.xlu0 0
    %2560 = vperm.xlu0 %2559, %v2538
    %v2561 = vpop.permute.xlu0 %2560
    %2564 = vset.pattern.permute.xlu0 0
    %2565 = vperm.xlu0 %2564, %v2539
    %v2566 = vpop.permute.xlu0 %2565
    %2569 = vset.pattern.permute.xlu0 0
    %2570 = vperm.xlu0 %2569, %v2540
    %v2571 = vpop.permute.xlu0 %2570
    %2574 = vset.pattern.permute.xlu0 0
    %2575 = vperm.xlu0 %2574, %v2541
    %v2576 = vpop.permute.xlu0 %2575
    %2579 = vset.pattern.permute.xlu0 0
    %2580 = vperm.xlu0 %2579, %v2542
    %v2581 = vpop.permute.xlu0 %2580
    %2584 = vset.pattern.permute.xlu0 0
    %2585 = vperm.xlu0 %2584, %v2543
    %v2586 = vpop.permute.xlu0 %2585
    %2589 = vset.pattern.permute.xlu0 0
    %2590 = vperm.xlu0 %2589, %v2544
    %v2591 = vpop.permute.xlu0 %2590
    %2594 = vset.pattern.permute.xlu0 0
    %2595 = vperm.xlu0 %2594, %v2545
    %v2596 = vpop.permute.xlu0 %2595
    %2599 = vset.pattern.permute.xlu0 0
    %2600 = vperm.xlu0 %2599, %v2546
    %v2601 = vpop.permute.xlu0 %2600
    %2604 = vset.pattern.permute.xlu0 0
    %2605 = vperm.xlu0 %2604, %v2547
    %v2606 = vpop.permute.xlu0 %2605
    %2609 = vset.pattern.permute.xlu0 0
    %2610 = vperm.xlu0 %2609, %v2548
    %v2611 = vpop.permute.xlu0 %2610
    %2614 = vset.pattern.permute.xlu0 0
    %2615 = vperm.xlu0 %2614, %v2549
    %v2616 = vpop.permute.xlu0 %2615
    %2619 = vset.pattern.permute.xlu0 0
    %2620 = vperm.xlu0 %2619, %v2550
    %v2621 = vpop.permute.xlu0 %2620
    %2624 = vset.pattern.permute.xlu0 0
    %2625 = vperm.xlu0 %2624, %v2551
    %v2626 = vpop.permute.xlu0 %2625
    %2629 = vset.pattern.permute.xlu0 0
    %2630 = vperm.xlu0 %2629, %v2552
    %v2631 = vpop.permute.xlu0 %2630
    %v2633 = vmul.f32 %v2476, %v2556
    %v2634 = vmul.f32 %v2536, %v2561
    %v2635 = vmul.f32 %v2495, %v2566
    %v2636 = vmul.f32 %v2497, %v2571
    %v2637 = vmul.f32 %v2499, %v2576
    %v2638 = vmul.f32 %v2501, %v2581
    %v2639 = vmul.f32 %v2503, %v2586
    %v2640 = vmul.f32 %v2505, %v2591
    %v2641 = vmul.f32 %v2507, %v2596
    %v2642 = vmul.f32 %v2509, %v2601
    %v2643 = vmul.f32 %v2511, %v2606
    %v2644 = vmul.f32 %v2513, %v2611
    %v2645 = vmul.f32 %v2515, %v2616
    %v2646 = vmul.f32 %v2517, %v2621
    %v2647 = vmul.f32 %v2519, %v2626
    %v2648 = vmul.f32 %v2520, %v2631
    %v2649 = vpack.c.bf16 %v2634, %v2633
    %v2650 = vpack.c.bf16 %v2636, %v2635
    %v2651 = vpack.c.bf16 %v2638, %v2637
    %v2652 = vpack.c.bf16 %v2640, %v2639
    %v2653 = vpack.c.bf16 %v2642, %v2641
    %v2654 = vpack.c.bf16 %v2644, %v2643
    %v2655 = vpack.c.bf16 %v2646, %v2645
    %v2656 = vpack.c.bf16 %v2648, %v2647
    %2657 = vst.msk [vmem:[#allocation2] sm:$0xff] %vm257, %v2649
    %2658 = vst.msk [vmem:[#allocation2 + $0x28] sm:$0xff] %vm257, %v2650
    %2659 = vst.msk [vmem:[#allocation2 + $0x50] sm:$0xff] %vm257, %v2651
    %2660 = vst.msk [vmem:[#allocation2 + $0x78] sm:$0xff] %vm257, %v2652
    %2661 = vst.msk [vmem:[#allocation2 + $0xa0] sm:$0xff] %vm257, %v2653
    %2662 = vst.msk [vmem:[#allocation2 + $0xc8] sm:$0xff] %vm257, %v2654
    %2663 = vst.msk [vmem:[#allocation2 + $0xf0] sm:$0xff] %vm257, %v2655
    %2664 = vst.msk [vmem:[#allocation2 + $0x118] sm:$0xff] %vm257, %v2656
    %v2665 = vld [vmem:[%s8] sm:$0xff]
    %v2666 = vld [vmem:[%s8 + $0x8] sm:$0xff]
    %v2667 = vld [vmem:[%s8 + $0x10] sm:$0xff]
    %v2668 = vld [vmem:[%s8 + $0x18] sm:$0xff]
    %v2669 = vld [vmem:[%s8 + $0x20] sm:$0xff]
    %v2670 = vld [vmem:[%s8 + $0x28] sm:$0xff]
    %v2671 = vld [vmem:[%s8 + $0x30] sm:$0xff]
    %v2672 = vld [vmem:[%s8 + $0x38] sm:$0xff]
    %v2673 = vld [vmem:[%s8 + $0x40] sm:$0xff]
    %v2674 = vld [vmem:[%s8 + $0x48] sm:$0xff]
    %v2675 = vld [vmem:[%s8 + $0x50] sm:$0xff]
    %v2676 = vld [vmem:[%s8 + $0x58] sm:$0xff]
    %v2677 = vld [vmem:[%s8 + $0x60] sm:$0xff]
    %v2678 = vld [vmem:[%s8 + $0x68] sm:$0xff]
    %v2679 = vld [vmem:[%s8 + $0x70] sm:$0xff]
    %v2680 = vld [vmem:[%s8 + $0x78] sm:$0xff]
    %2682 = vset.pattern.permute.xlu0 1
    %2683 = vperm.xlu0 %2682, %v2665
    %v2684 = vpop.permute.xlu0 %2683
    %2687 = vset.pattern.permute.xlu0 1
    %2688 = vperm.xlu0 %2687, %v2666
    %v2689 = vpop.permute.xlu0 %2688
    %2692 = vset.pattern.permute.xlu0 1
    %2693 = vperm.xlu0 %2692, %v2667
    %v2694 = vpop.permute.xlu0 %2693
    %2697 = vset.pattern.permute.xlu0 1
    %2698 = vperm.xlu0 %2697, %v2668
    %v2699 = vpop.permute.xlu0 %2698
    %2702 = vset.pattern.permute.xlu0 1
    %2703 = vperm.xlu0 %2702, %v2669
    %v2704 = vpop.permute.xlu0 %2703
    %2707 = vset.pattern.permute.xlu0 1
    %2708 = vperm.xlu0 %2707, %v2670
    %v2709 = vpop.permute.xlu0 %2708
    %2712 = vset.pattern.permute.xlu0 1
    %2713 = vperm.xlu0 %2712, %v2671
    %v2714 = vpop.permute.xlu0 %2713
    %2717 = vset.pattern.permute.xlu0 1
    %2718 = vperm.xlu0 %2717, %v2672
    %v2719 = vpop.permute.xlu0 %2718
    %2722 = vset.pattern.permute.xlu0 1
    %2723 = vperm.xlu0 %2722, %v2673
    %v2724 = vpop.permute.xlu0 %2723
    %2727 = vset.pattern.permute.xlu0 1
    %2728 = vperm.xlu0 %2727, %v2674
    %v2729 = vpop.permute.xlu0 %2728
    %2732 = vset.pattern.permute.xlu0 1
    %2733 = vperm.xlu0 %2732, %v2675
    %v2734 = vpop.permute.xlu0 %2733
    %2737 = vset.pattern.permute.xlu0 1
    %2738 = vperm.xlu0 %2737, %v2676
    %v2739 = vpop.permute.xlu0 %2738
    %2742 = vset.pattern.permute.xlu0 1
    %2743 = vperm.xlu0 %2742, %v2677
    %v2744 = vpop.permute.xlu0 %2743
    %2747 = vset.pattern.permute.xlu0 1
    %2748 = vperm.xlu0 %2747, %v2678
    %v2749 = vpop.permute.xlu0 %2748
    %2752 = vset.pattern.permute.xlu0 1
    %2753 = vperm.xlu0 %2752, %v2679
    %v2754 = vpop.permute.xlu0 %2753
    %2757 = vset.pattern.permute.xlu0 1
    %2758 = vperm.xlu0 %2757, %v2680
    %v2759 = vpop.permute.xlu0 %2758
    %v2761 = vmul.f32 %v2471, %v2684
    %v2762 = vmul.f32 %v2456, %v2689
    %v2763 = vmul.f32 %v2457, %v2694
    %v2764 = vmul.f32 %v2458, %v2699
    %v2765 = vmul.f32 %v2459, %v2704
    %v2766 = vmul.f32 %v2460, %v2709
    %v2767 = vmul.f32 %v2461, %v2714
    %v2768 = vmul.f32 %v2462, %v2719
    %v2769 = vmul.f32 %v2463, %v2724
    %v2770 = vmul.f32 %v2464, %v2729
    %v2771 = vmul.f32 %v2465, %v2734
    %v2772 = vmul.f32 %v2466, %v2739
    %v2773 = vmul.f32 %v2467, %v2744
    %v2774 = vmul.f32 %v2468, %v2749
    %v2775 = vmul.f32 %v2469, %v2754
    %v2776 = vmul.f32 %v2470, %v2759
    %v2777 = vpack.c.bf16 %v2762, %v2761
    %v2778 = vpack.c.bf16 %v2764, %v2763
    %v2779 = vpack.c.bf16 %v2766, %v2765
    %v2780 = vpack.c.bf16 %v2768, %v2767
    %v2781 = vpack.c.bf16 %v2770, %v2769
    %v2782 = vpack.c.bf16 %v2772, %v2771
    %v2783 = vpack.c.bf16 %v2774, %v2773
    %v2784 = vpack.c.bf16 %v2776, %v2775
    %2793 = vrot.lane.b32.xlu0 %v2777, 64
    %v2794 = vpop.permute.xlu0 %2793
    %2795 = vrot.lane.b32.xlu0 %v2778, 64
    %v2796 = vpop.permute.xlu0 %2795
    %2797 = vrot.lane.b32.xlu0 %v2779, 64
    %v2798 = vpop.permute.xlu0 %2797
    %2799 = vrot.lane.b32.xlu0 %v2780, 64
    %v2800 = vpop.permute.xlu0 %2799
    %2801 = vrot.lane.b32.xlu0 %v2781, 64
    %v2802 = vpop.permute.xlu0 %2801
    %2803 = vrot.lane.b32.xlu0 %v2782, 64
    %v2804 = vpop.permute.xlu0 %2803
    %2805 = vrot.lane.b32.xlu0 %v2783, 64
    %v2806 = vpop.permute.xlu0 %2805
    %2807 = vrot.lane.b32.xlu0 %v2784, 64
    %v2808 = vpop.permute.xlu0 %2807
    %2817 = vst.msk [vmem:[#allocation2] sm:$0xff] %vm46, %v2794
    %2818 = vst.msk [vmem:[#allocation2 + $0x28] sm:$0xff] %vm46, %v2796
    %2819 = vst.msk [vmem:[#allocation2 + $0x50] sm:$0xff] %vm46, %v2798
    %2820 = vst.msk [vmem:[#allocation2 + $0x78] sm:$0xff] %vm46, %v2800
    %2821 = vst.msk [vmem:[#allocation2 + $0xa0] sm:$0xff] %vm46, %v2802
    %2822 = vst.msk [vmem:[#allocation2 + $0xc8] sm:$0xff] %vm46, %v2804
    %2823 = vst.msk [vmem:[#allocation2 + $0xf0] sm:$0xff] %vm46, %v2806
    %2824 = vst.msk [vmem:[#allocation2 + $0x118] sm:$0xff] %vm46, %v2808
    %v2825 = vrot.slane %v2471, 1
    %v2827 = vrot.slane %v2456, 1
    %v2828 = vrot.slane %v2457, 1
    %v2829 = vsel %vm428, %v2827, %v2828
    %v2830 = vrot.slane %v2458, 1
    %v2831 = vsel %vm428, %v2828, %v2830
    %v2832 = vrot.slane %v2459, 1
    %v2833 = vsel %vm428, %v2830, %v2832
    %v2834 = vrot.slane %v2460, 1
    %v2835 = vsel %vm428, %v2832, %v2834
    %v2836 = vrot.slane %v2461, 1
    %v2837 = vsel %vm428, %v2834, %v2836
    %v2838 = vrot.slane %v2462, 1
    %v2839 = vsel %vm428, %v2836, %v2838
    %v2840 = vrot.slane %v2463, 1
    %v2841 = vsel %vm428, %v2838, %v2840
    %v2842 = vrot.slane %v2464, 1
    %v2843 = vsel %vm428, %v2840, %v2842
    %v2844 = vrot.slane %v2465, 1
    %v2845 = vsel %vm428, %v2842, %v2844
    %v2846 = vrot.slane %v2466, 1
    %v2847 = vsel %vm428, %v2844, %v2846
    %v2848 = vrot.slane %v2467, 1
    %v2849 = vsel %vm428, %v2846, %v2848
    %v2850 = vrot.slane %v2468, 1
    %v2851 = vsel %vm428, %v2848, %v2850
    %v2852 = vrot.slane %v2469, 1
    %v2853 = vsel %vm428, %v2850, %v2852
    %v2854 = vrot.slane %v2470, 1
    %v2855 = vsel %vm428, %v2852, %v2854
    %v2856 = vsel %vm428, %v2854, %v2825
    %v2873 = vsel %vm428, %v2825, %v2827
    %v2874 = vld [vmem:[%s8] sm:$0xff]
    %v2875 = vld [vmem:[%s8 + $0x8] sm:$0xff]
    %v2876 = vld [vmem:[%s8 + $0x10] sm:$0xff]
    %v2877 = vld [vmem:[%s8 + $0x18] sm:$0xff]
    %v2878 = vld [vmem:[%s8 + $0x20] sm:$0xff]
    %v2879 = vld [vmem:[%s8 + $0x28] sm:$0xff]
    %v2880 = vld [vmem:[%s8 + $0x30] sm:$0xff]
    %v2881 = vld [vmem:[%s8 + $0x38] sm:$0xff]
    %v2882 = vld [vmem:[%s8 + $0x40] sm:$0xff]
    %v2883 = vld [vmem:[%s8 + $0x48] sm:$0xff]
    %v2884 = vld [vmem:[%s8 + $0x50] sm:$0xff]
    %v2885 = vld [vmem:[%s8 + $0x58] sm:$0xff]
    %v2886 = vld [vmem:[%s8 + $0x60] sm:$0xff]
    %v2887 = vld [vmem:[%s8 + $0x68] sm:$0xff]
    %v2888 = vld [vmem:[%s8 + $0x70] sm:$0xff]
    %v2889 = vld [vmem:[%s8 + $0x78] sm:$0xff]
    %2891 = vset.pattern.permute.xlu0 2
    %2892 = vperm.xlu0 %2891, %v2874
    %v2893 = vpop.permute.xlu0 %2892
    %2896 = vset.pattern.permute.xlu0 2
    %2897 = vperm.xlu0 %2896, %v2875
    %v2898 = vpop.permute.xlu0 %2897
    %2901 = vset.pattern.permute.xlu0 2
    %2902 = vperm.xlu0 %2901, %v2876
    %v2903 = vpop.permute.xlu0 %2902
    %2906 = vset.pattern.permute.xlu0 2
    %2907 = vperm.xlu0 %2906, %v2877
    %v2908 = vpop.permute.xlu0 %2907
    %2911 = vset.pattern.permute.xlu0 2
    %2912 = vperm.xlu0 %2911, %v2878
    %v2913 = vpop.permute.xlu0 %2912
    %2916 = vset.pattern.permute.xlu0 2
    %2917 = vperm.xlu0 %2916, %v2879
    %v2918 = vpop.permute.xlu0 %2917
    %2921 = vset.pattern.permute.xlu0 2
    %2922 = vperm.xlu0 %2921, %v2880
    %v2923 = vpop.permute.xlu0 %2922
    %2926 = vset.pattern.permute.xlu0 2
    %2927 = vperm.xlu0 %2926, %v2881
    %v2928 = vpop.permute.xlu0 %2927
    %2931 = vset.pattern.permute.xlu0 2
    %2932 = vperm.xlu0 %2931, %v2882
    %v2933 = vpop.permute.xlu0 %2932
    %2936 = vset.pattern.permute.xlu0 2
    %2937 = vperm.xlu0 %2936, %v2883
    %v2938 = vpop.permute.xlu0 %2937
    %2941 = vset.pattern.permute.xlu0 2
    %2942 = vperm.xlu0 %2941, %v2884
    %v2943 = vpop.permute.xlu0 %2942
    %2946 = vset.pattern.permute.xlu0 2
    %2947 = vperm.xlu0 %2946, %v2885
    %v2948 = vpop.permute.xlu0 %2947
    %2951 = vset.pattern.permute.xlu0 2
    %2952 = vperm.xlu0 %2951, %v2886
    %v2953 = vpop.permute.xlu0 %2952
    %2956 = vset.pattern.permute.xlu0 2
    %2957 = vperm.xlu0 %2956, %v2887
    %v2958 = vpop.permute.xlu0 %2957
    %2961 = vset.pattern.permute.xlu0 2
    %2962 = vperm.xlu0 %2961, %v2888
    %v2963 = vpop.permute.xlu0 %2962
    %2966 = vset.pattern.permute.xlu0 2
    %2967 = vperm.xlu0 %2966, %v2889
    %v2968 = vpop.permute.xlu0 %2967
    %v2970 = vmul.f32 %v2873, %v2893
    %v2971 = vmul.f32 %v2829, %v2898
    %v2972 = vmul.f32 %v2831, %v2903
    %v2973 = vmul.f32 %v2833, %v2908
    %v2974 = vmul.f32 %v2835, %v2913
    %v2975 = vmul.f32 %v2837, %v2918
    %v2976 = vmul.f32 %v2839, %v2923
    %v2977 = vmul.f32 %v2841, %v2928
    %v2978 = vmul.f32 %v2843, %v2933
    %v2979 = vmul.f32 %v2845, %v2938
    %v2980 = vmul.f32 %v2847, %v2943
    %v2981 = vmul.f32 %v2849, %v2948
    %v2982 = vmul.f32 %v2851, %v2953
    %v2983 = vmul.f32 %v2853, %v2958
    %v2984 = vmul.f32 %v2855, %v2963
    %v2985 = vmul.f32 %v2856, %v2968
    %v2986 = vpack.c.bf16 %v2971, %v2970
    %v2987 = vpack.c.bf16 %v2973, %v2972
    %v2988 = vpack.c.bf16 %v2975, %v2974
    %v2989 = vpack.c.bf16 %v2977, %v2976
    %v2990 = vpack.c.bf16 %v2979, %v2978
    %v2991 = vpack.c.bf16 %v2981, %v2980
    %v2992 = vpack.c.bf16 %v2983, %v2982
    %v2993 = vpack.c.bf16 %v2985, %v2984
    %2994 = vst.msk [vmem:[#allocation2 + $0x8] sm:$0xff] %vm257, %v2986
    %2995 = vst.msk [vmem:[#allocation2 + $0x30] sm:$0xff] %vm257, %v2987
    %2996 = vst.msk [vmem:[#allocation2 + $0x58] sm:$0xff] %vm257, %v2988
    %2997 = vst.msk [vmem:[#allocation2 + $0x80] sm:$0xff] %vm257, %v2989
    %2998 = vst.msk [vmem:[#allocation2 + $0xa8] sm:$0xff] %vm257, %v2990
    %2999 = vst.msk [vmem:[#allocation2 + $0xd0] sm:$0xff] %vm257, %v2991
    %3000 = vst.msk [vmem:[#allocation2 + $0xf8] sm:$0xff] %vm257, %v2992
    %3001 = vst.msk [vmem:[#allocation2 + $0x120] sm:$0xff] %vm257, %v2993
    %v3002 = vld [vmem:[%s8] sm:$0xff]
    %v3003 = vld [vmem:[%s8 + $0x8] sm:$0xff]
    %v3004 = vld [vmem:[%s8 + $0x10] sm:$0xff]
    %v3005 = vld [vmem:[%s8 + $0x18] sm:$0xff]
    %v3006 = vld [vmem:[%s8 + $0x20] sm:$0xff]
    %v3007 = vld [vmem:[%s8 + $0x28] sm:$0xff]
    %v3008 = vld [vmem:[%s8 + $0x30] sm:$0xff]
    %v3009 = vld [vmem:[%s8 + $0x38] sm:$0xff]
    %v3010 = vld [vmem:[%s8 + $0x40] sm:$0xff]
    %v3011 = vld [vmem:[%s8 + $0x48] sm:$0xff]
    %v3012 = vld [vmem:[%s8 + $0x50] sm:$0xff]
    %v3013 = vld [vmem:[%s8 + $0x58] sm:$0xff]
    %v3014 = vld [vmem:[%s8 + $0x60] sm:$0xff]
    %v3015 = vld [vmem:[%s8 + $0x68] sm:$0xff]
    %v3016 = vld [vmem:[%s8 + $0x70] sm:$0xff]
    %v3017 = vld [vmem:[%s8 + $0x78] sm:$0xff]
    %3019 = vset.pattern.permute.xlu0 3
    %3020 = vperm.xlu0 %3019, %v3002
    %v3021 = vpop.permute.xlu0 %3020
    %3024 = vset.pattern.permute.xlu0 3
    %3025 = vperm.xlu0 %3024, %v3003
    %v3026 = vpop.permute.xlu0 %3025
    %3029 = vset.pattern.permute.xlu0 3
    %3030 = vperm.xlu0 %3029, %v3004
    %v3031 = vpop.permute.xlu0 %3030
    %3034 = vset.pattern.permute.xlu0 3
    %3035 = vperm.xlu0 %3034, %v3005
    %v3036 = vpop.permute.xlu0 %3035
    %3039 = vset.pattern.permute.xlu0 3
    %3040 = vperm.xlu0 %3039, %v3006
    %v3041 = vpop.permute.xlu0 %3040
    %3044 = vset.pattern.permute.xlu0 3
    %3045 = vperm.xlu0 %3044, %v3007
    %v3046 = vpop.permute.xlu0 %3045
    %3049 = vset.pattern.permute.xlu0 3
    %3050 = vperm.xlu0 %3049, %v3008
    %v3051 = vpop.permute.xlu0 %3050
    %3054 = vset.pattern.permute.xlu0 3
    %3055 = vperm.xlu0 %3054, %v3009
    %v3056 = vpop.permute.xlu0 %3055
    %3059 = vset.pattern.permute.xlu0 3
    %3060 = vperm.xlu0 %3059, %v3010
    %v3061 = vpop.permute.xlu0 %3060
    %3064 = vset.pattern.permute.xlu0 3
    %3065 = vperm.xlu0 %3064, %v3011
    %v3066 = vpop.permute.xlu0 %3065
    %3069 = vset.pattern.permute.xlu0 3
    %3070 = vperm.xlu0 %3069, %v3012
    %v3071 = vpop.permute.xlu0 %3070
    %3074 = vset.pattern.permute.xlu0 3
    %3075 = vperm.xlu0 %3074, %v3013
    %v3076 = vpop.permute.xlu0 %3075
    %3079 = vset.pattern.permute.xlu0 3
    %3080 = vperm.xlu0 %3079, %v3014
    %v3081 = vpop.permute.xlu0 %3080
    %3084 = vset.pattern.permute.xlu0 3
    %3085 = vperm.xlu0 %3084, %v3015
    %v3086 = vpop.permute.xlu0 %3085
    %3089 = vset.pattern.permute.xlu0 3
    %3090 = vperm.xlu0 %3089, %v3016
    %v3091 = vpop.permute.xlu0 %3090
    %3094 = vset.pattern.permute.xlu0 3
    %3095 = vperm.xlu0 %3094, %v3017
    %v3096 = vpop.permute.xlu0 %3095
    %v3098 = vmul.f32 %v2536, %v3021
    %v3099 = vmul.f32 %v2495, %v3026
    %v3100 = vmul.f32 %v2497, %v3031
    %v3101 = vmul.f32 %v2499, %v3036
    %v3102 = vmul.f32 %v2501, %v3041
    %v3103 = vmul.f32 %v2503, %v3046
    %v3104 = vmul.f32 %v2505, %v3051
    %v3105 = vmul.f32 %v2507, %v3056
    %v3106 = vmul.f32 %v2509, %v3061
    %v3107 = vmul.f32 %v2511, %v3066
    %v3108 = vmul.f32 %v2513, %v3071
    %v3109 = vmul.f32 %v2515, %v3076
    %v3110 = vmul.f32 %v2517, %v3081
    %v3111 = vmul.f32 %v2519, %v3086
    %v3112 = vmul.f32 %v2520, %v3091
    %v3113 = vmul.f32 %v2476, %v3096
    %v3114 = vpack.c.bf16 %v3099, %v3098
    %v3115 = vpack.c.bf16 %v3101, %v3100
    %v3116 = vpack.c.bf16 %v3103, %v3102
    %v3117 = vpack.c.bf16 %v3105, %v3104
    %v3118 = vpack.c.bf16 %v3107, %v3106
    %v3119 = vpack.c.bf16 %v3109, %v3108
    %v3120 = vpack.c.bf16 %v3111, %v3110
    %v3121 = vpack.c.bf16 %v3113, %v3112
    %3130 = vrot.lane.b32.xlu0 %v3114, 64
    %v3131 = vpop.permute.xlu0 %3130
    %3132 = vrot.lane.b32.xlu0 %v3115, 64
    %v3133 = vpop.permute.xlu0 %3132
    %3134 = vrot.lane.b32.xlu0 %v3116, 64
    %v3135 = vpop.permute.xlu0 %3134
    %3136 = vrot.lane.b32.xlu0 %v3117, 64
    %v3137 = vpop.permute.xlu0 %3136
    %3138 = vrot.lane.b32.xlu0 %v3118, 64
    %v3139 = vpop.permute.xlu0 %3138
    %3140 = vrot.lane.b32.xlu0 %v3119, 64
    %v3141 = vpop.permute.xlu0 %3140
    %3142 = vrot.lane.b32.xlu0 %v3120, 64
    %v3143 = vpop.permute.xlu0 %3142
    %3144 = vrot.lane.b32.xlu0 %v3121, 64
    %v3145 = vpop.permute.xlu0 %3144
    %3154 = vst.msk [vmem:[#allocation2 + $0x8] sm:$0xff] %vm46, %v3131
    %3155 = vst.msk [vmem:[#allocation2 + $0x30] sm:$0xff] %vm46, %v3133
    %3156 = vst.msk [vmem:[#allocation2 + $0x58] sm:$0xff] %vm46, %v3135
    %3157 = vst.msk [vmem:[#allocation2 + $0x80] sm:$0xff] %vm46, %v3137
    %3158 = vst.msk [vmem:[#allocation2 + $0xa8] sm:$0xff] %vm46, %v3139
    %3159 = vst.msk [vmem:[#allocation2 + $0xd0] sm:$0xff] %vm46, %v3141
    %3160 = vst.msk [vmem:[#allocation2 + $0xf8] sm:$0xff] %vm46, %v3143
    %3161 = vst.msk [vmem:[#allocation2 + $0x120] sm:$0xff] %vm46, %v3145
    %v3162 = vld [vmem:[%s8] sm:$0xff]
    %v3163 = vld [vmem:[%s8 + $0x8] sm:$0xff]
    %v3164 = vld [vmem:[%s8 + $0x10] sm:$0xff]
    %v3165 = vld [vmem:[%s8 + $0x18] sm:$0xff]
    %v3166 = vld [vmem:[%s8 + $0x20] sm:$0xff]
    %v3167 = vld [vmem:[%s8 + $0x28] sm:$0xff]
    %v3168 = vld [vmem:[%s8 + $0x30] sm:$0xff]
    %v3169 = vld [vmem:[%s8 + $0x38] sm:$0xff]
    %v3170 = vld [vmem:[%s8 + $0x40] sm:$0xff]
    %v3171 = vld [vmem:[%s8 + $0x48] sm:$0xff]
    %v3172 = vld [vmem:[%s8 + $0x50] sm:$0xff]
    %v3173 = vld [vmem:[%s8 + $0x58] sm:$0xff]
    %v3174 = vld [vmem:[%s8 + $0x60] sm:$0xff]
    %v3175 = vld [vmem:[%s8 + $0x68] sm:$0xff]
    %v3176 = vld [vmem:[%s8 + $0x70] sm:$0xff]
    %v3177 = vld [vmem:[%s8 + $0x78] sm:$0xff]
    %3179 = vset.pattern.permute.xlu0 4
    %3180 = vperm.xlu0 %3179, %v3162
    %v3181 = vpop.permute.xlu0 %3180
    %3184 = vset.pattern.permute.xlu0 4
    %3185 = vperm.xlu0 %3184, %v3163
    %v3186 = vpop.permute.xlu0 %3185
    %3189 = vset.pattern.permute.xlu0 4
    %3190 = vperm.xlu0 %3189, %v3164
    %v3191 = vpop.permute.xlu0 %3190
    %3194 = vset.pattern.permute.xlu0 4
    %3195 = vperm.xlu0 %3194, %v3165
    %v3196 = vpop.permute.xlu0 %3195
    %3199 = vset.pattern.permute.xlu0 4
    %3200 = vperm.xlu0 %3199, %v3166
    %v3201 = vpop.permute.xlu0 %3200
    %3204 = vset.pattern.permute.xlu0 4
    %3205 = vperm.xlu0 %3204, %v3167
    %v3206 = vpop.permute.xlu0 %3205
    %3209 = vset.pattern.permute.xlu0 4
    %3210 = vperm.xlu0 %3209, %v3168
    %v3211 = vpop.permute.xlu0 %3210
    %3214 = vset.pattern.permute.xlu0 4
    %3215 = vperm.xlu0 %3214, %v3169
    %v3216 = vpop.permute.xlu0 %3215
    %3219 = vset.pattern.permute.xlu0 4
    %3220 = vperm.xlu0 %3219, %v3170
    %v3221 = vpop.permute.xlu0 %3220
    %3224 = vset.pattern.permute.xlu0 4
    %3225 = vperm.xlu0 %3224, %v3171
    %v3226 = vpop.permute.xlu0 %3225
    %3229 = vset.pattern.permute.xlu0 4
    %3230 = vperm.xlu0 %3229, %v3172
    %v3231 = vpop.permute.xlu0 %3230
    %3234 = vset.pattern.permute.xlu0 4
    %3235 = vperm.xlu0 %3234, %v3173
    %v3236 = vpop.permute.xlu0 %3235
    %3239 = vset.pattern.permute.xlu0 4
    %3240 = vperm.xlu0 %3239, %v3174
    %v3241 = vpop.permute.xlu0 %3240
    %3244 = vset.pattern.permute.xlu0 4
    %3245 = vperm.xlu0 %3244, %v3175
    %v3246 = vpop.permute.xlu0 %3245
    %3249 = vset.pattern.permute.xlu0 4
    %3250 = vperm.xlu0 %3249, %v3176
    %v3251 = vpop.permute.xlu0 %3250
    %3254 = vset.pattern.permute.xlu0 4
    %3255 = vperm.xlu0 %3254, %v3177
    %v3256 = vpop.permute.xlu0 %3255
    %v3258 = vmul.f32 %v2456, %v3181
    %v3259 = vmul.f32 %v2457, %v3186
    %v3260 = vmul.f32 %v2458, %v3191
    %v3261 = vmul.f32 %v2459, %v3196
    %v3262 = vmul.f32 %v2460, %v3201
    %v3263 = vmul.f32 %v2461, %v3206
    %v3264 = vmul.f32 %v2462, %v3211
    %v3265 = vmul.f32 %v2463, %v3216
    %v3266 = vmul.f32 %v2464, %v3221
    %v3267 = vmul.f32 %v2465, %v3226
    %v3268 = vmul.f32 %v2466, %v3231
    %v3269 = vmul.f32 %v2467, %v3236
    %v3270 = vmul.f32 %v2468, %v3241
    %v3271 = vmul.f32 %v2469, %v3246
    %v3272 = vmul.f32 %v2470, %v3251
    %v3273 = vmul.f32 %v2471, %v3256
    %v3274 = vpack.c.bf16 %v3259, %v3258
    %v3275 = vpack.c.bf16 %v3261, %v3260
    %v3276 = vpack.c.bf16 %v3263, %v3262
    %v3277 = vpack.c.bf16 %v3265, %v3264
    %v3278 = vpack.c.bf16 %v3267, %v3266
    %v3279 = vpack.c.bf16 %v3269, %v3268
    %v3280 = vpack.c.bf16 %v3271, %v3270
    %v3281 = vpack.c.bf16 %v3273, %v3272
    %3282 = vst.msk [vmem:[#allocation2 + $0x10] sm:$0xff] %vm257, %v3274
    %3283 = vst.msk [vmem:[#allocation2 + $0x38] sm:$0xff] %vm257, %v3275
    %3284 = vst.msk [vmem:[#allocation2 + $0x60] sm:$0xff] %vm257, %v3276
    %3285 = vst.msk [vmem:[#allocation2 + $0x88] sm:$0xff] %vm257, %v3277
    %3286 = vst.msk [vmem:[#allocation2 + $0xb0] sm:$0xff] %vm257, %v3278
    %3287 = vst.msk [vmem:[#allocation2 + $0xd8] sm:$0xff] %vm257, %v3279
    %3288 = vst.msk [vmem:[#allocation2 + $0x100] sm:$0xff] %vm257, %v3280
    %3289 = vst.msk [vmem:[#allocation2 + $0x128] sm:$0xff] %vm257, %v3281
    %v3290 = vld [vmem:[%s8] sm:$0xff]
    %v3291 = vld [vmem:[%s8 + $0x8] sm:$0xff]
    %v3292 = vld [vmem:[%s8 + $0x10] sm:$0xff]
    %v3293 = vld [vmem:[%s8 + $0x18] sm:$0xff]
    %v3294 = vld [vmem:[%s8 + $0x20] sm:$0xff]
    %v3295 = vld [vmem:[%s8 + $0x28] sm:$0xff]
    %v3296 = vld [vmem:[%s8 + $0x30] sm:$0xff]
    %v3297 = vld [vmem:[%s8 + $0x38] sm:$0xff]
    %v3298 = vld [vmem:[%s8 + $0x40] sm:$0xff]
    %v3299 = vld [vmem:[%s8 + $0x48] sm:$0xff]
    %v3300 = vld [vmem:[%s8 + $0x50] sm:$0xff]
    %v3301 = vld [vmem:[%s8 + $0x58] sm:$0xff]
    %v3302 = vld [vmem:[%s8 + $0x60] sm:$0xff]
    %v3303 = vld [vmem:[%s8 + $0x68] sm:$0xff]
    %v3304 = vld [vmem:[%s8 + $0x70] sm:$0xff]
    %v3305 = vld [vmem:[%s8 + $0x78] sm:$0xff]
    %3307 = vset.pattern.permute.xlu0 5
    %3308 = vperm.xlu0 %3307, %v3290
    %v3309 = vpop.permute.xlu0 %3308
    %3312 = vset.pattern.permute.xlu0 5
    %3313 = vperm.xlu0 %3312, %v3291
    %v3314 = vpop.permute.xlu0 %3313
    %3317 = vset.pattern.permute.xlu0 5
    %3318 = vperm.xlu0 %3317, %v3292
    %v3319 = vpop.permute.xlu0 %3318
    %3322 = vset.pattern.permute.xlu0 5
    %3323 = vperm.xlu0 %3322, %v3293
    %v3324 = vpop.permute.xlu0 %3323
    %3327 = vset.pattern.permute.xlu0 5
    %3328 = vperm.xlu0 %3327, %v3294
    %v3329 = vpop.permute.xlu0 %3328
    %3332 = vset.pattern.permute.xlu0 5
    %3333 = vperm.xlu0 %3332, %v3295
    %v3334 = vpop.permute.xlu0 %3333
    %3337 = vset.pattern.permute.xlu0 5
    %3338 = vperm.xlu0 %3337, %v3296
    %v3339 = vpop.permute.xlu0 %3338
    %3342 = vset.pattern.permute.xlu0 5
    %3343 = vperm.xlu0 %3342, %v3297
    %v3344 = vpop.permute.xlu0 %3343
    %3347 = vset.pattern.permute.xlu0 5
    %3348 = vperm.xlu0 %3347, %v3298
    %v3349 = vpop.permute.xlu0 %3348
    %3352 = vset.pattern.permute.xlu0 5
    %3353 = vperm.xlu0 %3352, %v3299
    %v3354 = vpop.permute.xlu0 %3353
    %3357 = vset.pattern.permute.xlu0 5
    %3358 = vperm.xlu0 %3357, %v3300
    %v3359 = vpop.permute.xlu0 %3358
    %3362 = vset.pattern.permute.xlu0 5
    %3363 = vperm.xlu0 %3362, %v3301
    %v3364 = vpop.permute.xlu0 %3363
    %3367 = vset.pattern.permute.xlu0 5
    %3368 = vperm.xlu0 %3367, %v3302
    %v3369 = vpop.permute.xlu0 %3368
    %3372 = vset.pattern.permute.xlu0 5
    %3373 = vperm.xlu0 %3372, %v3303
    %v3374 = vpop.permute.xlu0 %3373
    %3377 = vset.pattern.permute.xlu0 5
    %3378 = vperm.xlu0 %3377, %v3304
    %v3379 = vpop.permute.xlu0 %3378
    %3382 = vset.pattern.permute.xlu0 5
    %3383 = vperm.xlu0 %3382, %v3305
    %v3384 = vpop.permute.xlu0 %3383
    %v3386 = vmul.f32 %v2829, %v3309
    %v3387 = vmul.f32 %v2831, %v3314
    %v3388 = vmul.f32 %v2833, %v3319
    %v3389 = vmul.f32 %v2835, %v3324
    %v3390 = vmul.f32 %v2837, %v3329
    %v3391 = vmul.f32 %v2839, %v3334
    %v3392 = vmul.f32 %v2841, %v3339
    %v3393 = vmul.f32 %v2843, %v3344
    %v3394 = vmul.f32 %v2845, %v3349
    %v3395 = vmul.f32 %v2847, %v3354
    %v3396 = vmul.f32 %v2849, %v3359
    %v3397 = vmul.f32 %v2851, %v3364
    %v3398 = vmul.f32 %v2853, %v3369
    %v3399 = vmul.f32 %v2855, %v3374
    %v3400 = vmul.f32 %v2856, %v3379
    %v3401 = vmul.f32 %v2873, %v3384
    %v3402 = vpack.c.bf16 %v3387, %v3386
    %v3403 = vpack.c.bf16 %v3389, %v3388
    %v3404 = vpack.c.bf16 %v3391, %v3390
    %v3405 = vpack.c.bf16 %v3393, %v3392
    %v3406 = vpack.c.bf16 %v3395, %v3394
    %v3407 = vpack.c.bf16 %v3397, %v3396
    %v3408 = vpack.c.bf16 %v3399, %v3398
    %v3409 = vpack.c.bf16 %v3401, %v3400
    %3418 = vrot.lane.b32.xlu0 %v3402, 64
    %v3419 = vpop.permute.xlu0 %3418
    %3420 = vrot.lane.b32.xlu0 %v3403, 64
    %v3421 = vpop.permute.xlu0 %3420
    %3422 = vrot.lane.b32.xlu0 %v3404, 64
    %v3423 = vpop.permute.xlu0 %3422
    %3424 = vrot.lane.b32.xlu0 %v3405, 64
    %v3425 = vpop.permute.xlu0 %3424
    %3426 = vrot.lane.b32.xlu0 %v3406, 64
    %v3427 = vpop.permute.xlu0 %3426
    %3428 = vrot.lane.b32.xlu0 %v3407, 64
    %v3429 = vpop.permute.xlu0 %3428
    %3430 = vrot.lane.b32.xlu0 %v3408, 64
    %v3431 = vpop.permute.xlu0 %3430
    %3432 = vrot.lane.b32.xlu0 %v3409, 64
    %v3433 = vpop.permute.xlu0 %3432
    %3442 = vst.msk [vmem:[#allocation2 + $0x10] sm:$0xff] %vm46, %v3419
    %3443 = vst.msk [vmem:[#allocation2 + $0x38] sm:$0xff] %vm46, %v3421
    %3444 = vst.msk [vmem:[#allocation2 + $0x60] sm:$0xff] %vm46, %v3423
    %3445 = vst.msk [vmem:[#allocation2 + $0x88] sm:$0xff] %vm46, %v3425
    %3446 = vst.msk [vmem:[#allocation2 + $0xb0] sm:$0xff] %vm46, %v3427
    %3447 = vst.msk [vmem:[#allocation2 + $0xd8] sm:$0xff] %vm46, %v3429
    %3448 = vst.msk [vmem:[#allocation2 + $0x100] sm:$0xff] %vm46, %v3431
    %3449 = vst.msk [vmem:[#allocation2 + $0x128] sm:$0xff] %vm46, %v3433
    %v3450 = vld [vmem:[%s8] sm:$0xff]
    %v3451 = vld [vmem:[%s8 + $0x8] sm:$0xff]
    %v3452 = vld [vmem:[%s8 + $0x10] sm:$0xff]
    %v3453 = vld [vmem:[%s8 + $0x18] sm:$0xff]
    %v3454 = vld [vmem:[%s8 + $0x20] sm:$0xff]
    %v3455 = vld [vmem:[%s8 + $0x28] sm:$0xff]
    %v3456 = vld [vmem:[%s8 + $0x30] sm:$0xff]
    %v3457 = vld [vmem:[%s8 + $0x38] sm:$0xff]
    %v3458 = vld [vmem:[%s8 + $0x40] sm:$0xff]
    %v3459 = vld [vmem:[%s8 + $0x48] sm:$0xff]
    %v3460 = vld [vmem:[%s8 + $0x50] sm:$0xff]
    %v3461 = vld [vmem:[%s8 + $0x58] sm:$0xff]
    %v3462 = vld [vmem:[%s8 + $0x60] sm:$0xff]
    %v3463 = vld [vmem:[%s8 + $0x68] sm:$0xff]
    %v3464 = vld [vmem:[%s8 + $0x70] sm:$0xff]
    %v3465 = vld [vmem:[%s8 + $0x78] sm:$0xff]
    %3467 = vset.pattern.permute.xlu0 6
    %3468 = vperm.xlu0 %3467, %v3450
    %v3469 = vpop.permute.xlu0 %3468
    %3472 = vset.pattern.permute.xlu0 6
    %3473 = vperm.xlu0 %3472, %v3451
    %v3474 = vpop.permute.xlu0 %3473
    %3477 = vset.pattern.permute.xlu0 6
    %3478 = vperm.xlu0 %3477, %v3452
    %v3479 = vpop.permute.xlu0 %3478
    %3482 = vset.pattern.permute.xlu0 6
    %3483 = vperm.xlu0 %3482, %v3453
    %v3484 = vpop.permute.xlu0 %3483
    %3487 = vset.pattern.permute.xlu0 6
    %3488 = vperm.xlu0 %3487, %v3454
    %v3489 = vpop.permute.xlu0 %3488
    %3492 = vset.pattern.permute.xlu0 6
    %3493 = vperm.xlu0 %3492, %v3455
    %v3494 = vpop.permute.xlu0 %3493
    %3497 = vset.pattern.permute.xlu0 6
    %3498 = vperm.xlu0 %3497, %v3456
    %v3499 = vpop.permute.xlu0 %3498
    %3502 = vset.pattern.permute.xlu0 6
    %3503 = vperm.xlu0 %3502, %v3457
    %v3504 = vpop.permute.xlu0 %3503
    %3507 = vset.pattern.permute.xlu0 6
    %3508 = vperm.xlu0 %3507, %v3458
    %v3509 = vpop.permute.xlu0 %3508
    %3512 = vset.pattern.permute.xlu0 6
    %3513 = vperm.xlu0 %3512, %v3459
    %v3514 = vpop.permute.xlu0 %3513
    %3517 = vset.pattern.permute.xlu0 6
    %3518 = vperm.xlu0 %3517, %v3460
    %v3519 = vpop.permute.xlu0 %3518
    %3522 = vset.pattern.permute.xlu0 6
    %3523 = vperm.xlu0 %3522, %v3461
    %v3524 = vpop.permute.xlu0 %3523
    %3527 = vset.pattern.permute.xlu0 6
    %3528 = vperm.xlu0 %3527, %v3462
    %v3529 = vpop.permute.xlu0 %3528
    %3532 = vset.pattern.permute.xlu0 6
    %3533 = vperm.xlu0 %3532, %v3463
    %v3534 = vpop.permute.xlu0 %3533
    %3537 = vset.pattern.permute.xlu0 6
    %3538 = vperm.xlu0 %3537, %v3464
    %v3539 = vpop.permute.xlu0 %3538
    %3542 = vset.pattern.permute.xlu0 6
    %3543 = vperm.xlu0 %3542, %v3465
    %v3544 = vpop.permute.xlu0 %3543
    %v3546 = vmul.f32 %v2495, %v3469
    %v3547 = vmul.f32 %v2497, %v3474
    %v3548 = vmul.f32 %v2499, %v3479
    %v3549 = vmul.f32 %v2501, %v3484
    %v3550 = vmul.f32 %v2503, %v3489
    %v3551 = vmul.f32 %v2505, %v3494
    %v3552 = vmul.f32 %v2507, %v3499
    %v3553 = vmul.f32 %v2509, %v3504
    %v3554 = vmul.f32 %v2511, %v3509
    %v3555 = vmul.f32 %v2513, %v3514
    %v3556 = vmul.f32 %v2515, %v3519
    %v3557 = vmul.f32 %v2517, %v3524
    %v3558 = vmul.f32 %v2519, %v3529
    %v3559 = vmul.f32 %v2520, %v3534
    %v3560 = vmul.f32 %v2476, %v3539
    %v3561 = vmul.f32 %v2536, %v3544
    %v3562 = vpack.c.bf16 %v3547, %v3546
    %v3563 = vpack.c.bf16 %v3549, %v3548
    %v3564 = vpack.c.bf16 %v3551, %v3550
    %v3565 = vpack.c.bf16 %v3553, %v3552
    %v3566 = vpack.c.bf16 %v3555, %v3554
    %v3567 = vpack.c.bf16 %v3557, %v3556
    %v3568 = vpack.c.bf16 %v3559, %v3558
    %v3569 = vpack.c.bf16 %v3561, %v3560
    %3570 = vst.msk [vmem:[#allocation2 + $0x18] sm:$0xff] %vm257, %v3562
    %3571 = vst.msk [vmem:[#allocation2 + $0x40] sm:$0xff] %vm257, %v3563
    %3572 = vst.msk [vmem:[#allocation2 + $0x68] sm:$0xff] %vm257, %v3564
    %3573 = vst.msk [vmem:[#allocation2 + $0x90] sm:$0xff] %vm257, %v3565
    %3574 = vst.msk [vmem:[#allocation2 + $0xb8] sm:$0xff] %vm257, %v3566
    %3575 = vst.msk [vmem:[#allocation2 + $0xe0] sm:$0xff] %vm257, %v3567
    %3576 = vst.msk [vmem:[#allocation2 + $0x108] sm:$0xff] %vm257, %v3568
    %3577 = vst.msk [vmem:[#allocation2 + $0x130] sm:$0xff] %vm257, %v3569
    %v3578 = vld [vmem:[%s8] sm:$0xff]
    %v3579 = vld [vmem:[%s8 + $0x8] sm:$0xff]
    %v3580 = vld [vmem:[%s8 + $0x10] sm:$0xff]
    %v3581 = vld [vmem:[%s8 + $0x18] sm:$0xff]
    %v3582 = vld [vmem:[%s8 + $0x20] sm:$0xff]
    %v3583 = vld [vmem:[%s8 + $0x28] sm:$0xff]
    %v3584 = vld [vmem:[%s8 + $0x30] sm:$0xff]
    %v3585 = vld [vmem:[%s8 + $0x38] sm:$0xff]
    %v3586 = vld [vmem:[%s8 + $0x40] sm:$0xff]
    %v3587 = vld [vmem:[%s8 + $0x48] sm:$0xff]
    %v3588 = vld [vmem:[%s8 + $0x50] sm:$0xff]
    %v3589 = vld [vmem:[%s8 + $0x58] sm:$0xff]
    %v3590 = vld [vmem:[%s8 + $0x60] sm:$0xff]
    %v3591 = vld [vmem:[%s8 + $0x68] sm:$0xff]
    %v3592 = vld [vmem:[%s8 + $0x70] sm:$0xff]
    %v3593 = vld [vmem:[%s8 + $0x78] sm:$0xff]
    %3595 = vset.pattern.permute.xlu0 7
    %3596 = vperm.xlu0 %3595, %v3578
    %v3597 = vpop.permute.xlu0 %3596
    %3600 = vset.pattern.permute.xlu0 7
    %3601 = vperm.xlu0 %3600, %v3579
    %v3602 = vpop.permute.xlu0 %3601
    %3605 = vset.pattern.permute.xlu0 7
    %3606 = vperm.xlu0 %3605, %v3580
    %v3607 = vpop.permute.xlu0 %3606
    %3610 = vset.pattern.permute.xlu0 7
    %3611 = vperm.xlu0 %3610, %v3581
    %v3612 = vpop.permute.xlu0 %3611
    %3615 = vset.pattern.permute.xlu0 7
    %3616 = vperm.xlu0 %3615, %v3582
    %v3617 = vpop.permute.xlu0 %3616
    %3620 = vset.pattern.permute.xlu0 7
    %3621 = vperm.xlu0 %3620, %v3583
    %v3622 = vpop.permute.xlu0 %3621
    %3625 = vset.pattern.permute.xlu0 7
    %3626 = vperm.xlu0 %3625, %v3584
    %v3627 = vpop.permute.xlu0 %3626
    %3630 = vset.pattern.permute.xlu0 7
    %3631 = vperm.xlu0 %3630, %v3585
    %v3632 = vpop.permute.xlu0 %3631
    %3635 = vset.pattern.permute.xlu0 7
    %3636 = vperm.xlu0 %3635, %v3586
    %v3637 = vpop.permute.xlu0 %3636
    %3640 = vset.pattern.permute.xlu0 7
    %3641 = vperm.xlu0 %3640, %v3587
    %v3642 = vpop.permute.xlu0 %3641
    %3645 = vset.pattern.permute.xlu0 7
    %3646 = vperm.xlu0 %3645, %v3588
    %v3647 = vpop.permute.xlu0 %3646
    %3650 = vset.pattern.permute.xlu0 7
    %3651 = vperm.xlu0 %3650, %v3589
    %v3652 = vpop.permute.xlu0 %3651
    %3655 = vset.pattern.permute.xlu0 7
    %3656 = vperm.xlu0 %3655, %v3590
    %v3657 = vpop.permute.xlu0 %3656
    %3660 = vset.pattern.permute.xlu0 7
    %3661 = vperm.xlu0 %3660, %v3591
    %v3662 = vpop.permute.xlu0 %3661
    %3665 = vset.pattern.permute.xlu0 7
    %3666 = vperm.xlu0 %3665, %v3592
    %v3667 = vpop.permute.xlu0 %3666
    %3670 = vset.pattern.permute.xlu0 7
    %3671 = vperm.xlu0 %3670, %v3593
    %v3672 = vpop.permute.xlu0 %3671
    %v3674 = vmul.f32 %v2457, %v3597
    %v3675 = vmul.f32 %v2458, %v3602
    %v3676 = vmul.f32 %v2459, %v3607
    %v3677 = vmul.f32 %v2460, %v3612
    %v3678 = vmul.f32 %v2461, %v3617
    %v3679 = vmul.f32 %v2462, %v3622
    %v3680 = vmul.f32 %v2463, %v3627
    %v3681 = vmul.f32 %v2464, %v3632
    %v3682 = vmul.f32 %v2465, %v3637
    %v3683 = vmul.f32 %v2466, %v3642
    %v3684 = vmul.f32 %v2467, %v3647
    %v3685 = vmul.f32 %v2468, %v3652
    %v3686 = vmul.f32 %v2469, %v3657
    %v3687 = vmul.f32 %v2470, %v3662
    %v3688 = vmul.f32 %v2471, %v3667
    %v3689 = vmul.f32 %v2456, %v3672
    %v3690 = vpack.c.bf16 %v3675, %v3674
    %v3691 = vpack.c.bf16 %v3677, %v3676
    %v3692 = vpack.c.bf16 %v3679, %v3678
    %v3693 = vpack.c.bf16 %v3681, %v3680
    %v3694 = vpack.c.bf16 %v3683, %v3682
    %v3695 = vpack.c.bf16 %v3685, %v3684
    %v3696 = vpack.c.bf16 %v3687, %v3686
    %v3697 = vpack.c.bf16 %v3689, %v3688
    %3706 = vrot.lane.b32.xlu0 %v3690, 64
    %v3707 = vpop.permute.xlu0 %3706
    %3708 = vrot.lane.b32.xlu0 %v3691, 64
    %v3709 = vpop.permute.xlu0 %3708
    %3710 = vrot.lane.b32.xlu0 %v3692, 64
    %v3711 = vpop.permute.xlu0 %3710
    %3712 = vrot.lane.b32.xlu0 %v3693, 64
    %v3713 = vpop.permute.xlu0 %3712
    %3714 = vrot.lane.b32.xlu0 %v3694, 64
    %v3715 = vpop.permute.xlu0 %3714
    %3716 = vrot.lane.b32.xlu0 %v3695, 64
    %v3717 = vpop.permute.xlu0 %3716
    %3718 = vrot.lane.b32.xlu0 %v3696, 64
    %v3719 = vpop.permute.xlu0 %3718
    %3720 = vrot.lane.b32.xlu0 %v3697, 64
    %v3721 = vpop.permute.xlu0 %3720
    %3730 = vst.msk [vmem:[#allocation2 + $0x18] sm:$0xff] %vm46, %v3707
    %3731 = vst.msk [vmem:[#allocation2 + $0x40] sm:$0xff] %vm46, %v3709
    %3732 = vst.msk [vmem:[#allocation2 + $0x68] sm:$0xff] %vm46, %v3711
    %3733 = vst.msk [vmem:[#allocation2 + $0x90] sm:$0xff] %vm46, %v3713
    %3734 = vst.msk [vmem:[#allocation2 + $0xb8] sm:$0xff] %vm46, %v3715
    %3735 = vst.msk [vmem:[#allocation2 + $0xe0] sm:$0xff] %vm46, %v3717
    %3736 = vst.msk [vmem:[#allocation2 + $0x108] sm:$0xff] %vm46, %v3719
    %3737 = vst.msk [vmem:[#allocation2 + $0x130] sm:$0xff] %vm46, %v3721
    %v3738 = vld [vmem:[%s8] sm:$0xff]
    %v3739 = vld [vmem:[%s8 + $0x8] sm:$0xff]
    %v3740 = vld [vmem:[%s8 + $0x10] sm:$0xff]
    %v3741 = vld [vmem:[%s8 + $0x18] sm:$0xff]
    %v3742 = vld [vmem:[%s8 + $0x20] sm:$0xff]
    %v3743 = vld [vmem:[%s8 + $0x28] sm:$0xff]
    %v3744 = vld [vmem:[%s8 + $0x30] sm:$0xff]
    %v3745 = vld [vmem:[%s8 + $0x38] sm:$0xff]
    %v3746 = vld [vmem:[%s8 + $0x40] sm:$0xff]
    %v3747 = vld [vmem:[%s8 + $0x48] sm:$0xff]
    %v3748 = vld [vmem:[%s8 + $0x50] sm:$0xff]
    %v3749 = vld [vmem:[%s8 + $0x58] sm:$0xff]
    %v3750 = vld [vmem:[%s8 + $0x60] sm:$0xff]
    %v3751 = vld [vmem:[%s8 + $0x68] sm:$0xff]
    %v3752 = vld [vmem:[%s8 + $0x70] sm:$0xff]
    %v3753 = vld [vmem:[%s8 + $0x78] sm:$0xff]
    %3755 = vset.pattern.permute.xlu0 8
    %3756 = vperm.xlu0 %3755, %v3738
    %v3757 = vpop.permute.xlu0 %3756
    %3760 = vset.pattern.permute.xlu0 8
    %3761 = vperm.xlu0 %3760, %v3739
    %v3762 = vpop.permute.xlu0 %3761
    %3765 = vset.pattern.permute.xlu0 8
    %3766 = vperm.xlu0 %3765, %v3740
    %v3767 = vpop.permute.xlu0 %3766
    %3770 = vset.pattern.permute.xlu0 8
    %3771 = vperm.xlu0 %3770, %v3741
    %v3772 = vpop.permute.xlu0 %3771
    %3775 = vset.pattern.permute.xlu0 8
    %3776 = vperm.xlu0 %3775, %v3742
    %v3777 = vpop.permute.xlu0 %3776
    %3780 = vset.pattern.permute.xlu0 8
    %3781 = vperm.xlu0 %3780, %v3743
    %v3782 = vpop.permute.xlu0 %3781
    %3785 = vset.pattern.permute.xlu0 8
    %3786 = vperm.xlu0 %3785, %v3744
    %v3787 = vpop.permute.xlu0 %3786
    %3790 = vset.pattern.permute.xlu0 8
    %3791 = vperm.xlu0 %3790, %v3745
    %v3792 = vpop.permute.xlu0 %3791
    %3795 = vset.pattern.permute.xlu0 8
    %3796 = vperm.xlu0 %3795, %v3746
    %v3797 = vpop.permute.xlu0 %3796
    %3800 = vset.pattern.permute.xlu0 8
    %3801 = vperm.xlu0 %3800, %v3747
    %v3802 = vpop.permute.xlu0 %3801
    %3805 = vset.pattern.permute.xlu0 8
    %3806 = vperm.xlu0 %3805, %v3748
    %v3807 = vpop.permute.xlu0 %3806
    %3810 = vset.pattern.permute.xlu0 8
    %3811 = vperm.xlu0 %3810, %v3749
    %v3812 = vpop.permute.xlu0 %3811
    %3815 = vset.pattern.permute.xlu0 8
    %3816 = vperm.xlu0 %3815, %v3750
    %v3817 = vpop.permute.xlu0 %3816
    %3820 = vset.pattern.permute.xlu0 8
    %3821 = vperm.xlu0 %3820, %v3751
    %v3822 = vpop.permute.xlu0 %3821
    %3825 = vset.pattern.permute.xlu0 8
    %3826 = vperm.xlu0 %3825, %v3752
    %v3827 = vpop.permute.xlu0 %3826
    %3830 = vset.pattern.permute.xlu0 8
    %3831 = vperm.xlu0 %3830, %v3753
    %v3832 = vpop.permute.xlu0 %3831
    %v3834 = vmul.f32 %v2831, %v3757
    %v3835 = vmul.f32 %v2833, %v3762
    %v3836 = vmul.f32 %v2835, %v3767
    %v3837 = vmul.f32 %v2837, %v3772
    %v3838 = vmul.f32 %v2839, %v3777
    %v3839 = vmul.f32 %v2841, %v3782
    %v3840 = vmul.f32 %v2843, %v3787
    %v3841 = vmul.f32 %v2845, %v3792
    %v3842 = vmul.f32 %v2847, %v3797
    %v3843 = vmul.f32 %v2849, %v3802
    %v3844 = vmul.f32 %v2851, %v3807
    %v3845 = vmul.f32 %v2853, %v3812
    %v3846 = vmul.f32 %v2855, %v3817
    %v3847 = vmul.f32 %v2856, %v3822
    %v3848 = vmul.f32 %v2873, %v3827
    %v3849 = vmul.f32 %v2829, %v3832
    %v3850 = vpack.c.bf16 %v3835, %v3834
    %v3851 = vpack.c.bf16 %v3837, %v3836
    %v3852 = vpack.c.bf16 %v3839, %v3838
    %v3853 = vpack.c.bf16 %v3841, %v3840
    %v3854 = vpack.c.bf16 %v3843, %v3842
    %v3855 = vpack.c.bf16 %v3845, %v3844
    %v3856 = vpack.c.bf16 %v3847, %v3846
    %v3857 = vpack.c.bf16 %v3849, %v3848
    %3858 = vst.msk [vmem:[#allocation2 + $0x20] sm:$0xff] %vm257, %v3850
    %3859 = vst.msk [vmem:[#allocation2 + $0x48] sm:$0xff] %vm257, %v3851
    %3860 = vst.msk [vmem:[#allocation2 + $0x70] sm:$0xff] %vm257, %v3852
    %3861 = vst.msk [vmem:[#allocation2 + $0x98] sm:$0xff] %vm257, %v3853
    %3862 = vst.msk [vmem:[#allocation2 + $0xc0] sm:$0xff] %vm257, %v3854
    %3863 = vst.msk [vmem:[#allocation2 + $0xe8] sm:$0xff] %vm257, %v3855
    %3864 = vst.msk [vmem:[#allocation2 + $0x110] sm:$0xff] %vm257, %v3856
    %3865 = vst.msk [vmem:[#allocation2 + $0x138] sm:$0xff] %vm257, %v3857
    %v3866 = vld [vmem:[#allocation2] sm:$0xff]
    %v3867 = vld [vmem:[#allocation2 + $0x8] sm:$0xff]
    %v3868 = vld [vmem:[#allocation2 + $0x10] sm:$0xff]
    %v3869 = vld [vmem:[#allocation2 + $0x18] sm:$0xff]
    %v3870 = vld [vmem:[#allocation2 + $0x20] sm:$0xff]
    %v3871 = vld [vmem:[#allocation2 + $0x28] sm:$0xff]
    %v3872 = vld [vmem:[#allocation2 + $0x30] sm:$0xff]
    %v3873 = vld [vmem:[#allocation2 + $0x38] sm:$0xff]
    %v3874 = vld [vmem:[#allocation2 + $0x40] sm:$0xff]
    %v3875 = vld [vmem:[#allocation2 + $0x48] sm:$0xff]
    %v3876 = vld [vmem:[#allocation2 + $0x50] sm:$0xff]
    %v3877 = vld [vmem:[#allocation2 + $0x58] sm:$0xff]
    %v3878 = vld [vmem:[#allocation2 + $0x60] sm:$0xff]
    %v3879 = vld [vmem:[#allocation2 + $0x68] sm:$0xff]
    %v3880 = vld [vmem:[#allocation2 + $0x70] sm:$0xff]
    %v3881 = vld [vmem:[#allocation2 + $0x78] sm:$0xff]
    %v3882 = vld [vmem:[#allocation2 + $0x80] sm:$0xff]
    %v3883 = vld [vmem:[#allocation2 + $0x88] sm:$0xff]
    %v3884 = vld [vmem:[#allocation2 + $0x90] sm:$0xff]
    %v3885 = vld [vmem:[#allocation2 + $0x98] sm:$0xff]
    %v3886 = vld [vmem:[#allocation2 + $0xa0] sm:$0xff]
    %v3887 = vld [vmem:[#allocation2 + $0xa8] sm:$0xff]
    %v3888 = vld [vmem:[#allocation2 + $0xb0] sm:$0xff]
    %v3889 = vld [vmem:[#allocation2 + $0xb8] sm:$0xff]
    %v3890 = vld [vmem:[#allocation2 + $0xc0] sm:$0xff]
    %v3891 = vld [vmem:[#allocation2 + $0xc8] sm:$0xff]
    %v3892 = vld [vmem:[#allocation2 + $0xd0] sm:$0xff]
    %v3893 = vld [vmem:[#allocation2 + $0xd8] sm:$0xff]
    %v3894 = vld [vmem:[#allocation2 + $0xe0] sm:$0xff]
    %v3895 = vld [vmem:[#allocation2 + $0xe8] sm:$0xff]
    %v3896 = vld [vmem:[#allocation2 + $0xf0] sm:$0xff]
    %v3897 = vld [vmem:[#allocation2 + $0xf8] sm:$0xff]
    %v3898 = vld [vmem:[#allocation2 + $0x100] sm:$0xff]
    %v3899 = vld [vmem:[#allocation2 + $0x108] sm:$0xff]
    %v3900 = vld [vmem:[#allocation2 + $0x110] sm:$0xff]
    %v3901 = vld [vmem:[#allocation2 + $0x118] sm:$0xff]
    %v3902 = vld [vmem:[#allocation2 + $0x120] sm:$0xff]
    %v3903 = vld [vmem:[#allocation2 + $0x128] sm:$0xff]
    %v3904 = vld [vmem:[#allocation2 + $0x130] sm:$0xff]
    %v3905 = vld [vmem:[#allocation2 + $0x138] sm:$0xff]
    %v3906 = vld [vmem:[%s2] sm:$0xf]
    %v3907 = vld [vmem:[%s2 + $0x4] sm:$0xf]
    %v3908 = vld [vmem:[%s2 + $0x8] sm:$0xf]
    %v3909 = vld [vmem:[%s2 + $0xc] sm:$0xf]
    %v3910 = vld [vmem:[%s2 + $0x10] sm:$0xf]
    %v3911 = vld [vmem:[%s2 + $0x14] sm:$0xf]
    %v3912 = vld [vmem:[%s2 + $0x18] sm:$0xf]
    %v3913 = vld [vmem:[%s2 + $0x1c] sm:$0xf]
    %v3914 = vld [vmem:[%s2 + $0x20] sm:$0xf]
    %v3915 = vld [vmem:[%s2 + $0x24] sm:$0xf]
    %v3916 = vld [vmem:[%s2 + $0x28] sm:$0xf]
    %v3917 = vld [vmem:[%s2 + $0x2c] sm:$0xf]
    %v3918 = vld [vmem:[%s2 + $0x30] sm:$0xf]
    %v3919 = vld [vmem:[%s2 + $0x34] sm:$0xf]
    %v3920 = vld [vmem:[%s2 + $0x38] sm:$0xf]
    %v3921 = vld [vmem:[%s2 + $0x3c] sm:$0xf]
    %v3922 = vld [vmem:[%s2 + $0x40] sm:$0xf]
    %v3923 = vld [vmem:[%s2 + $0x44] sm:$0xf]
    %v3924 = vld [vmem:[%s2 + $0x48] sm:$0xf]
    %v3925 = vld [vmem:[%s2 + $0x4c] sm:$0xf]
    %v3926 = vld [vmem:[%s2 + $0x50] sm:$0xf]
    %v3927 = vld [vmem:[%s2 + $0x54] sm:$0xf]
    %v3928 = vld [vmem:[%s2 + $0x58] sm:$0xf]
    %v3929 = vld [vmem:[%s2 + $0x5c] sm:$0xf]
    %v3930 = vld [vmem:[%s2 + $0x60] sm:$0xf]
    %v3931 = vld [vmem:[%s2 + $0x64] sm:$0xf]
    %v3932 = vld [vmem:[%s2 + $0x68] sm:$0xf]
    %v3933 = vld [vmem:[%s2 + $0x6c] sm:$0xf]
    %v3934 = vld [vmem:[%s2 + $0x70] sm:$0xf]
    %v3935 = vld [vmem:[%s2 + $0x74] sm:$0xf]
    %v3936 = vld [vmem:[%s2 + $0x78] sm:$0xf]
    %v3937 = vld [vmem:[%s2 + $0x7c] sm:$0xf]
    %v3938 = vld [vmem:[%s2 + $0x80] sm:$0xf]
    %v3939 = vld [vmem:[%s2 + $0x84] sm:$0xf]
    %v3940 = vld [vmem:[%s2 + $0x88] sm:$0xf]
    %v3941 = vld [vmem:[%s2 + $0x8c] sm:$0xf]
    %v3942 = vld [vmem:[%s2 + $0x90] sm:$0xf]
    %v3943 = vld [vmem:[%s2 + $0x94] sm:$0xf]
    %v3944 = vld [vmem:[%s2 + $0x98] sm:$0xf]
    %v3945 = vld [vmem:[%s2 + $0x9c] sm:$0xf]
    %v3946 = vld [vmem:[%s2 + $0xa0] sm:$0xf]
    %v3947 = vld [vmem:[%s2 + $0xa4] sm:$0xf]
    %v3948 = vld [vmem:[%s2 + $0xa8] sm:$0xf]
    %v3949 = vld [vmem:[%s2 + $0xac] sm:$0xf]
    %v3950 = vld [vmem:[%s2 + $0xb0] sm:$0xf]
    %v3951 = vld [vmem:[%s2 + $0xb4] sm:$0xf]
    %v3952 = vld [vmem:[%s2 + $0xb8] sm:$0xf]
    %v3953 = vld [vmem:[%s2 + $0xbc] sm:$0xf]
    %v3954 = vld [vmem:[%s2 + $0xc0] sm:$0xf]
    %v3955 = vld [vmem:[%s2 + $0xc4] sm:$0xf]
    %v3956 = vld [vmem:[%s2 + $0xc8] sm:$0xf]
    %v3957 = vld [vmem:[%s2 + $0xcc] sm:$0xf]
    %v3958 = vld [vmem:[%s2 + $0xd0] sm:$0xf]
    %v3959 = vld [vmem:[%s2 + $0xd4] sm:$0xf]
    %v3960 = vld [vmem:[%s2 + $0xd8] sm:$0xf]
    %v3961 = vld [vmem:[%s2 + $0xdc] sm:$0xf]
    %v3962 = vld [vmem:[%s2 + $0xe0] sm:$0xf]
    %v3963 = vld [vmem:[%s2 + $0xe4] sm:$0xf]
    %v3964 = vld [vmem:[%s2 + $0xe8] sm:$0xf]
    %v3965 = vld [vmem:[%s2 + $0xec] sm:$0xf]
    %v3966 = vld [vmem:[%s2 + $0xf0] sm:$0xf]
    %v3967 = vld [vmem:[%s2 + $0xf4] sm:$0xf]
    %v3968 = vld [vmem:[%s2 + $0xf8] sm:$0xf]
    %v3969 = vld [vmem:[%s2 + $0xfc] sm:$0xf]
    %v3970 = vld [vmem:[%s2 + $0x100] sm:$0xf]
    %v3971 = vld [vmem:[%s2 + $0x104] sm:$0xf]
    %v3972 = vld [vmem:[%s2 + $0x108] sm:$0xf]
    %v3973 = vld [vmem:[%s2 + $0x10c] sm:$0xf]
    %v3974 = vld [vmem:[%s2 + $0x110] sm:$0xf]
    %v3975 = vld [vmem:[%s2 + $0x114] sm:$0xf]
    %v3976 = vld [vmem:[%s2 + $0x118] sm:$0xf]
    %v3977 = vld [vmem:[%s2 + $0x11c] sm:$0xf]
    %v3978 = vld [vmem:[%s2 + $0x120] sm:$0xf]
    %v3979 = vld [vmem:[%s2 + $0x124] sm:$0xf]
    %v3980 = vld [vmem:[%s2 + $0x128] sm:$0xf]
    %v3981 = vld [vmem:[%s2 + $0x12c] sm:$0xf]
    %v3982 = vld [vmem:[%s2 + $0x130] sm:$0xf]
    %v3983 = vld [vmem:[%s2 + $0x134] sm:$0xf]
    %v3984 = vld [vmem:[%s2 + $0x138] sm:$0xf]
    %v3985 = vld [vmem:[%s2 + $0x13c] sm:$0xf]
    %v4066 = vunpack.c.l.b16 %v3906
    %v4067 = vunpack.c.l.b16 %v3907
    %v4068 = vunpack.c.l.b16 %v3908
    %v4069 = vunpack.c.l.b16 %v3909
    %v4070 = vunpack.c.l.b16 %v3910
    %v4071 = vunpack.c.l.b16 %v3911
    %v4072 = vunpack.c.l.b16 %v3912
    %v4073 = vunpack.c.l.b16 %v3913
    %v4074 = vunpack.c.l.b16 %v3914
    %v4075 = vunpack.c.l.b16 %v3915
    %v4076 = vunpack.c.l.b16 %v3916
    %v4077 = vunpack.c.l.b16 %v3917
    %v4078 = vunpack.c.l.b16 %v3918
    %v4079 = vunpack.c.l.b16 %v3919
    %v4080 = vunpack.c.l.b16 %v3920
    %v4081 = vunpack.c.l.b16 %v3921
    %v4082 = vunpack.c.l.b16 %v3922
    %v4083 = vunpack.c.l.b16 %v3923
    %v4084 = vunpack.c.l.b16 %v3924
    %v4085 = vunpack.c.l.b16 %v3925
    %v4086 = vunpack.c.l.b16 %v3926
    %v4087 = vunpack.c.l.b16 %v3927
    %v4088 = vunpack.c.l.b16 %v3928
    %v4089 = vunpack.c.l.b16 %v3929
    %v4090 = vunpack.c.l.b16 %v3930
    %v4091 = vunpack.c.l.b16 %v3931
    %v4092 = vunpack.c.l.b16 %v3932
    %v4093 = vunpack.c.l.b16 %v3933
    %v4094 = vunpack.c.l.b16 %v3934
    %v4095 = vunpack.c.l.b16 %v3935
    %v4096 = vunpack.c.l.b16 %v3936
    %v4097 = vunpack.c.l.b16 %v3937
    %v4098 = vunpack.c.l.b16 %v3938
    %v4099 = vunpack.c.l.b16 %v3939
    %v4100 = vunpack.c.l.b16 %v3940
    %v4101 = vunpack.c.l.b16 %v3941
    %v4102 = vunpack.c.l.b16 %v3942
    %v4103 = vunpack.c.l.b16 %v3943
    %v4104 = vunpack.c.l.b16 %v3944
    %v4105 = vunpack.c.l.b16 %v3945
    %v4106 = vunpack.c.l.b16 %v3946
    %v4107 = vunpack.c.l.b16 %v3947
    %v4108 = vunpack.c.l.b16 %v3948
    %v4109 = vunpack.c.l.b16 %v3949
    %v4110 = vunpack.c.l.b16 %v3950
    %v4111 = vunpack.c.l.b16 %v3951
    %v4112 = vunpack.c.l.b16 %v3952
    %v4113 = vunpack.c.l.b16 %v3953
    %v4114 = vunpack.c.l.b16 %v3954
    %v4115 = vunpack.c.l.b16 %v3955
    %v4116 = vunpack.c.l.b16 %v3956
    %v4117 = vunpack.c.l.b16 %v3957
    %v4118 = vunpack.c.l.b16 %v3958
    %v4119 = vunpack.c.l.b16 %v3959
    %v4120 = vunpack.c.l.b16 %v3960
    %v4121 = vunpack.c.l.b16 %v3961
    %v4122 = vunpack.c.l.b16 %v3962
    %v4123 = vunpack.c.l.b16 %v3963
    %v4124 = vunpack.c.l.b16 %v3964
    %v4125 = vunpack.c.l.b16 %v3965
    %v4126 = vunpack.c.l.b16 %v3966
    %v4127 = vunpack.c.l.b16 %v3967
    %v4128 = vunpack.c.l.b16 %v3968
    %v4129 = vunpack.c.l.b16 %v3969
    %v4130 = vunpack.c.l.b16 %v3970
    %v4131 = vunpack.c.l.b16 %v3971
    %v4132 = vunpack.c.l.b16 %v3972
    %v4133 = vunpack.c.l.b16 %v3973
    %v4134 = vunpack.c.l.b16 %v3974
    %v4135 = vunpack.c.l.b16 %v3975
    %v4136 = vunpack.c.l.b16 %v3976
    %v4137 = vunpack.c.l.b16 %v3977
    %v4138 = vunpack.c.l.b16 %v3978
    %v4139 = vunpack.c.l.b16 %v3979
    %v4140 = vunpack.c.l.b16 %v3980
    %v4141 = vunpack.c.l.b16 %v3981
    %v4142 = vunpack.c.l.b16 %v3982
    %v4143 = vunpack.c.l.b16 %v3983
    %v4144 = vunpack.c.l.b16 %v3984
    %v4145 = vunpack.c.l.b16 %v3985
    %v4146 = vpack.c.b16 %v4067, %v4066
    %v4147 = vpack.c.b16 %v4069, %v4068
    %v4148 = vpack.c.b16 %v4071, %v4070
    %v4149 = vpack.c.b16 %v4073, %v4072
    %v4150 = vpack.c.b16 %v4075, %v4074
    %v4151 = vpack.c.b16 %v4077, %v4076
    %v4152 = vpack.c.b16 %v4079, %v4078
    %v4153 = vpack.c.b16 %v4081, %v4080
    %v4154 = vpack.c.b16 %v4083, %v4082
    %v4155 = vpack.c.b16 %v4085, %v4084
    %v4156 = vpack.c.b16 %v4087, %v4086
    %v4157 = vpack.c.b16 %v4089, %v4088
    %v4158 = vpack.c.b16 %v4091, %v4090
    %v4159 = vpack.c.b16 %v4093, %v4092
    %v4160 = vpack.c.b16 %v4095, %v4094
    %v4161 = vpack.c.b16 %v4097, %v4096
    %v4162 = vpack.c.b16 %v4099, %v4098
    %v4163 = vpack.c.b16 %v4101, %v4100
    %v4164 = vpack.c.b16 %v4103, %v4102
    %v4165 = vpack.c.b16 %v4105, %v4104
    %v4166 = vpack.c.b16 %v4107, %v4106
    %v4167 = vpack.c.b16 %v4109, %v4108
    %v4168 = vpack.c.b16 %v4111, %v4110
    %v4169 = vpack.c.b16 %v4113, %v4112
    %v4170 = vpack.c.b16 %v4115, %v4114
    %v4171 = vpack.c.b16 %v4117, %v4116
    %v4172 = vpack.c.b16 %v4119, %v4118
    %v4173 = vpack.c.b16 %v4121, %v4120
    %v4174 = vpack.c.b16 %v4123, %v4122
    %v4175 = vpack.c.b16 %v4125, %v4124
    %v4176 = vpack.c.b16 %v4127, %v4126
    %v4177 = vpack.c.b16 %v4129, %v4128
    %v4178 = vpack.c.b16 %v4131, %v4130
    %v4179 = vpack.c.b16 %v4133, %v4132
    %v4180 = vpack.c.b16 %v4135, %v4134
    %v4181 = vpack.c.b16 %v4137, %v4136
    %v4182 = vpack.c.b16 %v4139, %v4138
    %v4183 = vpack.c.b16 %v4141, %v4140
    %v4184 = vpack.c.b16 %v4143, %v4142
    %v4185 = vpack.c.b16 %v4145, %v4144
    %4226 = vmatprep.subr.bf16.mxu0 0
    %4227 = vmatpush1.bf16.msra.mxu0 %v4146
    %4228 = vmatprep.subr.bf16.mxu0 0
    %4229 = vmatpush1.bf16.msra.mxu0 %v4147
    %4230 = vmatprep.subr.bf16.mxu0 0
    %4231 = vmatpush1.bf16.msra.mxu0 %v4148
    %4232 = vmatprep.subr.bf16.mxu0 0
    %4233 = vmatpush1.bf16.msra.mxu0 %v4149
    %4234 = vmatprep.subr.bf16.mxu0 0
    %4235 = vmatpush1.bf16.msra.mxu0 %v4150
    %4236 = vmatprep.subr.bf16.mxu0 0
    %4237 = vmatpush1.bf16.msra.mxu0 %v4151
    %4238 = vmatprep.subr.bf16.mxu0 0
    %4239 = vmatpush1.bf16.msra.mxu0 %v4152
    %4240 = vmatprep.subr.bf16.mxu0 0
    %4241 = vmatpush1.bf16.msra.mxu0 %v4153
    %4242 = vmatprep.subr.bf16.mxu0 0
    %4243 = vmatpush1.bf16.msra.mxu0 %v4154
    %4244 = vmatprep.subr.bf16.mxu0 0
    %4245 = vmatpush1.bf16.msra.mxu0 %v4155
    %4246 = vmatprep.subr.bf16.mxu0 0
    %4247 = vmatpush1.bf16.msra.mxu0 %v4156
    %4248 = vmatprep.subr.bf16.mxu0 0
    %4249 = vmatpush1.bf16.msra.mxu0 %v4157
    %4250 = vmatprep.subr.bf16.mxu0 0
    %4251 = vmatpush1.bf16.msra.mxu0 %v4158
    %4252 = vmatprep.subr.bf16.mxu0 0
    %4253 = vmatpush1.bf16.msra.mxu0 %v4159
    %4254 = vmatprep.subr.bf16.mxu0 0
    %4255 = vmatpush1.bf16.msra.mxu0 %v4160
    %4256 = vmatprep.subr.bf16.mxu0 0
    %4257 = vmatpush1.bf16.msra.mxu0 %v4161
    %4258 = vmatprep.mubr.bf16.mxu0 %v3867
    %4259 = vmatmul.mubr.bf16.gmra.mrb[0].mxu0 %v3866
    %v4260 = vpop.f32.mrb[0].mxu0
    %v4261 = vadd.f32 0.0, %v4260
    %v4262 = vpop.f32.mrb[0].mxu0
    %v4263 = vpop.f32.mrb[0].mxu0
    %v4264 = vadd.f32 0.0, %v4263
    %v4265 = vpop.f32.mrb[0].mxu0
    %4266 = vmatprep.mubr.bf16.mxu0 %v3872
    %4267 = vmatmul.mubr.bf16.gmra.mrb[0].mxu0 %v3871
    %v4268 = vpop.f32.mrb[0].mxu0
    %v4269 = vadd.f32 0.0, %v4268
    %v4270 = vpop.f32.mrb[0].mxu0
    %v4271 = vpop.f32.mrb[0].mxu0
    %v4272 = vadd.f32 0.0, %v4271
    %v4273 = vpop.f32.mrb[0].mxu0
    %4274 = vmatprep.mubr.bf16.mxu0 %v3877
    %4275 = vmatmul.mubr.bf16.gmra.mrb[0].mxu0 %v3876
    %v4276 = vpop.f32.mrb[0].mxu0
    %v4277 = vadd.f32 0.0, %v4276
    %v4278 = vpop.f32.mrb[0].mxu0
    %v4279 = vpop.f32.mrb[0].mxu0
    %v4280 = vadd.f32 0.0, %v4279
    %v4281 = vpop.f32.mrb[0].mxu0
    %4282 = vmatprep.mubr.bf16.mxu0 %v3882
    %4283 = vmatmul.mubr.bf16.gmra.mrb[0].mxu0 %v3881
    %v4284 = vpop.f32.mrb[0].mxu0
    %v4285 = vadd.f32 0.0, %v4284
    %v4286 = vpop.f32.mrb[0].mxu0
    %v4287 = vpop.f32.mrb[0].mxu0
    %v4288 = vadd.f32 0.0, %v4287
    %v4289 = vpop.f32.mrb[0].mxu0
    %4290 = vmatprep.mubr.bf16.mxu0 %v3887
    %4291 = vmatmul.mubr.bf16.gmra.mrb[0].mxu0 %v3886
    %v4292 = vpop.f32.mrb[0].mxu0
    %v4293 = vadd.f32 0.0, %v4292
    %v4294 = vpop.f32.mrb[0].mxu0
    %v4295 = vpop.f32.mrb[0].mxu0
    %v4296 = vadd.f32 0.0, %v4295
    %v4297 = vpop.f32.mrb[0].mxu0
    %4298 = vmatprep.mubr.bf16.mxu0 %v3892
    %4299 = vmatmul.mubr.bf16.gmra.mrb[0].mxu0 %v3891
    %v4300 = vpop.f32.mrb[0].mxu0
    %v4301 = vadd.f32 0.0, %v4300
    %v4302 = vpop.f32.mrb[0].mxu0
    %v4303 = vpop.f32.mrb[0].mxu0
    %v4304 = vadd.f32 0.0, %v4303
    %v4305 = vpop.f32.mrb[0].mxu0
    %4306 = vmatprep.mubr.bf16.mxu0 %v3897
    %4307 = vmatmul.mubr.bf16.gmra.mrb[0].mxu0 %v3896
    %v4308 = vpop.f32.mrb[0].mxu0
    %v4309 = vadd.f32 0.0, %v4308
    %v4310 = vpop.f32.mrb[0].mxu0
    %v4311 = vpop.f32.mrb[0].mxu0
    %v4312 = vadd.f32 0.0, %v4311
    %v4313 = vpop.f32.mrb[0].mxu0
    %4314 = vmatprep.mubr.bf16.mxu0 %v3902
    %4315 = vmatmul.mubr.bf16.gmra.mrb[0].mxu0 %v3901
    %v4316 = vpop.f32.mrb[0].mxu0
    %v4317 = vadd.f32 0.0, %v4316
    %v4318 = vpop.f32.mrb[0].mxu0
    %v4319 = vpop.f32.mrb[0].mxu0
    %v4320 = vadd.f32 0.0, %v4319
    %v4321 = vpop.f32.mrb[0].mxu0
    %4322 = vdwg.mxu0
    %4323 = vmatprep.subr.bf16.mxu0 0
    %4324 = vmatpush1.bf16.msra.mxu0 %v4162
    %4325 = vmatprep.subr.bf16.mxu0 0
    %4326 = vmatpush1.bf16.msra.mxu0 %v4163
    %4327 = vmatprep.subr.bf16.mxu0 0
    %4328 = vmatpush1.bf16.msra.mxu0 %v4164
    %4329 = vmatprep.subr.bf16.mxu0 0
    %4330 = vmatpush1.bf16.msra.mxu0 %v4165
    %4331 = vmatprep.subr.bf16.mxu0 0
    %4332 = vmatpush1.bf16.msra.mxu0 %v4166
    %4333 = vmatprep.subr.bf16.mxu0 0
    %4334 = vmatpush1.bf16.msra.mxu0 %v4167
    %4335 = vmatprep.subr.bf16.mxu0 0
    %4336 = vmatpush1.bf16.msra.mxu0 %v4168
    %4337 = vmatprep.subr.bf16.mxu0 0
    %4338 = vmatpush1.bf16.msra.mxu0 %v4169
    %4339 = vmatprep.subr.bf16.mxu0 0
    %4340 = vmatpush1.bf16.msra.mxu0 %v4170
    %4341 = vmatprep.subr.bf16.mxu0 0
    %4342 = vmatpush1.bf16.msra.mxu0 %v4171
    %4343 = vmatprep.subr.bf16.mxu0 0
    %4344 = vmatpush1.bf16.msra.mxu0 %v4172
    %4345 = vmatprep.subr.bf16.mxu0 0
    %4346 = vmatpush1.bf16.msra.mxu0 %v4173
    %4347 = vmatprep.subr.bf16.mxu0 0
    %4348 = vmatpush1.bf16.msra.mxu0 %v4174
    %4349 = vmatprep.subr.bf16.mxu0 0
    %4350 = vmatpush1.bf16.msra.mxu0 %v4175
    %4351 = vmatprep.subr.bf16.mxu0 0
    %4352 = vmatpush1.bf16.msra.mxu0 %v4176
    %4353 = vmatprep.subr.bf16.mxu0 0
    %4354 = vmatpush1.bf16.msra.mxu0 %v4177
    %4355 = vmatprep.mubr.bf16.mxu0 %v3869
    %4356 = vmatmul.mubr.bf16.gmra.mrb[0].mxu0 %v3868
    %v4357 = vpop.f32.mrb[0].mxu0
    %v4358 = vadd.f32 %v4261, %v4357
    %v4359 = vpop.f32.mrb[0].mxu0
    %v4360 = vpop.f32.mrb[0].mxu0
    %v4361 = vadd.f32 %v4264, %v4360
    %v4362 = vpop.f32.mrb[0].mxu0
    %4363 = vmatprep.mubr.bf16.mxu0 %v3874
    %4364 = vmatmul.mubr.bf16.gmra.mrb[0].mxu0 %v3873
    %v4365 = vpop.f32.mrb[0].mxu0
    %v4366 = vadd.f32 %v4269, %v4365
    %v4367 = vpop.f32.mrb[0].mxu0
    %v4368 = vpop.f32.mrb[0].mxu0
    %v4369 = vadd.f32 %v4272, %v4368
    %v4370 = vpop.f32.mrb[0].mxu0
    %4371 = vmatprep.mubr.bf16.mxu0 %v3879
    %4372 = vmatmul.mubr.bf16.gmra.mrb[0].mxu0 %v3878
    %v4373 = vpop.f32.mrb[0].mxu0
    %v4374 = vadd.f32 %v4277, %v4373
    %v4375 = vpop.f32.mrb[0].mxu0
    %v4376 = vpop.f32.mrb[0].mxu0
    %v4377 = vadd.f32 %v4280, %v4376
    %v4378 = vpop.f32.mrb[0].mxu0
    %4379 = vmatprep.mubr.bf16.mxu0 %v3884
    %4380 = vmatmul.mubr.bf16.gmra.mrb[0].mxu0 %v3883
    %v4381 = vpop.f32.mrb[0].mxu0
    %v4382 = vadd.f32 %v4285, %v4381
    %v4383 = vpop.f32.mrb[0].mxu0
    %v4384 = vpop.f32.mrb[0].mxu0
    %v4385 = vadd.f32 %v4288, %v4384
    %v4386 = vpop.f32.mrb[0].mxu0
    %4387 = vmatprep.mubr.bf16.mxu0 %v3889
    %4388 = vmatmul.mubr.bf16.gmra.mrb[0].mxu0 %v3888
    %v4389 = vpop.f32.mrb[0].mxu0
    %v4390 = vadd.f32 %v4293, %v4389
    %v4391 = vpop.f32.mrb[0].mxu0
    %v4392 = vpop.f32.mrb[0].mxu0
    %v4393 = vadd.f32 %v4296, %v4392
    %v4394 = vpop.f32.mrb[0].mxu0
    %4395 = vmatprep.mubr.bf16.mxu0 %v3894
    %4396 = vmatmul.mubr.bf16.gmra.mrb[0].mxu0 %v3893
    %v4397 = vpop.f32.mrb[0].mxu0
    %v4398 = vadd.f32 %v4301, %v4397
    %v4399 = vpop.f32.mrb[0].mxu0
    %v4400 = vpop.f32.mrb[0].mxu0
    %v4401 = vadd.f32 %v4304, %v4400
    %v4402 = vpop.f32.mrb[0].mxu0
    %4403 = vmatprep.mubr.bf16.mxu0 %v3899
    %4404 = vmatmul.mubr.bf16.gmra.mrb[0].mxu0 %v3898
    %v4405 = vpop.f32.mrb[0].mxu0
    %v4406 = vadd.f32 %v4309, %v4405
    %v4407 = vpop.f32.mrb[0].mxu0
    %v4408 = vpop.f32.mrb[0].mxu0
    %v4409 = vadd.f32 %v4312, %v4408
    %v4410 = vpop.f32.mrb[0].mxu0
    %4411 = vmatprep.mubr.bf16.mxu0 %v3904
    %4412 = vmatmul.mubr.bf16.gmra.mrb[0].mxu0 %v3903
    %v4413 = vpop.f32.mrb[0].mxu0
    %v4414 = vadd.f32 %v4317, %v4413
    %v4415 = vpop.f32.mrb[0].mxu0
    %v4416 = vpop.f32.mrb[0].mxu0
    %v4417 = vadd.f32 %v4320, %v4416
    %v4418 = vpop.f32.mrb[0].mxu0
    %4419 = vdwg.mxu0
    %4420 = vmatprep.subr.bf16.mxu0 0
    %4421 = vmatpush1.bf16.msra.mxu0 %v4178
    %4422 = vmatprep.subr.bf16.mxu0 0
    %4423 = vmatpush1.bf16.msra.mxu0 %v4179
    %4424 = vmatprep.subr.bf16.mxu0 0
    %4425 = vmatpush1.bf16.msra.mxu0 %v4180
    %4426 = vmatprep.subr.bf16.mxu0 0
    %4427 = vmatpush1.bf16.msra.mxu0 %v4181
    %4428 = vmatprep.subr.bf16.mxu0 0
    %4429 = vmatpush1.bf16.msra.mxu0 %v4182
    %4430 = vmatprep.subr.bf16.mxu0 0
    %4431 = vmatpush1.bf16.msra.mxu0 %v4183
    %4432 = vmatprep.subr.bf16.mxu0 0
    %4433 = vmatpush1.bf16.msra.mxu0 %v4184
    %4434 = vmatprep.subr.bf16.mxu0 0
    %4435 = vmatpush1.bf16.msra.mxu0 %v4185
    %4436 = vmatprep.subr.bf16.mxu0 0
    %4437 = vmatpush1.bf16.msra.mxu0 0
    %4438 = vmatprep.subr.bf16.mxu0 0
    %4439 = vmatpush1.bf16.msra.mxu0 0
    %4440 = vmatprep.subr.bf16.mxu0 0
    %4441 = vmatpush1.bf16.msra.mxu0 0
    %4442 = vmatprep.subr.bf16.mxu0 0
    %4443 = vmatpush1.bf16.msra.mxu0 0
    %4444 = vmatprep.subr.bf16.mxu0 0
    %4445 = vmatpush1.bf16.msra.mxu0 0
    %4446 = vmatprep.subr.bf16.mxu0 0
    %4447 = vmatpush1.bf16.msra.mxu0 0
    %4448 = vmatprep.subr.bf16.mxu0 0
    %4449 = vmatpush1.bf16.msra.mxu0 0
    %4450 = vmatprep.subr.bf16.mxu0 0
    %4451 = vmatpush1.bf16.msra.mxu0 0
    %4452 = vmatprep.mubr.bf16.mxu0 0
    %4453 = vmatmul.mubr.bf16.gmra.mrb[0].mxu0 %v3870
    %v4454 = vpop.f32.mrb[0].mxu0
    %v4455 = vadd.f32 %v4358, %v4454
    %v4456 = vpop.f32.mrb[0].mxu0
    %v4457 = vpop.f32.mrb[0].mxu0
    %v4458 = vadd.f32 %v4361, %v4457
    %v4459 = vpop.f32.mrb[0].mxu0
    %4460 = vmatprep.mubr.bf16.mxu0 0
    %4461 = vmatmul.mubr.bf16.gmra.mrb[0].mxu0 %v3875
    %v4462 = vpop.f32.mrb[0].mxu0
    %v4463 = vadd.f32 %v4366, %v4462
    %v4464 = vpop.f32.mrb[0].mxu0
    %v4465 = vpop.f32.mrb[0].mxu0
    %v4466 = vadd.f32 %v4369, %v4465
    %v4467 = vpop.f32.mrb[0].mxu0
    %4468 = vmatprep.mubr.bf16.mxu0 0
    %4469 = vmatmul.mubr.bf16.gmra.mrb[0].mxu0 %v3880
    %v4470 = vpop.f32.mrb[0].mxu0
    %v4471 = vadd.f32 %v4374, %v4470
    %v4472 = vpop.f32.mrb[0].mxu0
    %v4473 = vpop.f32.mrb[0].mxu0
    %v4474 = vadd.f32 %v4377, %v4473
    %v4475 = vpop.f32.mrb[0].mxu0
    %4476 = vmatprep.mubr.bf16.mxu0 0
    %4477 = vmatmul.mubr.bf16.gmra.mrb[0].mxu0 %v3885
    %v4478 = vpop.f32.mrb[0].mxu0
    %v4479 = vadd.f32 %v4382, %v4478
    %v4480 = vpop.f32.mrb[0].mxu0
    %v4481 = vpop.f32.mrb[0].mxu0
    %v4482 = vadd.f32 %v4385, %v4481
    %v4483 = vpop.f32.mrb[0].mxu0
    %4484 = vmatprep.mubr.bf16.mxu0 0
    %4485 = vmatmul.mubr.bf16.gmra.mrb[0].mxu0 %v3890
    %v4486 = vpop.f32.mrb[0].mxu0
    %v4487 = vadd.f32 %v4390, %v4486
    %v4488 = vpop.f32.mrb[0].mxu0
    %v4489 = vpop.f32.mrb[0].mxu0
    %v4490 = vadd.f32 %v4393, %v4489
    %v4491 = vpop.f32.mrb[0].mxu0
    %4492 = vmatprep.mubr.bf16.mxu0 0
    %4493 = vmatmul.mubr.bf16.gmra.mrb[0].mxu0 %v3895
    %v4494 = vpop.f32.mrb[0].mxu0
    %v4495 = vadd.f32 %v4398, %v4494
    %v4496 = vpop.f32.mrb[0].mxu0
    %v4497 = vpop.f32.mrb[0].mxu0
    %v4498 = vadd.f32 %v4401, %v4497
    %v4499 = vpop.f32.mrb[0].mxu0
    %4500 = vmatprep.mubr.bf16.mxu0 0
    %4501 = vmatmul.mubr.bf16.gmra.mrb[0].mxu0 %v3900
    %v4502 = vpop.f32.mrb[0].mxu0
    %v4503 = vadd.f32 %v4406, %v4502
    %v4504 = vpop.f32.mrb[0].mxu0
    %v4505 = vpop.f32.mrb[0].mxu0
    %v4506 = vadd.f32 %v4409, %v4505
    %v4507 = vpop.f32.mrb[0].mxu0
    %4508 = vmatprep.mubr.bf16.mxu0 0
    %4509 = vmatmul.mubr.bf16.gmra.mrb[0].mxu0 %v3905
    %v4510 = vpop.f32.mrb[0].mxu0
    %v4511 = vadd.f32 %v4414, %v4510
    %v4512 = vpop.f32.mrb[0].mxu0
    %v4513 = vpop.f32.mrb[0].mxu0
    %v4514 = vadd.f32 %v4417, %v4513
    %v4515 = vpop.f32.mrb[0].mxu0
    %4516 = vdwg.mxu0
    %v4517 = vsel %vm257, %v4455, 0.0
    %v4518 = vsel %vm257, %v4458, 0.0
    %v4519 = vadd.f32 %v4517, %v4518
    %v4520 = vsel %vm257, %v4463, 0.0
    %v4521 = vadd.f32 %v4519, %v4520
    %v4522 = vsel %vm257, %v4466, 0.0
    %v4523 = vadd.f32 %v4521, %v4522
    %v4524 = vsel %vm257, %v4471, 0.0
    %v4525 = vadd.f32 %v4523, %v4524
    %v4526 = vsel %vm257, %v4474, 0.0
    %v4527 = vadd.f32 %v4525, %v4526
    %v4528 = vsel %vm257, %v4479, 0.0
    %v4529 = vadd.f32 %v4527, %v4528
    %v4530 = vsel %vm257, %v4482, 0.0
    %v4531 = vadd.f32 %v4529, %v4530
    %v4532 = vrot.slane %v4531, 4
    %v4533 = vadd.f32 %v4531, %v4532
    %v4534 = vrot.slane %v4533, 2
    %v4535 = vadd.f32 %v4533, %v4534
    %v4536 = vrot.slane %v4535, 1
    %v4537 = vadd.f32 %v4535, %v4536
    %v4538 = vsel %vm257, %v4487, 0.0
    %v4539 = vsel %vm257, %v4490, 0.0
    %v4540 = vadd.f32 %v4538, %v4539
    %v4541 = vsel %vm257, %v4495, 0.0
    %v4542 = vadd.f32 %v4540, %v4541
    %v4543 = vsel %vm257, %v4498, 0.0
    %v4544 = vadd.f32 %v4542, %v4543
    %v4545 = vsel %vm257, %v4503, 0.0
    %v4546 = vadd.f32 %v4544, %v4545
    %v4547 = vsel %vm257, %v4506, 0.0
    %v4548 = vadd.f32 %v4546, %v4547
    %v4549 = vsel %vm257, %v4511, 0.0
    %v4550 = vadd.f32 %v4548, %v4549
    %v4551 = vsel %vm257, %v4514, 0.0
    %v4552 = vadd.f32 %v4550, %v4551
    %v4553 = vrot.slane %v4552, 4
    %v4554 = vadd.f32 %v4552, %v4553
    %v4555 = vrot.slane %v4554, 2
    %v4556 = vadd.f32 %v4554, %v4555
    %v4557 = vrot.slane %v4556, 1
    %v4558 = vadd.f32 %v4556, %v4557
    %v4559 = vmul.f32 %v4455, %v4455
    %v4560 = vmul.f32 %v4458, %v4458
    %v4561 = vmul.f32 %v4463, %v4463
    %v4562 = vmul.f32 %v4466, %v4466
    %v4563 = vmul.f32 %v4471, %v4471
    %v4564 = vmul.f32 %v4474, %v4474
    %v4565 = vmul.f32 %v4479, %v4479
    %v4566 = vmul.f32 %v4482, %v4482
    %v4567 = vmul.f32 %v4487, %v4487
    %v4568 = vmul.f32 %v4490, %v4490
    %v4569 = vmul.f32 %v4495, %v4495
    %v4570 = vmul.f32 %v4498, %v4498
    %v4571 = vmul.f32 %v4503, %v4503
    %v4572 = vmul.f32 %v4506, %v4506
    %v4573 = vmul.f32 %v4511, %v4511
    %v4574 = vmul.f32 %v4514, %v4514
    %v4575 = vsel %vm257, %v4559, 0.0
    %v4576 = vsel %vm257, %v4560, 0.0
    %v4577 = vadd.f32 %v4575, %v4576
    %v4578 = vsel %vm257, %v4561, 0.0
    %v4579 = vadd.f32 %v4577, %v4578
    %v4580 = vsel %vm257, %v4562, 0.0
    %v4581 = vadd.f32 %v4579, %v4580
    %v4582 = vsel %vm257, %v4563, 0.0
    %v4583 = vadd.f32 %v4581, %v4582
    %v4584 = vsel %vm257, %v4564, 0.0
    %v4585 = vadd.f32 %v4583, %v4584
    %v4586 = vsel %vm257, %v4565, 0.0
    %v4587 = vadd.f32 %v4585, %v4586
    %v4588 = vsel %vm257, %v4566, 0.0
    %v4589 = vadd.f32 %v4587, %v4588
    %v4590 = vrot.slane %v4589, 4
    %v4591 = vadd.f32 %v4589, %v4590
    %v4592 = vrot.slane %v4591, 2
    %v4593 = vadd.f32 %v4591, %v4592
    %v4594 = vrot.slane %v4593, 1
    %v4595 = vadd.f32 %v4593, %v4594
    %v4596 = vsel %vm257, %v4567, 0.0
    %v4597 = vsel %vm257, %v4568, 0.0
    %v4598 = vadd.f32 %v4596, %v4597
    %v4599 = vsel %vm257, %v4569, 0.0
    %v4600 = vadd.f32 %v4598, %v4599
    %v4601 = vsel %vm257, %v4570, 0.0
    %v4602 = vadd.f32 %v4600, %v4601
    %v4603 = vsel %vm257, %v4571, 0.0
    %v4604 = vadd.f32 %v4602, %v4603
    %v4605 = vsel %vm257, %v4572, 0.0
    %v4606 = vadd.f32 %v4604, %v4605
    %v4607 = vsel %vm257, %v4573, 0.0
    %v4608 = vadd.f32 %v4606, %v4607
    %v4609 = vsel %vm257, %v4574, 0.0
    %v4610 = vadd.f32 %v4608, %v4609
    %v4611 = vrot.slane %v4610, 4
    %v4612 = vadd.f32 %v4610, %v4611
    %v4613 = vrot.slane %v4612, 2
    %v4614 = vadd.f32 %v4612, %v4613
    %v4615 = vrot.slane %v4614, 1
    %v4616 = vadd.f32 %v4614, %v4615
    %v4619 = vsel %vm2221, %v4558, %v4537
    %v4623 = vsel %vm2226, %v4616, %v4595
    %v4625 = vsel %vm2229, %v4619, %v4623
    %v4627 = vsel %vm257, %v4625, 0
    %4629 = vmatprep.subr.mxu0 0.0
    %4630 = vmatpush1.msra.mxu0 %v34
    %4631 = vmatprep.subr.mxu0 0.0
    %4632 = vmatpush1.msra.mxu0 %v35
    %4633 = vmatprep.subr.mxu0 0.0
    %4634 = vmatpush1.msra.mxu0 %v36
    %4635 = vmatprep.subr.mxu0 0.0
    %4636 = vmatpush1.msra.mxu0 %v37
    %4637 = vmatprep.subr.mxu0 0.0
    %4638 = vmatpush1.msra.mxu0 %v38
    %4639 = vmatprep.subr.mxu0 0.0
    %4640 = vmatpush1.msra.mxu0 %v39
    %4641 = vmatprep.subr.mxu0 0.0
    %4642 = vmatpush1.msra.mxu0 %v40
    %4643 = vmatprep.subr.mxu0 0.0
    %4644 = vmatpush1.msra.mxu0 %v41
    %4645 = vmatprep.subr.mxu0 0.0
    %4646 = vmatpush1.msra.mxu0 0.0
    %4647 = vmatprep.subr.mxu0 0.0
    %4648 = vmatpush1.msra.mxu0 0.0
    %4649 = vmatprep.subr.mxu0 0.0
    %4650 = vmatpush1.msra.mxu0 0.0
    %4651 = vmatprep.subr.mxu0 0.0
    %4652 = vmatpush1.msra.mxu0 0.0
    %4653 = vmatprep.subr.mxu0 0.0
    %4654 = vmatpush1.msra.mxu0 0.0
    %4655 = vmatprep.subr.mxu0 0.0
    %4656 = vmatpush1.msra.mxu0 0.0
    %4657 = vmatprep.subr.mxu0 0.0
    %4658 = vmatpush1.msra.mxu0 0.0
    %4659 = vmatprep.subr.mxu0 0.0
    %4660 = vmatpush1.msra.mxu0 0.0
    %4661 = vmatprep.subr.mxu0 0.0
    %4662 = vmatpush1.msra.mxu0 0.0
    %4663 = vmatprep.subr.mxu0 0.0
    %4664 = vmatpush1.msra.mxu0 0.0
    %4665 = vmatprep.subr.mxu0 0.0
    %4666 = vmatpush1.msra.mxu0 0.0
    %4667 = vmatprep.subr.mxu0 0.0
    %4668 = vmatpush1.msra.mxu0 0.0
    %4669 = vmatprep.subr.mxu0 0.0
    %4670 = vmatpush1.msra.mxu0 0.0
    %4671 = vmatprep.subr.mxu0 0.0
    %4672 = vmatpush1.msra.mxu0 0.0
    %4673 = vmatprep.subr.mxu0 0.0
    %4674 = vmatpush1.msra.mxu0 0.0
    %4675 = vmatprep.subr.mxu0 0.0
    %4676 = vmatpush1.msra.mxu0 0.0
    %4677 = vmatprep.subr.mxu0 0.0
    %4678 = vmatpush1.msra.mxu0 0.0
    %4679 = vmatprep.subr.mxu0 0.0
    %4680 = vmatpush1.msra.mxu0 0.0
    %4681 = vmatprep.subr.mxu0 0.0
    %4682 = vmatpush1.msra.mxu0 0.0
    %4683 = vmatprep.subr.mxu0 0.0
    %4684 = vmatpush1.msra.mxu0 0.0
    %4685 = vmatprep.subr.mxu0 0.0
    %4686 = vmatpush1.msra.mxu0 0.0
    %4687 = vmatprep.subr.mxu0 0.0
    %4688 = vmatpush1.msra.mxu0 0.0
    %4689 = vmatprep.subr.mxu0 0.0
    %4690 = vmatpush1.msra.mxu0 0.0
    %4691 = vmatprep.subr.mxu0 0.0
    %4692 = vmatpush1.msra.mxu0 0.0
    %4693 = vmatprep.mubr.f32.mxu0 0.0
    %4694 = vmatmul.mubr.f32.gmra.mrb[0].mxu0 %v4627
    %v4695 = vpop.f32.mrb[0].mxu0
    %v4696 = vadd.f32 0.0, %v4695
    %v4697 = vpop.f32.mrb[0].mxu0
    %4698 = vdwg.mxu0
    %v4699 = vmul.f32 %v4696, %v4696
    %v4701 = vrot.slane %v4699, 6
    %v4703 = vsub.f32 %v4696, %v4701
    %v4704 = vmax.f32 %v4703, 0.0
    %v4705 = vadd.f32 %v4704, 1e-05
    %v4706 = vrsqrt.pop %v4705
    %v4709 = vunpack.c.l.s4 1966171168
    %v4710 = vunpack.c.0.s8 %v4709
    %v4711 = vlaneseq
    %v4712 = vshrl.u32 %v4711, 7
    %v4713 = vsub.s32 %v4710, %v4712
    %v4714 = vrot.slane %v4696, %v4713
    %v4715 = vcombine.high %v4714, %v4714
    %v4717 = vunpack.c.l.s4 1966171168
    %v4718 = vunpack.c.0.s8 %v4717
    %v4719 = vlaneseq
    %v4720 = vshrl.u32 %v4719, 7
    %v4721 = vsub.s32 %v4718, %v4720
    %v4722 = vrot.slane %v4714, %v4721
    %v4724 = vunpack.c.l.s4 1966171168
    %v4725 = vunpack.c.0.s8 %v4724
    %v4726 = vlaneseq
    %v4727 = vshrl.u32 %v4726, 7
    %v4728 = vsub.s32 %v4725, %v4727
    %v4729 = vrot.slane %v4715, %v4728
    %v4730 = vlaneseq
    %v4731 = vshrl.u32 %v4730, 7
    %v4732 = vsub.s32 0, %v4731
    %v4733 = vrot.slane %v4722, %v4732
    %v4734 = vlaneseq
    %v4735 = vshrl.u32 %v4734, 7
    %v4736 = vsub.s32 0, %v4735
    %v4737 = vrot.slane %v4729, %v4736
    %v4740 = vsub.f32 %v4455, %v4733
    %v4741 = vsub.f32 %v4458, %v4733
    %v4742 = vsub.f32 %v4463, %v4733
    %v4743 = vsub.f32 %v4466, %v4733
    %v4744 = vsub.f32 %v4471, %v4733
    %v4745 = vsub.f32 %v4474, %v4733
    %v4746 = vsub.f32 %v4479, %v4733
    %v4747 = vsub.f32 %v4482, %v4733
    %v4748 = vsub.f32 %v4487, %v4737
    %v4749 = vsub.f32 %v4490, %v4737
    %v4750 = vsub.f32 %v4495, %v4737
    %v4751 = vsub.f32 %v4498, %v4737
    %v4752 = vsub.f32 %v4503, %v4737
    %v4753 = vsub.f32 %v4506, %v4737
    %v4754 = vsub.f32 %v4511, %v4737
    %v4755 = vsub.f32 %v4514, %v4737
    %v4758 = vunpack.c.l.s4 1966171168
    %v4759 = vunpack.c.0.s8 %v4758
    %v4760 = vlaneseq
    %v4761 = vshrl.u32 %v4760, 7
    %v4762 = vsub.s32 %v4759, %v4761
    %v4763 = vrot.slane %v4706, %v4762
    %v4764 = vcombine.high %v4763, %v4763
    %v4766 = vunpack.c.l.s4 1966171168
    %v4767 = vunpack.c.0.s8 %v4766
    %v4768 = vlaneseq
    %v4769 = vshrl.u32 %v4768, 7
    %v4770 = vsub.s32 %v4767, %v4769
    %v4771 = vrot.slane %v4763, %v4770
    %v4773 = vunpack.c.l.s4 1966171168
    %v4774 = vunpack.c.0.s8 %v4773
    %v4775 = vlaneseq
    %v4776 = vshrl.u32 %v4775, 7
    %v4777 = vsub.s32 %v4774, %v4776
    %v4778 = vrot.slane %v4764, %v4777
    %v4779 = vcombine.high %v4771, %v4771
    %v4780 = vcombine.high %v4778, %v4778
    %v4781 = vlaneseq
    %v4782 = vshrl.u32 %v4781, 7
    %v4783 = vsub.s32 0, %v4782
    %v4784 = vrot.slane %v4779, %v4783
    %v4785 = vlaneseq
    %v4786 = vshrl.u32 %v4785, 7
    %v4787 = vsub.s32 0, %v4786
    %v4788 = vrot.slane %v4780, %v4787
    %v4791 = vmul.f32 %v4740, %v4784
    %v4792 = vmul.f32 %v4741, %v4784
    %v4793 = vmul.f32 %v4742, %v4784
    %v4794 = vmul.f32 %v4743, %v4784
    %v4795 = vmul.f32 %v4744, %v4784
    %v4796 = vmul.f32 %v4745, %v4784
    %v4797 = vmul.f32 %v4746, %v4784
    %v4798 = vmul.f32 %v4747, %v4784
    %v4799 = vmul.f32 %v4748, %v4788
    %v4800 = vmul.f32 %v4749, %v4788
    %v4801 = vmul.f32 %v4750, %v4788
    %v4802 = vmul.f32 %v4751, %v4788
    %v4803 = vmul.f32 %v4752, %v4788
    %v4804 = vmul.f32 %v4753, %v4788
    %v4805 = vmul.f32 %v4754, %v4788
    %v4806 = vmul.f32 %v4755, %v4788
    %v4808 = vlaneseq
    %v4809 = vshrl.u32 %v4808, 7
    %v4810 = vsub.s32 0, %v4809
    %v4811 = vrot.slane %v44, %v4810
    %v4813 = vmul.f32 %v4791, %v4811
    %v4814 = vmul.f32 %v4792, %v4811
    %v4815 = vmul.f32 %v4793, %v4811
    %v4816 = vmul.f32 %v4794, %v4811
    %v4817 = vmul.f32 %v4795, %v4811
    %v4818 = vmul.f32 %v4796, %v4811
    %v4819 = vmul.f32 %v4797, %v4811
    %v4820 = vmul.f32 %v4798, %v4811
    %v4821 = vmul.f32 %v4799, %v4811
    %v4822 = vmul.f32 %v4800, %v4811
    %v4823 = vmul.f32 %v4801, %v4811
    %v4824 = vmul.f32 %v4802, %v4811
    %v4825 = vmul.f32 %v4803, %v4811
    %v4826 = vmul.f32 %v4804, %v4811
    %v4827 = vmul.f32 %v4805, %v4811
    %v4828 = vmul.f32 %v4806, %v4811
    %v4830 = vlaneseq
    %v4831 = vshrl.u32 %v4830, 7
    %v4832 = vsub.s32 0, %v4831
    %v4833 = vrot.slane %v45, %v4832
    %v4835 = vadd.f32 %v4813, %v4833
    %v4836 = vadd.f32 %v4814, %v4833
    %v4837 = vadd.f32 %v4815, %v4833
    %v4838 = vadd.f32 %v4816, %v4833
    %v4839 = vadd.f32 %v4817, %v4833
    %v4840 = vadd.f32 %v4818, %v4833
    %v4841 = vadd.f32 %v4819, %v4833
    %v4842 = vadd.f32 %v4820, %v4833
    %v4843 = vadd.f32 %v4821, %v4833
    %v4844 = vadd.f32 %v4822, %v4833
    %v4845 = vadd.f32 %v4823, %v4833
    %v4846 = vadd.f32 %v4824, %v4833
    %v4847 = vadd.f32 %v4825, %v4833
    %v4848 = vadd.f32 %v4826, %v4833
    %v4849 = vadd.f32 %v4827, %v4833
    %v4850 = vadd.f32 %v4828, %v4833
    %v4851 = vmax.f32 %v4835, 0.0
    %v4852 = vmax.f32 %v4836, 0.0
    %v4853 = vmax.f32 %v4837, 0.0
    %v4854 = vmax.f32 %v4838, 0.0
    %v4855 = vmax.f32 %v4839, 0.0
    %v4856 = vmax.f32 %v4840, 0.0
    %v4857 = vmax.f32 %v4841, 0.0
    %v4858 = vmax.f32 %v4842, 0.0
    %v4859 = vmax.f32 %v4843, 0.0
    %v4860 = vmax.f32 %v4844, 0.0
    %v4861 = vmax.f32 %v4845, 0.0
    %v4862 = vmax.f32 %v4846, 0.0
    %v4863 = vmax.f32 %v4847, 0.0
    %v4864 = vmax.f32 %v4848, 0.0
    %v4865 = vmax.f32 %v4849, 0.0
    %v4866 = vmax.f32 %v4850, 0.0
    %v4867 = vmul.f32 %v4851, 0.5
    %v4868 = vmul.f32 %v4852, 0.5
    %v4869 = vmul.f32 %v4853, 0.5
    %v4870 = vmul.f32 %v4854, 0.5
    %v4871 = vmul.f32 %v4855, 0.5
    %v4872 = vmul.f32 %v4856, 0.5
    %v4873 = vmul.f32 %v4857, 0.5
    %v4874 = vmul.f32 %v4858, 0.5
    %v4875 = vmul.f32 %v4859, 0.5
    %v4876 = vmul.f32 %v4860, 0.5
    %v4877 = vmul.f32 %v4861, 0.5
    %v4878 = vmul.f32 %v4862, 0.5
    %v4879 = vmul.f32 %v4863, 0.5
    %v4880 = vmul.f32 %v4864, 0.5
    %v4881 = vmul.f32 %v4865, 0.5
    %v4882 = vmul.f32 %v4866, 0.5
    %v4883 = vadd.f32 %v55, %v4867
    %v4884 = vadd.f32 %v56, %v4868
    %v4885 = vadd.f32 %v57, %v4869
    %v4886 = vadd.f32 %v58, %v4870
    %v4887 = vadd.f32 %v59, %v4871
    %v4888 = vadd.f32 %v60, %v4872
    %v4889 = vadd.f32 %v61, %v4873
    %v4890 = vadd.f32 %v62, %v4874
    %v4891 = vadd.f32 %v63, %v4875
    %v4892 = vadd.f32 %v64, %v4876
    %v4893 = vadd.f32 %v65, %v4877
    %v4894 = vadd.f32 %v66, %v4878
    %v4895 = vadd.f32 %v67, %v4879
    %v4896 = vadd.f32 %v68, %v4880
    %v4897 = vadd.f32 %v69, %v4881
    %v4898 = vadd.f32 %v70, %v4882
    %v4901 = vrot.slane %v4897, 7
    %v4902 = vrot.slane %v4898, 7
    %v4903 = vsel %vm73, %v4901, %v4902
    %v4920 = vrot.slane %v4883, 7
    %v4921 = vrot.slane %v4884, 7
    %v4922 = vsel %vm73, %v4920, %v4921
    %v4923 = vrot.slane %v4885, 7
    %v4924 = vsel %vm73, %v4921, %v4923
    %v4925 = vrot.slane %v4886, 7
    %v4926 = vsel %vm73, %v4923, %v4925
    %v4927 = vrot.slane %v4887, 7
    %v4928 = vsel %vm73, %v4925, %v4927
    %v4929 = vrot.slane %v4888, 7
    %v4930 = vsel %vm73, %v4927, %v4929
    %v4931 = vrot.slane %v4889, 7
    %v4932 = vsel %vm73, %v4929, %v4931
    %v4933 = vrot.slane %v4890, 7
    %v4934 = vsel %vm73, %v4931, %v4933
    %v4935 = vrot.slane %v4891, 7
    %v4936 = vsel %vm73, %v4933, %v4935
    %v4937 = vrot.slane %v4892, 7
    %v4938 = vsel %vm73, %v4935, %v4937
    %v4939 = vrot.slane %v4893, 7
    %v4940 = vsel %vm73, %v4937, %v4939
    %v4941 = vrot.slane %v4894, 7
    %v4942 = vsel %vm73, %v4939, %v4941
    %v4943 = vrot.slane %v4895, 7
    %v4944 = vsel %vm73, %v4941, %v4943
    %v4945 = vrot.slane %v4896, 7
    %v4946 = vsel %vm73, %v4943, %v4945
    %v4947 = vsel %vm73, %v4945, %v4901
    %v4963 = vsel %vm73, %v4902, %v4920
    %v4964 = vld [vmem:[%s8] sm:$0xff]
    %v4965 = vld [vmem:[%s8 + $0x8] sm:$0xff]
    %v4966 = vld [vmem:[%s8 + $0x10] sm:$0xff]
    %v4967 = vld [vmem:[%s8 + $0x18] sm:$0xff]
    %v4968 = vld [vmem:[%s8 + $0x20] sm:$0xff]
    %v4969 = vld [vmem:[%s8 + $0x28] sm:$0xff]
    %v4970 = vld [vmem:[%s8 + $0x30] sm:$0xff]
    %v4971 = vld [vmem:[%s8 + $0x38] sm:$0xff]
    %v4972 = vld [vmem:[%s8 + $0x40] sm:$0xff]
    %v4973 = vld [vmem:[%s8 + $0x48] sm:$0xff]
    %v4974 = vld [vmem:[%s8 + $0x50] sm:$0xff]
    %v4975 = vld [vmem:[%s8 + $0x58] sm:$0xff]
    %v4976 = vld [vmem:[%s8 + $0x60] sm:$0xff]
    %v4977 = vld [vmem:[%s8 + $0x68] sm:$0xff]
    %v4978 = vld [vmem:[%s8 + $0x70] sm:$0xff]
    %v4979 = vld [vmem:[%s8 + $0x78] sm:$0xff]
    %4981 = vset.pattern.permute.xlu0 0
    %4982 = vperm.xlu0 %4981, %v4964
    %v4983 = vpop.permute.xlu0 %4982
    %4986 = vset.pattern.permute.xlu0 0
    %4987 = vperm.xlu0 %4986, %v4965
    %v4988 = vpop.permute.xlu0 %4987
    %4991 = vset.pattern.permute.xlu0 0
    %4992 = vperm.xlu0 %4991, %v4966
    %v4993 = vpop.permute.xlu0 %4992
    %4996 = vset.pattern.permute.xlu0 0
    %4997 = vperm.xlu0 %4996, %v4967
    %v4998 = vpop.permute.xlu0 %4997
    %5001 = vset.pattern.permute.xlu0 0
    %5002 = vperm.xlu0 %5001, %v4968
    %v5003 = vpop.permute.xlu0 %5002
    %5006 = vset.pattern.permute.xlu0 0
    %5007 = vperm.xlu0 %5006, %v4969
    %v5008 = vpop.permute.xlu0 %5007
    %5011 = vset.pattern.permute.xlu0 0
    %5012 = vperm.xlu0 %5011, %v4970
    %v5013 = vpop.permute.xlu0 %5012
    %5016 = vset.pattern.permute.xlu0 0
    %5017 = vperm.xlu0 %5016, %v4971
    %v5018 = vpop.permute.xlu0 %5017
    %5021 = vset.pattern.permute.xlu0 0
    %5022 = vperm.xlu0 %5021, %v4972
    %v5023 = vpop.permute.xlu0 %5022
    %5026 = vset.pattern.permute.xlu0 0
    %5027 = vperm.xlu0 %5026, %v4973
    %v5028 = vpop.permute.xlu0 %5027
    %5031 = vset.pattern.permute.xlu0 0
    %5032 = vperm.xlu0 %5031, %v4974
    %v5033 = vpop.permute.xlu0 %5032
    %5036 = vset.pattern.permute.xlu0 0
    %5037 = vperm.xlu0 %5036, %v4975
    %v5038 = vpop.permute.xlu0 %5037
    %5041 = vset.pattern.permute.xlu0 0
    %5042 = vperm.xlu0 %5041, %v4976
    %v5043 = vpop.permute.xlu0 %5042
    %5046 = vset.pattern.permute.xlu0 0
    %5047 = vperm.xlu0 %5046, %v4977
    %v5048 = vpop.permute.xlu0 %5047
    %5051 = vset.pattern.permute.xlu0 0
    %5052 = vperm.xlu0 %5051, %v4978
    %v5053 = vpop.permute.xlu0 %5052
    %5056 = vset.pattern.permute.xlu0 0
    %5057 = vperm.xlu0 %5056, %v4979
    %v5058 = vpop.permute.xlu0 %5057
    %v5060 = vmul.f32 %v4903, %v4983
    %v5061 = vmul.f32 %v4963, %v4988
    %v5062 = vmul.f32 %v4922, %v4993
    %v5063 = vmul.f32 %v4924, %v4998
    %v5064 = vmul.f32 %v4926, %v5003
    %v5065 = vmul.f32 %v4928, %v5008
    %v5066 = vmul.f32 %v4930, %v5013
    %v5067 = vmul.f32 %v4932, %v5018
    %v5068 = vmul.f32 %v4934, %v5023
    %v5069 = vmul.f32 %v4936, %v5028
    %v5070 = vmul.f32 %v4938, %v5033
    %v5071 = vmul.f32 %v4940, %v5038
    %v5072 = vmul.f32 %v4942, %v5043
    %v5073 = vmul.f32 %v4944, %v5048
    %v5074 = vmul.f32 %v4946, %v5053
    %v5075 = vmul.f32 %v4947, %v5058
    %v5076 = vpack.c.bf16 %v5061, %v5060
    %v5077 = vpack.c.bf16 %v5063, %v5062
    %v5078 = vpack.c.bf16 %v5065, %v5064
    %v5079 = vpack.c.bf16 %v5067, %v5066
    %v5080 = vpack.c.bf16 %v5069, %v5068
    %v5081 = vpack.c.bf16 %v5071, %v5070
    %v5082 = vpack.c.bf16 %v5073, %v5072
    %v5083 = vpack.c.bf16 %v5075, %v5074
    %5084 = vst.msk [vmem:[#allocation2] sm:$0xff] %vm257, %v5076
    %5085 = vst.msk [vmem:[#allocation2 + $0x28] sm:$0xff] %vm257, %v5077
    %5086 = vst.msk [vmem:[#allocation2 + $0x50] sm:$0xff] %vm257, %v5078
    %5087 = vst.msk [vmem:[#allocation2 + $0x78] sm:$0xff] %vm257, %v5079
    %5088 = vst.msk [vmem:[#allocation2 + $0xa0] sm:$0xff] %vm257, %v5080
    %5089 = vst.msk [vmem:[#allocation2 + $0xc8] sm:$0xff] %vm257, %v5081
    %5090 = vst.msk [vmem:[#allocation2 + $0xf0] sm:$0xff] %vm257, %v5082
    %5091 = vst.msk [vmem:[#allocation2 + $0x118] sm:$0xff] %vm257, %v5083
    %v5092 = vld [vmem:[%s8] sm:$0xff]
    %v5093 = vld [vmem:[%s8 + $0x8] sm:$0xff]
    %v5094 = vld [vmem:[%s8 + $0x10] sm:$0xff]
    %v5095 = vld [vmem:[%s8 + $0x18] sm:$0xff]
    %v5096 = vld [vmem:[%s8 + $0x20] sm:$0xff]
    %v5097 = vld [vmem:[%s8 + $0x28] sm:$0xff]
    %v5098 = vld [vmem:[%s8 + $0x30] sm:$0xff]
    %v5099 = vld [vmem:[%s8 + $0x38] sm:$0xff]
    %v5100 = vld [vmem:[%s8 + $0x40] sm:$0xff]
    %v5101 = vld [vmem:[%s8 + $0x48] sm:$0xff]
    %v5102 = vld [vmem:[%s8 + $0x50] sm:$0xff]
    %v5103 = vld [vmem:[%s8 + $0x58] sm:$0xff]
    %v5104 = vld [vmem:[%s8 + $0x60] sm:$0xff]
    %v5105 = vld [vmem:[%s8 + $0x68] sm:$0xff]
    %v5106 = vld [vmem:[%s8 + $0x70] sm:$0xff]
    %v5107 = vld [vmem:[%s8 + $0x78] sm:$0xff]
    %5109 = vset.pattern.permute.xlu0 1
    %5110 = vperm.xlu0 %5109, %v5092
    %v5111 = vpop.permute.xlu0 %5110
    %5114 = vset.pattern.permute.xlu0 1
    %5115 = vperm.xlu0 %5114, %v5093
    %v5116 = vpop.permute.xlu0 %5115
    %5119 = vset.pattern.permute.xlu0 1
    %5120 = vperm.xlu0 %5119, %v5094
    %v5121 = vpop.permute.xlu0 %5120
    %5124 = vset.pattern.permute.xlu0 1
    %5125 = vperm.xlu0 %5124, %v5095
    %v5126 = vpop.permute.xlu0 %5125
    %5129 = vset.pattern.permute.xlu0 1
    %5130 = vperm.xlu0 %5129, %v5096
    %v5131 = vpop.permute.xlu0 %5130
    %5134 = vset.pattern.permute.xlu0 1
    %5135 = vperm.xlu0 %5134, %v5097
    %v5136 = vpop.permute.xlu0 %5135
    %5139 = vset.pattern.permute.xlu0 1
    %5140 = vperm.xlu0 %5139, %v5098
    %v5141 = vpop.permute.xlu0 %5140
    %5144 = vset.pattern.permute.xlu0 1
    %5145 = vperm.xlu0 %5144, %v5099
    %v5146 = vpop.permute.xlu0 %5145
    %5149 = vset.pattern.permute.xlu0 1
    %5150 = vperm.xlu0 %5149, %v5100
    %v5151 = vpop.permute.xlu0 %5150
    %5154 = vset.pattern.permute.xlu0 1
    %5155 = vperm.xlu0 %5154, %v5101
    %v5156 = vpop.permute.xlu0 %5155
    %5159 = vset.pattern.permute.xlu0 1
    %5160 = vperm.xlu0 %5159, %v5102
    %v5161 = vpop.permute.xlu0 %5160
    %5164 = vset.pattern.permute.xlu0 1
    %5165 = vperm.xlu0 %5164, %v5103
    %v5166 = vpop.permute.xlu0 %5165
    %5169 = vset.pattern.permute.xlu0 1
    %5170 = vperm.xlu0 %5169, %v5104
    %v5171 = vpop.permute.xlu0 %5170
    %5174 = vset.pattern.permute.xlu0 1
    %5175 = vperm.xlu0 %5174, %v5105
    %v5176 = vpop.permute.xlu0 %5175
    %5179 = vset.pattern.permute.xlu0 1
    %5180 = vperm.xlu0 %5179, %v5106
    %v5181 = vpop.permute.xlu0 %5180
    %5184 = vset.pattern.permute.xlu0 1
    %5185 = vperm.xlu0 %5184, %v5107
    %v5186 = vpop.permute.xlu0 %5185
    %v5188 = vmul.f32 %v4898, %v5111
    %v5189 = vmul.f32 %v4883, %v5116
    %v5190 = vmul.f32 %v4884, %v5121
    %v5191 = vmul.f32 %v4885, %v5126
    %v5192 = vmul.f32 %v4886, %v5131
    %v5193 = vmul.f32 %v4887, %v5136
    %v5194 = vmul.f32 %v4888, %v5141
    %v5195 = vmul.f32 %v4889, %v5146
    %v5196 = vmul.f32 %v4890, %v5151
    %v5197 = vmul.f32 %v4891, %v5156
    %v5198 = vmul.f32 %v4892, %v5161
    %v5199 = vmul.f32 %v4893, %v5166
    %v5200 = vmul.f32 %v4894, %v5171
    %v5201 = vmul.f32 %v4895, %v5176
    %v5202 = vmul.f32 %v4896, %v5181
    %v5203 = vmul.f32 %v4897, %v5186
    %v5204 = vpack.c.bf16 %v5189, %v5188
    %v5205 = vpack.c.bf16 %v5191, %v5190
    %v5206 = vpack.c.bf16 %v5193, %v5192
    %v5207 = vpack.c.bf16 %v5195, %v5194
    %v5208 = vpack.c.bf16 %v5197, %v5196
    %v5209 = vpack.c.bf16 %v5199, %v5198
    %v5210 = vpack.c.bf16 %v5201, %v5200
    %v5211 = vpack.c.bf16 %v5203, %v5202
    %5220 = vrot.lane.b32.xlu0 %v5204, 64
    %v5221 = vpop.permute.xlu0 %5220
    %5222 = vrot.lane.b32.xlu0 %v5205, 64
    %v5223 = vpop.permute.xlu0 %5222
    %5224 = vrot.lane.b32.xlu0 %v5206, 64
    %v5225 = vpop.permute.xlu0 %5224
    %5226 = vrot.lane.b32.xlu0 %v5207, 64
    %v5227 = vpop.permute.xlu0 %5226
    %5228 = vrot.lane.b32.xlu0 %v5208, 64
    %v5229 = vpop.permute.xlu0 %5228
    %5230 = vrot.lane.b32.xlu0 %v5209, 64
    %v5231 = vpop.permute.xlu0 %5230
    %5232 = vrot.lane.b32.xlu0 %v5210, 64
    %v5233 = vpop.permute.xlu0 %5232
    %5234 = vrot.lane.b32.xlu0 %v5211, 64
    %v5235 = vpop.permute.xlu0 %5234
    %5244 = vst.msk [vmem:[#allocation2] sm:$0xff] %vm46, %v5221
    %5245 = vst.msk [vmem:[#allocation2 + $0x28] sm:$0xff] %vm46, %v5223
    %5246 = vst.msk [vmem:[#allocation2 + $0x50] sm:$0xff] %vm46, %v5225
    %5247 = vst.msk [vmem:[#allocation2 + $0x78] sm:$0xff] %vm46, %v5227
    %5248 = vst.msk [vmem:[#allocation2 + $0xa0] sm:$0xff] %vm46, %v5229
    %5249 = vst.msk [vmem:[#allocation2 + $0xc8] sm:$0xff] %vm46, %v5231
    %5250 = vst.msk [vmem:[#allocation2 + $0xf0] sm:$0xff] %vm46, %v5233
    %5251 = vst.msk [vmem:[#allocation2 + $0x118] sm:$0xff] %vm46, %v5235
    %v5252 = vrot.slane %v4898, 1
    %v5254 = vrot.slane %v4883, 1
    %v5255 = vrot.slane %v4884, 1
    %v5256 = vsel %vm428, %v5254, %v5255
    %v5257 = vrot.slane %v4885, 1
    %v5258 = vsel %vm428, %v5255, %v5257
    %v5259 = vrot.slane %v4886, 1
    %v5260 = vsel %vm428, %v5257, %v5259
    %v5261 = vrot.slane %v4887, 1
    %v5262 = vsel %vm428, %v5259, %v5261
    %v5263 = vrot.slane %v4888, 1
    %v5264 = vsel %vm428, %v5261, %v5263
    %v5265 = vrot.slane %v4889, 1
    %v5266 = vsel %vm428, %v5263, %v5265
    %v5267 = vrot.slane %v4890, 1
    %v5268 = vsel %vm428, %v5265, %v5267
    %v5269 = vrot.slane %v4891, 1
    %v5270 = vsel %vm428, %v5267, %v5269
    %v5271 = vrot.slane %v4892, 1
    %v5272 = vsel %vm428, %v5269, %v5271
    %v5273 = vrot.slane %v4893, 1
    %v5274 = vsel %vm428, %v5271, %v5273
    %v5275 = vrot.slane %v4894, 1
    %v5276 = vsel %vm428, %v5273, %v5275
    %v5277 = vrot.slane %v4895, 1
    %v5278 = vsel %vm428, %v5275, %v5277
    %v5279 = vrot.slane %v4896, 1
    %v5280 = vsel %vm428, %v5277, %v5279
    %v5281 = vrot.slane %v4897, 1
    %v5282 = vsel %vm428, %v5279, %v5281
    %v5283 = vsel %vm428, %v5281, %v5252
    %v5300 = vsel %vm428, %v5252, %v5254
    %v5301 = vld [vmem:[%s8] sm:$0xff]
    %v5302 = vld [vmem:[%s8 + $0x8] sm:$0xff]
    %v5303 = vld [vmem:[%s8 + $0x10] sm:$0xff]
    %v5304 = vld [vmem:[%s8 + $0x18] sm:$0xff]
    %v5305 = vld [vmem:[%s8 + $0x20] sm:$0xff]
    %v5306 = vld [vmem:[%s8 + $0x28] sm:$0xff]
    %v5307 = vld [vmem:[%s8 + $0x30] sm:$0xff]
    %v5308 = vld [vmem:[%s8 + $0x38] sm:$0xff]
    %v5309 = vld [vmem:[%s8 + $0x40] sm:$0xff]
    %v5310 = vld [vmem:[%s8 + $0x48] sm:$0xff]
    %v5311 = vld [vmem:[%s8 + $0x50] sm:$0xff]
    %v5312 = vld [vmem:[%s8 + $0x58] sm:$0xff]
    %v5313 = vld [vmem:[%s8 + $0x60] sm:$0xff]
    %v5314 = vld [vmem:[%s8 + $0x68] sm:$0xff]
    %v5315 = vld [vmem:[%s8 + $0x70] sm:$0xff]
    %v5316 = vld [vmem:[%s8 + $0x78] sm:$0xff]
    %5318 = vset.pattern.permute.xlu0 2
    %5319 = vperm.xlu0 %5318, %v5301
    %v5320 = vpop.permute.xlu0 %5319
    %5323 = vset.pattern.permute.xlu0 2
    %5324 = vperm.xlu0 %5323, %v5302
    %v5325 = vpop.permute.xlu0 %5324
    %5328 = vset.pattern.permute.xlu0 2
    %5329 = vperm.xlu0 %5328, %v5303
    %v5330 = vpop.permute.xlu0 %5329
    %5333 = vset.pattern.permute.xlu0 2
    %5334 = vperm.xlu0 %5333, %v5304
    %v5335 = vpop.permute.xlu0 %5334
    %5338 = vset.pattern.permute.xlu0 2
    %5339 = vperm.xlu0 %5338, %v5305
    %v5340 = vpop.permute.xlu0 %5339
    %5343 = vset.pattern.permute.xlu0 2
    %5344 = vperm.xlu0 %5343, %v5306
    %v5345 = vpop.permute.xlu0 %5344
    %5348 = vset.pattern.permute.xlu0 2
    %5349 = vperm.xlu0 %5348, %v5307
    %v5350 = vpop.permute.xlu0 %5349
    %5353 = vset.pattern.permute.xlu0 2
    %5354 = vperm.xlu0 %5353, %v5308
    %v5355 = vpop.permute.xlu0 %5354
    %5358 = vset.pattern.permute.xlu0 2
    %5359 = vperm.xlu0 %5358, %v5309
    %v5360 = vpop.permute.xlu0 %5359
    %5363 = vset.pattern.permute.xlu0 2
    %5364 = vperm.xlu0 %5363, %v5310
    %v5365 = vpop.permute.xlu0 %5364
    %5368 = vset.pattern.permute.xlu0 2
    %5369 = vperm.xlu0 %5368, %v5311
    %v5370 = vpop.permute.xlu0 %5369
    %5373 = vset.pattern.permute.xlu0 2
    %5374 = vperm.xlu0 %5373, %v5312
    %v5375 = vpop.permute.xlu0 %5374
    %5378 = vset.pattern.permute.xlu0 2
    %5379 = vperm.xlu0 %5378, %v5313
    %v5380 = vpop.permute.xlu0 %5379
    %5383 = vset.pattern.permute.xlu0 2
    %5384 = vperm.xlu0 %5383, %v5314
    %v5385 = vpop.permute.xlu0 %5384
    %5388 = vset.pattern.permute.xlu0 2
    %5389 = vperm.xlu0 %5388, %v5315
    %v5390 = vpop.permute.xlu0 %5389
    %5393 = vset.pattern.permute.xlu0 2
    %5394 = vperm.xlu0 %5393, %v5316
    %v5395 = vpop.permute.xlu0 %5394
    %v5397 = vmul.f32 %v5300, %v5320
    %v5398 = vmul.f32 %v5256, %v5325
    %v5399 = vmul.f32 %v5258, %v5330
    %v5400 = vmul.f32 %v5260, %v5335
    %v5401 = vmul.f32 %v5262, %v5340
    %v5402 = vmul.f32 %v5264, %v5345
    %v5403 = vmul.f32 %v5266, %v5350
    %v5404 = vmul.f32 %v5268, %v5355
    %v5405 = vmul.f32 %v5270, %v5360
    %v5406 = vmul.f32 %v5272, %v5365
    %v5407 = vmul.f32 %v5274, %v5370
    %v5408 = vmul.f32 %v5276, %v5375
    %v5409 = vmul.f32 %v5278, %v5380
    %v5410 = vmul.f32 %v5280, %v5385
    %v5411 = vmul.f32 %v5282, %v5390
    %v5412 = vmul.f32 %v5283, %v5395
    %v5413 = vpack.c.bf16 %v5398, %v5397
    %v5414 = vpack.c.bf16 %v5400, %v5399
    %v5415 = vpack.c.bf16 %v5402, %v5401
    %v5416 = vpack.c.bf16 %v5404, %v5403
    %v5417 = vpack.c.bf16 %v5406, %v5405
    %v5418 = vpack.c.bf16 %v5408, %v5407
    %v5419 = vpack.c.bf16 %v5410, %v5409
    %v5420 = vpack.c.bf16 %v5412, %v5411
    %5421 = vst.msk [vmem:[#allocation2 + $0x8] sm:$0xff] %vm257, %v5413
    %5422 = vst.msk [vmem:[#allocation2 + $0x30] sm:$0xff] %vm257, %v5414
    %5423 = vst.msk [vmem:[#allocation2 + $0x58] sm:$0xff] %vm257, %v5415
    %5424 = vst.msk [vmem:[#allocation2 + $0x80] sm:$0xff] %vm257, %v5416
    %5425 = vst.msk [vmem:[#allocation2 + $0xa8] sm:$0xff] %vm257, %v5417
    %5426 = vst.msk [vmem:[#allocation2 + $0xd0] sm:$0xff] %vm257, %v5418
    %5427 = vst.msk [vmem:[#allocation2 + $0xf8] sm:$0xff] %vm257, %v5419
    %5428 = vst.msk [vmem:[#allocation2 + $0x120] sm:$0xff] %vm257, %v5420
    %v5429 = vld [vmem:[%s8] sm:$0xff]
    %v5430 = vld [vmem:[%s8 + $0x8] sm:$0xff]
    %v5431 = vld [vmem:[%s8 + $0x10] sm:$0xff]
    %v5432 = vld [vmem:[%s8 + $0x18] sm:$0xff]
    %v5433 = vld [vmem:[%s8 + $0x20] sm:$0xff]
    %v5434 = vld [vmem:[%s8 + $0x28] sm:$0xff]
    %v5435 = vld [vmem:[%s8 + $0x30] sm:$0xff]
    %v5436 = vld [vmem:[%s8 + $0x38] sm:$0xff]
    %v5437 = vld [vmem:[%s8 + $0x40] sm:$0xff]
    %v5438 = vld [vmem:[%s8 + $0x48] sm:$0xff]
    %v5439 = vld [vmem:[%s8 + $0x50] sm:$0xff]
    %v5440 = vld [vmem:[%s8 + $0x58] sm:$0xff]
    %v5441 = vld [vmem:[%s8 + $0x60] sm:$0xff]
    %v5442 = vld [vmem:[%s8 + $0x68] sm:$0xff]
    %v5443 = vld [vmem:[%s8 + $0x70] sm:$0xff]
    %v5444 = vld [vmem:[%s8 + $0x78] sm:$0xff]
    %5446 = vset.pattern.permute.xlu0 3
    %5447 = vperm.xlu0 %5446, %v5429
    %v5448 = vpop.permute.xlu0 %5447
    %5451 = vset.pattern.permute.xlu0 3
    %5452 = vperm.xlu0 %5451, %v5430
    %v5453 = vpop.permute.xlu0 %5452
    %5456 = vset.pattern.permute.xlu0 3
    %5457 = vperm.xlu0 %5456, %v5431
    %v5458 = vpop.permute.xlu0 %5457
    %5461 = vset.pattern.permute.xlu0 3
    %5462 = vperm.xlu0 %5461, %v5432
    %v5463 = vpop.permute.xlu0 %5462
    %5466 = vset.pattern.permute.xlu0 3
    %5467 = vperm.xlu0 %5466, %v5433
    %v5468 = vpop.permute.xlu0 %5467
    %5471 = vset.pattern.permute.xlu0 3
    %5472 = vperm.xlu0 %5471, %v5434
    %v5473 = vpop.permute.xlu0 %5472
    %5476 = vset.pattern.permute.xlu0 3
    %5477 = vperm.xlu0 %5476, %v5435
    %v5478 = vpop.permute.xlu0 %5477
    %5481 = vset.pattern.permute.xlu0 3
    %5482 = vperm.xlu0 %5481, %v5436
    %v5483 = vpop.permute.xlu0 %5482
    %5486 = vset.pattern.permute.xlu0 3
    %5487 = vperm.xlu0 %5486, %v5437
    %v5488 = vpop.permute.xlu0 %5487
    %5491 = vset.pattern.permute.xlu0 3
    %5492 = vperm.xlu0 %5491, %v5438
    %v5493 = vpop.permute.xlu0 %5492
    %5496 = vset.pattern.permute.xlu0 3
    %5497 = vperm.xlu0 %5496, %v5439
    %v5498 = vpop.permute.xlu0 %5497
    %5501 = vset.pattern.permute.xlu0 3
    %5502 = vperm.xlu0 %5501, %v5440
    %v5503 = vpop.permute.xlu0 %5502
    %5506 = vset.pattern.permute.xlu0 3
    %5507 = vperm.xlu0 %5506, %v5441
    %v5508 = vpop.permute.xlu0 %5507
    %5511 = vset.pattern.permute.xlu0 3
    %5512 = vperm.xlu0 %5511, %v5442
    %v5513 = vpop.permute.xlu0 %5512
    %5516 = vset.pattern.permute.xlu0 3
    %5517 = vperm.xlu0 %5516, %v5443
    %v5518 = vpop.permute.xlu0 %5517
    %5521 = vset.pattern.permute.xlu0 3
    %5522 = vperm.xlu0 %5521, %v5444
    %v5523 = vpop.permute.xlu0 %5522
    %v5525 = vmul.f32 %v4963, %v5448
    %v5526 = vmul.f32 %v4922, %v5453
    %v5527 = vmul.f32 %v4924, %v5458
    %v5528 = vmul.f32 %v4926, %v5463
    %v5529 = vmul.f32 %v4928, %v5468
    %v5530 = vmul.f32 %v4930, %v5473
    %v5531 = vmul.f32 %v4932, %v5478
    %v5532 = vmul.f32 %v4934, %v5483
    %v5533 = vmul.f32 %v4936, %v5488
    %v5534 = vmul.f32 %v4938, %v5493
    %v5535 = vmul.f32 %v4940, %v5498
    %v5536 = vmul.f32 %v4942, %v5503
    %v5537 = vmul.f32 %v4944, %v5508
    %v5538 = vmul.f32 %v4946, %v5513
    %v5539 = vmul.f32 %v4947, %v5518
    %v5540 = vmul.f32 %v4903, %v5523
    %v5541 = vpack.c.bf16 %v5526, %v5525
    %v5542 = vpack.c.bf16 %v5528, %v5527
    %v5543 = vpack.c.bf16 %v5530, %v5529
    %v5544 = vpack.c.bf16 %v5532, %v5531
    %v5545 = vpack.c.bf16 %v5534, %v5533
    %v5546 = vpack.c.bf16 %v5536, %v5535
    %v5547 = vpack.c.bf16 %v5538, %v5537
    %v5548 = vpack.c.bf16 %v5540, %v5539
    %5557 = vrot.lane.b32.xlu0 %v5541, 64
    %v5558 = vpop.permute.xlu0 %5557
    %5559 = vrot.lane.b32.xlu0 %v5542, 64
    %v5560 = vpop.permute.xlu0 %5559
    %5561 = vrot.lane.b32.xlu0 %v5543, 64
    %v5562 = vpop.permute.xlu0 %5561
    %5563 = vrot.lane.b32.xlu0 %v5544, 64
    %v5564 = vpop.permute.xlu0 %5563
    %5565 = vrot.lane.b32.xlu0 %v5545, 64
    %v5566 = vpop.permute.xlu0 %5565
    %5567 = vrot.lane.b32.xlu0 %v5546, 64
    %v5568 = vpop.permute.xlu0 %5567
    %5569 = vrot.lane.b32.xlu0 %v5547, 64
    %v5570 = vpop.permute.xlu0 %5569
    %5571 = vrot.lane.b32.xlu0 %v5548, 64
    %v5572 = vpop.permute.xlu0 %5571
    %5581 = vst.msk [vmem:[#allocation2 + $0x8] sm:$0xff] %vm46, %v5558
    %5582 = vst.msk [vmem:[#allocation2 + $0x30] sm:$0xff] %vm46, %v5560
    %5583 = vst.msk [vmem:[#allocation2 + $0x58] sm:$0xff] %vm46, %v5562
    %5584 = vst.msk [vmem:[#allocation2 + $0x80] sm:$0xff] %vm46, %v5564
    %5585 = vst.msk [vmem:[#allocation2 + $0xa8] sm:$0xff] %vm46, %v5566
    %5586 = vst.msk [vmem:[#allocation2 + $0xd0] sm:$0xff] %vm46, %v5568
    %5587 = vst.msk [vmem:[#allocation2 + $0xf8] sm:$0xff] %vm46, %v5570
    %5588 = vst.msk [vmem:[#allocation2 + $0x120] sm:$0xff] %vm46, %v5572
    %v5589 = vld [vmem:[%s8] sm:$0xff]
    %v5590 = vld [vmem:[%s8 + $0x8] sm:$0xff]
    %v5591 = vld [vmem:[%s8 + $0x10] sm:$0xff]
    %v5592 = vld [vmem:[%s8 + $0x18] sm:$0xff]
    %v5593 = vld [vmem:[%s8 + $0x20] sm:$0xff]
    %v5594 = vld [vmem:[%s8 + $0x28] sm:$0xff]
    %v5595 = vld [vmem:[%s8 + $0x30] sm:$0xff]
    %v5596 = vld [vmem:[%s8 + $0x38] sm:$0xff]
    %v5597 = vld [vmem:[%s8 + $0x40] sm:$0xff]
    %v5598 = vld [vmem:[%s8 + $0x48] sm:$0xff]
    %v5599 = vld [vmem:[%s8 + $0x50] sm:$0xff]
    %v5600 = vld [vmem:[%s8 + $0x58] sm:$0xff]
    %v5601 = vld [vmem:[%s8 + $0x60] sm:$0xff]
    %v5602 = vld [vmem:[%s8 + $0x68] sm:$0xff]
    %v5603 = vld [vmem:[%s8 + $0x70] sm:$0xff]
    %v5604 = vld [vmem:[%s8 + $0x78] sm:$0xff]
    %5606 = vset.pattern.permute.xlu0 4
    %5607 = vperm.xlu0 %5606, %v5589
    %v5608 = vpop.permute.xlu0 %5607
    %5611 = vset.pattern.permute.xlu0 4
    %5612 = vperm.xlu0 %5611, %v5590
    %v5613 = vpop.permute.xlu0 %5612
    %5616 = vset.pattern.permute.xlu0 4
    %5617 = vperm.xlu0 %5616, %v5591
    %v5618 = vpop.permute.xlu0 %5617
    %5621 = vset.pattern.permute.xlu0 4
    %5622 = vperm.xlu0 %5621, %v5592
    %v5623 = vpop.permute.xlu0 %5622
    %5626 = vset.pattern.permute.xlu0 4
    %5627 = vperm.xlu0 %5626, %v5593
    %v5628 = vpop.permute.xlu0 %5627
    %5631 = vset.pattern.permute.xlu0 4
    %5632 = vperm.xlu0 %5631, %v5594
    %v5633 = vpop.permute.xlu0 %5632
    %5636 = vset.pattern.permute.xlu0 4
    %5637 = vperm.xlu0 %5636, %v5595
    %v5638 = vpop.permute.xlu0 %5637
    %5641 = vset.pattern.permute.xlu0 4
    %5642 = vperm.xlu0 %5641, %v5596
    %v5643 = vpop.permute.xlu0 %5642
    %5646 = vset.pattern.permute.xlu0 4
    %5647 = vperm.xlu0 %5646, %v5597
    %v5648 = vpop.permute.xlu0 %5647
    %5651 = vset.pattern.permute.xlu0 4
    %5652 = vperm.xlu0 %5651, %v5598
    %v5653 = vpop.permute.xlu0 %5652
    %5656 = vset.pattern.permute.xlu0 4
    %5657 = vperm.xlu0 %5656, %v5599
    %v5658 = vpop.permute.xlu0 %5657
    %5661 = vset.pattern.permute.xlu0 4
    %5662 = vperm.xlu0 %5661, %v5600
    %v5663 = vpop.permute.xlu0 %5662
    %5666 = vset.pattern.permute.xlu0 4
    %5667 = vperm.xlu0 %5666, %v5601
    %v5668 = vpop.permute.xlu0 %5667
    %5671 = vset.pattern.permute.xlu0 4
    %5672 = vperm.xlu0 %5671, %v5602
    %v5673 = vpop.permute.xlu0 %5672
    %5676 = vset.pattern.permute.xlu0 4
    %5677 = vperm.xlu0 %5676, %v5603
    %v5678 = vpop.permute.xlu0 %5677
    %5681 = vset.pattern.permute.xlu0 4
    %5682 = vperm.xlu0 %5681, %v5604
    %v5683 = vpop.permute.xlu0 %5682
    %v5685 = vmul.f32 %v4883, %v5608
    %v5686 = vmul.f32 %v4884, %v5613
    %v5687 = vmul.f32 %v4885, %v5618
    %v5688 = vmul.f32 %v4886, %v5623
    %v5689 = vmul.f32 %v4887, %v5628
    %v5690 = vmul.f32 %v4888, %v5633
    %v5691 = vmul.f32 %v4889, %v5638
    %v5692 = vmul.f32 %v4890, %v5643
    %v5693 = vmul.f32 %v4891, %v5648
    %v5694 = vmul.f32 %v4892, %v5653
    %v5695 = vmul.f32 %v4893, %v5658
    %v5696 = vmul.f32 %v4894, %v5663
    %v5697 = vmul.f32 %v4895, %v5668
    %v5698 = vmul.f32 %v4896, %v5673
    %v5699 = vmul.f32 %v4897, %v5678
    %v5700 = vmul.f32 %v4898, %v5683
    %v5701 = vpack.c.bf16 %v5686, %v5685
    %v5702 = vpack.c.bf16 %v5688, %v5687
    %v5703 = vpack.c.bf16 %v5690, %v5689
    %v5704 = vpack.c.bf16 %v5692, %v5691
    %v5705 = vpack.c.bf16 %v5694, %v5693
    %v5706 = vpack.c.bf16 %v5696, %v5695
    %v5707 = vpack.c.bf16 %v5698, %v5697
    %v5708 = vpack.c.bf16 %v5700, %v5699
    %5709 = vst.msk [vmem:[#allocation2 + $0x10] sm:$0xff] %vm257, %v5701
    %5710 = vst.msk [vmem:[#allocation2 + $0x38] sm:$0xff] %vm257, %v5702
    %5711 = vst.msk [vmem:[#allocation2 + $0x60] sm:$0xff] %vm257, %v5703
    %5712 = vst.msk [vmem:[#allocation2 + $0x88] sm:$0xff] %vm257, %v5704
    %5713 = vst.msk [vmem:[#allocation2 + $0xb0] sm:$0xff] %vm257, %v5705
    %5714 = vst.msk [vmem:[#allocation2 + $0xd8] sm:$0xff] %vm257, %v5706
    %5715 = vst.msk [vmem:[#allocation2 + $0x100] sm:$0xff] %vm257, %v5707
    %5716 = vst.msk [vmem:[#allocation2 + $0x128] sm:$0xff] %vm257, %v5708
    %v5717 = vld [vmem:[%s8] sm:$0xff]
    %v5718 = vld [vmem:[%s8 + $0x8] sm:$0xff]
    %v5719 = vld [vmem:[%s8 + $0x10] sm:$0xff]
    %v5720 = vld [vmem:[%s8 + $0x18] sm:$0xff]
    %v5721 = vld [vmem:[%s8 + $0x20] sm:$0xff]
    %v5722 = vld [vmem:[%s8 + $0x28] sm:$0xff]
    %v5723 = vld [vmem:[%s8 + $0x30] sm:$0xff]
    %v5724 = vld [vmem:[%s8 + $0x38] sm:$0xff]
    %v5725 = vld [vmem:[%s8 + $0x40] sm:$0xff]
    %v5726 = vld [vmem:[%s8 + $0x48] sm:$0xff]
    %v5727 = vld [vmem:[%s8 + $0x50] sm:$0xff]
    %v5728 = vld [vmem:[%s8 + $0x58] sm:$0xff]
    %v5729 = vld [vmem:[%s8 + $0x60] sm:$0xff]
    %v5730 = vld [vmem:[%s8 + $0x68] sm:$0xff]
    %v5731 = vld [vmem:[%s8 + $0x70] sm:$0xff]
    %v5732 = vld [vmem:[%s8 + $0x78] sm:$0xff]
    %5734 = vset.pattern.permute.xlu0 5
    %5735 = vperm.xlu0 %5734, %v5717
    %v5736 = vpop.permute.xlu0 %5735
    %5739 = vset.pattern.permute.xlu0 5
    %5740 = vperm.xlu0 %5739, %v5718
    %v5741 = vpop.permute.xlu0 %5740
    %5744 = vset.pattern.permute.xlu0 5
    %5745 = vperm.xlu0 %5744, %v5719
    %v5746 = vpop.permute.xlu0 %5745
    %5749 = vset.pattern.permute.xlu0 5
    %5750 = vperm.xlu0 %5749, %v5720
    %v5751 = vpop.permute.xlu0 %5750
    %5754 = vset.pattern.permute.xlu0 5
    %5755 = vperm.xlu0 %5754, %v5721
    %v5756 = vpop.permute.xlu0 %5755
    %5759 = vset.pattern.permute.xlu0 5
    %5760 = vperm.xlu0 %5759, %v5722
    %v5761 = vpop.permute.xlu0 %5760
    %5764 = vset.pattern.permute.xlu0 5
    %5765 = vperm.xlu0 %5764, %v5723
    %v5766 = vpop.permute.xlu0 %5765
    %5769 = vset.pattern.permute.xlu0 5
    %5770 = vperm.xlu0 %5769, %v5724
    %v5771 = vpop.permute.xlu0 %5770
    %5774 = vset.pattern.permute.xlu0 5
    %5775 = vperm.xlu0 %5774, %v5725
    %v5776 = vpop.permute.xlu0 %5775
    %5779 = vset.pattern.permute.xlu0 5
    %5780 = vperm.xlu0 %5779, %v5726
    %v5781 = vpop.permute.xlu0 %5780
    %5784 = vset.pattern.permute.xlu0 5
    %5785 = vperm.xlu0 %5784, %v5727
    %v5786 = vpop.permute.xlu0 %5785
    %5789 = vset.pattern.permute.xlu0 5
    %5790 = vperm.xlu0 %5789, %v5728
    %v5791 = vpop.permute.xlu0 %5790
    %5794 = vset.pattern.permute.xlu0 5
    %5795 = vperm.xlu0 %5794, %v5729
    %v5796 = vpop.permute.xlu0 %5795
    %5799 = vset.pattern.permute.xlu0 5
    %5800 = vperm.xlu0 %5799, %v5730
    %v5801 = vpop.permute.xlu0 %5800
    %5804 = vset.pattern.permute.xlu0 5
    %5805 = vperm.xlu0 %5804, %v5731
    %v5806 = vpop.permute.xlu0 %5805
    %5809 = vset.pattern.permute.xlu0 5
    %5810 = vperm.xlu0 %5809, %v5732
    %v5811 = vpop.permute.xlu0 %5810
    %v5813 = vmul.f32 %v5256, %v5736
    %v5814 = vmul.f32 %v5258, %v5741
    %v5815 = vmul.f32 %v5260, %v5746
    %v5816 = vmul.f32 %v5262, %v5751
    %v5817 = vmul.f32 %v5264, %v5756
    %v5818 = vmul.f32 %v5266, %v5761
    %v5819 = vmul.f32 %v5268, %v5766
    %v5820 = vmul.f32 %v5270, %v5771
    %v5821 = vmul.f32 %v5272, %v5776
    %v5822 = vmul.f32 %v5274, %v5781
    %v5823 = vmul.f32 %v5276, %v5786
    %v5824 = vmul.f32 %v5278, %v5791
    %v5825 = vmul.f32 %v5280, %v5796
    %v5826 = vmul.f32 %v5282, %v5801
    %v5827 = vmul.f32 %v5283, %v5806
    %v5828 = vmul.f32 %v5300, %v5811
    %v5829 = vpack.c.bf16 %v5814, %v5813
    %v5830 = vpack.c.bf16 %v5816, %v5815
    %v5831 = vpack.c.bf16 %v5818, %v5817
    %v5832 = vpack.c.bf16 %v5820, %v5819
    %v5833 = vpack.c.bf16 %v5822, %v5821
    %v5834 = vpack.c.bf16 %v5824, %v5823
    %v5835 = vpack.c.bf16 %v5826, %v5825
    %v5836 = vpack.c.bf16 %v5828, %v5827
    %5845 = vrot.lane.b32.xlu0 %v5829, 64
    %v5846 = vpop.permute.xlu0 %5845
    %5847 = vrot.lane.b32.xlu0 %v5830, 64
    %v5848 = vpop.permute.xlu0 %5847
    %5849 = vrot.lane.b32.xlu0 %v5831, 64
    %v5850 = vpop.permute.xlu0 %5849
    %5851 = vrot.lane.b32.xlu0 %v5832, 64
    %v5852 = vpop.permute.xlu0 %5851
    %5853 = vrot.lane.b32.xlu0 %v5833, 64
    %v5854 = vpop.permute.xlu0 %5853
    %5855 = vrot.lane.b32.xlu0 %v5834, 64
    %v5856 = vpop.permute.xlu0 %5855
    %5857 = vrot.lane.b32.xlu0 %v5835, 64
    %v5858 = vpop.permute.xlu0 %5857
    %5859 = vrot.lane.b32.xlu0 %v5836, 64
    %v5860 = vpop.permute.xlu0 %5859
    %5869 = vst.msk [vmem:[#allocation2 + $0x10] sm:$0xff] %vm46, %v5846
    %5870 = vst.msk [vmem:[#allocation2 + $0x38] sm:$0xff] %vm46, %v5848
    %5871 = vst.msk [vmem:[#allocation2 + $0x60] sm:$0xff] %vm46, %v5850
    %5872 = vst.msk [vmem:[#allocation2 + $0x88] sm:$0xff] %vm46, %v5852
    %5873 = vst.msk [vmem:[#allocation2 + $0xb0] sm:$0xff] %vm46, %v5854
    %5874 = vst.msk [vmem:[#allocation2 + $0xd8] sm:$0xff] %vm46, %v5856
    %5875 = vst.msk [vmem:[#allocation2 + $0x100] sm:$0xff] %vm46, %v5858
    %5876 = vst.msk [vmem:[#allocation2 + $0x128] sm:$0xff] %vm46, %v5860
    %v5877 = vld [vmem:[%s8] sm:$0xff]
    %v5878 = vld [vmem:[%s8 + $0x8] sm:$0xff]
    %v5879 = vld [vmem:[%s8 + $0x10] sm:$0xff]
    %v5880 = vld [vmem:[%s8 + $0x18] sm:$0xff]
    %v5881 = vld [vmem:[%s8 + $0x20] sm:$0xff]
    %v5882 = vld [vmem:[%s8 + $0x28] sm:$0xff]
    %v5883 = vld [vmem:[%s8 + $0x30] sm:$0xff]
    %v5884 = vld [vmem:[%s8 + $0x38] sm:$0xff]
    %v5885 = vld [vmem:[%s8 + $0x40] sm:$0xff]
    %v5886 = vld [vmem:[%s8 + $0x48] sm:$0xff]
    %v5887 = vld [vmem:[%s8 + $0x50] sm:$0xff]
    %v5888 = vld [vmem:[%s8 + $0x58] sm:$0xff]
    %v5889 = vld [vmem:[%s8 + $0x60] sm:$0xff]
    %v5890 = vld [vmem:[%s8 + $0x68] sm:$0xff]
    %v5891 = vld [vmem:[%s8 + $0x70] sm:$0xff]
    %v5892 = vld [vmem:[%s8 + $0x78] sm:$0xff]
    %5894 = vset.pattern.permute.xlu0 6
    %5895 = vperm.xlu0 %5894, %v5877
    %v5896 = vpop.permute.xlu0 %5895
    %5899 = vset.pattern.permute.xlu0 6
    %5900 = vperm.xlu0 %5899, %v5878
    %v5901 = vpop.permute.xlu0 %5900
    %5904 = vset.pattern.permute.xlu0 6
    %5905 = vperm.xlu0 %5904, %v5879
    %v5906 = vpop.permute.xlu0 %5905
    %5909 = vset.pattern.permute.xlu0 6
    %5910 = vperm.xlu0 %5909, %v5880
    %v5911 = vpop.permute.xlu0 %5910
    %5914 = vset.pattern.permute.xlu0 6
    %5915 = vperm.xlu0 %5914, %v5881
    %v5916 = vpop.permute.xlu0 %5915
    %5919 = vset.pattern.permute.xlu0 6
    %5920 = vperm.xlu0 %5919, %v5882
    %v5921 = vpop.permute.xlu0 %5920
    %5924 = vset.pattern.permute.xlu0 6
    %5925 = vperm.xlu0 %5924, %v5883
    %v5926 = vpop.permute.xlu0 %5925
    %5929 = vset.pattern.permute.xlu0 6
    %5930 = vperm.xlu0 %5929, %v5884
    %v5931 = vpop.permute.xlu0 %5930
    %5934 = vset.pattern.permute.xlu0 6
    %5935 = vperm.xlu0 %5934, %v5885
    %v5936 = vpop.permute.xlu0 %5935
    %5939 = vset.pattern.permute.xlu0 6
    %5940 = vperm.xlu0 %5939, %v5886
    %v5941 = vpop.permute.xlu0 %5940
    %5944 = vset.pattern.permute.xlu0 6
    %5945 = vperm.xlu0 %5944, %v5887
    %v5946 = vpop.permute.xlu0 %5945
    %5949 = vset.pattern.permute.xlu0 6
    %5950 = vperm.xlu0 %5949, %v5888
    %v5951 = vpop.permute.xlu0 %5950
    %5954 = vset.pattern.permute.xlu0 6
    %5955 = vperm.xlu0 %5954, %v5889
    %v5956 = vpop.permute.xlu0 %5955
    %5959 = vset.pattern.permute.xlu0 6
    %5960 = vperm.xlu0 %5959, %v5890
    %v5961 = vpop.permute.xlu0 %5960
    %5964 = vset.pattern.permute.xlu0 6
    %5965 = vperm.xlu0 %5964, %v5891
    %v5966 = vpop.permute.xlu0 %5965
    %5969 = vset.pattern.permute.xlu0 6
    %5970 = vperm.xlu0 %5969, %v5892
    %v5971 = vpop.permute.xlu0 %5970
    %v5973 = vmul.f32 %v4922, %v5896
    %v5974 = vmul.f32 %v4924, %v5901
    %v5975 = vmul.f32 %v4926, %v5906
    %v5976 = vmul.f32 %v4928, %v5911
    %v5977 = vmul.f32 %v4930, %v5916
    %v5978 = vmul.f32 %v4932, %v5921
    %v5979 = vmul.f32 %v4934, %v5926
    %v5980 = vmul.f32 %v4936, %v5931
    %v5981 = vmul.f32 %v4938, %v5936
    %v5982 = vmul.f32 %v4940, %v5941
    %v5983 = vmul.f32 %v4942, %v5946
    %v5984 = vmul.f32 %v4944, %v5951
    %v5985 = vmul.f32 %v4946, %v5956
    %v5986 = vmul.f32 %v4947, %v5961
    %v5987 = vmul.f32 %v4903, %v5966
    %v5988 = vmul.f32 %v4963, %v5971
    %v5989 = vpack.c.bf16 %v5974, %v5973
    %v5990 = vpack.c.bf16 %v5976, %v5975
    %v5991 = vpack.c.bf16 %v5978, %v5977
    %v5992 = vpack.c.bf16 %v5980, %v5979
    %v5993 = vpack.c.bf16 %v5982, %v5981
    %v5994 = vpack.c.bf16 %v5984, %v5983
    %v5995 = vpack.c.bf16 %v5986, %v5985
    %v5996 = vpack.c.bf16 %v5988, %v5987
    %5997 = vst.msk [vmem:[#allocation2 + $0x18] sm:$0xff] %vm257, %v5989
    %5998 = vst.msk [vmem:[#allocation2 + $0x40] sm:$0xff] %vm257, %v5990
    %5999 = vst.msk [vmem:[#allocation2 + $0x68] sm:$0xff] %vm257, %v5991
    %6000 = vst.msk [vmem:[#allocation2 + $0x90] sm:$0xff] %vm257, %v5992
    %6001 = vst.msk [vmem:[#allocation2 + $0xb8] sm:$0xff] %vm257, %v5993
    %6002 = vst.msk [vmem:[#allocation2 + $0xe0] sm:$0xff] %vm257, %v5994
    %6003 = vst.msk [vmem:[#allocation2 + $0x108] sm:$0xff] %vm257, %v5995
    %6004 = vst.msk [vmem:[#allocation2 + $0x130] sm:$0xff] %vm257, %v5996
    %v6005 = vld [vmem:[%s8] sm:$0xff]
    %v6006 = vld [vmem:[%s8 + $0x8] sm:$0xff]
    %v6007 = vld [vmem:[%s8 + $0x10] sm:$0xff]
    %v6008 = vld [vmem:[%s8 + $0x18] sm:$0xff]
    %v6009 = vld [vmem:[%s8 + $0x20] sm:$0xff]
    %v6010 = vld [vmem:[%s8 + $0x28] sm:$0xff]
    %v6011 = vld [vmem:[%s8 + $0x30] sm:$0xff]
    %v6012 = vld [vmem:[%s8 + $0x38] sm:$0xff]
    %v6013 = vld [vmem:[%s8 + $0x40] sm:$0xff]
    %v6014 = vld [vmem:[%s8 + $0x48] sm:$0xff]
    %v6015 = vld [vmem:[%s8 + $0x50] sm:$0xff]
    %v6016 = vld [vmem:[%s8 + $0x58] sm:$0xff]
    %v6017 = vld [vmem:[%s8 + $0x60] sm:$0xff]
    %v6018 = vld [vmem:[%s8 + $0x68] sm:$0xff]
    %v6019 = vld [vmem:[%s8 + $0x70] sm:$0xff]
    %v6020 = vld [vmem:[%s8 + $0x78] sm:$0xff]
    %6022 = vset.pattern.permute.xlu0 7
    %6023 = vperm.xlu0 %6022, %v6005
    %v6024 = vpop.permute.xlu0 %6023
    %6027 = vset.pattern.permute.xlu0 7
    %6028 = vperm.xlu0 %6027, %v6006
    %v6029 = vpop.permute.xlu0 %6028
    %6032 = vset.pattern.permute.xlu0 7
    %6033 = vperm.xlu0 %6032, %v6007
    %v6034 = vpop.permute.xlu0 %6033
    %6037 = vset.pattern.permute.xlu0 7
    %6038 = vperm.xlu0 %6037, %v6008
    %v6039 = vpop.permute.xlu0 %6038
    %6042 = vset.pattern.permute.xlu0 7
    %6043 = vperm.xlu0 %6042, %v6009
    %v6044 = vpop.permute.xlu0 %6043
    %6047 = vset.pattern.permute.xlu0 7
    %6048 = vperm.xlu0 %6047, %v6010
    %v6049 = vpop.permute.xlu0 %6048
    %6052 = vset.pattern.permute.xlu0 7
    %6053 = vperm.xlu0 %6052, %v6011
    %v6054 = vpop.permute.xlu0 %6053
    %6057 = vset.pattern.permute.xlu0 7
    %6058 = vperm.xlu0 %6057, %v6012
    %v6059 = vpop.permute.xlu0 %6058
    %6062 = vset.pattern.permute.xlu0 7
    %6063 = vperm.xlu0 %6062, %v6013
    %v6064 = vpop.permute.xlu0 %6063
    %6067 = vset.pattern.permute.xlu0 7
    %6068 = vperm.xlu0 %6067, %v6014
    %v6069 = vpop.permute.xlu0 %6068
    %6072 = vset.pattern.permute.xlu0 7
    %6073 = vperm.xlu0 %6072, %v6015
    %v6074 = vpop.permute.xlu0 %6073
    %6077 = vset.pattern.permute.xlu0 7
    %6078 = vperm.xlu0 %6077, %v6016
    %v6079 = vpop.permute.xlu0 %6078
    %6082 = vset.pattern.permute.xlu0 7
    %6083 = vperm.xlu0 %6082, %v6017
    %v6084 = vpop.permute.xlu0 %6083
    %6087 = vset.pattern.permute.xlu0 7
    %6088 = vperm.xlu0 %6087, %v6018
    %v6089 = vpop.permute.xlu0 %6088
    %6092 = vset.pattern.permute.xlu0 7
    %6093 = vperm.xlu0 %6092, %v6019
    %v6094 = vpop.permute.xlu0 %6093
    %6097 = vset.pattern.permute.xlu0 7
    %6098 = vperm.xlu0 %6097, %v6020
    %v6099 = vpop.permute.xlu0 %6098
    %v6101 = vmul.f32 %v4884, %v6024
    %v6102 = vmul.f32 %v4885, %v6029
    %v6103 = vmul.f32 %v4886, %v6034
    %v6104 = vmul.f32 %v4887, %v6039
    %v6105 = vmul.f32 %v4888, %v6044
    %v6106 = vmul.f32 %v4889, %v6049
    %v6107 = vmul.f32 %v4890, %v6054
    %v6108 = vmul.f32 %v4891, %v6059
    %v6109 = vmul.f32 %v4892, %v6064
    %v6110 = vmul.f32 %v4893, %v6069
    %v6111 = vmul.f32 %v4894, %v6074
    %v6112 = vmul.f32 %v4895, %v6079
    %v6113 = vmul.f32 %v4896, %v6084
    %v6114 = vmul.f32 %v4897, %v6089
    %v6115 = vmul.f32 %v4898, %v6094
    %v6116 = vmul.f32 %v4883, %v6099
    %v6117 = vpack.c.bf16 %v6102, %v6101
    %v6118 = vpack.c.bf16 %v6104, %v6103
    %v6119 = vpack.c.bf16 %v6106, %v6105
    %v6120 = vpack.c.bf16 %v6108, %v6107
    %v6121 = vpack.c.bf16 %v6110, %v6109
    %v6122 = vpack.c.bf16 %v6112, %v6111
    %v6123 = vpack.c.bf16 %v6114, %v6113
    %v6124 = vpack.c.bf16 %v6116, %v6115
    %6133 = vrot.lane.b32.xlu0 %v6117, 64
    %v6134 = vpop.permute.xlu0 %6133
    %6135 = vrot.lane.b32.xlu0 %v6118, 64
    %v6136 = vpop.permute.xlu0 %6135
    %6137 = vrot.lane.b32.xlu0 %v6119, 64
    %v6138 = vpop.permute.xlu0 %6137
    %6139 = vrot.lane.b32.xlu0 %v6120, 64
    %v6140 = vpop.permute.xlu0 %6139
    %6141 = vrot.lane.b32.xlu0 %v6121, 64
    %v6142 = vpop.permute.xlu0 %6141
    %6143 = vrot.lane.b32.xlu0 %v6122, 64
    %v6144 = vpop.permute.xlu0 %6143
    %6145 = vrot.lane.b32.xlu0 %v6123, 64
    %v6146 = vpop.permute.xlu0 %6145
    %6147 = vrot.lane.b32.xlu0 %v6124, 64
    %v6148 = vpop.permute.xlu0 %6147
    %6157 = vst.msk [vmem:[#allocation2 + $0x18] sm:$0xff] %vm46, %v6134
    %6158 = vst.msk [vmem:[#allocation2 + $0x40] sm:$0xff] %vm46, %v6136
    %6159 = vst.msk [vmem:[#allocation2 + $0x68] sm:$0xff] %vm46, %v6138
    %6160 = vst.msk [vmem:[#allocation2 + $0x90] sm:$0xff] %vm46, %v6140
    %6161 = vst.msk [vmem:[#allocation2 + $0xb8] sm:$0xff] %vm46, %v6142
    %6162 = vst.msk [vmem:[#allocation2 + $0xe0] sm:$0xff] %vm46, %v6144
    %6163 = vst.msk [vmem:[#allocation2 + $0x108] sm:$0xff] %vm46, %v6146
    %6164 = vst.msk [vmem:[#allocation2 + $0x130] sm:$0xff] %vm46, %v6148
    %v6165 = vld [vmem:[%s8] sm:$0xff]
    %v6166 = vld [vmem:[%s8 + $0x8] sm:$0xff]
    %v6167 = vld [vmem:[%s8 + $0x10] sm:$0xff]
    %v6168 = vld [vmem:[%s8 + $0x18] sm:$0xff]
    %v6169 = vld [vmem:[%s8 + $0x20] sm:$0xff]
    %v6170 = vld [vmem:[%s8 + $0x28] sm:$0xff]
    %v6171 = vld [vmem:[%s8 + $0x30] sm:$0xff]
    %v6172 = vld [vmem:[%s8 + $0x38] sm:$0xff]
    %v6173 = vld [vmem:[%s8 + $0x40] sm:$0xff]
    %v6174 = vld [vmem:[%s8 + $0x48] sm:$0xff]
    %v6175 = vld [vmem:[%s8 + $0x50] sm:$0xff]
    %v6176 = vld [vmem:[%s8 + $0x58] sm:$0xff]
    %v6177 = vld [vmem:[%s8 + $0x60] sm:$0xff]
    %v6178 = vld [vmem:[%s8 + $0x68] sm:$0xff]
    %v6179 = vld [vmem:[%s8 + $0x70] sm:$0xff]
    %v6180 = vld [vmem:[%s8 + $0x78] sm:$0xff]
    %6182 = vset.pattern.permute.xlu0 8
    %6183 = vperm.xlu0 %6182, %v6165
    %v6184 = vpop.permute.xlu0 %6183
    %6187 = vset.pattern.permute.xlu0 8
    %6188 = vperm.xlu0 %6187, %v6166
    %v6189 = vpop.permute.xlu0 %6188
    %6192 = vset.pattern.permute.xlu0 8
    %6193 = vperm.xlu0 %6192, %v6167
    %v6194 = vpop.permute.xlu0 %6193
    %6197 = vset.pattern.permute.xlu0 8
    %6198 = vperm.xlu0 %6197, %v6168
    %v6199 = vpop.permute.xlu0 %6198
    %6202 = vset.pattern.permute.xlu0 8
    %6203 = vperm.xlu0 %6202, %v6169
    %v6204 = vpop.permute.xlu0 %6203
    %6207 = vset.pattern.permute.xlu0 8
    %6208 = vperm.xlu0 %6207, %v6170
    %v6209 = vpop.permute.xlu0 %6208
    %6212 = vset.pattern.permute.xlu0 8
    %6213 = vperm.xlu0 %6212, %v6171
    %v6214 = vpop.permute.xlu0 %6213
    %6217 = vset.pattern.permute.xlu0 8
    %6218 = vperm.xlu0 %6217, %v6172
    %v6219 = vpop.permute.xlu0 %6218
    %6222 = vset.pattern.permute.xlu0 8
    %6223 = vperm.xlu0 %6222, %v6173
    %v6224 = vpop.permute.xlu0 %6223
    %6227 = vset.pattern.permute.xlu0 8
    %6228 = vperm.xlu0 %6227, %v6174
    %v6229 = vpop.permute.xlu0 %6228
    %6232 = vset.pattern.permute.xlu0 8
    %6233 = vperm.xlu0 %6232, %v6175
    %v6234 = vpop.permute.xlu0 %6233
    %6237 = vset.pattern.permute.xlu0 8
    %6238 = vperm.xlu0 %6237, %v6176
    %v6239 = vpop.permute.xlu0 %6238
    %6242 = vset.pattern.permute.xlu0 8
    %6243 = vperm.xlu0 %6242, %v6177
    %v6244 = vpop.permute.xlu0 %6243
    %6247 = vset.pattern.permute.xlu0 8
    %6248 = vperm.xlu0 %6247, %v6178
    %v6249 = vpop.permute.xlu0 %6248
    %6252 = vset.pattern.permute.xlu0 8
    %6253 = vperm.xlu0 %6252, %v6179
    %v6254 = vpop.permute.xlu0 %6253
    %6257 = vset.pattern.permute.xlu0 8
    %6258 = vperm.xlu0 %6257, %v6180
    %v6259 = vpop.permute.xlu0 %6258
    %v6261 = vmul.f32 %v5258, %v6184
    %v6262 = vmul.f32 %v5260, %v6189
    %v6263 = vmul.f32 %v5262, %v6194
    %v6264 = vmul.f32 %v5264, %v6199
    %v6265 = vmul.f32 %v5266, %v6204
    %v6266 = vmul.f32 %v5268, %v6209
    %v6267 = vmul.f32 %v5270, %v6214
    %v6268 = vmul.f32 %v5272, %v6219
    %v6269 = vmul.f32 %v5274, %v6224
    %v6270 = vmul.f32 %v5276, %v6229
    %v6271 = vmul.f32 %v5278, %v6234
    %v6272 = vmul.f32 %v5280, %v6239
    %v6273 = vmul.f32 %v5282, %v6244
    %v6274 = vmul.f32 %v5283, %v6249
    %v6275 = vmul.f32 %v5300, %v6254
    %v6276 = vmul.f32 %v5256, %v6259
    %v6277 = vpack.c.bf16 %v6262, %v6261
    %v6278 = vpack.c.bf16 %v6264, %v6263
    %v6279 = vpack.c.bf16 %v6266, %v6265
    %v6280 = vpack.c.bf16 %v6268, %v6267
    %v6281 = vpack.c.bf16 %v6270, %v6269
    %v6282 = vpack.c.bf16 %v6272, %v6271
    %v6283 = vpack.c.bf16 %v6274, %v6273
    %v6284 = vpack.c.bf16 %v6276, %v6275
    %6285 = vst.msk [vmem:[#allocation2 + $0x20] sm:$0xff] %vm257, %v6277
    %6286 = vst.msk [vmem:[#allocation2 + $0x48] sm:$0xff] %vm257, %v6278
    %6287 = vst.msk [vmem:[#allocation2 + $0x70] sm:$0xff] %vm257, %v6279
    %6288 = vst.msk [vmem:[#allocation2 + $0x98] sm:$0xff] %vm257, %v6280
    %6289 = vst.msk [vmem:[#allocation2 + $0xc0] sm:$0xff] %vm257, %v6281
    %6290 = vst.msk [vmem:[#allocation2 + $0xe8] sm:$0xff] %vm257, %v6282
    %6291 = vst.msk [vmem:[#allocation2 + $0x110] sm:$0xff] %vm257, %v6283
    %6292 = vst.msk [vmem:[#allocation2 + $0x138] sm:$0xff] %vm257, %v6284
    %v6293 = vld [vmem:[#allocation2] sm:$0xff]
    %v6294 = vld [vmem:[#allocation2 + $0x8] sm:$0xff]
    %v6295 = vld [vmem:[#allocation2 + $0x10] sm:$0xff]
    %v6296 = vld [vmem:[#allocation2 + $0x18] sm:$0xff]
    %v6297 = vld [vmem:[#allocation2 + $0x20] sm:$0xff]
    %v6298 = vld [vmem:[#allocation2 + $0x28] sm:$0xff]
    %v6299 = vld [vmem:[#allocation2 + $0x30] sm:$0xff]
    %v6300 = vld [vmem:[#allocation2 + $0x38] sm:$0xff]
    %v6301 = vld [vmem:[#allocation2 + $0x40] sm:$0xff]
    %v6302 = vld [vmem:[#allocation2 + $0x48] sm:$0xff]
    %v6303 = vld [vmem:[#allocation2 + $0x50] sm:$0xff]
    %v6304 = vld [vmem:[#allocation2 + $0x58] sm:$0xff]
    %v6305 = vld [vmem:[#allocation2 + $0x60] sm:$0xff]
    %v6306 = vld [vmem:[#allocation2 + $0x68] sm:$0xff]
    %v6307 = vld [vmem:[#allocation2 + $0x70] sm:$0xff]
    %v6308 = vld [vmem:[#allocation2 + $0x78] sm:$0xff]
    %v6309 = vld [vmem:[#allocation2 + $0x80] sm:$0xff]
    %v6310 = vld [vmem:[#allocation2 + $0x88] sm:$0xff]
    %v6311 = vld [vmem:[#allocation2 + $0x90] sm:$0xff]
    %v6312 = vld [vmem:[#allocation2 + $0x98] sm:$0xff]
    %v6313 = vld [vmem:[#allocation2 + $0xa0] sm:$0xff]
    %v6314 = vld [vmem:[#allocation2 + $0xa8] sm:$0xff]
    %v6315 = vld [vmem:[#allocation2 + $0xb0] sm:$0xff]
    %v6316 = vld [vmem:[#allocation2 + $0xb8] sm:$0xff]
    %v6317 = vld [vmem:[#allocation2 + $0xc0] sm:$0xff]
    %v6318 = vld [vmem:[#allocation2 + $0xc8] sm:$0xff]
    %v6319 = vld [vmem:[#allocation2 + $0xd0] sm:$0xff]
    %v6320 = vld [vmem:[#allocation2 + $0xd8] sm:$0xff]
    %v6321 = vld [vmem:[#allocation2 + $0xe0] sm:$0xff]
    %v6322 = vld [vmem:[#allocation2 + $0xe8] sm:$0xff]
    %v6323 = vld [vmem:[#allocation2 + $0xf0] sm:$0xff]
    %v6324 = vld [vmem:[#allocation2 + $0xf8] sm:$0xff]
    %v6325 = vld [vmem:[#allocation2 + $0x100] sm:$0xff]
    %v6326 = vld [vmem:[#allocation2 + $0x108] sm:$0xff]
    %v6327 = vld [vmem:[#allocation2 + $0x110] sm:$0xff]
    %v6328 = vld [vmem:[#allocation2 + $0x118] sm:$0xff]
    %v6329 = vld [vmem:[#allocation2 + $0x120] sm:$0xff]
    %v6330 = vld [vmem:[#allocation2 + $0x128] sm:$0xff]
    %v6331 = vld [vmem:[#allocation2 + $0x130] sm:$0xff]
    %v6332 = vld [vmem:[#allocation2 + $0x138] sm:$0xff]
    %v6333 = vld [vmem:[%s1] sm:$0xf]
    %v6334 = vld [vmem:[%s1 + $0x4] sm:$0xf]
    %v6335 = vld [vmem:[%s1 + $0x8] sm:$0xf]
    %v6336 = vld [vmem:[%s1 + $0xc] sm:$0xf]
    %v6337 = vld [vmem:[%s1 + $0x10] sm:$0xf]
    %v6338 = vld [vmem:[%s1 + $0x14] sm:$0xf]
    %v6339 = vld [vmem:[%s1 + $0x18] sm:$0xf]
    %v6340 = vld [vmem:[%s1 + $0x1c] sm:$0xf]
    %v6341 = vld [vmem:[%s1 + $0x20] sm:$0xf]
    %v6342 = vld [vmem:[%s1 + $0x24] sm:$0xf]
    %v6343 = vld [vmem:[%s1 + $0x28] sm:$0xf]
    %v6344 = vld [vmem:[%s1 + $0x2c] sm:$0xf]
    %v6345 = vld [vmem:[%s1 + $0x30] sm:$0xf]
    %v6346 = vld [vmem:[%s1 + $0x34] sm:$0xf]
    %v6347 = vld [vmem:[%s1 + $0x38] sm:$0xf]
    %v6348 = vld [vmem:[%s1 + $0x3c] sm:$0xf]
    %v6349 = vld [vmem:[%s1 + $0x40] sm:$0xf]
    %v6350 = vld [vmem:[%s1 + $0x44] sm:$0xf]
    %v6351 = vld [vmem:[%s1 + $0x48] sm:$0xf]
    %v6352 = vld [vmem:[%s1 + $0x4c] sm:$0xf]
    %v6353 = vld [vmem:[%s1 + $0x50] sm:$0xf]
    %v6354 = vld [vmem:[%s1 + $0x54] sm:$0xf]
    %v6355 = vld [vmem:[%s1 + $0x58] sm:$0xf]
    %v6356 = vld [vmem:[%s1 + $0x5c] sm:$0xf]
    %v6357 = vld [vmem:[%s1 + $0x60] sm:$0xf]
    %v6358 = vld [vmem:[%s1 + $0x64] sm:$0xf]
    %v6359 = vld [vmem:[%s1 + $0x68] sm:$0xf]
    %v6360 = vld [vmem:[%s1 + $0x6c] sm:$0xf]
    %v6361 = vld [vmem:[%s1 + $0x70] sm:$0xf]
    %v6362 = vld [vmem:[%s1 + $0x74] sm:$0xf]
    %v6363 = vld [vmem:[%s1 + $0x78] sm:$0xf]
    %v6364 = vld [vmem:[%s1 + $0x7c] sm:$0xf]
    %v6365 = vld [vmem:[%s1 + $0x80] sm:$0xf]
    %v6366 = vld [vmem:[%s1 + $0x84] sm:$0xf]
    %v6367 = vld [vmem:[%s1 + $0x88] sm:$0xf]
    %v6368 = vld [vmem:[%s1 + $0x8c] sm:$0xf]
    %v6369 = vld [vmem:[%s1 + $0x90] sm:$0xf]
    %v6370 = vld [vmem:[%s1 + $0x94] sm:$0xf]
    %v6371 = vld [vmem:[%s1 + $0x98] sm:$0xf]
    %v6372 = vld [vmem:[%s1 + $0x9c] sm:$0xf]
    %v6373 = vld [vmem:[%s1 + $0xa0] sm:$0xf]
    %v6374 = vld [vmem:[%s1 + $0xa4] sm:$0xf]
    %v6375 = vld [vmem:[%s1 + $0xa8] sm:$0xf]
    %v6376 = vld [vmem:[%s1 + $0xac] sm:$0xf]
    %v6377 = vld [vmem:[%s1 + $0xb0] sm:$0xf]
    %v6378 = vld [vmem:[%s1 + $0xb4] sm:$0xf]
    %v6379 = vld [vmem:[%s1 + $0xb8] sm:$0xf]
    %v6380 = vld [vmem:[%s1 + $0xbc] sm:$0xf]
    %v6381 = vld [vmem:[%s1 + $0xc0] sm:$0xf]
    %v6382 = vld [vmem:[%s1 + $0xc4] sm:$0xf]
    %v6383 = vld [vmem:[%s1 + $0xc8] sm:$0xf]
    %v6384 = vld [vmem:[%s1 + $0xcc] sm:$0xf]
    %v6385 = vld [vmem:[%s1 + $0xd0] sm:$0xf]
    %v6386 = vld [vmem:[%s1 + $0xd4] sm:$0xf]
    %v6387 = vld [vmem:[%s1 + $0xd8] sm:$0xf]
    %v6388 = vld [vmem:[%s1 + $0xdc] sm:$0xf]
    %v6389 = vld [vmem:[%s1 + $0xe0] sm:$0xf]
    %v6390 = vld [vmem:[%s1 + $0xe4] sm:$0xf]
    %v6391 = vld [vmem:[%s1 + $0xe8] sm:$0xf]
    %v6392 = vld [vmem:[%s1 + $0xec] sm:$0xf]
    %v6393 = vld [vmem:[%s1 + $0xf0] sm:$0xf]
    %v6394 = vld [vmem:[%s1 + $0xf4] sm:$0xf]
    %v6395 = vld [vmem:[%s1 + $0xf8] sm:$0xf]
    %v6396 = vld [vmem:[%s1 + $0xfc] sm:$0xf]
    %v6397 = vld [vmem:[%s1 + $0x100] sm:$0xf]
    %v6398 = vld [vmem:[%s1 + $0x104] sm:$0xf]
    %v6399 = vld [vmem:[%s1 + $0x108] sm:$0xf]
    %v6400 = vld [vmem:[%s1 + $0x10c] sm:$0xf]
    %v6401 = vld [vmem:[%s1 + $0x110] sm:$0xf]
    %v6402 = vld [vmem:[%s1 + $0x114] sm:$0xf]
    %v6403 = vld [vmem:[%s1 + $0x118] sm:$0xf]
    %v6404 = vld [vmem:[%s1 + $0x11c] sm:$0xf]
    %v6405 = vld [vmem:[%s1 + $0x120] sm:$0xf]
    %v6406 = vld [vmem:[%s1 + $0x124] sm:$0xf]
    %v6407 = vld [vmem:[%s1 + $0x128] sm:$0xf]
    %v6408 = vld [vmem:[%s1 + $0x12c] sm:$0xf]
    %v6409 = vld [vmem:[%s1 + $0x130] sm:$0xf]
    %v6410 = vld [vmem:[%s1 + $0x134] sm:$0xf]
    %v6411 = vld [vmem:[%s1 + $0x138] sm:$0xf]
    %v6412 = vld [vmem:[%s1 + $0x13c] sm:$0xf]
    %v6493 = vunpack.c.l.b16 %v6333
    %v6494 = vunpack.c.l.b16 %v6334
    %v6495 = vunpack.c.l.b16 %v6335
    %v6496 = vunpack.c.l.b16 %v6336
    %v6497 = vunpack.c.l.b16 %v6337
    %v6498 = vunpack.c.l.b16 %v6338
    %v6499 = vunpack.c.l.b16 %v6339
    %v6500 = vunpack.c.l.b16 %v6340
    %v6501 = vunpack.c.l.b16 %v6341
    %v6502 = vunpack.c.l.b16 %v6342
    %v6503 = vunpack.c.l.b16 %v6343
    %v6504 = vunpack.c.l.b16 %v6344
    %v6505 = vunpack.c.l.b16 %v6345
    %v6506 = vunpack.c.l.b16 %v6346
    %v6507 = vunpack.c.l.b16 %v6347
    %v6508 = vunpack.c.l.b16 %v6348
    %v6509 = vunpack.c.l.b16 %v6349
    %v6510 = vunpack.c.l.b16 %v6350
    %v6511 = vunpack.c.l.b16 %v6351
    %v6512 = vunpack.c.l.b16 %v6352
    %v6513 = vunpack.c.l.b16 %v6353
    %v6514 = vunpack.c.l.b16 %v6354
    %v6515 = vunpack.c.l.b16 %v6355
    %v6516 = vunpack.c.l.b16 %v6356
    %v6517 = vunpack.c.l.b16 %v6357
    %v6518 = vunpack.c.l.b16 %v6358
    %v6519 = vunpack.c.l.b16 %v6359
    %v6520 = vunpack.c.l.b16 %v6360
    %v6521 = vunpack.c.l.b16 %v6361
    %v6522 = vunpack.c.l.b16 %v6362
    %v6523 = vunpack.c.l.b16 %v6363
    %v6524 = vunpack.c.l.b16 %v6364
    %v6525 = vunpack.c.l.b16 %v6365
    %v6526 = vunpack.c.l.b16 %v6366
    %v6527 = vunpack.c.l.b16 %v6367
    %v6528 = vunpack.c.l.b16 %v6368
    %v6529 = vunpack.c.l.b16 %v6369
    %v6530 = vunpack.c.l.b16 %v6370
    %v6531 = vunpack.c.l.b16 %v6371
    %v6532 = vunpack.c.l.b16 %v6372
    %v6533 = vunpack.c.l.b16 %v6373
    %v6534 = vunpack.c.l.b16 %v6374
    %v6535 = vunpack.c.l.b16 %v6375
    %v6536 = vunpack.c.l.b16 %v6376
    %v6537 = vunpack.c.l.b16 %v6377
    %v6538 = vunpack.c.l.b16 %v6378
    %v6539 = vunpack.c.l.b16 %v6379
    %v6540 = vunpack.c.l.b16 %v6380
    %v6541 = vunpack.c.l.b16 %v6381
    %v6542 = vunpack.c.l.b16 %v6382
    %v6543 = vunpack.c.l.b16 %v6383
    %v6544 = vunpack.c.l.b16 %v6384
    %v6545 = vunpack.c.l.b16 %v6385
    %v6546 = vunpack.c.l.b16 %v6386
    %v6547 = vunpack.c.l.b16 %v6387
    %v6548 = vunpack.c.l.b16 %v6388
    %v6549 = vunpack.c.l.b16 %v6389
    %v6550 = vunpack.c.l.b16 %v6390
    %v6551 = vunpack.c.l.b16 %v6391
    %v6552 = vunpack.c.l.b16 %v6392
    %v6553 = vunpack.c.l.b16 %v6393
    %v6554 = vunpack.c.l.b16 %v6394
    %v6555 = vunpack.c.l.b16 %v6395
    %v6556 = vunpack.c.l.b16 %v6396
    %v6557 = vunpack.c.l.b16 %v6397
    %v6558 = vunpack.c.l.b16 %v6398
    %v6559 = vunpack.c.l.b16 %v6399
    %v6560 = vunpack.c.l.b16 %v6400
    %v6561 = vunpack.c.l.b16 %v6401
    %v6562 = vunpack.c.l.b16 %v6402
    %v6563 = vunpack.c.l.b16 %v6403
    %v6564 = vunpack.c.l.b16 %v6404
    %v6565 = vunpack.c.l.b16 %v6405
    %v6566 = vunpack.c.l.b16 %v6406
    %v6567 = vunpack.c.l.b16 %v6407
    %v6568 = vunpack.c.l.b16 %v6408
    %v6569 = vunpack.c.l.b16 %v6409
    %v6570 = vunpack.c.l.b16 %v6410
    %v6571 = vunpack.c.l.b16 %v6411
    %v6572 = vunpack.c.l.b16 %v6412
    %v6573 = vpack.c.b16 %v6494, %v6493
    %v6574 = vpack.c.b16 %v6496, %v6495
    %v6575 = vpack.c.b16 %v6498, %v6497
    %v6576 = vpack.c.b16 %v6500, %v6499
    %v6577 = vpack.c.b16 %v6502, %v6501
    %v6578 = vpack.c.b16 %v6504, %v6503
    %v6579 = vpack.c.b16 %v6506, %v6505
    %v6580 = vpack.c.b16 %v6508, %v6507
    %v6581 = vpack.c.b16 %v6510, %v6509
    %v6582 = vpack.c.b16 %v6512, %v6511
    %v6583 = vpack.c.b16 %v6514, %v6513
    %v6584 = vpack.c.b16 %v6516, %v6515
    %v6585 = vpack.c.b16 %v6518, %v6517
    %v6586 = vpack.c.b16 %v6520, %v6519
    %v6587 = vpack.c.b16 %v6522, %v6521
    %v6588 = vpack.c.b16 %v6524, %v6523
    %v6589 = vpack.c.b16 %v6526, %v6525
    %v6590 = vpack.c.b16 %v6528, %v6527
    %v6591 = vpack.c.b16 %v6530, %v6529
    %v6592 = vpack.c.b16 %v6532, %v6531
    %v6593 = vpack.c.b16 %v6534, %v6533
    %v6594 = vpack.c.b16 %v6536, %v6535
    %v6595 = vpack.c.b16 %v6538, %v6537
    %v6596 = vpack.c.b16 %v6540, %v6539
    %v6597 = vpack.c.b16 %v6542, %v6541
    %v6598 = vpack.c.b16 %v6544, %v6543
    %v6599 = vpack.c.b16 %v6546, %v6545
    %v6600 = vpack.c.b16 %v6548, %v6547
    %v6601 = vpack.c.b16 %v6550, %v6549
    %v6602 = vpack.c.b16 %v6552, %v6551
    %v6603 = vpack.c.b16 %v6554, %v6553
    %v6604 = vpack.c.b16 %v6556, %v6555
    %v6605 = vpack.c.b16 %v6558, %v6557
    %v6606 = vpack.c.b16 %v6560, %v6559
    %v6607 = vpack.c.b16 %v6562, %v6561
    %v6608 = vpack.c.b16 %v6564, %v6563
    %v6609 = vpack.c.b16 %v6566, %v6565
    %v6610 = vpack.c.b16 %v6568, %v6567
    %v6611 = vpack.c.b16 %v6570, %v6569
    %v6612 = vpack.c.b16 %v6572, %v6571
    %6653 = vmatprep.subr.bf16.mxu0 0
    %6654 = vmatpush1.bf16.msra.mxu0 %v6573
    %6655 = vmatprep.subr.bf16.mxu0 0
    %6656 = vmatpush1.bf16.msra.mxu0 %v6574
    %6657 = vmatprep.subr.bf16.mxu0 0
    %6658 = vmatpush1.bf16.msra.mxu0 %v6575
    %6659 = vmatprep.subr.bf16.mxu0 0
    %6660 = vmatpush1.bf16.msra.mxu0 %v6576
    %6661 = vmatprep.subr.bf16.mxu0 0
    %6662 = vmatpush1.bf16.msra.mxu0 %v6577
    %6663 = vmatprep.subr.bf16.mxu0 0
    %6664 = vmatpush1.bf16.msra.mxu0 %v6578
    %6665 = vmatprep.subr.bf16.mxu0 0
    %6666 = vmatpush1.bf16.msra.mxu0 %v6579
    %6667 = vmatprep.subr.bf16.mxu0 0
    %6668 = vmatpush1.bf16.msra.mxu0 %v6580
    %6669 = vmatprep.subr.bf16.mxu0 0
    %6670 = vmatpush1.bf16.msra.mxu0 %v6581
    %6671 = vmatprep.subr.bf16.mxu0 0
    %6672 = vmatpush1.bf16.msra.mxu0 %v6582
    %6673 = vmatprep.subr.bf16.mxu0 0
    %6674 = vmatpush1.bf16.msra.mxu0 %v6583
    %6675 = vmatprep.subr.bf16.mxu0 0
    %6676 = vmatpush1.bf16.msra.mxu0 %v6584
    %6677 = vmatprep.subr.bf16.mxu0 0
    %6678 = vmatpush1.bf16.msra.mxu0 %v6585
    %6679 = vmatprep.subr.bf16.mxu0 0
    %6680 = vmatpush1.bf16.msra.mxu0 %v6586
    %6681 = vmatprep.subr.bf16.mxu0 0
    %6682 = vmatpush1.bf16.msra.mxu0 %v6587
    %6683 = vmatprep.subr.bf16.mxu0 0
    %6684 = vmatpush1.bf16.msra.mxu0 %v6588
    %6685 = vmatprep.mubr.bf16.mxu0 %v6294
    %6686 = vmatmul.mubr.bf16.gmra.mrb[0].mxu0 %v6293
    %v6687 = vpop.f32.mrb[0].mxu0
    %v6688 = vadd.f32 0.0, %v6687
    %v6689 = vpop.f32.mrb[0].mxu0
    %v6690 = vpop.f32.mrb[0].mxu0
    %v6691 = vadd.f32 0.0, %v6690
    %v6692 = vpop.f32.mrb[0].mxu0
    %6693 = vmatprep.mubr.bf16.mxu0 %v6299
    %6694 = vmatmul.mubr.bf16.gmra.mrb[0].mxu0 %v6298
    %v6695 = vpop.f32.mrb[0].mxu0
    %v6696 = vadd.f32 0.0, %v6695
    %v6697 = vpop.f32.mrb[0].mxu0
    %v6698 = vpop.f32.mrb[0].mxu0
    %v6699 = vadd.f32 0.0, %v6698
    %v6700 = vpop.f32.mrb[0].mxu0
    %6701 = vmatprep.mubr.bf16.mxu0 %v6304
    %6702 = vmatmul.mubr.bf16.gmra.mrb[0].mxu0 %v6303
    %v6703 = vpop.f32.mrb[0].mxu0
    %v6704 = vadd.f32 0.0, %v6703
    %v6705 = vpop.f32.mrb[0].mxu0
    %v6706 = vpop.f32.mrb[0].mxu0
    %v6707 = vadd.f32 0.0, %v6706
    %v6708 = vpop.f32.mrb[0].mxu0
    %6709 = vmatprep.mubr.bf16.mxu0 %v6309
    %6710 = vmatmul.mubr.bf16.gmra.mrb[0].mxu0 %v6308
    %v6711 = vpop.f32.mrb[0].mxu0
    %v6712 = vadd.f32 0.0, %v6711
    %v6713 = vpop.f32.mrb[0].mxu0
    %v6714 = vpop.f32.mrb[0].mxu0
    %v6715 = vadd.f32 0.0, %v6714
    %v6716 = vpop.f32.mrb[0].mxu0
    %6717 = vmatprep.mubr.bf16.mxu0 %v6314
    %6718 = vmatmul.mubr.bf16.gmra.mrb[0].mxu0 %v6313
    %v6719 = vpop.f32.mrb[0].mxu0
    %v6720 = vadd.f32 0.0, %v6719
    %v6721 = vpop.f32.mrb[0].mxu0
    %v6722 = vpop.f32.mrb[0].mxu0
    %v6723 = vadd.f32 0.0, %v6722
    %v6724 = vpop.f32.mrb[0].mxu0
    %6725 = vmatprep.mubr.bf16.mxu0 %v6319
    %6726 = vmatmul.mubr.bf16.gmra.mrb[0].mxu0 %v6318
    %v6727 = vpop.f32.mrb[0].mxu0
    %v6728 = vadd.f32 0.0, %v6727
    %v6729 = vpop.f32.mrb[0].mxu0
    %v6730 = vpop.f32.mrb[0].mxu0
    %v6731 = vadd.f32 0.0, %v6730
    %v6732 = vpop.f32.mrb[0].mxu0
    %6733 = vmatprep.mubr.bf16.mxu0 %v6324
    %6734 = vmatmul.mubr.bf16.gmra.mrb[0].mxu0 %v6323
    %v6735 = vpop.f32.mrb[0].mxu0
    %v6736 = vadd.f32 0.0, %v6735
    %v6737 = vpop.f32.mrb[0].mxu0
    %v6738 = vpop.f32.mrb[0].mxu0
    %v6739 = vadd.f32 0.0, %v6738
    %v6740 = vpop.f32.mrb[0].mxu0
    %6741 = vmatprep.mubr.bf16.mxu0 %v6329
    %6742 = vmatmul.mubr.bf16.gmra.mrb[0].mxu0 %v6328
    %v6743 = vpop.f32.mrb[0].mxu0
    %v6744 = vadd.f32 0.0, %v6743
    %v6745 = vpop.f32.mrb[0].mxu0
    %v6746 = vpop.f32.mrb[0].mxu0
    %v6747 = vadd.f32 0.0, %v6746
    %v6748 = vpop.f32.mrb[0].mxu0
    %6749 = vdwg.mxu0
    %6750 = vmatprep.subr.bf16.mxu0 0
    %6751 = vmatpush1.bf16.msra.mxu0 %v6589
    %6752 = vmatprep.subr.bf16.mxu0 0
    %6753 = vmatpush1.bf16.msra.mxu0 %v6590
    %6754 = vmatprep.subr.bf16.mxu0 0
    %6755 = vmatpush1.bf16.msra.mxu0 %v6591
    %6756 = vmatprep.subr.bf16.mxu0 0
    %6757 = vmatpush1.bf16.msra.mxu0 %v6592
    %6758 = vmatprep.subr.bf16.mxu0 0
    %6759 = vmatpush1.bf16.msra.mxu0 %v6593
    %6760 = vmatprep.subr.bf16.mxu0 0
    %6761 = vmatpush1.bf16.msra.mxu0 %v6594
    %6762 = vmatprep.subr.bf16.mxu0 0
    %6763 = vmatpush1.bf16.msra.mxu0 %v6595
    %6764 = vmatprep.subr.bf16.mxu0 0
    %6765 = vmatpush1.bf16.msra.mxu0 %v6596
    %6766 = vmatprep.subr.bf16.mxu0 0
    %6767 = vmatpush1.bf16.msra.mxu0 %v6597
    %6768 = vmatprep.subr.bf16.mxu0 0
    %6769 = vmatpush1.bf16.msra.mxu0 %v6598
    %6770 = vmatprep.subr.bf16.mxu0 0
    %6771 = vmatpush1.bf16.msra.mxu0 %v6599
    %6772 = vmatprep.subr.bf16.mxu0 0
    %6773 = vmatpush1.bf16.msra.mxu0 %v6600
    %6774 = vmatprep.subr.bf16.mxu0 0
    %6775 = vmatpush1.bf16.msra.mxu0 %v6601
    %6776 = vmatprep.subr.bf16.mxu0 0
    %6777 = vmatpush1.bf16.msra.mxu0 %v6602
    %6778 = vmatprep.subr.bf16.mxu0 0
    %6779 = vmatpush1.bf16.msra.mxu0 %v6603
    %6780 = vmatprep.subr.bf16.mxu0 0
    %6781 = vmatpush1.bf16.msra.mxu0 %v6604
    %6782 = vmatprep.mubr.bf16.mxu0 %v6296
    %6783 = vmatmul.mubr.bf16.gmra.mrb[0].mxu0 %v6295
    %v6784 = vpop.f32.mrb[0].mxu0
    %v6785 = vadd.f32 %v6688, %v6784
    %v6786 = vpop.f32.mrb[0].mxu0
    %v6787 = vpop.f32.mrb[0].mxu0
    %v6788 = vadd.f32 %v6691, %v6787
    %v6789 = vpop.f32.mrb[0].mxu0
    %6790 = vmatprep.mubr.bf16.mxu0 %v6301
    %6791 = vmatmul.mubr.bf16.gmra.mrb[0].mxu0 %v6300
    %v6792 = vpop.f32.mrb[0].mxu0
    %v6793 = vadd.f32 %v6696, %v6792
    %v6794 = vpop.f32.mrb[0].mxu0
    %v6795 = vpop.f32.mrb[0].mxu0
    %v6796 = vadd.f32 %v6699, %v6795
    %v6797 = vpop.f32.mrb[0].mxu0
    %6798 = vmatprep.mubr.bf16.mxu0 %v6306
    %6799 = vmatmul.mubr.bf16.gmra.mrb[0].mxu0 %v6305
    %v6800 = vpop.f32.mrb[0].mxu0
    %v6801 = vadd.f32 %v6704, %v6800
    %v6802 = vpop.f32.mrb[0].mxu0
    %v6803 = vpop.f32.mrb[0].mxu0
    %v6804 = vadd.f32 %v6707, %v6803
    %v6805 = vpop.f32.mrb[0].mxu0
    %6806 = vmatprep.mubr.bf16.mxu0 %v6311
    %6807 = vmatmul.mubr.bf16.gmra.mrb[0].mxu0 %v6310
    %v6808 = vpop.f32.mrb[0].mxu0
    %v6809 = vadd.f32 %v6712, %v6808
    %v6810 = vpop.f32.mrb[0].mxu0
    %v6811 = vpop.f32.mrb[0].mxu0
    %v6812 = vadd.f32 %v6715, %v6811
    %v6813 = vpop.f32.mrb[0].mxu0
    %6814 = vmatprep.mubr.bf16.mxu0 %v6316
    %6815 = vmatmul.mubr.bf16.gmra.mrb[0].mxu0 %v6315
    %v6816 = vpop.f32.mrb[0].mxu0
    %v6817 = vadd.f32 %v6720, %v6816
    %v6818 = vpop.f32.mrb[0].mxu0
    %v6819 = vpop.f32.mrb[0].mxu0
    %v6820 = vadd.f32 %v6723, %v6819
    %v6821 = vpop.f32.mrb[0].mxu0
    %6822 = vmatprep.mubr.bf16.mxu0 %v6321
    %6823 = vmatmul.mubr.bf16.gmra.mrb[0].mxu0 %v6320
    %v6824 = vpop.f32.mrb[0].mxu0
    %v6825 = vadd.f32 %v6728, %v6824
    %v6826 = vpop.f32.mrb[0].mxu0
    %v6827 = vpop.f32.mrb[0].mxu0
    %v6828 = vadd.f32 %v6731, %v6827
    %v6829 = vpop.f32.mrb[0].mxu0
    %6830 = vmatprep.mubr.bf16.mxu0 %v6326
    %6831 = vmatmul.mubr.bf16.gmra.mrb[0].mxu0 %v6325
    %v6832 = vpop.f32.mrb[0].mxu0
    %v6833 = vadd.f32 %v6736, %v6832
    %v6834 = vpop.f32.mrb[0].mxu0
    %v6835 = vpop.f32.mrb[0].mxu0
    %v6836 = vadd.f32 %v6739, %v6835
    %v6837 = vpop.f32.mrb[0].mxu0
    %6838 = vmatprep.mubr.bf16.mxu0 %v6331
    %6839 = vmatmul.mubr.bf16.gmra.mrb[0].mxu0 %v6330
    %v6840 = vpop.f32.mrb[0].mxu0
    %v6841 = vadd.f32 %v6744, %v6840
    %v6842 = vpop.f32.mrb[0].mxu0
    %v6843 = vpop.f32.mrb[0].mxu0
    %v6844 = vadd.f32 %v6747, %v6843
    %v6845 = vpop.f32.mrb[0].mxu0
    %6846 = vdwg.mxu0
    %6847 = vmatprep.subr.bf16.mxu0 0
    %6848 = vmatpush1.bf16.msra.mxu0 %v6605
    %6849 = vmatprep.subr.bf16.mxu0 0
    %6850 = vmatpush1.bf16.msra.mxu0 %v6606
    %6851 = vmatprep.subr.bf16.mxu0 0
    %6852 = vmatpush1.bf16.msra.mxu0 %v6607
    %6853 = vmatprep.subr.bf16.mxu0 0
    %6854 = vmatpush1.bf16.msra.mxu0 %v6608
    %6855 = vmatprep.subr.bf16.mxu0 0
    %6856 = vmatpush1.bf16.msra.mxu0 %v6609
    %6857 = vmatprep.subr.bf16.mxu0 0
    %6858 = vmatpush1.bf16.msra.mxu0 %v6610
    %6859 = vmatprep.subr.bf16.mxu0 0
    %6860 = vmatpush1.bf16.msra.mxu0 %v6611
    %6861 = vmatprep.subr.bf16.mxu0 0
    %6862 = vmatpush1.bf16.msra.mxu0 %v6612
    %6863 = vmatprep.subr.bf16.mxu0 0
    %6864 = vmatpush1.bf16.msra.mxu0 0
    %6865 = vmatprep.subr.bf16.mxu0 0
    %6866 = vmatpush1.bf16.msra.mxu0 0
    %6867 = vmatprep.subr.bf16.mxu0 0
    %6868 = vmatpush1.bf16.msra.mxu0 0
    %6869 = vmatprep.subr.bf16.mxu0 0
    %6870 = vmatpush1.bf16.msra.mxu0 0
    %6871 = vmatprep.subr.bf16.mxu0 0
    %6872 = vmatpush1.bf16.msra.mxu0 0
    %6873 = vmatprep.subr.bf16.mxu0 0
    %6874 = vmatpush1.bf16.msra.mxu0 0
    %6875 = vmatprep.subr.bf16.mxu0 0
    %6876 = vmatpush1.bf16.msra.mxu0 0
    %6877 = vmatprep.subr.bf16.mxu0 0
    %6878 = vmatpush1.bf16.msra.mxu0 0
    %6879 = vmatprep.mubr.bf16.mxu0 0
    %6880 = vmatmul.mubr.bf16.gmra.mrb[0].mxu0 %v6297
    %v6881 = vpop.f32.mrb[0].mxu0
    %v6882 = vadd.f32 %v6785, %v6881
    %v6883 = vpop.f32.mrb[0].mxu0
    %v6884 = vpop.f32.mrb[0].mxu0
    %v6885 = vadd.f32 %v6788, %v6884
    %v6886 = vpop.f32.mrb[0].mxu0
    %6887 = vmatprep.mubr.bf16.mxu0 0
    %6888 = vmatmul.mubr.bf16.gmra.mrb[0].mxu0 %v6302
    %v6889 = vpop.f32.mrb[0].mxu0
    %v6890 = vadd.f32 %v6793, %v6889
    %v6891 = vpop.f32.mrb[0].mxu0
    %v6892 = vpop.f32.mrb[0].mxu0
    %v6893 = vadd.f32 %v6796, %v6892
    %v6894 = vpop.f32.mrb[0].mxu0
    %6895 = vmatprep.mubr.bf16.mxu0 0
    %6896 = vmatmul.mubr.bf16.gmra.mrb[0].mxu0 %v6307
    %v6897 = vpop.f32.mrb[0].mxu0
    %v6898 = vadd.f32 %v6801, %v6897
    %v6899 = vpop.f32.mrb[0].mxu0
    %v6900 = vpop.f32.mrb[0].mxu0
    %v6901 = vadd.f32 %v6804, %v6900
    %v6902 = vpop.f32.mrb[0].mxu0
    %6903 = vmatprep.mubr.bf16.mxu0 0
    %6904 = vmatmul.mubr.bf16.gmra.mrb[0].mxu0 %v6312
    %v6905 = vpop.f32.mrb[0].mxu0
    %v6906 = vadd.f32 %v6809, %v6905
    %v6907 = vpop.f32.mrb[0].mxu0
    %v6908 = vpop.f32.mrb[0].mxu0
    %v6909 = vadd.f32 %v6812, %v6908
    %v6910 = vpop.f32.mrb[0].mxu0
    %6911 = vmatprep.mubr.bf16.mxu0 0
    %6912 = vmatmul.mubr.bf16.gmra.mrb[0].mxu0 %v6317
    %v6913 = vpop.f32.mrb[0].mxu0
    %v6914 = vadd.f32 %v6817, %v6913
    %v6915 = vpop.f32.mrb[0].mxu0
    %v6916 = vpop.f32.mrb[0].mxu0
    %v6917 = vadd.f32 %v6820, %v6916
    %v6918 = vpop.f32.mrb[0].mxu0
    %6919 = vmatprep.mubr.bf16.mxu0 0
    %6920 = vmatmul.mubr.bf16.gmra.mrb[0].mxu0 %v6322
    %v6921 = vpop.f32.mrb[0].mxu0
    %v6922 = vadd.f32 %v6825, %v6921
    %v6923 = vpop.f32.mrb[0].mxu0
    %v6924 = vpop.f32.mrb[0].mxu0
    %v6925 = vadd.f32 %v6828, %v6924
    %v6926 = vpop.f32.mrb[0].mxu0
    %6927 = vmatprep.mubr.bf16.mxu0 0
    %6928 = vmatmul.mubr.bf16.gmra.mrb[0].mxu0 %v6327
    %v6929 = vpop.f32.mrb[0].mxu0
    %v6930 = vadd.f32 %v6833, %v6929
    %v6931 = vpop.f32.mrb[0].mxu0
    %v6932 = vpop.f32.mrb[0].mxu0
    %v6933 = vadd.f32 %v6836, %v6932
    %v6934 = vpop.f32.mrb[0].mxu0
    %6935 = vmatprep.mubr.bf16.mxu0 0
    %6936 = vmatmul.mubr.bf16.gmra.mrb[0].mxu0 %v6332
    %v6937 = vpop.f32.mrb[0].mxu0
    %v6938 = vadd.f32 %v6841, %v6937
    %v6939 = vpop.f32.mrb[0].mxu0
    %v6940 = vpop.f32.mrb[0].mxu0
    %v6941 = vadd.f32 %v6844, %v6940
    %v6942 = vpop.f32.mrb[0].mxu0
    %6943 = vdwg.mxu0
    %v6944 = vsel %vm257, %v6882, 0.0
    %v6945 = vsel %vm257, %v6885, 0.0
    %v6946 = vadd.f32 %v6944, %v6945
    %v6947 = vsel %vm257, %v6890, 0.0
    %v6948 = vadd.f32 %v6946, %v6947
    %v6949 = vsel %vm257, %v6893, 0.0
    %v6950 = vadd.f32 %v6948, %v6949
    %v6951 = vsel %vm257, %v6898, 0.0
    %v6952 = vadd.f32 %v6950, %v6951
    %v6953 = vsel %vm257, %v6901, 0.0
    %v6954 = vadd.f32 %v6952, %v6953
    %v6955 = vsel %vm257, %v6906, 0.0
    %v6956 = vadd.f32 %v6954, %v6955
    %v6957 = vsel %vm257, %v6909, 0.0
    %v6958 = vadd.f32 %v6956, %v6957
    %v6959 = vrot.slane %v6958, 4
    %v6960 = vadd.f32 %v6958, %v6959
    %v6961 = vrot.slane %v6960, 2
    %v6962 = vadd.f32 %v6960, %v6961
    %v6963 = vrot.slane %v6962, 1
    %v6964 = vadd.f32 %v6962, %v6963
    %v6965 = vsel %vm257, %v6914, 0.0
    %v6966 = vsel %vm257, %v6917, 0.0
    %v6967 = vadd.f32 %v6965, %v6966
    %v6968 = vsel %vm257, %v6922, 0.0
    %v6969 = vadd.f32 %v6967, %v6968
    %v6970 = vsel %vm257, %v6925, 0.0
    %v6971 = vadd.f32 %v6969, %v6970
    %v6972 = vsel %vm257, %v6930, 0.0
    %v6973 = vadd.f32 %v6971, %v6972
    %v6974 = vsel %vm257, %v6933, 0.0
    %v6975 = vadd.f32 %v6973, %v6974
    %v6976 = vsel %vm257, %v6938, 0.0
    %v6977 = vadd.f32 %v6975, %v6976
    %v6978 = vsel %vm257, %v6941, 0.0
    %v6979 = vadd.f32 %v6977, %v6978
    %v6980 = vrot.slane %v6979, 4
    %v6981 = vadd.f32 %v6979, %v6980
    %v6982 = vrot.slane %v6981, 2
    %v6983 = vadd.f32 %v6981, %v6982
    %v6984 = vrot.slane %v6983, 1
    %v6985 = vadd.f32 %v6983, %v6984
    %v6986 = vmul.f32 %v6882, %v6882
    %v6987 = vmul.f32 %v6885, %v6885
    %v6988 = vmul.f32 %v6890, %v6890
    %v6989 = vmul.f32 %v6893, %v6893
    %v6990 = vmul.f32 %v6898, %v6898
    %v6991 = vmul.f32 %v6901, %v6901
    %v6992 = vmul.f32 %v6906, %v6906
    %v6993 = vmul.f32 %v6909, %v6909
    %v6994 = vmul.f32 %v6914, %v6914
    %v6995 = vmul.f32 %v6917, %v6917
    %v6996 = vmul.f32 %v6922, %v6922
    %v6997 = vmul.f32 %v6925, %v6925
    %v6998 = vmul.f32 %v6930, %v6930
    %v6999 = vmul.f32 %v6933, %v6933
    %v7000 = vmul.f32 %v6938, %v6938
    %v7001 = vmul.f32 %v6941, %v6941
    %v7002 = vsel %vm257, %v6986, 0.0
    %v7003 = vsel %vm257, %v6987, 0.0
    %v7004 = vadd.f32 %v7002, %v7003
    %v7005 = vsel %vm257, %v6988, 0.0
    %v7006 = vadd.f32 %v7004, %v7005
    %v7007 = vsel %vm257, %v6989, 0.0
    %v7008 = vadd.f32 %v7006, %v7007
    %v7009 = vsel %vm257, %v6990, 0.0
    %v7010 = vadd.f32 %v7008, %v7009
    %v7011 = vsel %vm257, %v6991, 0.0
    %v7012 = vadd.f32 %v7010, %v7011
    %v7013 = vsel %vm257, %v6992, 0.0
    %v7014 = vadd.f32 %v7012, %v7013
    %v7015 = vsel %vm257, %v6993, 0.0
    %v7016 = vadd.f32 %v7014, %v7015
    %v7017 = vrot.slane %v7016, 4
    %v7018 = vadd.f32 %v7016, %v7017
    %v7019 = vrot.slane %v7018, 2
    %v7020 = vadd.f32 %v7018, %v7019
    %v7021 = vrot.slane %v7020, 1
    %v7022 = vadd.f32 %v7020, %v7021
    %v7023 = vsel %vm257, %v6994, 0.0
    %v7024 = vsel %vm257, %v6995, 0.0
    %v7025 = vadd.f32 %v7023, %v7024
    %v7026 = vsel %vm257, %v6996, 0.0
    %v7027 = vadd.f32 %v7025, %v7026
    %v7028 = vsel %vm257, %v6997, 0.0
    %v7029 = vadd.f32 %v7027, %v7028
    %v7030 = vsel %vm257, %v6998, 0.0
    %v7031 = vadd.f32 %v7029, %v7030
    %v7032 = vsel %vm257, %v6999, 0.0
    %v7033 = vadd.f32 %v7031, %v7032
    %v7034 = vsel %vm257, %v7000, 0.0
    %v7035 = vadd.f32 %v7033, %v7034
    %v7036 = vsel %vm257, %v7001, 0.0
    %v7037 = vadd.f32 %v7035, %v7036
    %v7038 = vrot.slane %v7037, 4
    %v7039 = vadd.f32 %v7037, %v7038
    %v7040 = vrot.slane %v7039, 2
    %v7041 = vadd.f32 %v7039, %v7040
    %v7042 = vrot.slane %v7041, 1
    %v7043 = vadd.f32 %v7041, %v7042
    %v7046 = vsel %vm2221, %v6985, %v6964
    %v7050 = vsel %vm2226, %v7043, %v7022
    %v7052 = vsel %vm2229, %v7046, %v7050
    %v7054 = vsel %vm257, %v7052, 0
    %7056 = vmatprep.subr.mxu0 0.0
    %7057 = vmatpush1.msra.mxu0 %v34
    %7058 = vmatprep.subr.mxu0 0.0
    %7059 = vmatpush1.msra.mxu0 %v35
    %7060 = vmatprep.subr.mxu0 0.0
    %7061 = vmatpush1.msra.mxu0 %v36
    %7062 = vmatprep.subr.mxu0 0.0
    %7063 = vmatpush1.msra.mxu0 %v37
    %7064 = vmatprep.subr.mxu0 0.0
    %7065 = vmatpush1.msra.mxu0 %v38
    %7066 = vmatprep.subr.mxu0 0.0
    %7067 = vmatpush1.msra.mxu0 %v39
    %7068 = vmatprep.subr.mxu0 0.0
    %7069 = vmatpush1.msra.mxu0 %v40
    %7070 = vmatprep.subr.mxu0 0.0
    %7071 = vmatpush1.msra.mxu0 %v41
    %7072 = vmatprep.subr.mxu0 0.0
    %7073 = vmatpush1.msra.mxu0 0.0
    %7074 = vmatprep.subr.mxu0 0.0
    %7075 = vmatpush1.msra.mxu0 0.0
    %7076 = vmatprep.subr.mxu0 0.0
    %7077 = vmatpush1.msra.mxu0 0.0
    %7078 = vmatprep.subr.mxu0 0.0
    %7079 = vmatpush1.msra.mxu0 0.0
    %7080 = vmatprep.subr.mxu0 0.0
    %7081 = vmatpush1.msra.mxu0 0.0
    %7082 = vmatprep.subr.mxu0 0.0
    %7083 = vmatpush1.msra.mxu0 0.0
    %7084 = vmatprep.subr.mxu0 0.0
    %7085 = vmatpush1.msra.mxu0 0.0
    %7086 = vmatprep.subr.mxu0 0.0
    %7087 = vmatpush1.msra.mxu0 0.0
    %7088 = vmatprep.subr.mxu0 0.0
    %7089 = vmatpush1.msra.mxu0 0.0
    %7090 = vmatprep.subr.mxu0 0.0
    %7091 = vmatpush1.msra.mxu0 0.0
    %7092 = vmatprep.subr.mxu0 0.0
    %7093 = vmatpush1.msra.mxu0 0.0
    %7094 = vmatprep.subr.mxu0 0.0
    %7095 = vmatpush1.msra.mxu0 0.0
    %7096 = vmatprep.subr.mxu0 0.0
    %7097 = vmatpush1.msra.mxu0 0.0
    %7098 = vmatprep.subr.mxu0 0.0
    %7099 = vmatpush1.msra.mxu0 0.0
    %7100 = vmatprep.subr.mxu0 0.0
    %7101 = vmatpush1.msra.mxu0 0.0
    %7102 = vmatprep.subr.mxu0 0.0
    %7103 = vmatpush1.msra.mxu0 0.0
    %7104 = vmatprep.subr.mxu0 0.0
    %7105 = vmatpush1.msra.mxu0 0.0
    %7106 = vmatprep.subr.mxu0 0.0
    %7107 = vmatpush1.msra.mxu0 0.0
    %7108 = vmatprep.subr.mxu0 0.0
    %7109 = vmatpush1.msra.mxu0 0.0
    %7110 = vmatprep.subr.mxu0 0.0
    %7111 = vmatpush1.msra.mxu0 0.0
    %7112 = vmatprep.subr.mxu0 0.0
    %7113 = vmatpush1.msra.mxu0 0.0
    %7114 = vmatprep.subr.mxu0 0.0
    %7115 = vmatpush1.msra.mxu0 0.0
    %7116 = vmatprep.subr.mxu0 0.0
    %7117 = vmatpush1.msra.mxu0 0.0
    %7118 = vmatprep.subr.mxu0 0.0
    %7119 = vmatpush1.msra.mxu0 0.0
    %7120 = vmatprep.mubr.f32.mxu0 0.0
    %7121 = vmatmul.mubr.f32.gmra.mrb[0].mxu0 %v7054
    %v7122 = vpop.f32.mrb[0].mxu0
    %v7123 = vadd.f32 0.0, %v7122
    %v7124 = vpop.f32.mrb[0].mxu0
    %7125 = vdwg.mxu0
    %v7126 = vmul.f32 %v7123, %v7123
    %v7128 = vrot.slane %v7126, 6
    %v7130 = vsub.f32 %v7123, %v7128
    %v7131 = vmax.f32 %v7130, 0.0
    %v7132 = vadd.f32 %v7131, 1e-05
    %v7133 = vrsqrt.pop %v7132
    %v7136 = vunpack.c.l.s4 1966171168
    %v7137 = vunpack.c.0.s8 %v7136
    %v7138 = vlaneseq
    %v7139 = vshrl.u32 %v7138, 7
    %v7140 = vsub.s32 %v7137, %v7139
    %v7141 = vrot.slane %v7123, %v7140
    %v7142 = vcombine.high %v7141, %v7141
    %v7144 = vunpack.c.l.s4 1966171168
    %v7145 = vunpack.c.0.s8 %v7144
    %v7146 = vlaneseq
    %v7147 = vshrl.u32 %v7146, 7
    %v7148 = vsub.s32 %v7145, %v7147
    %v7149 = vrot.slane %v7141, %v7148
    %v7151 = vunpack.c.l.s4 1966171168
    %v7152 = vunpack.c.0.s8 %v7151
    %v7153 = vlaneseq
    %v7154 = vshrl.u32 %v7153, 7
    %v7155 = vsub.s32 %v7152, %v7154
    %v7156 = vrot.slane %v7142, %v7155
    %v7157 = vlaneseq
    %v7158 = vshrl.u32 %v7157, 7
    %v7159 = vsub.s32 0, %v7158
    %v7160 = vrot.slane %v7149, %v7159
    %v7161 = vlaneseq
    %v7162 = vshrl.u32 %v7161, 7
    %v7163 = vsub.s32 0, %v7162
    %v7164 = vrot.slane %v7156, %v7163
    %v7167 = vsub.f32 %v6882, %v7160
    %v7168 = vsub.f32 %v6885, %v7160
    %v7169 = vsub.f32 %v6890, %v7160
    %v7170 = vsub.f32 %v6893, %v7160
    %v7171 = vsub.f32 %v6898, %v7160
    %v7172 = vsub.f32 %v6901, %v7160
    %v7173 = vsub.f32 %v6906, %v7160
    %v7174 = vsub.f32 %v6909, %v7160
    %v7175 = vsub.f32 %v6914, %v7164
    %v7176 = vsub.f32 %v6917, %v7164
    %v7177 = vsub.f32 %v6922, %v7164
    %v7178 = vsub.f32 %v6925, %v7164
    %v7179 = vsub.f32 %v6930, %v7164
    %v7180 = vsub.f32 %v6933, %v7164
    %v7181 = vsub.f32 %v6938, %v7164
    %v7182 = vsub.f32 %v6941, %v7164
    %v7185 = vunpack.c.l.s4 1966171168
    %v7186 = vunpack.c.0.s8 %v7185
    %v7187 = vlaneseq
    %v7188 = vshrl.u32 %v7187, 7
    %v7189 = vsub.s32 %v7186, %v7188
    %v7190 = vrot.slane %v7133, %v7189
    %v7191 = vcombine.high %v7190, %v7190
    %v7193 = vunpack.c.l.s4 1966171168
    %v7194 = vunpack.c.0.s8 %v7193
    %v7195 = vlaneseq
    %v7196 = vshrl.u32 %v7195, 7
    %v7197 = vsub.s32 %v7194, %v7196
    %v7198 = vrot.slane %v7190, %v7197
    %v7200 = vunpack.c.l.s4 1966171168
    %v7201 = vunpack.c.0.s8 %v7200
    %v7202 = vlaneseq
    %v7203 = vshrl.u32 %v7202, 7
    %v7204 = vsub.s32 %v7201, %v7203
    %v7205 = vrot.slane %v7191, %v7204
    %v7206 = vcombine.high %v7198, %v7198
    %v7207 = vcombine.high %v7205, %v7205
    %v7208 = vlaneseq
    %v7209 = vshrl.u32 %v7208, 7
    %v7210 = vsub.s32 0, %v7209
    %v7211 = vrot.slane %v7206, %v7210
    %v7212 = vlaneseq
    %v7213 = vshrl.u32 %v7212, 7
    %v7214 = vsub.s32 0, %v7213
    %v7215 = vrot.slane %v7207, %v7214
    %v7218 = vmul.f32 %v7167, %v7211
    %v7219 = vmul.f32 %v7168, %v7211
    %v7220 = vmul.f32 %v7169, %v7211
    %v7221 = vmul.f32 %v7170, %v7211
    %v7222 = vmul.f32 %v7171, %v7211
    %v7223 = vmul.f32 %v7172, %v7211
    %v7224 = vmul.f32 %v7173, %v7211
    %v7225 = vmul.f32 %v7174, %v7211
    %v7226 = vmul.f32 %v7175, %v7215
    %v7227 = vmul.f32 %v7176, %v7215
    %v7228 = vmul.f32 %v7177, %v7215
    %v7229 = vmul.f32 %v7178, %v7215
    %v7230 = vmul.f32 %v7179, %v7215
    %v7231 = vmul.f32 %v7180, %v7215
    %v7232 = vmul.f32 %v7181, %v7215
    %v7233 = vmul.f32 %v7182, %v7215
    %v7234 = vmul.f32 %v7218, %v2416
    %v7235 = vmul.f32 %v7219, %v2416
    %v7236 = vmul.f32 %v7220, %v2416
    %v7237 = vmul.f32 %v7221, %v2416
    %v7238 = vmul.f32 %v7222, %v2416
    %v7239 = vmul.f32 %v7223, %v2416
    %v7240 = vmul.f32 %v7224, %v2416
    %v7241 = vmul.f32 %v7225, %v2416
    %v7242 = vmul.f32 %v7226, %v2416
    %v7243 = vmul.f32 %v7227, %v2416
    %v7244 = vmul.f32 %v7228, %v2416
    %v7245 = vmul.f32 %v7229, %v2416
    %v7246 = vmul.f32 %v7230, %v2416
    %v7247 = vmul.f32 %v7231, %v2416
    %v7248 = vmul.f32 %v7232, %v2416
    %v7249 = vmul.f32 %v7233, %v2416
    %v7250 = vadd.f32 %v7234, %v2438
    %v7251 = vadd.f32 %v7235, %v2438
    %v7252 = vadd.f32 %v7236, %v2438
    %v7253 = vadd.f32 %v7237, %v2438
    %v7254 = vadd.f32 %v7238, %v2438
    %v7255 = vadd.f32 %v7239, %v2438
    %v7256 = vadd.f32 %v7240, %v2438
    %v7257 = vadd.f32 %v7241, %v2438
    %v7258 = vadd.f32 %v7242, %v2438
    %v7259 = vadd.f32 %v7243, %v2438
    %v7260 = vadd.f32 %v7244, %v2438
    %v7261 = vadd.f32 %v7245, %v2438
    %v7262 = vadd.f32 %v7246, %v2438
    %v7263 = vadd.f32 %v7247, %v2438
    %v7264 = vadd.f32 %v7248, %v2438
    %v7265 = vadd.f32 %v7249, %v2438
    %v7266 = vmax.f32 %v7250, 0.0
    %v7267 = vmax.f32 %v7251, 0.0
    %v7268 = vmax.f32 %v7252, 0.0
    %v7269 = vmax.f32 %v7253, 0.0
    %v7270 = vmax.f32 %v7254, 0.0
    %v7271 = vmax.f32 %v7255, 0.0
    %v7272 = vmax.f32 %v7256, 0.0
    %v7273 = vmax.f32 %v7257, 0.0
    %v7274 = vmax.f32 %v7258, 0.0
    %v7275 = vmax.f32 %v7259, 0.0
    %v7276 = vmax.f32 %v7260, 0.0
    %v7277 = vmax.f32 %v7261, 0.0
    %v7278 = vmax.f32 %v7262, 0.0
    %v7279 = vmax.f32 %v7263, 0.0
    %v7280 = vmax.f32 %v7264, 0.0
    %v7281 = vmax.f32 %v7265, 0.0
    %v7284 = vrot.slane %v7280, 7
    %v7285 = vrot.slane %v7281, 7
    %v7286 = vsel %vm73, %v7284, %v7285
    %v7303 = vrot.slane %v7266, 7
    %v7304 = vrot.slane %v7267, 7
    %v7305 = vsel %vm73, %v7303, %v7304
    %v7306 = vrot.slane %v7268, 7
    %v7307 = vsel %vm73, %v7304, %v7306
    %v7308 = vrot.slane %v7269, 7
    %v7309 = vsel %vm73, %v7306, %v7308
    %v7310 = vrot.slane %v7270, 7
    %v7311 = vsel %vm73, %v7308, %v7310
    %v7312 = vrot.slane %v7271, 7
    %v7313 = vsel %vm73, %v7310, %v7312
    %v7314 = vrot.slane %v7272, 7
    %v7315 = vsel %vm73, %v7312, %v7314
    %v7316 = vrot.slane %v7273, 7
    %v7317 = vsel %vm73, %v7314, %v7316
    %v7318 = vrot.slane %v7274, 7
    %v7319 = vsel %vm73, %v7316, %v7318
    %v7320 = vrot.slane %v7275, 7
    %v7321 = vsel %vm73, %v7318, %v7320
    %v7322 = vrot.slane %v7276, 7
    %v7323 = vsel %vm73, %v7320, %v7322
    %v7324 = vrot.slane %v7277, 7
    %v7325 = vsel %vm73, %v7322, %v7324
    %v7326 = vrot.slane %v7278, 7
    %v7327 = vsel %vm73, %v7324, %v7326
    %v7328 = vrot.slane %v7279, 7
    %v7329 = vsel %vm73, %v7326, %v7328
    %v7330 = vsel %vm73, %v7328, %v7284
    %v7346 = vsel %vm73, %v7285, %v7303
    %v7347 = vld [vmem:[%s8] sm:$0xff]
    %v7348 = vld [vmem:[%s8 + $0x8] sm:$0xff]
    %v7349 = vld [vmem:[%s8 + $0x10] sm:$0xff]
    %v7350 = vld [vmem:[%s8 + $0x18] sm:$0xff]
    %v7351 = vld [vmem:[%s8 + $0x20] sm:$0xff]
    %v7352 = vld [vmem:[%s8 + $0x28] sm:$0xff]
    %v7353 = vld [vmem:[%s8 + $0x30] sm:$0xff]
    %v7354 = vld [vmem:[%s8 + $0x38] sm:$0xff]
    %v7355 = vld [vmem:[%s8 + $0x40] sm:$0xff]
    %v7356 = vld [vmem:[%s8 + $0x48] sm:$0xff]
    %v7357 = vld [vmem:[%s8 + $0x50] sm:$0xff]
    %v7358 = vld [vmem:[%s8 + $0x58] sm:$0xff]
    %v7359 = vld [vmem:[%s8 + $0x60] sm:$0xff]
    %v7360 = vld [vmem:[%s8 + $0x68] sm:$0xff]
    %v7361 = vld [vmem:[%s8 + $0x70] sm:$0xff]
    %v7362 = vld [vmem:[%s8 + $0x78] sm:$0xff]
    %7364 = vset.pattern.permute.xlu0 0
    %7365 = vperm.xlu0 %7364, %v7347
    %v7366 = vpop.permute.xlu0 %7365
    %7369 = vset.pattern.permute.xlu0 0
    %7370 = vperm.xlu0 %7369, %v7348
    %v7371 = vpop.permute.xlu0 %7370
    %7374 = vset.pattern.permute.xlu0 0
    %7375 = vperm.xlu0 %7374, %v7349
    %v7376 = vpop.permute.xlu0 %7375
    %7379 = vset.pattern.permute.xlu0 0
    %7380 = vperm.xlu0 %7379, %v7350
    %v7381 = vpop.permute.xlu0 %7380
    %7384 = vset.pattern.permute.xlu0 0
    %7385 = vperm.xlu0 %7384, %v7351
    %v7386 = vpop.permute.xlu0 %7385
    %7389 = vset.pattern.permute.xlu0 0
    %7390 = vperm.xlu0 %7389, %v7352
    %v7391 = vpop.permute.xlu0 %7390
    %7394 = vset.pattern.permute.xlu0 0
    %7395 = vperm.xlu0 %7394, %v7353
    %v7396 = vpop.permute.xlu0 %7395
    %7399 = vset.pattern.permute.xlu0 0
    %7400 = vperm.xlu0 %7399, %v7354
    %v7401 = vpop.permute.xlu0 %7400
    %7404 = vset.pattern.permute.xlu0 0
    %7405 = vperm.xlu0 %7404, %v7355
    %v7406 = vpop.permute.xlu0 %7405
    %7409 = vset.pattern.permute.xlu0 0
    %7410 = vperm.xlu0 %7409, %v7356
    %v7411 = vpop.permute.xlu0 %7410
    %7414 = vset.pattern.permute.xlu0 0
    %7415 = vperm.xlu0 %7414, %v7357
    %v7416 = vpop.permute.xlu0 %7415
    %7419 = vset.pattern.permute.xlu0 0
    %7420 = vperm.xlu0 %7419, %v7358
    %v7421 = vpop.permute.xlu0 %7420
    %7424 = vset.pattern.permute.xlu0 0
    %7425 = vperm.xlu0 %7424, %v7359
    %v7426 = vpop.permute.xlu0 %7425
    %7429 = vset.pattern.permute.xlu0 0
    %7430 = vperm.xlu0 %7429, %v7360
    %v7431 = vpop.permute.xlu0 %7430
    %7434 = vset.pattern.permute.xlu0 0
    %7435 = vperm.xlu0 %7434, %v7361
    %v7436 = vpop.permute.xlu0 %7435
    %7439 = vset.pattern.permute.xlu0 0
    %7440 = vperm.xlu0 %7439, %v7362
    %v7441 = vpop.permute.xlu0 %7440
    %v7443 = vmul.f32 %v7286, %v7366
    %v7444 = vmul.f32 %v7346, %v7371
    %v7445 = vmul.f32 %v7305, %v7376
    %v7446 = vmul.f32 %v7307, %v7381
    %v7447 = vmul.f32 %v7309, %v7386
    %v7448 = vmul.f32 %v7311, %v7391
    %v7449 = vmul.f32 %v7313, %v7396
    %v7450 = vmul.f32 %v7315, %v7401
    %v7451 = vmul.f32 %v7317, %v7406
    %v7452 = vmul.f32 %v7319, %v7411
    %v7453 = vmul.f32 %v7321, %v7416
    %v7454 = vmul.f32 %v7323, %v7421
    %v7455 = vmul.f32 %v7325, %v7426
    %v7456 = vmul.f32 %v7327, %v7431
    %v7457 = vmul.f32 %v7329, %v7436
    %v7458 = vmul.f32 %v7330, %v7441
    %v7459 = vpack.c.bf16 %v7444, %v7443
    %v7460 = vpack.c.bf16 %v7446, %v7445
    %v7461 = vpack.c.bf16 %v7448, %v7447
    %v7462 = vpack.c.bf16 %v7450, %v7449
    %v7463 = vpack.c.bf16 %v7452, %v7451
    %v7464 = vpack.c.bf16 %v7454, %v7453
    %v7465 = vpack.c.bf16 %v7456, %v7455
    %v7466 = vpack.c.bf16 %v7458, %v7457
    %7467 = vst.msk [vmem:[#allocation2] sm:$0xff] %vm257, %v7459
    %7468 = vst.msk [vmem:[#allocation2 + $0x28] sm:$0xff] %vm257, %v7460
    %7469 = vst.msk [vmem:[#allocation2 + $0x50] sm:$0xff] %vm257, %v7461
    %7470 = vst.msk [vmem:[#allocation2 + $0x78] sm:$0xff] %vm257, %v7462
    %7471 = vst.msk [vmem:[#allocation2 + $0xa0] sm:$0xff] %vm257, %v7463
    %7472 = vst.msk [vmem:[#allocation2 + $0xc8] sm:$0xff] %vm257, %v7464
    %7473 = vst.msk [vmem:[#allocation2 + $0xf0] sm:$0xff] %vm257, %v7465
    %7474 = vst.msk [vmem:[#allocation2 + $0x118] sm:$0xff] %vm257, %v7466
    %v7475 = vld [vmem:[%s8] sm:$0xff]
    %v7476 = vld [vmem:[%s8 + $0x8] sm:$0xff]
    %v7477 = vld [vmem:[%s8 + $0x10] sm:$0xff]
    %v7478 = vld [vmem:[%s8 + $0x18] sm:$0xff]
    %v7479 = vld [vmem:[%s8 + $0x20] sm:$0xff]
    %v7480 = vld [vmem:[%s8 + $0x28] sm:$0xff]
    %v7481 = vld [vmem:[%s8 + $0x30] sm:$0xff]
    %v7482 = vld [vmem:[%s8 + $0x38] sm:$0xff]
    %v7483 = vld [vmem:[%s8 + $0x40] sm:$0xff]
    %v7484 = vld [vmem:[%s8 + $0x48] sm:$0xff]
    %v7485 = vld [vmem:[%s8 + $0x50] sm:$0xff]
    %v7486 = vld [vmem:[%s8 + $0x58] sm:$0xff]
    %v7487 = vld [vmem:[%s8 + $0x60] sm:$0xff]
    %v7488 = vld [vmem:[%s8 + $0x68] sm:$0xff]
    %v7489 = vld [vmem:[%s8 + $0x70] sm:$0xff]
    %v7490 = vld [vmem:[%s8 + $0x78] sm:$0xff]
    %7492 = vset.pattern.permute.xlu0 1
    %7493 = vperm.xlu0 %7492, %v7475
    %v7494 = vpop.permute.xlu0 %7493
    %7497 = vset.pattern.permute.xlu0 1
    %7498 = vperm.xlu0 %7497, %v7476
    %v7499 = vpop.permute.xlu0 %7498
    %7502 = vset.pattern.permute.xlu0 1
    %7503 = vperm.xlu0 %7502, %v7477
    %v7504 = vpop.permute.xlu0 %7503
    %7507 = vset.pattern.permute.xlu0 1
    %7508 = vperm.xlu0 %7507, %v7478
    %v7509 = vpop.permute.xlu0 %7508
    %7512 = vset.pattern.permute.xlu0 1
    %7513 = vperm.xlu0 %7512, %v7479
    %v7514 = vpop.permute.xlu0 %7513
    %7517 = vset.pattern.permute.xlu0 1
    %7518 = vperm.xlu0 %7517, %v7480
    %v7519 = vpop.permute.xlu0 %7518
    %7522 = vset.pattern.permute.xlu0 1
    %7523 = vperm.xlu0 %7522, %v7481
    %v7524 = vpop.permute.xlu0 %7523
    %7527 = vset.pattern.permute.xlu0 1
    %7528 = vperm.xlu0 %7527, %v7482
    %v7529 = vpop.permute.xlu0 %7528
    %7532 = vset.pattern.permute.xlu0 1
    %7533 = vperm.xlu0 %7532, %v7483
    %v7534 = vpop.permute.xlu0 %7533
    %7537 = vset.pattern.permute.xlu0 1
    %7538 = vperm.xlu0 %7537, %v7484
    %v7539 = vpop.permute.xlu0 %7538
    %7542 = vset.pattern.permute.xlu0 1
    %7543 = vperm.xlu0 %7542, %v7485
    %v7544 = vpop.permute.xlu0 %7543
    %7547 = vset.pattern.permute.xlu0 1
    %7548 = vperm.xlu0 %7547, %v7486
    %v7549 = vpop.permute.xlu0 %7548
    %7552 = vset.pattern.permute.xlu0 1
    %7553 = vperm.xlu0 %7552, %v7487
    %v7554 = vpop.permute.xlu0 %7553
    %7557 = vset.pattern.permute.xlu0 1
    %7558 = vperm.xlu0 %7557, %v7488
    %v7559 = vpop.permute.xlu0 %7558
    %7562 = vset.pattern.permute.xlu0 1
    %7563 = vperm.xlu0 %7562, %v7489
    %v7564 = vpop.permute.xlu0 %7563
    %7567 = vset.pattern.permute.xlu0 1
    %7568 = vperm.xlu0 %7567, %v7490
    %v7569 = vpop.permute.xlu0 %7568
    %v7571 = vmul.f32 %v7281, %v7494
    %v7572 = vmul.f32 %v7266, %v7499
    %v7573 = vmul.f32 %v7267, %v7504
    %v7574 = vmul.f32 %v7268, %v7509
    %v7575 = vmul.f32 %v7269, %v7514
    %v7576 = vmul.f32 %v7270, %v7519
    %v7577 = vmul.f32 %v7271, %v7524
    %v7578 = vmul.f32 %v7272, %v7529
    %v7579 = vmul.f32 %v7273, %v7534
    %v7580 = vmul.f32 %v7274, %v7539
    %v7581 = vmul.f32 %v7275, %v7544
    %v7582 = vmul.f32 %v7276, %v7549
    %v7583 = vmul.f32 %v7277, %v7554
    %v7584 = vmul.f32 %v7278, %v7559
    %v7585 = vmul.f32 %v7279, %v7564
    %v7586 = vmul.f32 %v7280, %v7569
    %v7587 = vpack.c.bf16 %v7572, %v7571
    %v7588 = vpack.c.bf16 %v7574, %v7573
    %v7589 = vpack.c.bf16 %v7576, %v7575
    %v7590 = vpack.c.bf16 %v7578, %v7577
    %v7591 = vpack.c.bf16 %v7580, %v7579
    %v7592 = vpack.c.bf16 %v7582, %v7581
    %v7593 = vpack.c.bf16 %v7584, %v7583
    %v7594 = vpack.c.bf16 %v7586, %v7585
    %7603 = vrot.lane.b32.xlu0 %v7587, 64
    %v7604 = vpop.permute.xlu0 %7603
    %7605 = vrot.lane.b32.xlu0 %v7588, 64
    %v7606 = vpop.permute.xlu0 %7605
    %7607 = vrot.lane.b32.xlu0 %v7589, 64
    %v7608 = vpop.permute.xlu0 %7607
    %7609 = vrot.lane.b32.xlu0 %v7590, 64
    %v7610 = vpop.permute.xlu0 %7609
    %7611 = vrot.lane.b32.xlu0 %v7591, 64
    %v7612 = vpop.permute.xlu0 %7611
    %7613 = vrot.lane.b32.xlu0 %v7592, 64
    %v7614 = vpop.permute.xlu0 %7613
    %7615 = vrot.lane.b32.xlu0 %v7593, 64
    %v7616 = vpop.permute.xlu0 %7615
    %7617 = vrot.lane.b32.xlu0 %v7594, 64
    %v7618 = vpop.permute.xlu0 %7617
    %7627 = vst.msk [vmem:[#allocation2] sm:$0xff] %vm46, %v7604
    %7628 = vst.msk [vmem:[#allocation2 + $0x28] sm:$0xff] %vm46, %v7606
    %7629 = vst.msk [vmem:[#allocation2 + $0x50] sm:$0xff] %vm46, %v7608
    %7630 = vst.msk [vmem:[#allocation2 + $0x78] sm:$0xff] %vm46, %v7610
    %7631 = vst.msk [vmem:[#allocation2 + $0xa0] sm:$0xff] %vm46, %v7612
    %7632 = vst.msk [vmem:[#allocation2 + $0xc8] sm:$0xff] %vm46, %v7614
    %7633 = vst.msk [vmem:[#allocation2 + $0xf0] sm:$0xff] %vm46, %v7616
    %7634 = vst.msk [vmem:[#allocation2 + $0x118] sm:$0xff] %vm46, %v7618
    %v7635 = vrot.slane %v7281, 1
    %v7637 = vrot.slane %v7266, 1
    %v7638 = vrot.slane %v7267, 1
    %v7639 = vsel %vm428, %v7637, %v7638
    %v7640 = vrot.slane %v7268, 1
    %v7641 = vsel %vm428, %v7638, %v7640
    %v7642 = vrot.slane %v7269, 1
    %v7643 = vsel %vm428, %v7640, %v7642
    %v7644 = vrot.slane %v7270, 1
    %v7645 = vsel %vm428, %v7642, %v7644
    %v7646 = vrot.slane %v7271, 1
    %v7647 = vsel %vm428, %v7644, %v7646
    %v7648 = vrot.slane %v7272, 1
    %v7649 = vsel %vm428, %v7646, %v7648
    %v7650 = vrot.slane %v7273, 1
    %v7651 = vsel %vm428, %v7648, %v7650
    %v7652 = vrot.slane %v7274, 1
    %v7653 = vsel %vm428, %v7650, %v7652
    %v7654 = vrot.slane %v7275, 1
    %v7655 = vsel %vm428, %v7652, %v7654
    %v7656 = vrot.slane %v7276, 1
    %v7657 = vsel %vm428, %v7654, %v7656
    %v7658 = vrot.slane %v7277, 1
    %v7659 = vsel %vm428, %v7656, %v7658
    %v7660 = vrot.slane %v7278, 1
    %v7661 = vsel %vm428, %v7658, %v7660
    %v7662 = vrot.slane %v7279, 1
    %v7663 = vsel %vm428, %v7660, %v7662
    %v7664 = vrot.slane %v7280, 1
    %v7665 = vsel %vm428, %v7662, %v7664
    %v7666 = vsel %vm428, %v7664, %v7635
    %v7683 = vsel %vm428, %v7635, %v7637
    %v7684 = vld [vmem:[%s8] sm:$0xff]
    %v7685 = vld [vmem:[%s8 + $0x8] sm:$0xff]
    %v7686 = vld [vmem:[%s8 + $0x10] sm:$0xff]
    %v7687 = vld [vmem:[%s8 + $0x18] sm:$0xff]
    %v7688 = vld [vmem:[%s8 + $0x20] sm:$0xff]
    %v7689 = vld [vmem:[%s8 + $0x28] sm:$0xff]
    %v7690 = vld [vmem:[%s8 + $0x30] sm:$0xff]
    %v7691 = vld [vmem:[%s8 + $0x38] sm:$0xff]
    %v7692 = vld [vmem:[%s8 + $0x40] sm:$0xff]
    %v7693 = vld [vmem:[%s8 + $0x48] sm:$0xff]
    %v7694 = vld [vmem:[%s8 + $0x50] sm:$0xff]
    %v7695 = vld [vmem:[%s8 + $0x58] sm:$0xff]
    %v7696 = vld [vmem:[%s8 + $0x60] sm:$0xff]
    %v7697 = vld [vmem:[%s8 + $0x68] sm:$0xff]
    %v7698 = vld [vmem:[%s8 + $0x70] sm:$0xff]
    %v7699 = vld [vmem:[%s8 + $0x78] sm:$0xff]
    %7701 = vset.pattern.permute.xlu0 2
    %7702 = vperm.xlu0 %7701, %v7684
    %v7703 = vpop.permute.xlu0 %7702
    %7706 = vset.pattern.permute.xlu0 2
    %7707 = vperm.xlu0 %7706, %v7685
    %v7708 = vpop.permute.xlu0 %7707
    %7711 = vset.pattern.permute.xlu0 2
    %7712 = vperm.xlu0 %7711, %v7686
    %v7713 = vpop.permute.xlu0 %7712
    %7716 = vset.pattern.permute.xlu0 2
    %7717 = vperm.xlu0 %7716, %v7687
    %v7718 = vpop.permute.xlu0 %7717
    %7721 = vset.pattern.permute.xlu0 2
    %7722 = vperm.xlu0 %7721, %v7688
    %v7723 = vpop.permute.xlu0 %7722
    %7726 = vset.pattern.permute.xlu0 2
    %7727 = vperm.xlu0 %7726, %v7689
    %v7728 = vpop.permute.xlu0 %7727
    %7731 = vset.pattern.permute.xlu0 2
    %7732 = vperm.xlu0 %7731, %v7690
    %v7733 = vpop.permute.xlu0 %7732
    %7736 = vset.pattern.permute.xlu0 2
    %7737 = vperm.xlu0 %7736, %v7691
    %v7738 = vpop.permute.xlu0 %7737
    %7741 = vset.pattern.permute.xlu0 2
    %7742 = vperm.xlu0 %7741, %v7692
    %v7743 = vpop.permute.xlu0 %7742
    %7746 = vset.pattern.permute.xlu0 2
    %7747 = vperm.xlu0 %7746, %v7693
    %v7748 = vpop.permute.xlu0 %7747
    %7751 = vset.pattern.permute.xlu0 2
    %7752 = vperm.xlu0 %7751, %v7694
    %v7753 = vpop.permute.xlu0 %7752
    %7756 = vset.pattern.permute.xlu0 2
    %7757 = vperm.xlu0 %7756, %v7695
    %v7758 = vpop.permute.xlu0 %7757
    %7761 = vset.pattern.permute.xlu0 2
    %7762 = vperm.xlu0 %7761, %v7696
    %v7763 = vpop.permute.xlu0 %7762
    %7766 = vset.pattern.permute.xlu0 2
    %7767 = vperm.xlu0 %7766, %v7697
    %v7768 = vpop.permute.xlu0 %7767
    %7771 = vset.pattern.permute.xlu0 2
    %7772 = vperm.xlu0 %7771, %v7698
    %v7773 = vpop.permute.xlu0 %7772
    %7776 = vset.pattern.permute.xlu0 2
    %7777 = vperm.xlu0 %7776, %v7699
    %v7778 = vpop.permute.xlu0 %7777
    %v7780 = vmul.f32 %v7683, %v7703
    %v7781 = vmul.f32 %v7639, %v7708
    %v7782 = vmul.f32 %v7641, %v7713
    %v7783 = vmul.f32 %v7643, %v7718
    %v7784 = vmul.f32 %v7645, %v7723
    %v7785 = vmul.f32 %v7647, %v7728
    %v7786 = vmul.f32 %v7649, %v7733
    %v7787 = vmul.f32 %v7651, %v7738
    %v7788 = vmul.f32 %v7653, %v7743
    %v7789 = vmul.f32 %v7655, %v7748
    %v7790 = vmul.f32 %v7657, %v7753
    %v7791 = vmul.f32 %v7659, %v7758
    %v7792 = vmul.f32 %v7661, %v7763
    %v7793 = vmul.f32 %v7663, %v7768
    %v7794 = vmul.f32 %v7665, %v7773
    %v7795 = vmul.f32 %v7666, %v7778
    %v7796 = vpack.c.bf16 %v7781, %v7780
    %v7797 = vpack.c.bf16 %v7783, %v7782
    %v7798 = vpack.c.bf16 %v7785, %v7784
    %v7799 = vpack.c.bf16 %v7787, %v7786
    %v7800 = vpack.c.bf16 %v7789, %v7788
    %v7801 = vpack.c.bf16 %v7791, %v7790
    %v7802 = vpack.c.bf16 %v7793, %v7792
    %v7803 = vpack.c.bf16 %v7795, %v7794
    %7804 = vst.msk [vmem:[#allocation2 + $0x8] sm:$0xff] %vm257, %v7796
    %7805 = vst.msk [vmem:[#allocation2 + $0x30] sm:$0xff] %vm257, %v7797
    %7806 = vst.msk [vmem:[#allocation2 + $0x58] sm:$0xff] %vm257, %v7798
    %7807 = vst.msk [vmem:[#allocation2 + $0x80] sm:$0xff] %vm257, %v7799
    %7808 = vst.msk [vmem:[#allocation2 + $0xa8] sm:$0xff] %vm257, %v7800
    %7809 = vst.msk [vmem:[#allocation2 + $0xd0] sm:$0xff] %vm257, %v7801
    %7810 = vst.msk [vmem:[#allocation2 + $0xf8] sm:$0xff] %vm257, %v7802
    %7811 = vst.msk [vmem:[#allocation2 + $0x120] sm:$0xff] %vm257, %v7803
    %v7812 = vld [vmem:[%s8] sm:$0xff]
    %v7813 = vld [vmem:[%s8 + $0x8] sm:$0xff]
    %v7814 = vld [vmem:[%s8 + $0x10] sm:$0xff]
    %v7815 = vld [vmem:[%s8 + $0x18] sm:$0xff]
    %v7816 = vld [vmem:[%s8 + $0x20] sm:$0xff]
    %v7817 = vld [vmem:[%s8 + $0x28] sm:$0xff]
    %v7818 = vld [vmem:[%s8 + $0x30] sm:$0xff]
    %v7819 = vld [vmem:[%s8 + $0x38] sm:$0xff]
    %v7820 = vld [vmem:[%s8 + $0x40] sm:$0xff]
    %v7821 = vld [vmem:[%s8 + $0x48] sm:$0xff]
    %v7822 = vld [vmem:[%s8 + $0x50] sm:$0xff]
    %v7823 = vld [vmem:[%s8 + $0x58] sm:$0xff]
    %v7824 = vld [vmem:[%s8 + $0x60] sm:$0xff]
    %v7825 = vld [vmem:[%s8 + $0x68] sm:$0xff]
    %v7826 = vld [vmem:[%s8 + $0x70] sm:$0xff]
    %v7827 = vld [vmem:[%s8 + $0x78] sm:$0xff]
    %7829 = vset.pattern.permute.xlu0 3
    %7830 = vperm.xlu0 %7829, %v7812
    %v7831 = vpop.permute.xlu0 %7830
    %7834 = vset.pattern.permute.xlu0 3
    %7835 = vperm.xlu0 %7834, %v7813
    %v7836 = vpop.permute.xlu0 %7835
    %7839 = vset.pattern.permute.xlu0 3
    %7840 = vperm.xlu0 %7839, %v7814
    %v7841 = vpop.permute.xlu0 %7840
    %7844 = vset.pattern.permute.xlu0 3
    %7845 = vperm.xlu0 %7844, %v7815
    %v7846 = vpop.permute.xlu0 %7845
    %7849 = vset.pattern.permute.xlu0 3
    %7850 = vperm.xlu0 %7849, %v7816
    %v7851 = vpop.permute.xlu0 %7850
    %7854 = vset.pattern.permute.xlu0 3
    %7855 = vperm.xlu0 %7854, %v7817
    %v7856 = vpop.permute.xlu0 %7855
    %7859 = vset.pattern.permute.xlu0 3
    %7860 = vperm.xlu0 %7859, %v7818
    %v7861 = vpop.permute.xlu0 %7860
    %7864 = vset.pattern.permute.xlu0 3
    %7865 = vperm.xlu0 %7864, %v7819
    %v7866 = vpop.permute.xlu0 %7865
    %7869 = vset.pattern.permute.xlu0 3
    %7870 = vperm.xlu0 %7869, %v7820
    %v7871 = vpop.permute.xlu0 %7870
    %7874 = vset.pattern.permute.xlu0 3
    %7875 = vperm.xlu0 %7874, %v7821
    %v7876 = vpop.permute.xlu0 %7875
    %7879 = vset.pattern.permute.xlu0 3
    %7880 = vperm.xlu0 %7879, %v7822
    %v7881 = vpop.permute.xlu0 %7880
    %7884 = vset.pattern.permute.xlu0 3
    %7885 = vperm.xlu0 %7884, %v7823
    %v7886 = vpop.permute.xlu0 %7885
    %7889 = vset.pattern.permute.xlu0 3
    %7890 = vperm.xlu0 %7889, %v7824
    %v7891 = vpop.permute.xlu0 %7890
    %7894 = vset.pattern.permute.xlu0 3
    %7895 = vperm.xlu0 %7894, %v7825
    %v7896 = vpop.permute.xlu0 %7895
    %7899 = vset.pattern.permute.xlu0 3
    %7900 = vperm.xlu0 %7899, %v7826
    %v7901 = vpop.permute.xlu0 %7900
    %7904 = vset.pattern.permute.xlu0 3
    %7905 = vperm.xlu0 %7904, %v7827
    %v7906 = vpop.permute.xlu0 %7905
    %v7908 = vmul.f32 %v7346, %v7831
    %v7909 = vmul.f32 %v7305, %v7836
    %v7910 = vmul.f32 %v7307, %v7841
    %v7911 = vmul.f32 %v7309, %v7846
    %v7912 = vmul.f32 %v7311, %v7851
    %v7913 = vmul.f32 %v7313, %v7856
    %v7914 = vmul.f32 %v7315, %v7861
    %v7915 = vmul.f32 %v7317, %v7866
    %v7916 = vmul.f32 %v7319, %v7871
    %v7917 = vmul.f32 %v7321, %v7876
    %v7918 = vmul.f32 %v7323, %v7881
    %v7919 = vmul.f32 %v7325, %v7886
    %v7920 = vmul.f32 %v7327, %v7891
    %v7921 = vmul.f32 %v7329, %v7896
    %v7922 = vmul.f32 %v7330, %v7901
    %v7923 = vmul.f32 %v7286, %v7906
    %v7924 = vpack.c.bf16 %v7909, %v7908
    %v7925 = vpack.c.bf16 %v7911, %v7910
    %v7926 = vpack.c.bf16 %v7913, %v7912
    %v7927 = vpack.c.bf16 %v7915, %v7914
    %v7928 = vpack.c.bf16 %v7917, %v7916
    %v7929 = vpack.c.bf16 %v7919, %v7918
    %v7930 = vpack.c.bf16 %v7921, %v7920
    %v7931 = vpack.c.bf16 %v7923, %v7922
    %7940 = vrot.lane.b32.xlu0 %v7924, 64
    %v7941 = vpop.permute.xlu0 %7940
    %7942 = vrot.lane.b32.xlu0 %v7925, 64
    %v7943 = vpop.permute.xlu0 %7942
    %7944 = vrot.lane.b32.xlu0 %v7926, 64
    %v7945 = vpop.permute.xlu0 %7944
    %7946 = vrot.lane.b32.xlu0 %v7927, 64
    %v7947 = vpop.permute.xlu0 %7946
    %7948 = vrot.lane.b32.xlu0 %v7928, 64
    %v7949 = vpop.permute.xlu0 %7948
    %7950 = vrot.lane.b32.xlu0 %v7929, 64
    %v7951 = vpop.permute.xlu0 %7950
    %7952 = vrot.lane.b32.xlu0 %v7930, 64
    %v7953 = vpop.permute.xlu0 %7952
    %7954 = vrot.lane.b32.xlu0 %v7931, 64
    %v7955 = vpop.permute.xlu0 %7954
    %7964 = vst.msk [vmem:[#allocation2 + $0x8] sm:$0xff] %vm46, %v7941
    %7965 = vst.msk [vmem:[#allocation2 + $0x30] sm:$0xff] %vm46, %v7943
    %7966 = vst.msk [vmem:[#allocation2 + $0x58] sm:$0xff] %vm46, %v7945
    %7967 = vst.msk [vmem:[#allocation2 + $0x80] sm:$0xff] %vm46, %v7947
    %7968 = vst.msk [vmem:[#allocation2 + $0xa8] sm:$0xff] %vm46, %v7949
    %7969 = vst.msk [vmem:[#allocation2 + $0xd0] sm:$0xff] %vm46, %v7951
    %7970 = vst.msk [vmem:[#allocation2 + $0xf8] sm:$0xff] %vm46, %v7953
    %7971 = vst.msk [vmem:[#allocation2 + $0x120] sm:$0xff] %vm46, %v7955
    %v7972 = vld [vmem:[%s8] sm:$0xff]
    %v7973 = vld [vmem:[%s8 + $0x8] sm:$0xff]
    %v7974 = vld [vmem:[%s8 + $0x10] sm:$0xff]
    %v7975 = vld [vmem:[%s8 + $0x18] sm:$0xff]
    %v7976 = vld [vmem:[%s8 + $0x20] sm:$0xff]
    %v7977 = vld [vmem:[%s8 + $0x28] sm:$0xff]
    %v7978 = vld [vmem:[%s8 + $0x30] sm:$0xff]
    %v7979 = vld [vmem:[%s8 + $0x38] sm:$0xff]
    %v7980 = vld [vmem:[%s8 + $0x40] sm:$0xff]
    %v7981 = vld [vmem:[%s8 + $0x48] sm:$0xff]
    %v7982 = vld [vmem:[%s8 + $0x50] sm:$0xff]
    %v7983 = vld [vmem:[%s8 + $0x58] sm:$0xff]
    %v7984 = vld [vmem:[%s8 + $0x60] sm:$0xff]
    %v7985 = vld [vmem:[%s8 + $0x68] sm:$0xff]
    %v7986 = vld [vmem:[%s8 + $0x70] sm:$0xff]
    %v7987 = vld [vmem:[%s8 + $0x78] sm:$0xff]
    %7989 = vset.pattern.permute.xlu0 4
    %7990 = vperm.xlu0 %7989, %v7972
    %v7991 = vpop.permute.xlu0 %7990
    %7994 = vset.pattern.permute.xlu0 4
    %7995 = vperm.xlu0 %7994, %v7973
    %v7996 = vpop.permute.xlu0 %7995
    %7999 = vset.pattern.permute.xlu0 4
    %8000 = vperm.xlu0 %7999, %v7974
    %v8001 = vpop.permute.xlu0 %8000
    %8004 = vset.pattern.permute.xlu0 4
    %8005 = vperm.xlu0 %8004, %v7975
    %v8006 = vpop.permute.xlu0 %8005
    %8009 = vset.pattern.permute.xlu0 4
    %8010 = vperm.xlu0 %8009, %v7976
    %v8011 = vpop.permute.xlu0 %8010
    %8014 = vset.pattern.permute.xlu0 4
    %8015 = vperm.xlu0 %8014, %v7977
    %v8016 = vpop.permute.xlu0 %8015
    %8019 = vset.pattern.permute.xlu0 4
    %8020 = vperm.xlu0 %8019, %v7978
    %v8021 = vpop.permute.xlu0 %8020
    %8024 = vset.pattern.permute.xlu0 4
    %8025 = vperm.xlu0 %8024, %v7979
    %v8026 = vpop.permute.xlu0 %8025
    %8029 = vset.pattern.permute.xlu0 4
    %8030 = vperm.xlu0 %8029, %v7980
    %v8031 = vpop.permute.xlu0 %8030
    %8034 = vset.pattern.permute.xlu0 4
    %8035 = vperm.xlu0 %8034, %v7981
    %v8036 = vpop.permute.xlu0 %8035
    %8039 = vset.pattern.permute.xlu0 4
    %8040 = vperm.xlu0 %8039, %v7982
    %v8041 = vpop.permute.xlu0 %8040
    %8044 = vset.pattern.permute.xlu0 4
    %8045 = vperm.xlu0 %8044, %v7983
    %v8046 = vpop.permute.xlu0 %8045
    %8049 = vset.pattern.permute.xlu0 4
    %8050 = vperm.xlu0 %8049, %v7984
    %v8051 = vpop.permute.xlu0 %8050
    %8054 = vset.pattern.permute.xlu0 4
    %8055 = vperm.xlu0 %8054, %v7985
    %v8056 = vpop.permute.xlu0 %8055
    %8059 = vset.pattern.permute.xlu0 4
    %8060 = vperm.xlu0 %8059, %v7986
    %v8061 = vpop.permute.xlu0 %8060
    %8064 = vset.pattern.permute.xlu0 4
    %8065 = vperm.xlu0 %8064, %v7987
    %v8066 = vpop.permute.xlu0 %8065
    %v8068 = vmul.f32 %v7266, %v7991
    %v8069 = vmul.f32 %v7267, %v7996
    %v8070 = vmul.f32 %v7268, %v8001
    %v8071 = vmul.f32 %v7269, %v8006
    %v8072 = vmul.f32 %v7270, %v8011
    %v8073 = vmul.f32 %v7271, %v8016
    %v8074 = vmul.f32 %v7272, %v8021
    %v8075 = vmul.f32 %v7273, %v8026
    %v8076 = vmul.f32 %v7274, %v8031
    %v8077 = vmul.f32 %v7275, %v8036
    %v8078 = vmul.f32 %v7276, %v8041
    %v8079 = vmul.f32 %v7277, %v8046
    %v8080 = vmul.f32 %v7278, %v8051
    %v8081 = vmul.f32 %v7279, %v8056
    %v8082 = vmul.f32 %v7280, %v8061
    %v8083 = vmul.f32 %v7281, %v8066
    %v8084 = vpack.c.bf16 %v8069, %v8068
    %v8085 = vpack.c.bf16 %v8071, %v8070
    %v8086 = vpack.c.bf16 %v8073, %v8072
    %v8087 = vpack.c.bf16 %v8075, %v8074
    %v8088 = vpack.c.bf16 %v8077, %v8076
    %v8089 = vpack.c.bf16 %v8079, %v8078
    %v8090 = vpack.c.bf16 %v8081, %v8080
    %v8091 = vpack.c.bf16 %v8083, %v8082
    %8092 = vst.msk [vmem:[#allocation2 + $0x10] sm:$0xff] %vm257, %v8084
    %8093 = vst.msk [vmem:[#allocation2 + $0x38] sm:$0xff] %vm257, %v8085
    %8094 = vst.msk [vmem:[#allocation2 + $0x60] sm:$0xff] %vm257, %v8086
    %8095 = vst.msk [vmem:[#allocation2 + $0x88] sm:$0xff] %vm257, %v8087
    %8096 = vst.msk [vmem:[#allocation2 + $0xb0] sm:$0xff] %vm257, %v8088
    %8097 = vst.msk [vmem:[#allocation2 + $0xd8] sm:$0xff] %vm257, %v8089
    %8098 = vst.msk [vmem:[#allocation2 + $0x100] sm:$0xff] %vm257, %v8090
    %8099 = vst.msk [vmem:[#allocation2 + $0x128] sm:$0xff] %vm257, %v8091
    %v8100 = vld [vmem:[%s8] sm:$0xff]
    %v8101 = vld [vmem:[%s8 + $0x8] sm:$0xff]
    %v8102 = vld [vmem:[%s8 + $0x10] sm:$0xff]
    %v8103 = vld [vmem:[%s8 + $0x18] sm:$0xff]
    %v8104 = vld [vmem:[%s8 + $0x20] sm:$0xff]
    %v8105 = vld [vmem:[%s8 + $0x28] sm:$0xff]
    %v8106 = vld [vmem:[%s8 + $0x30] sm:$0xff]
    %v8107 = vld [vmem:[%s8 + $0x38] sm:$0xff]
    %v8108 = vld [vmem:[%s8 + $0x40] sm:$0xff]
    %v8109 = vld [vmem:[%s8 + $0x48] sm:$0xff]
    %v8110 = vld [vmem:[%s8 + $0x50] sm:$0xff]
    %v8111 = vld [vmem:[%s8 + $0x58] sm:$0xff]
    %v8112 = vld [vmem:[%s8 + $0x60] sm:$0xff]
    %v8113 = vld [vmem:[%s8 + $0x68] sm:$0xff]
    %v8114 = vld [vmem:[%s8 + $0x70] sm:$0xff]
    %v8115 = vld [vmem:[%s8 + $0x78] sm:$0xff]
    %8117 = vset.pattern.permute.xlu0 5
    %8118 = vperm.xlu0 %8117, %v8100
    %v8119 = vpop.permute.xlu0 %8118
    %8122 = vset.pattern.permute.xlu0 5
    %8123 = vperm.xlu0 %8122, %v8101
    %v8124 = vpop.permute.xlu0 %8123
    %8127 = vset.pattern.permute.xlu0 5
    %8128 = vperm.xlu0 %8127, %v8102
    %v8129 = vpop.permute.xlu0 %8128
    %8132 = vset.pattern.permute.xlu0 5
    %8133 = vperm.xlu0 %8132, %v8103
    %v8134 = vpop.permute.xlu0 %8133
    %8137 = vset.pattern.permute.xlu0 5
    %8138 = vperm.xlu0 %8137, %v8104
    %v8139 = vpop.permute.xlu0 %8138
    %8142 = vset.pattern.permute.xlu0 5
    %8143 = vperm.xlu0 %8142, %v8105
    %v8144 = vpop.permute.xlu0 %8143
    %8147 = vset.pattern.permute.xlu0 5
    %8148 = vperm.xlu0 %8147, %v8106
    %v8149 = vpop.permute.xlu0 %8148
    %8152 = vset.pattern.permute.xlu0 5
    %8153 = vperm.xlu0 %8152, %v8107
    %v8154 = vpop.permute.xlu0 %8153
    %8157 = vset.pattern.permute.xlu0 5
    %8158 = vperm.xlu0 %8157, %v8108
    %v8159 = vpop.permute.xlu0 %8158
    %8162 = vset.pattern.permute.xlu0 5
    %8163 = vperm.xlu0 %8162, %v8109
    %v8164 = vpop.permute.xlu0 %8163
    %8167 = vset.pattern.permute.xlu0 5
    %8168 = vperm.xlu0 %8167, %v8110
    %v8169 = vpop.permute.xlu0 %8168
    %8172 = vset.pattern.permute.xlu0 5
    %8173 = vperm.xlu0 %8172, %v8111
    %v8174 = vpop.permute.xlu0 %8173
    %8177 = vset.pattern.permute.xlu0 5
    %8178 = vperm.xlu0 %8177, %v8112
    %v8179 = vpop.permute.xlu0 %8178
    %8182 = vset.pattern.permute.xlu0 5
    %8183 = vperm.xlu0 %8182, %v8113
    %v8184 = vpop.permute.xlu0 %8183
    %8187 = vset.pattern.permute.xlu0 5
    %8188 = vperm.xlu0 %8187, %v8114
    %v8189 = vpop.permute.xlu0 %8188
    %8192 = vset.pattern.permute.xlu0 5
    %8193 = vperm.xlu0 %8192, %v8115
    %v8194 = vpop.permute.xlu0 %8193
    %v8196 = vmul.f32 %v7639, %v8119
    %v8197 = vmul.f32 %v7641, %v8124
    %v8198 = vmul.f32 %v7643, %v8129
    %v8199 = vmul.f32 %v7645, %v8134
    %v8200 = vmul.f32 %v7647, %v8139
    %v8201 = vmul.f32 %v7649, %v8144
    %v8202 = vmul.f32 %v7651, %v8149
    %v8203 = vmul.f32 %v7653, %v8154
    %v8204 = vmul.f32 %v7655, %v8159
    %v8205 = vmul.f32 %v7657, %v8164
    %v8206 = vmul.f32 %v7659, %v8169
    %v8207 = vmul.f32 %v7661, %v8174
    %v8208 = vmul.f32 %v7663, %v8179
    %v8209 = vmul.f32 %v7665, %v8184
    %v8210 = vmul.f32 %v7666, %v8189
    %v8211 = vmul.f32 %v7683, %v8194
    %v8212 = vpack.c.bf16 %v8197, %v8196
    %v8213 = vpack.c.bf16 %v8199, %v8198
    %v8214 = vpack.c.bf16 %v8201, %v8200
    %v8215 = vpack.c.bf16 %v8203, %v8202
    %v8216 = vpack.c.bf16 %v8205, %v8204
    %v8217 = vpack.c.bf16 %v8207, %v8206
    %v8218 = vpack.c.bf16 %v8209, %v8208
    %v8219 = vpack.c.bf16 %v8211, %v8210
    %8228 = vrot.lane.b32.xlu0 %v8212, 64
    %v8229 = vpop.permute.xlu0 %8228
    %8230 = vrot.lane.b32.xlu0 %v8213, 64
    %v8231 = vpop.permute.xlu0 %8230
    %8232 = vrot.lane.b32.xlu0 %v8214, 64
    %v8233 = vpop.permute.xlu0 %8232
    %8234 = vrot.lane.b32.xlu0 %v8215, 64
    %v8235 = vpop.permute.xlu0 %8234
    %8236 = vrot.lane.b32.xlu0 %v8216, 64
    %v8237 = vpop.permute.xlu0 %8236
    %8238 = vrot.lane.b32.xlu0 %v8217, 64
    %v8239 = vpop.permute.xlu0 %8238
    %8240 = vrot.lane.b32.xlu0 %v8218, 64
    %v8241 = vpop.permute.xlu0 %8240
    %8242 = vrot.lane.b32.xlu0 %v8219, 64
    %v8243 = vpop.permute.xlu0 %8242
    %8252 = vst.msk [vmem:[#allocation2 + $0x10] sm:$0xff] %vm46, %v8229
    %8253 = vst.msk [vmem:[#allocation2 + $0x38] sm:$0xff] %vm46, %v8231
    %8254 = vst.msk [vmem:[#allocation2 + $0x60] sm:$0xff] %vm46, %v8233
    %8255 = vst.msk [vmem:[#allocation2 + $0x88] sm:$0xff] %vm46, %v8235
    %8256 = vst.msk [vmem:[#allocation2 + $0xb0] sm:$0xff] %vm46, %v8237
    %8257 = vst.msk [vmem:[#allocation2 + $0xd8] sm:$0xff] %vm46, %v8239
    %8258 = vst.msk [vmem:[#allocation2 + $0x100] sm:$0xff] %vm46, %v8241
    %8259 = vst.msk [vmem:[#allocation2 + $0x128] sm:$0xff] %vm46, %v8243
    %v8260 = vld [vmem:[%s8] sm:$0xff]
    %v8261 = vld [vmem:[%s8 + $0x8] sm:$0xff]
    %v8262 = vld [vmem:[%s8 + $0x10] sm:$0xff]
    %v8263 = vld [vmem:[%s8 + $0x18] sm:$0xff]
    %v8264 = vld [vmem:[%s8 + $0x20] sm:$0xff]
    %v8265 = vld [vmem:[%s8 + $0x28] sm:$0xff]
    %v8266 = vld [vmem:[%s8 + $0x30] sm:$0xff]
    %v8267 = vld [vmem:[%s8 + $0x38] sm:$0xff]
    %v8268 = vld [vmem:[%s8 + $0x40] sm:$0xff]
    %v8269 = vld [vmem:[%s8 + $0x48] sm:$0xff]
    %v8270 = vld [vmem:[%s8 + $0x50] sm:$0xff]
    %v8271 = vld [vmem:[%s8 + $0x58] sm:$0xff]
    %v8272 = vld [vmem:[%s8 + $0x60] sm:$0xff]
    %v8273 = vld [vmem:[%s8 + $0x68] sm:$0xff]
    %v8274 = vld [vmem:[%s8 + $0x70] sm:$0xff]
    %v8275 = vld [vmem:[%s8 + $0x78] sm:$0xff]
    %8277 = vset.pattern.permute.xlu0 6
    %8278 = vperm.xlu0 %8277, %v8260
    %v8279 = vpop.permute.xlu0 %8278
    %8282 = vset.pattern.permute.xlu0 6
    %8283 = vperm.xlu0 %8282, %v8261
    %v8284 = vpop.permute.xlu0 %8283
    %8287 = vset.pattern.permute.xlu0 6
    %8288 = vperm.xlu0 %8287, %v8262
    %v8289 = vpop.permute.xlu0 %8288
    %8292 = vset.pattern.permute.xlu0 6
    %8293 = vperm.xlu0 %8292, %v8263
    %v8294 = vpop.permute.xlu0 %8293
    %8297 = vset.pattern.permute.xlu0 6
    %8298 = vperm.xlu0 %8297, %v8264
    %v8299 = vpop.permute.xlu0 %8298
    %8302 = vset.pattern.permute.xlu0 6
    %8303 = vperm.xlu0 %8302, %v8265
    %v8304 = vpop.permute.xlu0 %8303
    %8307 = vset.pattern.permute.xlu0 6
    %8308 = vperm.xlu0 %8307, %v8266
    %v8309 = vpop.permute.xlu0 %8308
    %8312 = vset.pattern.permute.xlu0 6
    %8313 = vperm.xlu0 %8312, %v8267
    %v8314 = vpop.permute.xlu0 %8313
    %8317 = vset.pattern.permute.xlu0 6
    %8318 = vperm.xlu0 %8317, %v8268
    %v8319 = vpop.permute.xlu0 %8318
    %8322 = vset.pattern.permute.xlu0 6
    %8323 = vperm.xlu0 %8322, %v8269
    %v8324 = vpop.permute.xlu0 %8323
    %8327 = vset.pattern.permute.xlu0 6
    %8328 = vperm.xlu0 %8327, %v8270
    %v8329 = vpop.permute.xlu0 %8328
    %8332 = vset.pattern.permute.xlu0 6
    %8333 = vperm.xlu0 %8332, %v8271
    %v8334 = vpop.permute.xlu0 %8333
    %8337 = vset.pattern.permute.xlu0 6
    %8338 = vperm.xlu0 %8337, %v8272
    %v8339 = vpop.permute.xlu0 %8338
    %8342 = vset.pattern.permute.xlu0 6
    %8343 = vperm.xlu0 %8342, %v8273
    %v8344 = vpop.permute.xlu0 %8343
    %8347 = vset.pattern.permute.xlu0 6
    %8348 = vperm.xlu0 %8347, %v8274
    %v8349 = vpop.permute.xlu0 %8348
    %8352 = vset.pattern.permute.xlu0 6
    %8353 = vperm.xlu0 %8352, %v8275
    %v8354 = vpop.permute.xlu0 %8353
    %v8356 = vmul.f32 %v7305, %v8279
    %v8357 = vmul.f32 %v7307, %v8284
    %v8358 = vmul.f32 %v7309, %v8289
    %v8359 = vmul.f32 %v7311, %v8294
    %v8360 = vmul.f32 %v7313, %v8299
    %v8361 = vmul.f32 %v7315, %v8304
    %v8362 = vmul.f32 %v7317, %v8309
    %v8363 = vmul.f32 %v7319, %v8314
    %v8364 = vmul.f32 %v7321, %v8319
    %v8365 = vmul.f32 %v7323, %v8324
    %v8366 = vmul.f32 %v7325, %v8329
    %v8367 = vmul.f32 %v7327, %v8334
    %v8368 = vmul.f32 %v7329, %v8339
    %v8369 = vmul.f32 %v7330, %v8344
    %v8370 = vmul.f32 %v7286, %v8349
    %v8371 = vmul.f32 %v7346, %v8354
    %v8372 = vpack.c.bf16 %v8357, %v8356
    %v8373 = vpack.c.bf16 %v8359, %v8358
    %v8374 = vpack.c.bf16 %v8361, %v8360
    %v8375 = vpack.c.bf16 %v8363, %v8362
    %v8376 = vpack.c.bf16 %v8365, %v8364
    %v8377 = vpack.c.bf16 %v8367, %v8366
    %v8378 = vpack.c.bf16 %v8369, %v8368
    %v8379 = vpack.c.bf16 %v8371, %v8370
    %8380 = vst.msk [vmem:[#allocation2 + $0x18] sm:$0xff] %vm257, %v8372
    %8381 = vst.msk [vmem:[#allocation2 + $0x40] sm:$0xff] %vm257, %v8373
    %8382 = vst.msk [vmem:[#allocation2 + $0x68] sm:$0xff] %vm257, %v8374
    %8383 = vst.msk [vmem:[#allocation2 + $0x90] sm:$0xff] %vm257, %v8375
    %8384 = vst.msk [vmem:[#allocation2 + $0xb8] sm:$0xff] %vm257, %v8376
    %8385 = vst.msk [vmem:[#allocation2 + $0xe0] sm:$0xff] %vm257, %v8377
    %8386 = vst.msk [vmem:[#allocation2 + $0x108] sm:$0xff] %vm257, %v8378
    %8387 = vst.msk [vmem:[#allocation2 + $0x130] sm:$0xff] %vm257, %v8379
    %v8388 = vld [vmem:[%s8] sm:$0xff]
    %v8389 = vld [vmem:[%s8 + $0x8] sm:$0xff]
    %v8390 = vld [vmem:[%s8 + $0x10] sm:$0xff]
    %v8391 = vld [vmem:[%s8 + $0x18] sm:$0xff]
    %v8392 = vld [vmem:[%s8 + $0x20] sm:$0xff]
    %v8393 = vld [vmem:[%s8 + $0x28] sm:$0xff]
    %v8394 = vld [vmem:[%s8 + $0x30] sm:$0xff]
    %v8395 = vld [vmem:[%s8 + $0x38] sm:$0xff]
    %v8396 = vld [vmem:[%s8 + $0x40] sm:$0xff]
    %v8397 = vld [vmem:[%s8 + $0x48] sm:$0xff]
    %v8398 = vld [vmem:[%s8 + $0x50] sm:$0xff]
    %v8399 = vld [vmem:[%s8 + $0x58] sm:$0xff]
    %v8400 = vld [vmem:[%s8 + $0x60] sm:$0xff]
    %v8401 = vld [vmem:[%s8 + $0x68] sm:$0xff]
    %v8402 = vld [vmem:[%s8 + $0x70] sm:$0xff]
    %v8403 = vld [vmem:[%s8 + $0x78] sm:$0xff]
    %8405 = vset.pattern.permute.xlu0 7
    %8406 = vperm.xlu0 %8405, %v8388
    %v8407 = vpop.permute.xlu0 %8406
    %8410 = vset.pattern.permute.xlu0 7
    %8411 = vperm.xlu0 %8410, %v8389
    %v8412 = vpop.permute.xlu0 %8411
    %8415 = vset.pattern.permute.xlu0 7
    %8416 = vperm.xlu0 %8415, %v8390
    %v8417 = vpop.permute.xlu0 %8416
    %8420 = vset.pattern.permute.xlu0 7
    %8421 = vperm.xlu0 %8420, %v8391
    %v8422 = vpop.permute.xlu0 %8421
    %8425 = vset.pattern.permute.xlu0 7
    %8426 = vperm.xlu0 %8425, %v8392
    %v8427 = vpop.permute.xlu0 %8426
    %8430 = vset.pattern.permute.xlu0 7
    %8431 = vperm.xlu0 %8430, %v8393
    %v8432 = vpop.permute.xlu0 %8431
    %8435 = vset.pattern.permute.xlu0 7
    %8436 = vperm.xlu0 %8435, %v8394
    %v8437 = vpop.permute.xlu0 %8436
    %8440 = vset.pattern.permute.xlu0 7
    %8441 = vperm.xlu0 %8440, %v8395
    %v8442 = vpop.permute.xlu0 %8441
    %8445 = vset.pattern.permute.xlu0 7
    %8446 = vperm.xlu0 %8445, %v8396
    %v8447 = vpop.permute.xlu0 %8446
    %8450 = vset.pattern.permute.xlu0 7
    %8451 = vperm.xlu0 %8450, %v8397
    %v8452 = vpop.permute.xlu0 %8451
    %8455 = vset.pattern.permute.xlu0 7
    %8456 = vperm.xlu0 %8455, %v8398
    %v8457 = vpop.permute.xlu0 %8456
    %8460 = vset.pattern.permute.xlu0 7
    %8461 = vperm.xlu0 %8460, %v8399
    %v8462 = vpop.permute.xlu0 %8461
    %8465 = vset.pattern.permute.xlu0 7
    %8466 = vperm.xlu0 %8465, %v8400
    %v8467 = vpop.permute.xlu0 %8466
    %8470 = vset.pattern.permute.xlu0 7
    %8471 = vperm.xlu0 %8470, %v8401
    %v8472 = vpop.permute.xlu0 %8471
    %8475 = vset.pattern.permute.xlu0 7
    %8476 = vperm.xlu0 %8475, %v8402
    %v8477 = vpop.permute.xlu0 %8476
    %8480 = vset.pattern.permute.xlu0 7
    %8481 = vperm.xlu0 %8480, %v8403
    %v8482 = vpop.permute.xlu0 %8481
    %v8484 = vmul.f32 %v7267, %v8407
    %v8485 = vmul.f32 %v7268, %v8412
    %v8486 = vmul.f32 %v7269, %v8417
    %v8487 = vmul.f32 %v7270, %v8422
    %v8488 = vmul.f32 %v7271, %v8427
    %v8489 = vmul.f32 %v7272, %v8432
    %v8490 = vmul.f32 %v7273, %v8437
    %v8491 = vmul.f32 %v7274, %v8442
    %v8492 = vmul.f32 %v7275, %v8447
    %v8493 = vmul.f32 %v7276, %v8452
    %v8494 = vmul.f32 %v7277, %v8457
    %v8495 = vmul.f32 %v7278, %v8462
    %v8496 = vmul.f32 %v7279, %v8467
    %v8497 = vmul.f32 %v7280, %v8472
    %v8498 = vmul.f32 %v7281, %v8477
    %v8499 = vmul.f32 %v7266, %v8482
    %v8500 = vpack.c.bf16 %v8485, %v8484
    %v8501 = vpack.c.bf16 %v8487, %v8486
    %v8502 = vpack.c.bf16 %v8489, %v8488
    %v8503 = vpack.c.bf16 %v8491, %v8490
    %v8504 = vpack.c.bf16 %v8493, %v8492
    %v8505 = vpack.c.bf16 %v8495, %v8494
    %v8506 = vpack.c.bf16 %v8497, %v8496
    %v8507 = vpack.c.bf16 %v8499, %v8498
    %8516 = vrot.lane.b32.xlu0 %v8500, 64
    %v8517 = vpop.permute.xlu0 %8516
    %8518 = vrot.lane.b32.xlu0 %v8501, 64
    %v8519 = vpop.permute.xlu0 %8518
    %8520 = vrot.lane.b32.xlu0 %v8502, 64
    %v8521 = vpop.permute.xlu0 %8520
    %8522 = vrot.lane.b32.xlu0 %v8503, 64
    %v8523 = vpop.permute.xlu0 %8522
    %8524 = vrot.lane.b32.xlu0 %v8504, 64
    %v8525 = vpop.permute.xlu0 %8524
    %8526 = vrot.lane.b32.xlu0 %v8505, 64
    %v8527 = vpop.permute.xlu0 %8526
    %8528 = vrot.lane.b32.xlu0 %v8506, 64
    %v8529 = vpop.permute.xlu0 %8528
    %8530 = vrot.lane.b32.xlu0 %v8507, 64
    %v8531 = vpop.permute.xlu0 %8530
    %8540 = vst.msk [vmem:[#allocation2 + $0x18] sm:$0xff] %vm46, %v8517
    %8541 = vst.msk [vmem:[#allocation2 + $0x40] sm:$0xff] %vm46, %v8519
    %8542 = vst.msk [vmem:[#allocation2 + $0x68] sm:$0xff] %vm46, %v8521
    %8543 = vst.msk [vmem:[#allocation2 + $0x90] sm:$0xff] %vm46, %v8523
    %8544 = vst.msk [vmem:[#allocation2 + $0xb8] sm:$0xff] %vm46, %v8525
    %8545 = vst.msk [vmem:[#allocation2 + $0xe0] sm:$0xff] %vm46, %v8527
    %8546 = vst.msk [vmem:[#allocation2 + $0x108] sm:$0xff] %vm46, %v8529
    %8547 = vst.msk [vmem:[#allocation2 + $0x130] sm:$0xff] %vm46, %v8531
    %v8548 = vld [vmem:[%s8] sm:$0xff]
    %v8549 = vld [vmem:[%s8 + $0x8] sm:$0xff]
    %v8550 = vld [vmem:[%s8 + $0x10] sm:$0xff]
    %v8551 = vld [vmem:[%s8 + $0x18] sm:$0xff]
    %v8552 = vld [vmem:[%s8 + $0x20] sm:$0xff]
    %v8553 = vld [vmem:[%s8 + $0x28] sm:$0xff]
    %v8554 = vld [vmem:[%s8 + $0x30] sm:$0xff]
    %v8555 = vld [vmem:[%s8 + $0x38] sm:$0xff]
    %v8556 = vld [vmem:[%s8 + $0x40] sm:$0xff]
    %v8557 = vld [vmem:[%s8 + $0x48] sm:$0xff]
    %v8558 = vld [vmem:[%s8 + $0x50] sm:$0xff]
    %v8559 = vld [vmem:[%s8 + $0x58] sm:$0xff]
    %v8560 = vld [vmem:[%s8 + $0x60] sm:$0xff]
    %v8561 = vld [vmem:[%s8 + $0x68] sm:$0xff]
    %v8562 = vld [vmem:[%s8 + $0x70] sm:$0xff]
    %v8563 = vld [vmem:[%s8 + $0x78] sm:$0xff]
    %8565 = vset.pattern.permute.xlu0 8
    %8566 = vperm.xlu0 %8565, %v8548
    %v8567 = vpop.permute.xlu0 %8566
    %8570 = vset.pattern.permute.xlu0 8
    %8571 = vperm.xlu0 %8570, %v8549
    %v8572 = vpop.permute.xlu0 %8571
    %8575 = vset.pattern.permute.xlu0 8
    %8576 = vperm.xlu0 %8575, %v8550
    %v8577 = vpop.permute.xlu0 %8576
    %8580 = vset.pattern.permute.xlu0 8
    %8581 = vperm.xlu0 %8580, %v8551
    %v8582 = vpop.permute.xlu0 %8581
    %8585 = vset.pattern.permute.xlu0 8
    %8586 = vperm.xlu0 %8585, %v8552
    %v8587 = vpop.permute.xlu0 %8586
    %8590 = vset.pattern.permute.xlu0 8
    %8591 = vperm.xlu0 %8590, %v8553
    %v8592 = vpop.permute.xlu0 %8591
    %8595 = vset.pattern.permute.xlu0 8
    %8596 = vperm.xlu0 %8595, %v8554
    %v8597 = vpop.permute.xlu0 %8596
    %8600 = vset.pattern.permute.xlu0 8
    %8601 = vperm.xlu0 %8600, %v8555
    %v8602 = vpop.permute.xlu0 %8601
    %8605 = vset.pattern.permute.xlu0 8
    %8606 = vperm.xlu0 %8605, %v8556
    %v8607 = vpop.permute.xlu0 %8606
    %8610 = vset.pattern.permute.xlu0 8
    %8611 = vperm.xlu0 %8610, %v8557
    %v8612 = vpop.permute.xlu0 %8611
    %8615 = vset.pattern.permute.xlu0 8
    %8616 = vperm.xlu0 %8615, %v8558
    %v8617 = vpop.permute.xlu0 %8616
    %8620 = vset.pattern.permute.xlu0 8
    %8621 = vperm.xlu0 %8620, %v8559
    %v8622 = vpop.permute.xlu0 %8621
    %8625 = vset.pattern.permute.xlu0 8
    %8626 = vperm.xlu0 %8625, %v8560
    %v8627 = vpop.permute.xlu0 %8626
    %8630 = vset.pattern.permute.xlu0 8
    %8631 = vperm.xlu0 %8630, %v8561
    %v8632 = vpop.permute.xlu0 %8631
    %8635 = vset.pattern.permute.xlu0 8
    %8636 = vperm.xlu0 %8635, %v8562
    %v8637 = vpop.permute.xlu0 %8636
    %8640 = vset.pattern.permute.xlu0 8
    %8641 = vperm.xlu0 %8640, %v8563
    %v8642 = vpop.permute.xlu0 %8641
    %v8644 = vmul.f32 %v7641, %v8567
    %v8645 = vmul.f32 %v7643, %v8572
    %v8646 = vmul.f32 %v7645, %v8577
    %v8647 = vmul.f32 %v7647, %v8582
    %v8648 = vmul.f32 %v7649, %v8587
    %v8649 = vmul.f32 %v7651, %v8592
    %v8650 = vmul.f32 %v7653, %v8597
    %v8651 = vmul.f32 %v7655, %v8602
    %v8652 = vmul.f32 %v7657, %v8607
    %v8653 = vmul.f32 %v7659, %v8612
    %v8654 = vmul.f32 %v7661, %v8617
    %v8655 = vmul.f32 %v7663, %v8622
    %v8656 = vmul.f32 %v7665, %v8627
    %v8657 = vmul.f32 %v7666, %v8632
    %v8658 = vmul.f32 %v7683, %v8637
    %v8659 = vmul.f32 %v7639, %v8642
    %v8660 = vpack.c.bf16 %v8645, %v8644
    %v8661 = vpack.c.bf16 %v8647, %v8646
    %v8662 = vpack.c.bf16 %v8649, %v8648
    %v8663 = vpack.c.bf16 %v8651, %v8650
    %v8664 = vpack.c.bf16 %v8653, %v8652
    %v8665 = vpack.c.bf16 %v8655, %v8654
    %v8666 = vpack.c.bf16 %v8657, %v8656
    %v8667 = vpack.c.bf16 %v8659, %v8658
    %8668 = vst.msk [vmem:[#allocation2 + $0x20] sm:$0xff] %vm257, %v8660
    %8669 = vst.msk [vmem:[#allocation2 + $0x48] sm:$0xff] %vm257, %v8661
    %8670 = vst.msk [vmem:[#allocation2 + $0x70] sm:$0xff] %vm257, %v8662
    %8671 = vst.msk [vmem:[#allocation2 + $0x98] sm:$0xff] %vm257, %v8663
    %8672 = vst.msk [vmem:[#allocation2 + $0xc0] sm:$0xff] %vm257, %v8664
    %8673 = vst.msk [vmem:[#allocation2 + $0xe8] sm:$0xff] %vm257, %v8665
    %8674 = vst.msk [vmem:[#allocation2 + $0x110] sm:$0xff] %vm257, %v8666
    %8675 = vst.msk [vmem:[#allocation2 + $0x138] sm:$0xff] %vm257, %v8667
    %v8676 = vld [vmem:[#allocation2] sm:$0xff]
    %v8677 = vld [vmem:[#allocation2 + $0x8] sm:$0xff]
    %v8678 = vld [vmem:[#allocation2 + $0x10] sm:$0xff]
    %v8679 = vld [vmem:[#allocation2 + $0x18] sm:$0xff]
    %v8680 = vld [vmem:[#allocation2 + $0x20] sm:$0xff]
    %v8681 = vld [vmem:[#allocation2 + $0x28] sm:$0xff]
    %v8682 = vld [vmem:[#allocation2 + $0x30] sm:$0xff]
    %v8683 = vld [vmem:[#allocation2 + $0x38] sm:$0xff]
    %v8684 = vld [vmem:[#allocation2 + $0x40] sm:$0xff]
    %v8685 = vld [vmem:[#allocation2 + $0x48] sm:$0xff]
    %v8686 = vld [vmem:[#allocation2 + $0x50] sm:$0xff]
    %v8687 = vld [vmem:[#allocation2 + $0x58] sm:$0xff]
    %v8688 = vld [vmem:[#allocation2 + $0x60] sm:$0xff]
    %v8689 = vld [vmem:[#allocation2 + $0x68] sm:$0xff]
    %v8690 = vld [vmem:[#allocation2 + $0x70] sm:$0xff]
    %v8691 = vld [vmem:[#allocation2 + $0x78] sm:$0xff]
    %v8692 = vld [vmem:[#allocation2 + $0x80] sm:$0xff]
    %v8693 = vld [vmem:[#allocation2 + $0x88] sm:$0xff]
    %v8694 = vld [vmem:[#allocation2 + $0x90] sm:$0xff]
    %v8695 = vld [vmem:[#allocation2 + $0x98] sm:$0xff]
    %v8696 = vld [vmem:[#allocation2 + $0xa0] sm:$0xff]
    %v8697 = vld [vmem:[#allocation2 + $0xa8] sm:$0xff]
    %v8698 = vld [vmem:[#allocation2 + $0xb0] sm:$0xff]
    %v8699 = vld [vmem:[#allocation2 + $0xb8] sm:$0xff]
    %v8700 = vld [vmem:[#allocation2 + $0xc0] sm:$0xff]
    %v8701 = vld [vmem:[#allocation2 + $0xc8] sm:$0xff]
    %v8702 = vld [vmem:[#allocation2 + $0xd0] sm:$0xff]
    %v8703 = vld [vmem:[#allocation2 + $0xd8] sm:$0xff]
    %v8704 = vld [vmem:[#allocation2 + $0xe0] sm:$0xff]
    %v8705 = vld [vmem:[#allocation2 + $0xe8] sm:$0xff]
    %v8706 = vld [vmem:[#allocation2 + $0xf0] sm:$0xff]
    %v8707 = vld [vmem:[#allocation2 + $0xf8] sm:$0xff]
    %v8708 = vld [vmem:[#allocation2 + $0x100] sm:$0xff]
    %v8709 = vld [vmem:[#allocation2 + $0x108] sm:$0xff]
    %v8710 = vld [vmem:[#allocation2 + $0x110] sm:$0xff]
    %v8711 = vld [vmem:[#allocation2 + $0x118] sm:$0xff]
    %v8712 = vld [vmem:[#allocation2 + $0x120] sm:$0xff]
    %v8713 = vld [vmem:[#allocation2 + $0x128] sm:$0xff]
    %v8714 = vld [vmem:[#allocation2 + $0x130] sm:$0xff]
    %v8715 = vld [vmem:[#allocation2 + $0x138] sm:$0xff]
    %v8716 = vld [vmem:[%s2] sm:$0xf]
    %v8717 = vld [vmem:[%s2 + $0x4] sm:$0xf]
    %v8718 = vld [vmem:[%s2 + $0x8] sm:$0xf]
    %v8719 = vld [vmem:[%s2 + $0xc] sm:$0xf]
    %v8720 = vld [vmem:[%s2 + $0x10] sm:$0xf]
    %v8721 = vld [vmem:[%s2 + $0x14] sm:$0xf]
    %v8722 = vld [vmem:[%s2 + $0x18] sm:$0xf]
    %v8723 = vld [vmem:[%s2 + $0x1c] sm:$0xf]
    %v8724 = vld [vmem:[%s2 + $0x20] sm:$0xf]
    %v8725 = vld [vmem:[%s2 + $0x24] sm:$0xf]
    %v8726 = vld [vmem:[%s2 + $0x28] sm:$0xf]
    %v8727 = vld [vmem:[%s2 + $0x2c] sm:$0xf]
    %v8728 = vld [vmem:[%s2 + $0x30] sm:$0xf]
    %v8729 = vld [vmem:[%s2 + $0x34] sm:$0xf]
    %v8730 = vld [vmem:[%s2 + $0x38] sm:$0xf]
    %v8731 = vld [vmem:[%s2 + $0x3c] sm:$0xf]
    %v8732 = vld [vmem:[%s2 + $0x40] sm:$0xf]
    %v8733 = vld [vmem:[%s2 + $0x44] sm:$0xf]
    %v8734 = vld [vmem:[%s2 + $0x48] sm:$0xf]
    %v8735 = vld [vmem:[%s2 + $0x4c] sm:$0xf]
    %v8736 = vld [vmem:[%s2 + $0x50] sm:$0xf]
    %v8737 = vld [vmem:[%s2 + $0x54] sm:$0xf]
    %v8738 = vld [vmem:[%s2 + $0x58] sm:$0xf]
    %v8739 = vld [vmem:[%s2 + $0x5c] sm:$0xf]
    %v8740 = vld [vmem:[%s2 + $0x60] sm:$0xf]
    %v8741 = vld [vmem:[%s2 + $0x64] sm:$0xf]
    %v8742 = vld [vmem:[%s2 + $0x68] sm:$0xf]
    %v8743 = vld [vmem:[%s2 + $0x6c] sm:$0xf]
    %v8744 = vld [vmem:[%s2 + $0x70] sm:$0xf]
    %v8745 = vld [vmem:[%s2 + $0x74] sm:$0xf]
    %v8746 = vld [vmem:[%s2 + $0x78] sm:$0xf]
    %v8747 = vld [vmem:[%s2 + $0x7c] sm:$0xf]
    %v8748 = vld [vmem:[%s2 + $0x80] sm:$0xf]
    %v8749 = vld [vmem:[%s2 + $0x84] sm:$0xf]
    %v8750 = vld [vmem:[%s2 + $0x88] sm:$0xf]
    %v8751 = vld [vmem:[%s2 + $0x8c] sm:$0xf]
    %v8752 = vld [vmem:[%s2 + $0x90] sm:$0xf]
    %v8753 = vld [vmem:[%s2 + $0x94] sm:$0xf]
    %v8754 = vld [vmem:[%s2 + $0x98] sm:$0xf]
    %v8755 = vld [vmem:[%s2 + $0x9c] sm:$0xf]
    %v8756 = vld [vmem:[%s2 + $0xa0] sm:$0xf]
    %v8757 = vld [vmem:[%s2 + $0xa4] sm:$0xf]
    %v8758 = vld [vmem:[%s2 + $0xa8] sm:$0xf]
    %v8759 = vld [vmem:[%s2 + $0xac] sm:$0xf]
    %v8760 = vld [vmem:[%s2 + $0xb0] sm:$0xf]
    %v8761 = vld [vmem:[%s2 + $0xb4] sm:$0xf]
    %v8762 = vld [vmem:[%s2 + $0xb8] sm:$0xf]
    %v8763 = vld [vmem:[%s2 + $0xbc] sm:$0xf]
    %v8764 = vld [vmem:[%s2 + $0xc0] sm:$0xf]
    %v8765 = vld [vmem:[%s2 + $0xc4] sm:$0xf]
    %v8766 = vld [vmem:[%s2 + $0xc8] sm:$0xf]
    %v8767 = vld [vmem:[%s2 + $0xcc] sm:$0xf]
    %v8768 = vld [vmem:[%s2 + $0xd0] sm:$0xf]
    %v8769 = vld [vmem:[%s2 + $0xd4] sm:$0xf]
    %v8770 = vld [vmem:[%s2 + $0xd8] sm:$0xf]
    %v8771 = vld [vmem:[%s2 + $0xdc] sm:$0xf]
    %v8772 = vld [vmem:[%s2 + $0xe0] sm:$0xf]
    %v8773 = vld [vmem:[%s2 + $0xe4] sm:$0xf]
    %v8774 = vld [vmem:[%s2 + $0xe8] sm:$0xf]
    %v8775 = vld [vmem:[%s2 + $0xec] sm:$0xf]
    %v8776 = vld [vmem:[%s2 + $0xf0] sm:$0xf]
    %v8777 = vld [vmem:[%s2 + $0xf4] sm:$0xf]
    %v8778 = vld [vmem:[%s2 + $0xf8] sm:$0xf]
    %v8779 = vld [vmem:[%s2 + $0xfc] sm:$0xf]
    %v8780 = vld [vmem:[%s2 + $0x100] sm:$0xf]
    %v8781 = vld [vmem:[%s2 + $0x104] sm:$0xf]
    %v8782 = vld [vmem:[%s2 + $0x108] sm:$0xf]
    %v8783 = vld [vmem:[%s2 + $0x10c] sm:$0xf]
    %v8784 = vld [vmem:[%s2 + $0x110] sm:$0xf]
    %v8785 = vld [vmem:[%s2 + $0x114] sm:$0xf]
    %v8786 = vld [vmem:[%s2 + $0x118] sm:$0xf]
    %v8787 = vld [vmem:[%s2 + $0x11c] sm:$0xf]
    %v8788 = vld [vmem:[%s2 + $0x120] sm:$0xf]
    %v8789 = vld [vmem:[%s2 + $0x124] sm:$0xf]
    %v8790 = vld [vmem:[%s2 + $0x128] sm:$0xf]
    %v8791 = vld [vmem:[%s2 + $0x12c] sm:$0xf]
    %v8792 = vld [vmem:[%s2 + $0x130] sm:$0xf]
    %v8793 = vld [vmem:[%s2 + $0x134] sm:$0xf]
    %v8794 = vld [vmem:[%s2 + $0x138] sm:$0xf]
    %v8795 = vld [vmem:[%s2 + $0x13c] sm:$0xf]
    %v8876 = vunpack.c.l.b16 %v8716
    %v8877 = vunpack.c.l.b16 %v8717
    %v8878 = vunpack.c.l.b16 %v8718
    %v8879 = vunpack.c.l.b16 %v8719
    %v8880 = vunpack.c.l.b16 %v8720
    %v8881 = vunpack.c.l.b16 %v8721
    %v8882 = vunpack.c.l.b16 %v8722
    %v8883 = vunpack.c.l.b16 %v8723
    %v8884 = vunpack.c.l.b16 %v8724
    %v8885 = vunpack.c.l.b16 %v8725
    %v8886 = vunpack.c.l.b16 %v8726
    %v8887 = vunpack.c.l.b16 %v8727
    %v8888 = vunpack.c.l.b16 %v8728
    %v8889 = vunpack.c.l.b16 %v8729
    %v8890 = vunpack.c.l.b16 %v8730
    %v8891 = vunpack.c.l.b16 %v8731
    %v8892 = vunpack.c.l.b16 %v8732
    %v8893 = vunpack.c.l.b16 %v8733
    %v8894 = vunpack.c.l.b16 %v8734
    %v8895 = vunpack.c.l.b16 %v8735
    %v8896 = vunpack.c.l.b16 %v8736
    %v8897 = vunpack.c.l.b16 %v8737
    %v8898 = vunpack.c.l.b16 %v8738
    %v8899 = vunpack.c.l.b16 %v8739
    %v8900 = vunpack.c.l.b16 %v8740
    %v8901 = vunpack.c.l.b16 %v8741
    %v8902 = vunpack.c.l.b16 %v8742
    %v8903 = vunpack.c.l.b16 %v8743
    %v8904 = vunpack.c.l.b16 %v8744
    %v8905 = vunpack.c.l.b16 %v8745
    %v8906 = vunpack.c.l.b16 %v8746
    %v8907 = vunpack.c.l.b16 %v8747
    %v8908 = vunpack.c.l.b16 %v8748
    %v8909 = vunpack.c.l.b16 %v8749
    %v8910 = vunpack.c.l.b16 %v8750
    %v8911 = vunpack.c.l.b16 %v8751
    %v8912 = vunpack.c.l.b16 %v8752
    %v8913 = vunpack.c.l.b16 %v8753
    %v8914 = vunpack.c.l.b16 %v8754
    %v8915 = vunpack.c.l.b16 %v8755
    %v8916 = vunpack.c.l.b16 %v8756
    %v8917 = vunpack.c.l.b16 %v8757
    %v8918 = vunpack.c.l.b16 %v8758
    %v8919 = vunpack.c.l.b16 %v8759
    %v8920 = vunpack.c.l.b16 %v8760
    %v8921 = vunpack.c.l.b16 %v8761
    %v8922 = vunpack.c.l.b16 %v8762
    %v8923 = vunpack.c.l.b16 %v8763
    %v8924 = vunpack.c.l.b16 %v8764
    %v8925 = vunpack.c.l.b16 %v8765
    %v8926 = vunpack.c.l.b16 %v8766
    %v8927 = vunpack.c.l.b16 %v8767
    %v8928 = vunpack.c.l.b16 %v8768
    %v8929 = vunpack.c.l.b16 %v8769
    %v8930 = vunpack.c.l.b16 %v8770
    %v8931 = vunpack.c.l.b16 %v8771
    %v8932 = vunpack.c.l.b16 %v8772
    %v8933 = vunpack.c.l.b16 %v8773
    %v8934 = vunpack.c.l.b16 %v8774
    %v8935 = vunpack.c.l.b16 %v8775
    %v8936 = vunpack.c.l.b16 %v8776
    %v8937 = vunpack.c.l.b16 %v8777
    %v8938 = vunpack.c.l.b16 %v8778
    %v8939 = vunpack.c.l.b16 %v8779
    %v8940 = vunpack.c.l.b16 %v8780
    %v8941 = vunpack.c.l.b16 %v8781
    %v8942 = vunpack.c.l.b16 %v8782
    %v8943 = vunpack.c.l.b16 %v8783
    %v8944 = vunpack.c.l.b16 %v8784
    %v8945 = vunpack.c.l.b16 %v8785
    %v8946 = vunpack.c.l.b16 %v8786
    %v8947 = vunpack.c.l.b16 %v8787
    %v8948 = vunpack.c.l.b16 %v8788
    %v8949 = vunpack.c.l.b16 %v8789
    %v8950 = vunpack.c.l.b16 %v8790
    %v8951 = vunpack.c.l.b16 %v8791
    %v8952 = vunpack.c.l.b16 %v8792
    %v8953 = vunpack.c.l.b16 %v8793
    %v8954 = vunpack.c.l.b16 %v8794
    %v8955 = vunpack.c.l.b16 %v8795
    %v8956 = vpack.c.b16 %v8877, %v8876
    %v8957 = vpack.c.b16 %v8879, %v8878
    %v8958 = vpack.c.b16 %v8881, %v8880
    %v8959 = vpack.c.b16 %v8883, %v8882
    %v8960 = vpack.c.b16 %v8885, %v8884
    %v8961 = vpack.c.b16 %v8887, %v8886
    %v8962 = vpack.c.b16 %v8889, %v8888
    %v8963 = vpack.c.b16 %v8891, %v8890
    %v8964 = vpack.c.b16 %v8893, %v8892
    %v8965 = vpack.c.b16 %v8895, %v8894
    %v8966 = vpack.c.b16 %v8897, %v8896
    %v8967 = vpack.c.b16 %v8899, %v8898
    %v8968 = vpack.c.b16 %v8901, %v8900
    %v8969 = vpack.c.b16 %v8903, %v8902
    %v8970 = vpack.c.b16 %v8905, %v8904
    %v8971 = vpack.c.b16 %v8907, %v8906
    %v8972 = vpack.c.b16 %v8909, %v8908
    %v8973 = vpack.c.b16 %v8911, %v8910
    %v8974 = vpack.c.b16 %v8913, %v8912
    %v8975 = vpack.c.b16 %v8915, %v8914
    %v8976 = vpack.c.b16 %v8917, %v8916
    %v8977 = vpack.c.b16 %v8919, %v8918
    %v8978 = vpack.c.b16 %v8921, %v8920
    %v8979 = vpack.c.b16 %v8923, %v8922
    %v8980 = vpack.c.b16 %v8925, %v8924
    %v8981 = vpack.c.b16 %v8927, %v8926
    %v8982 = vpack.c.b16 %v8929, %v8928
    %v8983 = vpack.c.b16 %v8931, %v8930
    %v8984 = vpack.c.b16 %v8933, %v8932
    %v8985 = vpack.c.b16 %v8935, %v8934
    %v8986 = vpack.c.b16 %v8937, %v8936
    %v8987 = vpack.c.b16 %v8939, %v8938
    %v8988 = vpack.c.b16 %v8941, %v8940
    %v8989 = vpack.c.b16 %v8943, %v8942
    %v8990 = vpack.c.b16 %v8945, %v8944
    %v8991 = vpack.c.b16 %v8947, %v8946
    %v8992 = vpack.c.b16 %v8949, %v8948
    %v8993 = vpack.c.b16 %v8951, %v8950
    %v8994 = vpack.c.b16 %v8953, %v8952
    %v8995 = vpack.c.b16 %v8955, %v8954
    %9036 = vmatprep.subr.bf16.mxu0 0
    %9037 = vmatpush1.bf16.msra.mxu0 %v8956
    %9038 = vmatprep.subr.bf16.mxu0 0
    %9039 = vmatpush1.bf16.msra.mxu0 %v8957
    %9040 = vmatprep.subr.bf16.mxu0 0
    %9041 = vmatpush1.bf16.msra.mxu0 %v8958
    %9042 = vmatprep.subr.bf16.mxu0 0
    %9043 = vmatpush1.bf16.msra.mxu0 %v8959
    %9044 = vmatprep.subr.bf16.mxu0 0
    %9045 = vmatpush1.bf16.msra.mxu0 %v8960
    %9046 = vmatprep.subr.bf16.mxu0 0
    %9047 = vmatpush1.bf16.msra.mxu0 %v8961
    %9048 = vmatprep.subr.bf16.mxu0 0
    %9049 = vmatpush1.bf16.msra.mxu0 %v8962
    %9050 = vmatprep.subr.bf16.mxu0 0
    %9051 = vmatpush1.bf16.msra.mxu0 %v8963
    %9052 = vmatprep.subr.bf16.mxu0 0
    %9053 = vmatpush1.bf16.msra.mxu0 %v8964
    %9054 = vmatprep.subr.bf16.mxu0 0
    %9055 = vmatpush1.bf16.msra.mxu0 %v8965
    %9056 = vmatprep.subr.bf16.mxu0 0
    %9057 = vmatpush1.bf16.msra.mxu0 %v8966
    %9058 = vmatprep.subr.bf16.mxu0 0
    %9059 = vmatpush1.bf16.msra.mxu0 %v8967
    %9060 = vmatprep.subr.bf16.mxu0 0
    %9061 = vmatpush1.bf16.msra.mxu0 %v8968
    %9062 = vmatprep.subr.bf16.mxu0 0
    %9063 = vmatpush1.bf16.msra.mxu0 %v8969
    %9064 = vmatprep.subr.bf16.mxu0 0
    %9065 = vmatpush1.bf16.msra.mxu0 %v8970
    %9066 = vmatprep.subr.bf16.mxu0 0
    %9067 = vmatpush1.bf16.msra.mxu0 %v8971
    %9068 = vmatprep.mubr.bf16.mxu0 %v8677
    %9069 = vmatmul.mubr.bf16.gmra.mrb[0].mxu0 %v8676
    %v9070 = vpop.f32.mrb[0].mxu0
    %v9071 = vadd.f32 0.0, %v9070
    %v9072 = vpop.f32.mrb[0].mxu0
    %v9073 = vpop.f32.mrb[0].mxu0
    %v9074 = vadd.f32 0.0, %v9073
    %v9075 = vpop.f32.mrb[0].mxu0
    %9076 = vmatprep.mubr.bf16.mxu0 %v8682
    %9077 = vmatmul.mubr.bf16.gmra.mrb[0].mxu0 %v8681
    %v9078 = vpop.f32.mrb[0].mxu0
    %v9079 = vadd.f32 0.0, %v9078
    %v9080 = vpop.f32.mrb[0].mxu0
    %v9081 = vpop.f32.mrb[0].mxu0
    %v9082 = vadd.f32 0.0, %v9081
    %v9083 = vpop.f32.mrb[0].mxu0
    %9084 = vmatprep.mubr.bf16.mxu0 %v8687
    %9085 = vmatmul.mubr.bf16.gmra.mrb[0].mxu0 %v8686
    %v9086 = vpop.f32.mrb[0].mxu0
    %v9087 = vadd.f32 0.0, %v9086
    %v9088 = vpop.f32.mrb[0].mxu0
    %v9089 = vpop.f32.mrb[0].mxu0
    %v9090 = vadd.f32 0.0, %v9089
    %v9091 = vpop.f32.mrb[0].mxu0
    %9092 = vmatprep.mubr.bf16.mxu0 %v8692
    %9093 = vmatmul.mubr.bf16.gmra.mrb[0].mxu0 %v8691
    %v9094 = vpop.f32.mrb[0].mxu0
    %v9095 = vadd.f32 0.0, %v9094
    %v9096 = vpop.f32.mrb[0].mxu0
    %v9097 = vpop.f32.mrb[0].mxu0
    %v9098 = vadd.f32 0.0, %v9097
    %v9099 = vpop.f32.mrb[0].mxu0
    %9100 = vmatprep.mubr.bf16.mxu0 %v8697
    %9101 = vmatmul.mubr.bf16.gmra.mrb[0].mxu0 %v8696
    %v9102 = vpop.f32.mrb[0].mxu0
    %v9103 = vadd.f32 0.0, %v9102
    %v9104 = vpop.f32.mrb[0].mxu0
    %v9105 = vpop.f32.mrb[0].mxu0
    %v9106 = vadd.f32 0.0, %v9105
    %v9107 = vpop.f32.mrb[0].mxu0
    %9108 = vmatprep.mubr.bf16.mxu0 %v8702
    %9109 = vmatmul.mubr.bf16.gmra.mrb[0].mxu0 %v8701
    %v9110 = vpop.f32.mrb[0].mxu0
    %v9111 = vadd.f32 0.0, %v9110
    %v9112 = vpop.f32.mrb[0].mxu0
    %v9113 = vpop.f32.mrb[0].mxu0
    %v9114 = vadd.f32 0.0, %v9113
    %v9115 = vpop.f32.mrb[0].mxu0
    %9116 = vmatprep.mubr.bf16.mxu0 %v8707
    %9117 = vmatmul.mubr.bf16.gmra.mrb[0].mxu0 %v8706
    %v9118 = vpop.f32.mrb[0].mxu0
    %v9119 = vadd.f32 0.0, %v9118
    %v9120 = vpop.f32.mrb[0].mxu0
    %v9121 = vpop.f32.mrb[0].mxu0
    %v9122 = vadd.f32 0.0, %v9121
    %v9123 = vpop.f32.mrb[0].mxu0
    %9124 = vmatprep.mubr.bf16.mxu0 %v8712
    %9125 = vmatmul.mubr.bf16.gmra.mrb[0].mxu0 %v8711
    %v9126 = vpop.f32.mrb[0].mxu0
    %v9127 = vadd.f32 0.0, %v9126
    %v9128 = vpop.f32.mrb[0].mxu0
    %v9129 = vpop.f32.mrb[0].mxu0
    %v9130 = vadd.f32 0.0, %v9129
    %v9131 = vpop.f32.mrb[0].mxu0
    %9132 = vdwg.mxu0
    %9133 = vmatprep.subr.bf16.mxu0 0
    %9134 = vmatpush1.bf16.msra.mxu0 %v8972
    %9135 = vmatprep.subr.bf16.mxu0 0
    %9136 = vmatpush1.bf16.msra.mxu0 %v8973
    %9137 = vmatprep.subr.bf16.mxu0 0
    %9138 = vmatpush1.bf16.msra.mxu0 %v8974
    %9139 = vmatprep.subr.bf16.mxu0 0
    %9140 = vmatpush1.bf16.msra.mxu0 %v8975
    %9141 = vmatprep.subr.bf16.mxu0 0
    %9142 = vmatpush1.bf16.msra.mxu0 %v8976
    %9143 = vmatprep.subr.bf16.mxu0 0
    %9144 = vmatpush1.bf16.msra.mxu0 %v8977
    %9145 = vmatprep.subr.bf16.mxu0 0
    %9146 = vmatpush1.bf16.msra.mxu0 %v8978
    %9147 = vmatprep.subr.bf16.mxu0 0
    %9148 = vmatpush1.bf16.msra.mxu0 %v8979
    %9149 = vmatprep.subr.bf16.mxu0 0
    %9150 = vmatpush1.bf16.msra.mxu0 %v8980
    %9151 = vmatprep.subr.bf16.mxu0 0
    %9152 = vmatpush1.bf16.msra.mxu0 %v8981
    %9153 = vmatprep.subr.bf16.mxu0 0
    %9154 = vmatpush1.bf16.msra.mxu0 %v8982
    %9155 = vmatprep.subr.bf16.mxu0 0
    %9156 = vmatpush1.bf16.msra.mxu0 %v8983
    %9157 = vmatprep.subr.bf16.mxu0 0
    %9158 = vmatpush1.bf16.msra.mxu0 %v8984
    %9159 = vmatprep.subr.bf16.mxu0 0
    %9160 = vmatpush1.bf16.msra.mxu0 %v8985
    %9161 = vmatprep.subr.bf16.mxu0 0
    %9162 = vmatpush1.bf16.msra.mxu0 %v8986
    %9163 = vmatprep.subr.bf16.mxu0 0
    %9164 = vmatpush1.bf16.msra.mxu0 %v8987
    %9165 = vmatprep.mubr.bf16.mxu0 %v8679
    %9166 = vmatmul.mubr.bf16.gmra.mrb[0].mxu0 %v8678
    %v9167 = vpop.f32.mrb[0].mxu0
    %v9168 = vadd.f32 %v9071, %v9167
    %v9169 = vpop.f32.mrb[0].mxu0
    %v9170 = vpop.f32.mrb[0].mxu0
    %v9171 = vadd.f32 %v9074, %v9170
    %v9172 = vpop.f32.mrb[0].mxu0
    %9173 = vmatprep.mubr.bf16.mxu0 %v8684
    %9174 = vmatmul.mubr.bf16.gmra.mrb[0].mxu0 %v8683
    %v9175 = vpop.f32.mrb[0].mxu0
    %v9176 = vadd.f32 %v9079, %v9175
    %v9177 = vpop.f32.mrb[0].mxu0
    %v9178 = vpop.f32.mrb[0].mxu0
    %v9179 = vadd.f32 %v9082, %v9178
    %v9180 = vpop.f32.mrb[0].mxu0
    %9181 = vmatprep.mubr.bf16.mxu0 %v8689
    %9182 = vmatmul.mubr.bf16.gmra.mrb[0].mxu0 %v8688
    %v9183 = vpop.f32.mrb[0].mxu0
    %v9184 = vadd.f32 %v9087, %v9183
    %v9185 = vpop.f32.mrb[0].mxu0
    %v9186 = vpop.f32.mrb[0].mxu0
    %v9187 = vadd.f32 %v9090, %v9186
    %v9188 = vpop.f32.mrb[0].mxu0
    %9189 = vmatprep.mubr.bf16.mxu0 %v8694
    %9190 = vmatmul.mubr.bf16.gmra.mrb[0].mxu0 %v8693
    %v9191 = vpop.f32.mrb[0].mxu0
    %v9192 = vadd.f32 %v9095, %v9191
    %v9193 = vpop.f32.mrb[0].mxu0
    %v9194 = vpop.f32.mrb[0].mxu0
    %v9195 = vadd.f32 %v9098, %v9194
    %v9196 = vpop.f32.mrb[0].mxu0
    %9197 = vmatprep.mubr.bf16.mxu0 %v8699
    %9198 = vmatmul.mubr.bf16.gmra.mrb[0].mxu0 %v8698
    %v9199 = vpop.f32.mrb[0].mxu0
    %v9200 = vadd.f32 %v9103, %v9199
    %v9201 = vpop.f32.mrb[0].mxu0
    %v9202 = vpop.f32.mrb[0].mxu0
    %v9203 = vadd.f32 %v9106, %v9202
    %v9204 = vpop.f32.mrb[0].mxu0
    %9205 = vmatprep.mubr.bf16.mxu0 %v8704
    %9206 = vmatmul.mubr.bf16.gmra.mrb[0].mxu0 %v8703
    %v9207 = vpop.f32.mrb[0].mxu0
    %v9208 = vadd.f32 %v9111, %v9207
    %v9209 = vpop.f32.mrb[0].mxu0
    %v9210 = vpop.f32.mrb[0].mxu0
    %v9211 = vadd.f32 %v9114, %v9210
    %v9212 = vpop.f32.mrb[0].mxu0
    %9213 = vmatprep.mubr.bf16.mxu0 %v8709
    %9214 = vmatmul.mubr.bf16.gmra.mrb[0].mxu0 %v8708
    %v9215 = vpop.f32.mrb[0].mxu0
    %v9216 = vadd.f32 %v9119, %v9215
    %v9217 = vpop.f32.mrb[0].mxu0
    %v9218 = vpop.f32.mrb[0].mxu0
    %v9219 = vadd.f32 %v9122, %v9218
    %v9220 = vpop.f32.mrb[0].mxu0
    %9221 = vmatprep.mubr.bf16.mxu0 %v8714
    %9222 = vmatmul.mubr.bf16.gmra.mrb[0].mxu0 %v8713
    %v9223 = vpop.f32.mrb[0].mxu0
    %v9224 = vadd.f32 %v9127, %v9223
    %v9225 = vpop.f32.mrb[0].mxu0
    %v9226 = vpop.f32.mrb[0].mxu0
    %v9227 = vadd.f32 %v9130, %v9226
    %v9228 = vpop.f32.mrb[0].mxu0
    %9229 = vdwg.mxu0
    %9230 = vmatprep.subr.bf16.mxu0 0
    %9231 = vmatpush1.bf16.msra.mxu0 %v8988
    %9232 = vmatprep.subr.bf16.mxu0 0
    %9233 = vmatpush1.bf16.msra.mxu0 %v8989
    %9234 = vmatprep.subr.bf16.mxu0 0
    %9235 = vmatpush1.bf16.msra.mxu0 %v8990
    %9236 = vmatprep.subr.bf16.mxu0 0
    %9237 = vmatpush1.bf16.msra.mxu0 %v8991
    %9238 = vmatprep.subr.bf16.mxu0 0
    %9239 = vmatpush1.bf16.msra.mxu0 %v8992
    %9240 = vmatprep.subr.bf16.mxu0 0
    %9241 = vmatpush1.bf16.msra.mxu0 %v8993
    %9242 = vmatprep.subr.bf16.mxu0 0
    %9243 = vmatpush1.bf16.msra.mxu0 %v8994
    %9244 = vmatprep.subr.bf16.mxu0 0
    %9245 = vmatpush1.bf16.msra.mxu0 %v8995
    %9246 = vmatprep.subr.bf16.mxu0 0
    %9247 = vmatpush1.bf16.msra.mxu0 0
    %9248 = vmatprep.subr.bf16.mxu0 0
    %9249 = vmatpush1.bf16.msra.mxu0 0
    %9250 = vmatprep.subr.bf16.mxu0 0
    %9251 = vmatpush1.bf16.msra.mxu0 0
    %9252 = vmatprep.subr.bf16.mxu0 0
    %9253 = vmatpush1.bf16.msra.mxu0 0
    %9254 = vmatprep.subr.bf16.mxu0 0
    %9255 = vmatpush1.bf16.msra.mxu0 0
    %9256 = vmatprep.subr.bf16.mxu0 0
    %9257 = vmatpush1.bf16.msra.mxu0 0
    %9258 = vmatprep.subr.bf16.mxu0 0
    %9259 = vmatpush1.bf16.msra.mxu0 0
    %9260 = vmatprep.subr.bf16.mxu0 0
    %9261 = vmatpush1.bf16.msra.mxu0 0
    %9262 = vmatprep.mubr.bf16.mxu0 0
    %9263 = vmatmul.mubr.bf16.gmra.mrb[0].mxu0 %v8680
    %v9264 = vpop.f32.mrb[0].mxu0
    %v9265 = vadd.f32 %v9168, %v9264
    %v9266 = vpop.f32.mrb[0].mxu0
    %v9267 = vpop.f32.mrb[0].mxu0
    %v9268 = vadd.f32 %v9171, %v9267
    %v9269 = vpop.f32.mrb[0].mxu0
    %9270 = vmatprep.mubr.bf16.mxu0 0
    %9271 = vmatmul.mubr.bf16.gmra.mrb[0].mxu0 %v8685
    %v9272 = vpop.f32.mrb[0].mxu0
    %v9273 = vadd.f32 %v9176, %v9272
    %v9274 = vpop.f32.mrb[0].mxu0
    %v9275 = vpop.f32.mrb[0].mxu0
    %v9276 = vadd.f32 %v9179, %v9275
    %v9277 = vpop.f32.mrb[0].mxu0
    %9278 = vmatprep.mubr.bf16.mxu0 0
    %9279 = vmatmul.mubr.bf16.gmra.mrb[0].mxu0 %v8690
    %v9280 = vpop.f32.mrb[0].mxu0
    %v9281 = vadd.f32 %v9184, %v9280
    %v9282 = vpop.f32.mrb[0].mxu0
    %v9283 = vpop.f32.mrb[0].mxu0
    %v9284 = vadd.f32 %v9187, %v9283
    %v9285 = vpop.f32.mrb[0].mxu0
    %9286 = vmatprep.mubr.bf16.mxu0 0
    %9287 = vmatmul.mubr.bf16.gmra.mrb[0].mxu0 %v8695
    %v9288 = vpop.f32.mrb[0].mxu0
    %v9289 = vadd.f32 %v9192, %v9288
    %v9290 = vpop.f32.mrb[0].mxu0
    %v9291 = vpop.f32.mrb[0].mxu0
    %v9292 = vadd.f32 %v9195, %v9291
    %v9293 = vpop.f32.mrb[0].mxu0
    %9294 = vmatprep.mubr.bf16.mxu0 0
    %9295 = vmatmul.mubr.bf16.gmra.mrb[0].mxu0 %v8700
    %v9296 = vpop.f32.mrb[0].mxu0
    %v9297 = vadd.f32 %v9200, %v9296
    %v9298 = vpop.f32.mrb[0].mxu0
    %v9299 = vpop.f32.mrb[0].mxu0
    %v9300 = vadd.f32 %v9203, %v9299
    %v9301 = vpop.f32.mrb[0].mxu0
    %9302 = vmatprep.mubr.bf16.mxu0 0
    %9303 = vmatmul.mubr.bf16.gmra.mrb[0].mxu0 %v8705
    %v9304 = vpop.f32.mrb[0].mxu0
    %v9305 = vadd.f32 %v9208, %v9304
    %v9306 = vpop.f32.mrb[0].mxu0
    %v9307 = vpop.f32.mrb[0].mxu0
    %v9308 = vadd.f32 %v9211, %v9307
    %v9309 = vpop.f32.mrb[0].mxu0
    %9310 = vmatprep.mubr.bf16.mxu0 0
    %9311 = vmatmul.mubr.bf16.gmra.mrb[0].mxu0 %v8710
    %v9312 = vpop.f32.mrb[0].mxu0
    %v9313 = vadd.f32 %v9216, %v9312
    %v9314 = vpop.f32.mrb[0].mxu0
    %v9315 = vpop.f32.mrb[0].mxu0
    %v9316 = vadd.f32 %v9219, %v9315
    %v9317 = vpop.f32.mrb[0].mxu0
    %9318 = vmatprep.mubr.bf16.mxu0 0
    %9319 = vmatmul.mubr.bf16.gmra.mrb[0].mxu0 %v8715
    %v9320 = vpop.f32.mrb[0].mxu0
    %v9321 = vadd.f32 %v9224, %v9320
    %v9322 = vpop.f32.mrb[0].mxu0
    %v9323 = vpop.f32.mrb[0].mxu0
    %v9324 = vadd.f32 %v9227, %v9323
    %v9325 = vpop.f32.mrb[0].mxu0
    %9326 = vdwg.mxu0
    %v9327 = vsel %vm257, %v9265, 0.0
    %v9328 = vsel %vm257, %v9268, 0.0
    %v9329 = vadd.f32 %v9327, %v9328
    %v9330 = vsel %vm257, %v9273, 0.0
    %v9331 = vadd.f32 %v9329, %v9330
    %v9332 = vsel %vm257, %v9276, 0.0
    %v9333 = vadd.f32 %v9331, %v9332
    %v9334 = vsel %vm257, %v9281, 0.0
    %v9335 = vadd.f32 %v9333, %v9334
    %v9336 = vsel %vm257, %v9284, 0.0
    %v9337 = vadd.f32 %v9335, %v9336
    %v9338 = vsel %vm257, %v9289, 0.0
    %v9339 = vadd.f32 %v9337, %v9338
    %v9340 = vsel %vm257, %v9292, 0.0
    %v9341 = vadd.f32 %v9339, %v9340
    %v9342 = vrot.slane %v9341, 4
    %v9343 = vadd.f32 %v9341, %v9342
    %v9344 = vrot.slane %v9343, 2
    %v9345 = vadd.f32 %v9343, %v9344
    %v9346 = vrot.slane %v9345, 1
    %v9347 = vadd.f32 %v9345, %v9346
    %v9348 = vsel %vm257, %v9297, 0.0
    %v9349 = vsel %vm257, %v9300, 0.0
    %v9350 = vadd.f32 %v9348, %v9349
    %v9351 = vsel %vm257, %v9305, 0.0
    %v9352 = vadd.f32 %v9350, %v9351
    %v9353 = vsel %vm257, %v9308, 0.0
    %v9354 = vadd.f32 %v9352, %v9353
    %v9355 = vsel %vm257, %v9313, 0.0
    %v9356 = vadd.f32 %v9354, %v9355
    %v9357 = vsel %vm257, %v9316, 0.0
    %v9358 = vadd.f32 %v9356, %v9357
    %v9359 = vsel %vm257, %v9321, 0.0
    %v9360 = vadd.f32 %v9358, %v9359
    %v9361 = vsel %vm257, %v9324, 0.0
    %v9362 = vadd.f32 %v9360, %v9361
    %v9363 = vrot.slane %v9362, 4
    %v9364 = vadd.f32 %v9362, %v9363
    %v9365 = vrot.slane %v9364, 2
    %v9366 = vadd.f32 %v9364, %v9365
    %v9367 = vrot.slane %v9366, 1
    %v9368 = vadd.f32 %v9366, %v9367
    %v9369 = vmul.f32 %v9265, %v9265
    %v9370 = vmul.f32 %v9268, %v9268
    %v9371 = vmul.f32 %v9273, %v9273
    %v9372 = vmul.f32 %v9276, %v9276
    %v9373 = vmul.f32 %v9281, %v9281
    %v9374 = vmul.f32 %v9284, %v9284
    %v9375 = vmul.f32 %v9289, %v9289
    %v9376 = vmul.f32 %v9292, %v9292
    %v9377 = vmul.f32 %v9297, %v9297
    %v9378 = vmul.f32 %v9300, %v9300
    %v9379 = vmul.f32 %v9305, %v9305
    %v9380 = vmul.f32 %v9308, %v9308
    %v9381 = vmul.f32 %v9313, %v9313
    %v9382 = vmul.f32 %v9316, %v9316
    %v9383 = vmul.f32 %v9321, %v9321
    %v9384 = vmul.f32 %v9324, %v9324
    %v9385 = vsel %vm257, %v9369, 0.0
    %v9386 = vsel %vm257, %v9370, 0.0
    %v9387 = vadd.f32 %v9385, %v9386
    %v9388 = vsel %vm257, %v9371, 0.0
    %v9389 = vadd.f32 %v9387, %v9388
    %v9390 = vsel %vm257, %v9372, 0.0
    %v9391 = vadd.f32 %v9389, %v9390
    %v9392 = vsel %vm257, %v9373, 0.0
    %v9393 = vadd.f32 %v9391, %v9392
    %v9394 = vsel %vm257, %v9374, 0.0
    %v9395 = vadd.f32 %v9393, %v9394
    %v9396 = vsel %vm257, %v9375, 0.0
    %v9397 = vadd.f32 %v9395, %v9396
    %v9398 = vsel %vm257, %v9376, 0.0
    %v9399 = vadd.f32 %v9397, %v9398
    %v9400 = vrot.slane %v9399, 4
    %v9401 = vadd.f32 %v9399, %v9400
    %v9402 = vrot.slane %v9401, 2
    %v9403 = vadd.f32 %v9401, %v9402
    %v9404 = vrot.slane %v9403, 1
    %v9405 = vadd.f32 %v9403, %v9404
    %v9406 = vsel %vm257, %v9377, 0.0
    %v9407 = vsel %vm257, %v9378, 0.0
    %v9408 = vadd.f32 %v9406, %v9407
    %v9409 = vsel %vm257, %v9379, 0.0
    %v9410 = vadd.f32 %v9408, %v9409
    %v9411 = vsel %vm257, %v9380, 0.0
    %v9412 = vadd.f32 %v9410, %v9411
    %v9413 = vsel %vm257, %v9381, 0.0
    %v9414 = vadd.f32 %v9412, %v9413
    %v9415 = vsel %vm257, %v9382, 0.0
    %v9416 = vadd.f32 %v9414, %v9415
    %v9417 = vsel %vm257, %v9383, 0.0
    %v9418 = vadd.f32 %v9416, %v9417
    %v9419 = vsel %vm257, %v9384, 0.0
    %v9420 = vadd.f32 %v9418, %v9419
    %v9421 = vrot.slane %v9420, 4
    %v9422 = vadd.f32 %v9420, %v9421
    %v9423 = vrot.slane %v9422, 2
    %v9424 = vadd.f32 %v9422, %v9423
    %v9425 = vrot.slane %v9424, 1
    %v9426 = vadd.f32 %v9424, %v9425
    %v9429 = vsel %vm2221, %v9368, %v9347
    %v9433 = vsel %vm2226, %v9426, %v9405
    %v9435 = vsel %vm2229, %v9429, %v9433
    %v9437 = vsel %vm257, %v9435, 0
    %9439 = vmatprep.subr.mxu0 0.0
    %9440 = vmatpush1.msra.mxu0 %v34
    %9441 = vmatprep.subr.mxu0 0.0
    %9442 = vmatpush1.msra.mxu0 %v35
    %9443 = vmatprep.subr.mxu0 0.0
    %9444 = vmatpush1.msra.mxu0 %v36
    %9445 = vmatprep.subr.mxu0 0.0
    %9446 = vmatpush1.msra.mxu0 %v37
    %9447 = vmatprep.subr.mxu0 0.0
    %9448 = vmatpush1.msra.mxu0 %v38
    %9449 = vmatprep.subr.mxu0 0.0
    %9450 = vmatpush1.msra.mxu0 %v39
    %9451 = vmatprep.subr.mxu0 0.0
    %9452 = vmatpush1.msra.mxu0 %v40
    %9453 = vmatprep.subr.mxu0 0.0
    %9454 = vmatpush1.msra.mxu0 %v41
    %9455 = vmatprep.subr.mxu0 0.0
    %9456 = vmatpush1.msra.mxu0 0.0
    %9457 = vmatprep.subr.mxu0 0.0
    %9458 = vmatpush1.msra.mxu0 0.0
    %9459 = vmatprep.subr.mxu0 0.0
    %9460 = vmatpush1.msra.mxu0 0.0
    %9461 = vmatprep.subr.mxu0 0.0
    %9462 = vmatpush1.msra.mxu0 0.0
    %9463 = vmatprep.subr.mxu0 0.0
    %9464 = vmatpush1.msra.mxu0 0.0
    %9465 = vmatprep.subr.mxu0 0.0
    %9466 = vmatpush1.msra.mxu0 0.0
    %9467 = vmatprep.subr.mxu0 0.0
    %9468 = vmatpush1.msra.mxu0 0.0
    %9469 = vmatprep.subr.mxu0 0.0
    %9470 = vmatpush1.msra.mxu0 0.0
    %9471 = vmatprep.subr.mxu0 0.0
    %9472 = vmatpush1.msra.mxu0 0.0
    %9473 = vmatprep.subr.mxu0 0.0
    %9474 = vmatpush1.msra.mxu0 0.0
    %9475 = vmatprep.subr.mxu0 0.0
    %9476 = vmatpush1.msra.mxu0 0.0
    %9477 = vmatprep.subr.mxu0 0.0
    %9478 = vmatpush1.msra.mxu0 0.0
    %9479 = vmatprep.subr.mxu0 0.0
    %9480 = vmatpush1.msra.mxu0 0.0
    %9481 = vmatprep.subr.mxu0 0.0
    %9482 = vmatpush1.msra.mxu0 0.0
    %9483 = vmatprep.subr.mxu0 0.0
    %9484 = vmatpush1.msra.mxu0 0.0
    %9485 = vmatprep.subr.mxu0 0.0
    %9486 = vmatpush1.msra.mxu0 0.0
    %9487 = vmatprep.subr.mxu0 0.0
    %9488 = vmatpush1.msra.mxu0 0.0
    %9489 = vmatprep.subr.mxu0 0.0
    %9490 = vmatpush1.msra.mxu0 0.0
    %9491 = vmatprep.subr.mxu0 0.0
    %9492 = vmatpush1.msra.mxu0 0.0
    %9493 = vmatprep.subr.mxu0 0.0
    %9494 = vmatpush1.msra.mxu0 0.0
    %9495 = vmatprep.subr.mxu0 0.0
    %9496 = vmatpush1.msra.mxu0 0.0
    %9497 = vmatprep.subr.mxu0 0.0
    %9498 = vmatpush1.msra.mxu0 0.0
    %9499 = vmatprep.subr.mxu0 0.0
    %9500 = vmatpush1.msra.mxu0 0.0
    %9501 = vmatprep.subr.mxu0 0.0
    %9502 = vmatpush1.msra.mxu0 0.0
    %9503 = vmatprep.mubr.f32.mxu0 0.0
    %9504 = vmatmul.mubr.f32.gmra.mrb[0].mxu0 %v9437
    %v9505 = vpop.f32.mrb[0].mxu0
    %v9506 = vadd.f32 0.0, %v9505
    %v9507 = vpop.f32.mrb[0].mxu0
    %9508 = vdwg.mxu0
    %v9509 = vmul.f32 %v9506, %v9506
    %v9511 = vrot.slane %v9509, 6
    %v9513 = vsub.f32 %v9506, %v9511
    %v9514 = vmax.f32 %v9513, 0.0
    %v9515 = vadd.f32 %v9514, 1e-05
    %v9516 = vrsqrt.pop %v9515
    %v9519 = vunpack.c.l.s4 1966171168
    %v9520 = vunpack.c.0.s8 %v9519
    %v9521 = vlaneseq
    %v9522 = vshrl.u32 %v9521, 7
    %v9523 = vsub.s32 %v9520, %v9522
    %v9524 = vrot.slane %v9506, %v9523
    %v9525 = vcombine.high %v9524, %v9524
    %v9527 = vunpack.c.l.s4 1966171168
    %v9528 = vunpack.c.0.s8 %v9527
    %v9529 = vlaneseq
    %v9530 = vshrl.u32 %v9529, 7
    %v9531 = vsub.s32 %v9528, %v9530
    %v9532 = vrot.slane %v9524, %v9531
    %v9534 = vunpack.c.l.s4 1966171168
    %v9535 = vunpack.c.0.s8 %v9534
    %v9536 = vlaneseq
    %v9537 = vshrl.u32 %v9536, 7
    %v9538 = vsub.s32 %v9535, %v9537
    %v9539 = vrot.slane %v9525, %v9538
    %v9540 = vlaneseq
    %v9541 = vshrl.u32 %v9540, 7
    %v9542 = vsub.s32 0, %v9541
    %v9543 = vrot.slane %v9532, %v9542
    %v9544 = vlaneseq
    %v9545 = vshrl.u32 %v9544, 7
    %v9546 = vsub.s32 0, %v9545
    %v9547 = vrot.slane %v9539, %v9546
    %v9550 = vsub.f32 %v9265, %v9543
    %v9551 = vsub.f32 %v9268, %v9543
    %v9552 = vsub.f32 %v9273, %v9543
    %v9553 = vsub.f32 %v9276, %v9543
    %v9554 = vsub.f32 %v9281, %v9543
    %v9555 = vsub.f32 %v9284, %v9543
    %v9556 = vsub.f32 %v9289, %v9543
    %v9557 = vsub.f32 %v9292, %v9543
    %v9558 = vsub.f32 %v9297, %v9547
    %v9559 = vsub.f32 %v9300, %v9547
    %v9560 = vsub.f32 %v9305, %v9547
    %v9561 = vsub.f32 %v9308, %v9547
    %v9562 = vsub.f32 %v9313, %v9547
    %v9563 = vsub.f32 %v9316, %v9547
    %v9564 = vsub.f32 %v9321, %v9547
    %v9565 = vsub.f32 %v9324, %v9547
    %v9568 = vunpack.c.l.s4 1966171168
    %v9569 = vunpack.c.0.s8 %v9568
    %v9570 = vlaneseq
    %v9571 = vshrl.u32 %v9570, 7
    %v9572 = vsub.s32 %v9569, %v9571
    %v9573 = vrot.slane %v9516, %v9572
    %v9574 = vcombine.high %v9573, %v9573
    %v9576 = vunpack.c.l.s4 1966171168
    %v9577 = vunpack.c.0.s8 %v9576
    %v9578 = vlaneseq
    %v9579 = vshrl.u32 %v9578, 7
    %v9580 = vsub.s32 %v9577, %v9579
    %v9581 = vrot.slane %v9573, %v9580
    %v9583 = vunpack.c.l.s4 1966171168
    %v9584 = vunpack.c.0.s8 %v9583
    %v9585 = vlaneseq
    %v9586 = vshrl.u32 %v9585, 7
    %v9587 = vsub.s32 %v9584, %v9586
    %v9588 = vrot.slane %v9574, %v9587
    %v9589 = vcombine.high %v9581, %v9581
    %v9590 = vcombine.high %v9588, %v9588
    %v9591 = vlaneseq
    %v9592 = vshrl.u32 %v9591, 7
    %v9593 = vsub.s32 0, %v9592
    %v9594 = vrot.slane %v9589, %v9593
    %v9595 = vlaneseq
    %v9596 = vshrl.u32 %v9595, 7
    %v9597 = vsub.s32 0, %v9596
    %v9598 = vrot.slane %v9590, %v9597
    %v9601 = vmul.f32 %v9550, %v9594
    %v9602 = vmul.f32 %v9551, %v9594
    %v9603 = vmul.f32 %v9552, %v9594
    %v9604 = vmul.f32 %v9553, %v9594
    %v9605 = vmul.f32 %v9554, %v9594
    %v9606 = vmul.f32 %v9555, %v9594
    %v9607 = vmul.f32 %v9556, %v9594
    %v9608 = vmul.f32 %v9557, %v9594
    %v9609 = vmul.f32 %v9558, %v9598
    %v9610 = vmul.f32 %v9559, %v9598
    %v9611 = vmul.f32 %v9560, %v9598
    %v9612 = vmul.f32 %v9561, %v9598
    %v9613 = vmul.f32 %v9562, %v9598
    %v9614 = vmul.f32 %v9563, %v9598
    %v9615 = vmul.f32 %v9564, %v9598
    %v9616 = vmul.f32 %v9565, %v9598
    %v9617 = vmul.f32 %v9601, %v4811
    %v9618 = vmul.f32 %v9602, %v4811
    %v9619 = vmul.f32 %v9603, %v4811
    %v9620 = vmul.f32 %v9604, %v4811
    %v9621 = vmul.f32 %v9605, %v4811
    %v9622 = vmul.f32 %v9606, %v4811
    %v9623 = vmul.f32 %v9607, %v4811
    %v9624 = vmul.f32 %v9608, %v4811
    %v9625 = vmul.f32 %v9609, %v4811
    %v9626 = vmul.f32 %v9610, %v4811
    %v9627 = vmul.f32 %v9611, %v4811
    %v9628 = vmul.f32 %v9612, %v4811
    %v9629 = vmul.f32 %v9613, %v4811
    %v9630 = vmul.f32 %v9614, %v4811
    %v9631 = vmul.f32 %v9615, %v4811
    %v9632 = vmul.f32 %v9616, %v4811
    %v9633 = vadd.f32 %v9617, %v4833
    %v9634 = vadd.f32 %v9618, %v4833
    %v9635 = vadd.f32 %v9619, %v4833
    %v9636 = vadd.f32 %v9620, %v4833
    %v9637 = vadd.f32 %v9621, %v4833
    %v9638 = vadd.f32 %v9622, %v4833
    %v9639 = vadd.f32 %v9623, %v4833
    %v9640 = vadd.f32 %v9624, %v4833
    %v9641 = vadd.f32 %v9625, %v4833
    %v9642 = vadd.f32 %v9626, %v4833
    %v9643 = vadd.f32 %v9627, %v4833
    %v9644 = vadd.f32 %v9628, %v4833
    %v9645 = vadd.f32 %v9629, %v4833
    %v9646 = vadd.f32 %v9630, %v4833
    %v9647 = vadd.f32 %v9631, %v4833
    %v9648 = vadd.f32 %v9632, %v4833
    %v9649 = vmax.f32 %v9633, 0.0
    %v9650 = vmax.f32 %v9634, 0.0
    %v9651 = vmax.f32 %v9635, 0.0
    %v9652 = vmax.f32 %v9636, 0.0
    %v9653 = vmax.f32 %v9637, 0.0
    %v9654 = vmax.f32 %v9638, 0.0
    %v9655 = vmax.f32 %v9639, 0.0
    %v9656 = vmax.f32 %v9640, 0.0
    %v9657 = vmax.f32 %v9641, 0.0
    %v9658 = vmax.f32 %v9642, 0.0
    %v9659 = vmax.f32 %v9643, 0.0
    %v9660 = vmax.f32 %v9644, 0.0
    %v9661 = vmax.f32 %v9645, 0.0
    %v9662 = vmax.f32 %v9646, 0.0
    %v9663 = vmax.f32 %v9647, 0.0
    %v9664 = vmax.f32 %v9648, 0.0
    %v9665 = vmul.f32 %v9649, 0.5
    %v9666 = vmul.f32 %v9650, 0.5
    %v9667 = vmul.f32 %v9651, 0.5
    %v9668 = vmul.f32 %v9652, 0.5
    %v9669 = vmul.f32 %v9653, 0.5
    %v9670 = vmul.f32 %v9654, 0.5
    %v9671 = vmul.f32 %v9655, 0.5
    %v9672 = vmul.f32 %v9656, 0.5
    %v9673 = vmul.f32 %v9657, 0.5
    %v9674 = vmul.f32 %v9658, 0.5
    %v9675 = vmul.f32 %v9659, 0.5
    %v9676 = vmul.f32 %v9660, 0.5
    %v9677 = vmul.f32 %v9661, 0.5
    %v9678 = vmul.f32 %v9662, 0.5
    %v9679 = vmul.f32 %v9663, 0.5
    %v9680 = vmul.f32 %v9664, 0.5
    %v9681 = vadd.f32 %v4883, %v9665
    %v9682 = vadd.f32 %v4884, %v9666
    %v9683 = vadd.f32 %v4885, %v9667
    %v9684 = vadd.f32 %v4886, %v9668
    %v9685 = vadd.f32 %v4887, %v9669
    %v9686 = vadd.f32 %v4888, %v9670
    %v9687 = vadd.f32 %v4889, %v9671
    %v9688 = vadd.f32 %v4890, %v9672
    %v9689 = vadd.f32 %v4891, %v9673
    %v9690 = vadd.f32 %v4892, %v9674
    %v9691 = vadd.f32 %v4893, %v9675
    %v9692 = vadd.f32 %v4894, %v9676
    %v9693 = vadd.f32 %v4895, %v9677
    %v9694 = vadd.f32 %v4896, %v9678
    %v9695 = vadd.f32 %v4897, %v9679
    %v9696 = vadd.f32 %v4898, %v9680
    %9697 = vst.msk [vmem:[#allocation3] sm:$0xff] %vm257, %v9681
    %9698 = vst.msk [vmem:[#allocation3 + $0x8] sm:$0xff] %vm257, %v9682
    %9699 = vst.msk [vmem:[#allocation3 + $0x10] sm:$0xff] %vm257, %v9683
    %9700 = vst.msk [vmem:[#allocation3 + $0x18] sm:$0xff] %vm257, %v9684
    %9701 = vst.msk [vmem:[#allocation3 + $0x20] sm:$0xff] %vm257, %v9685
    %9702 = vst.msk [vmem:[#allocation3 + $0x28] sm:$0xff] %vm257, %v9686
    %9703 = vst.msk [vmem:[#allocation3 + $0x30] sm:$0xff] %vm257, %v9687
    %9704 = vst.msk [vmem:[#allocation3 + $0x38] sm:$0xff] %vm257, %v9688
    %9705 = vst.msk [vmem:[#allocation3 + $0x40] sm:$0xff] %vm257, %v9689
    %9706 = vst.msk [vmem:[#allocation3 + $0x48] sm:$0xff] %vm257, %v9690
    %9707 = vst.msk [vmem:[#allocation3 + $0x50] sm:$0xff] %vm257, %v9691
    %9708 = vst.msk [vmem:[#allocation3 + $0x58] sm:$0xff] %vm257, %v9692
    %9709 = vst.msk [vmem:[#allocation3 + $0x60] sm:$0xff] %vm257, %v9693
    %9710 = vst.msk [vmem:[#allocation3 + $0x68] sm:$0xff] %vm257, %v9694
    %9711 = vst.msk [vmem:[#allocation3 + $0x70] sm:$0xff] %vm257, %v9695
    %9712 = vst.msk [vmem:[#allocation3 + $0x78] sm:$0xff] %vm257, %v9696
    // Predicated region
    $region38: #{_lambda_.1} parent=1 // pred_check
      _
    $region39: #{_lambda_.1} parent=1 // pred_check_branch
      %9714 = sbr.rel (0) target = $region41
    $region40: #{_lambda_.1} parent=1 // pred_region
      %s9716 = ssub.s32 2048, 2048
      %9717 = vsyncadd [#allocation4], %s9716
      %s9718 = sshll.u32 [#allocation3], 4
      %s9719 = int_to_ptr.vmem [resolvable:$true] %s9718
      %9724 = dma.vmem_to_hbm [thread:$0]  %s9719, 2048, %s9, [#allocation4], 128, 128, 8
    $region41: #{_lambda_.1} parent=1 // pred_fallthru
      _
    // Predicated region
    $region42: #{_lambda_.1} parent=1 // pred_check
      _
    $region43: #{_lambda_.1} parent=1 // pred_check_branch
      %9726 = sbr.rel (0) target = $region45
    $region44: #{_lambda_.1} parent=1 // pred_region
      %9727 = dma.done [#allocation4], 2048
    $region45: #{_lambda_.1} parent=1 // pred_fallthru
      _
    %9728 = vsyncpa [#allocation4], 1

</llo_original>
